<compile_context>
chip_gen: v7x
topology: tpu7x:2x2x1
jax: 0.10.0
libtpu: 0.0.40
codegen_flags: <defaults>
</compile_context>

<pallas_src>
import functools

import jax
import jax.numpy as jnp
import numpy as np
from jax.experimental import pallas as pl
from jax.experimental.pallas import tpu as pltpu


# ----------------------------------------------------------------------------
# Fused forward kernel (one batch tile of `tb` samples per grid step).
#
# Activation row layout: rows = (spatial_row, sample_in_tile);
# conv output lanes = parity(ox)*256 + (ox//2)*Cout + channel.
# ----------------------------------------------------------------------------
def _convnn_kernel(x_ref, c1w_ref, c1b_ref, c2w_ref, c2b_ref,
                   f1w_ref, f1b_ref, f2w_ref, f2b_ref, f3w_ref, f3b_ref,
                   out_ref, z1_ref, a2_ref, z2_ref, a3_ref, *, tb):
    f32, bf16 = jnp.float32, jnp.bfloat16

    # --- conv1 (5x5, 1->16, pad=2): ONE K=160 MXU dot (ky windows were
    #     pre-concatenated along lanes in the wrapper) + bias + ReLU. ---------
    z1 = jnp.dot(x_ref[...], c1w_ref[...], preferred_element_type=f32)  # (28*tb,512)
    z1_ref[...] = jnp.maximum(z1 + c1b_ref[...], 0.0).astype(bf16)

    # --- maxpool 2x2 #1, written DIRECTLY into conv2's split-K lhs layout:
    #     a2[oy2*tb:(oy2+1)*tb, ky*256:(ky+1)*256] = pooled_row(oy2 + ky).
    #     (row-pair max over H, then max of the two 256-lane parity halves) ---
    for i in range(14):
        hm = jnp.maximum(z1_ref[(2 * i) * tb:(2 * i + 1) * tb, :],
                         z1_ref[(2 * i + 1) * tb:(2 * i + 2) * tb, :])  # (tb,512)
        pooled = jnp.maximum(hm[:, 0:256], hm[:, 256:512])              # (tb,256)
        for ky in range(5):
            oy2 = i - ky
            if 0 <= oy2 <= 9:
                a2_ref[oy2 * tb:(oy2 + 1) * tb, ky * 256:(ky + 1) * 256] = pooled

    # --- conv2 (5x5, 16->32): ONE K=1280 dot + bias + ReLU -------------------
    z2 = jnp.dot(a2_ref[...], c2w_ref[...], preferred_element_type=f32)  # (10*tb,512)
    z2_ref[...] = jnp.maximum(z2 + c2b_ref[...], 0.0).astype(bf16)

    # --- maxpool 2x2 #2, written directly into fc1's (tb, 1280) lhs layout ---
    for r in range(5):
        hm = jnp.maximum(z2_ref[(2 * r) * tb:(2 * r + 1) * tb, :],
                         z2_ref[(2 * r + 1) * tb:(2 * r + 2) * tb, :])   # (tb,512)
        a3_ref[:, r * 256:(r + 1) * 256] = jnp.maximum(hm[:, 0:256], hm[:, 256:512])

    # --- fc1 (800->128) + ReLU: ONE K=1280 dot -------------------------------
    h = jnp.dot(a3_ref[...], f1w_ref[...], preferred_element_type=f32)   # (tb,128)
    h = jnp.maximum(h + f1b_ref[...], 0.0)

    # --- fc2 (128->64, zero-padded to 128 output lanes) + ReLU ---------------
    h = jnp.dot(h.astype(bf16), f2w_ref[...], preferred_element_type=f32)
    h = jnp.maximum(h + f2b_ref[...], 0.0)                               # (tb,128)

    # --- fc3 (64->10, zero-padded to 128 output lanes) -----------------------
    out_ref[...] = (jnp.dot(h.astype(bf16), f3w_ref[...],
                            preferred_element_type=f32) + f3b_ref[...])


# ----------------------------------------------------------------------------
# One-time, host-side weight packing (hoisted out of the forward).
# ----------------------------------------------------------------------------
def prepare_params(params, dtype=jnp.bfloat16):
    w1 = np.asarray(params["conv1_w"], np.float32)    # (16, 1, 5, 5)
    b1 = np.asarray(params["conv1_b"], np.float32)
    w2 = np.asarray(params["conv2_w"], np.float32)    # (32, 16, 5, 5)
    b2 = np.asarray(params["conv2_b"], np.float32)
    f1 = np.asarray(params["fc1_w"], np.float32)      # (128, 800)  torch (out, in)
    fb1 = np.asarray(params["fc1_b"], np.float32)
    f2 = np.asarray(params["fc2_w"], np.float32)      # (64, 128)
    fb2 = np.asarray(params["fc2_b"], np.float32)
    f3 = np.asarray(params["fc3_w"], np.float32)      # (10, 64)
    fb3 = np.asarray(params["fc3_b"], np.float32)

    # Output-lane bases with even/odd output-column parity split (free pools).
    def lane1(ox):          # conv1 output column ox in 0..27, 16 channels
        return (ox % 2) * 256 + (ox // 2) * 16

    def lane2(ox):          # conv2 output column ox in 0..9, 32 channels
        return (ox % 2) * 256 + (ox // 2) * 32

    # conv1 Toeplitz, flattened split-K: K = ky*32 + padded_input_col.
    c1w = np.zeros((5, 32, 512), np.float32)
    for ky in range(5):
        for ox in range(28):
            for kx in range(5):
                c1w[ky, ox + kx, lane1(ox):lane1(ox) + 16] = w1[:, 0, ky, kx]
    c1w = c1w.reshape(160, 512)
    c1b = np.zeros((1, 512), np.float32)
    for ox in range(28):
        c1b[0, lane1(ox):lane1(ox) + 16] = b1

    # conv2 Toeplitz, flattened split-K: K = ky*256 + px*16 + cin,
    # px = pooled input column 0..13 (lane blocks 224..255 stay zero).
    c2w = np.zeros((5, 256, 512), np.float32)
    for ky in range(5):
        for ox in range(10):
            for kx in range(5):
                px = ox + kx
                c2w[ky, px * 16:px * 16 + 16,
                    lane2(ox):lane2(ox) + 32] = w2[:, :, ky, kx].T
    c2w = c2w.reshape(1280, 512)
    c2b = np.zeros((1, 512), np.float32)
    for ox in range(10):
        c2b[0, lane2(ox):lane2(ox) + 32] = b2

    # fc1, flattened: K = py2*256 + px2*32 + c; torch flatten index of
    # (N, 32, 5, 5) is c*25 + py2*5 + px2.
    f1r = f1.reshape(128, 32, 5, 5)
    f1w = np.zeros((5, 256, 128), np.float32)
    for py2 in range(5):
        for px2 in range(5):
            f1w[py2, px2 * 32:px2 * 32 + 32, :] = f1r[:, :, py2, px2].T
    f1w = f1w.reshape(1280, 128)
    f1b = fb1.reshape(1, 128)

    # fc2 / fc3, zero-padded to lane-dense 128-wide slabs.
    f2w = np.zeros((128, 128), np.float32); f2w[:, :64] = f2.T
    f2b = np.zeros((1, 128), np.float32);   f2b[0, :64] = fb2
    f3w = np.zeros((128, 128), np.float32); f3w[:64, :10] = f3.T
    f3b = np.zeros((1, 128), np.float32);   f3b[0, :10] = fb3

    w = lambda a: jnp.asarray(a, dtype)        # bf16 matmul operands
    b = lambda a: jnp.asarray(a, jnp.float32)  # f32 biases (post-accumulate)
    return dict(c1w=w(c1w), c1b=b(c1b), c2w=w(c2w), c2b=b(c2b),
                f1w=w(f1w), f1b=b(f1b), f2w=w(f2w), f2b=b(f2b),
                f3w=w(f3w), f3b=b(f3b))


# ----------------------------------------------------------------------------
# Forward wrapper: one fused pallas_call, batch-tiled, parallel grid axis.
# ----------------------------------------------------------------------------
def convnn_forward(x, kparams, *, tile_b=128):
    assert tile_b % 16 == 0 and tile_b > 0     # bf16 sublane tile = 16 rows
    x = x.reshape(-1, 1, 28, 28).astype(jnp.float32)   # matches x.view(-1,1,28,28)
    n = x.shape[0]

    # Shrink the tile for small batches so the ("parallel",) grid keeps >= 2
    # steps when it can (v7x shards the parallel axis over its 2 TensorCores),
    # while preserving the 16-row bf16 alignment of all in-kernel slices.
    half = -(-n // 2)                  # ceil(n / 2)
    half16 = -(-half // 16) * 16       # rounded up to the bf16 row tile
    tb = max(16, min(tile_b, half16))
    nt = -(-n // tb)
    npad = nt * tb

    # Pre-pack the conv1 lhs: zero-pad (padding=2), gather the 5 ky-shifted row
    # windows and concatenate them along lanes (K = 5*32 = 160), lay rows out
    # as (spatial_row, sample_in_tile), cast to bf16.  This single XLA pass
    # replaces the old pad+transpose pass and makes conv1 one clean MXU dot.
    xp = jnp.pad(x[:, 0], ((0, npad - n), (2, 2), (2, 2)))      # (npad, 32, 32)
    win = jnp.arange(28)[:, None] + jnp.arange(5)[None, :]      # (28, 5)
    xw = xp[:, win, :].reshape(npad, 28, 160)                   # lane = ky*32 + col
    xr = (xw.reshape(nt, tb, 28, 160)
            .transpose(0, 2, 1, 3)                              # rows = (oy, sample)
            .reshape(nt * 28 * tb, 160)
            .astype(jnp.bfloat16))

    weight_bytes = sum(int(np.prod(v.shape)) * v.dtype.itemsize
                       for v in kparams.values())
    cost = pl.CostEstimate(
        flops=2 * npad * (313_600 + 1_280_000 + 102_400 + 8_192 + 640),
        transcendentals=0,
        bytes_accessed=int(xr.size) * 2 + weight_bytes + npad * 128 * 4)

    kernel = functools.partial(_convnn_kernel, tb=tb)
    out = pl.pallas_call(
        kernel,
        grid=(nt,),
        in_specs=[
            pl.BlockSpec((28 * tb, 160), lambda i: (i, 0)),   # pre-packed input
            pl.BlockSpec((160, 512), lambda i: (0, 0)),       # conv1 Toeplitz (K=160)
            pl.BlockSpec((1, 512), lambda i: (0, 0)),
            pl.BlockSpec((1280, 512), lambda i: (0, 0)),      # conv2 Toeplitz (K=1280)
            pl.BlockSpec((1, 512), lambda i: (0, 0)),
            pl.BlockSpec((1280, 128), lambda i: (0, 0)),      # fc1 (permuted, K=1280)
            pl.BlockSpec((1, 128), lambda i: (0, 0)),
            pl.BlockSpec((128, 128), lambda i: (0, 0)),       # fc2 (padded)
            pl.BlockSpec((1, 128), lambda i: (0, 0)),
            pl.BlockSpec((128, 128), lambda i: (0, 0)),       # fc3 (padded)
            pl.BlockSpec((1, 128), lambda i: (0, 0)),
        ],
        out_specs=pl.BlockSpec((tb, 128), lambda i: (i, 0)),  # lane-dense logits slab
        out_shape=jax.ShapeDtypeStruct((npad, 128), jnp.float32),
        scratch_shapes=[
            pltpu.VMEM((28 * tb, 512), jnp.bfloat16),    # conv1 output (relu'd)
            pltpu.VMEM((10 * tb, 1280), jnp.bfloat16),   # pool1 -> conv2 split-K lhs
            pltpu.VMEM((10 * tb, 512), jnp.bfloat16),    # conv2 output (relu'd)
            pltpu.VMEM((tb, 1280), jnp.bfloat16),        # pool2 -> fc1 split-K lhs
        ],
        compiler_params=pltpu.CompilerParams(
            dimension_semantics=("parallel",),
            vmem_limit_bytes=48 * 1024 * 1024,
        ),
        cost_estimate=cost,
    )(xr, kparams["c1w"], kparams["c1b"], kparams["c2w"], kparams["c2b"],
      kparams["f1w"], kparams["f1b"], kparams["f2w"], kparams["f2b"],
      kparams["f3w"], kparams["f3b"])

    return out[:n, :10]


# ----------------------------------------------------------------------------
# Pure-JAX reference (f32) and parameter init, for a self-contained sanity run.
# ----------------------------------------------------------------------------
def reference_forward(x, params):
    x = x.reshape(-1, 1, 28, 28).astype(jnp.float32)

    def conv(x, w, b, pad):
        y = jax.lax.conv_general_dilated(
            x, w, (1, 1), [(pad, pad), (pad, pad)],
            dimension_numbers=("NCHW", "OIHW", "NCHW"))
        return y + b.reshape(1, -1, 1, 1)

    def pool(x):
        return jax.lax.reduce_window(
            x, -jnp.inf, jax.lax.max, (1, 1, 2, 2), (1, 1, 2, 2), "VALID")

    x = jax.nn.relu(conv(x, params["conv1_w"], params["conv1_b"], 2))
    x = pool(x)
    x = jax.nn.relu(conv(x, params["conv2_w"], params["conv2_b"], 0))
    x = pool(x)
    x = x.reshape(x.shape[0], -1)
    x = jax.nn.relu(x @ params["fc1_w"].T + params["fc1_b"])
    x = jax.nn.relu(x @ params["fc2_w"].T + params["fc2_b"])
    return x @ params["fc3_w"].T + params["fc3_b"]


def init_params(key):
    ks = jax.random.split(key, 10)
    f32 = jnp.float32
    return {
        "conv1_w": 0.10 * jax.random.normal(ks[0], (16, 1, 5, 5), f32),
        "conv1_b": 0.05 * jax.random.normal(ks[1], (16,), f32),
        "conv2_w": 0.05 * jax.random.normal(ks[2], (32, 16, 5, 5), f32),
        "conv2_b": 0.05 * jax.random.normal(ks[3], (32,), f32),
        "fc1_w": 0.05 * jax.random.normal(ks[4], (128, 800), f32),  # torch (out,in)
        "fc1_b": 0.05 * jax.random.normal(ks[5], (128,), f32),
        "fc2_w": 0.05 * jax.random.normal(ks[6], (64, 128), f32),
        "fc2_b": 0.05 * jax.random.normal(ks[7], (64,), f32),
        "fc3_w": 0.05 * jax.random.normal(ks[8], (10, 64), f32),
        "fc3_b": 0.05 * jax.random.normal(ks[9], (10,), f32),
    }


if __name__ == "__main__":
    root = jax.random.PRNGKey(0)
    pkey, xkey = jax.random.split(root)
    params = init_params(pkey)

    # Kernel-ready (Toeplitz-packed, lane-padded, bf16) weights — built once.
    kparams = prepare_params(params)

    # Small batch of MNIST-shaped inputs (the forward hard-codes 1x28x28).
    x = jax.random.normal(xkey, (2, 1, 28, 28), jnp.float32)

    out = jax.block_until_ready(convnn_forward(x, kparams))
    assert out.shape == (2, 10), out.shape

    ref = jax.block_until_ready(reference_forward(x, params))
    # bf16 MXU operands + bf16 activation scratch vs. pure-f32 reference.
    np.testing.assert_allclose(np.asarray(out), np.asarray(ref),
                               rtol=4e-2, atol=4e-2)

    print("KERNEL_OK")
</pallas_src>

<mosaic_0001>
module attributes {stable_mosaic.version = 11 : i64} {
  func.func @_convnn_kernel(%arg0: i32, %arg1: memref<448x160xbf16, #tpu.memory_space<vmem>>, %arg2: memref<160x512xbf16, #tpu.memory_space<vmem>>, %arg3: memref<1x512xf32, #tpu.memory_space<vmem>>, %arg4: memref<1280x512xbf16, #tpu.memory_space<vmem>>, %arg5: memref<1x512xf32, #tpu.memory_space<vmem>>, %arg6: memref<1280x128xbf16, #tpu.memory_space<vmem>>, %arg7: memref<1x128xf32, #tpu.memory_space<vmem>>, %arg8: memref<128x128xbf16, #tpu.memory_space<vmem>>, %arg9: memref<1x128xf32, #tpu.memory_space<vmem>>, %arg10: memref<128x128xbf16, #tpu.memory_space<vmem>>, %arg11: memref<1x128xf32, #tpu.memory_space<vmem>>, %arg12: memref<16x128xf32, #tpu.memory_space<vmem>>, %arg13: memref<448x512xbf16, #tpu.memory_space<vmem>>, %arg14: memref<160x1280xbf16, #tpu.memory_space<vmem>>, %arg15: memref<160x512xbf16, #tpu.memory_space<vmem>>, %arg16: memref<16x1280xbf16, #tpu.memory_space<vmem>>) attributes {dimension_semantics = [#tpu.dimension_semantics<parallel>], iteration_bounds = array<i64: 1>, scalar_prefetch = 0 : i64, scratch_operands = 4 : i64, tpu.core_type = #tpu.core_type<tc>, window_params = [{transform_indices = @transform_0, window_bounds = array<i64: 448, 160>}, {pipeline_mode = #tpu.pipeline_mode<synchronous>, transform_indices = @transform_1, window_bounds = array<i64: 160, 512>}, {pipeline_mode = #tpu.pipeline_mode<synchronous>, transform_indices = @transform_2, window_bounds = array<i64: 1, 512>}, {pipeline_mode = #tpu.pipeline_mode<synchronous>, transform_indices = @transform_3, window_bounds = array<i64: 1280, 512>}, {pipeline_mode = #tpu.pipeline_mode<synchronous>, transform_indices = @transform_4, window_bounds = array<i64: 1, 512>}, {pipeline_mode = #tpu.pipeline_mode<synchronous>, transform_indices = @transform_5, window_bounds = array<i64: 1280, 128>}, {pipeline_mode = #tpu.pipeline_mode<synchronous>, transform_indices = @transform_6, window_bounds = array<i64: 1, 128>}, {pipeline_mode = #tpu.pipeline_mode<synchronous>, transform_indices = @transform_7, window_bounds = array<i64: 128, 128>}, {pipeline_mode = #tpu.pipeline_mode<synchronous>, transform_indices = @transform_8, window_bounds = array<i64: 1, 128>}, {pipeline_mode = #tpu.pipeline_mode<synchronous>, transform_indices = @transform_9, window_bounds = array<i64: 128, 128>}, {pipeline_mode = #tpu.pipeline_mode<synchronous>, transform_indices = @transform_10, window_bounds = array<i64: 1, 128>}, {transform_indices = @transform_11, window_bounds = array<i64: 16, 128>}]} {
    %c0 = arith.constant 0 : index
    %c0_0 = arith.constant 0 : index
    %0 = vector.load %arg1[%c0, %c0_0] : memref<448x160xbf16, #tpu.memory_space<vmem>>, vector<448x160xbf16>
    %c0_1 = arith.constant 0 : index
    %c0_2 = arith.constant 0 : index
    %1 = vector.load %arg2[%c0_1, %c0_2] : memref<160x512xbf16, #tpu.memory_space<vmem>>, vector<160x512xbf16>
    %cst = arith.constant dense<0.000000e+00> : vector<448x512xf32>
    %2 = tpu.matmul %0, %1, %cst {dimension_numbers = #tpu.dot_dimension_numbers<[1], [0], [0], [1], [0, 0, 1, 1], [], []>} : vector<448x160xbf16>, vector<160x512xbf16>, vector<448x512xf32> -> vector<448x512xf32>
    %c0_3 = arith.constant 0 : index
    %c0_4 = arith.constant 0 : index
    %3 = vector.load %arg3[%c0_3, %c0_4] : memref<1x512xf32, #tpu.memory_space<vmem>>, vector<1x512xf32>
    %4 = vector.broadcast %3 : vector<1x512xf32> to vector<448x512xf32>
    %5 = arith.addf %2, %4 : vector<448x512xf32>
    %cst_5 = arith.constant 0.000000e+00 : f32
    %6 = vector.broadcast %cst_5 : f32 to vector<448x512xf32>
    %7 = arith.maximumf %5, %6 : vector<448x512xf32>
    %8 = arith.truncf %7 : vector<448x512xf32> to vector<448x512xbf16>
    %c0_6 = arith.constant 0 : index
    %c0_7 = arith.constant 0 : index
    %9 = vector.load %arg13[%c0_6, %c0_7] : memref<448x512xbf16, #tpu.memory_space<vmem>>, vector<448x512xbf16>
    tpu.vector_store %arg13[%c0_6, %c0_7], %8 {strides = array<i32>} : memref<448x512xbf16, #tpu.memory_space<vmem>>, vector<448x512xbf16>,
    %c0_8 = arith.constant 0 : index
    %c0_9 = arith.constant 0 : index
    %10 = vector.load %arg13[%c0_8, %c0_9] : memref<448x512xbf16, #tpu.memory_space<vmem>>, vector<16x512xbf16>
    %c16 = arith.constant 16 : index
    %c0_10 = arith.constant 0 : index
    %11 = vector.load %arg13[%c16, %c0_10] : memref<448x512xbf16, #tpu.memory_space<vmem>>, vector<16x512xbf16>
    %12 = arith.maximumf %10, %11 : vector<16x512xbf16>
    %13 = vector.extract_strided_slice %12 {offsets = [0, 0], sizes = [16, 256], strides = [1, 1]} : vector<16x512xbf16> to vector<16x256xbf16>
    %14 = vector.extract_strided_slice %12 {offsets = [0, 256], sizes = [16, 256], strides = [1, 1]} : vector<16x512xbf16> to vector<16x256xbf16>
    %15 = arith.maximumf %13, %14 : vector<16x256xbf16>
    %c0_11 = arith.constant 0 : index
    %c0_12 = arith.constant 0 : index
    %16 = vector.load %arg14[%c0_11, %c0_12] : memref<160x1280xbf16, #tpu.memory_space<vmem>>, vector<16x256xbf16>
    tpu.vector_store %arg14[%c0_11, %c0_12], %15 {strides = array<i32>} : memref<160x1280xbf16, #tpu.memory_space<vmem>>, vector<16x256xbf16>,
    %c32 = arith.constant 32 : index
    %c0_13 = arith.constant 0 : index
    %17 = vector.load %arg13[%c32, %c0_13] : memref<448x512xbf16, #tpu.memory_space<vmem>>, vector<16x512xbf16>
    %c48 = arith.constant 48 : index
    %c0_14 = arith.constant 0 : index
    %18 = vector.load %arg13[%c48, %c0_14] : memref<448x512xbf16, #tpu.memory_space<vmem>>, vector<16x512xbf16>
    %19 = arith.maximumf %17, %18 : vector<16x512xbf16>
    %20 = vector.extract_strided_slice %19 {offsets = [0, 0], sizes = [16, 256], strides = [1, 1]} : vector<16x512xbf16> to vector<16x256xbf16>
    %21 = vector.extract_strided_slice %19 {offsets = [0, 256], sizes = [16, 256], strides = [1, 1]} : vector<16x512xbf16> to vector<16x256xbf16>
    %22 = arith.maximumf %20, %21 : vector<16x256xbf16>
    %c16_15 = arith.constant 16 : index
    %c0_16 = arith.constant 0 : index
    %23 = vector.load %arg14[%c16_15, %c0_16] : memref<160x1280xbf16, #tpu.memory_space<vmem>>, vector<16x256xbf16>
    tpu.vector_store %arg14[%c16_15, %c0_16], %22 {strides = array<i32>} : memref<160x1280xbf16, #tpu.memory_space<vmem>>, vector<16x256xbf16>,
    %c0_17 = arith.constant 0 : index
    %c256 = arith.constant 256 : index
    %24 = vector.load %arg14[%c0_17, %c256] : memref<160x1280xbf16, #tpu.memory_space<vmem>>, vector<16x256xbf16>
    tpu.vector_store %arg14[%c0_17, %c256], %22 {strides = array<i32>} : memref<160x1280xbf16, #tpu.memory_space<vmem>>, vector<16x256xbf16>,
    %c64 = arith.constant 64 : index
    %c0_18 = arith.constant 0 : index
    %25 = vector.load %arg13[%c64, %c0_18] : memref<448x512xbf16, #tpu.memory_space<vmem>>, vector<16x512xbf16>
    %c80 = arith.constant 80 : index
    %c0_19 = arith.constant 0 : index
    %26 = vector.load %arg13[%c80, %c0_19] : memref<448x512xbf16, #tpu.memory_space<vmem>>, vector<16x512xbf16>
    %27 = arith.maximumf %25, %26 : vector<16x512xbf16>
    %28 = vector.extract_strided_slice %27 {offsets = [0, 0], sizes = [16, 256], strides = [1, 1]} : vector<16x512xbf16> to vector<16x256xbf16>
    %29 = vector.extract_strided_slice %27 {offsets = [0, 256], sizes = [16, 256], strides = [1, 1]} : vector<16x512xbf16> to vector<16x256xbf16>
    %30 = arith.maximumf %28, %29 : vector<16x256xbf16>
    %c32_20 = arith.constant 32 : index
    %c0_21 = arith.constant 0 : index
    %31 = vector.load %arg14[%c32_20, %c0_21] : memref<160x1280xbf16, #tpu.memory_space<vmem>>, vector<16x256xbf16>
    tpu.vector_store %arg14[%c32_20, %c0_21], %30 {strides = array<i32>} : memref<160x1280xbf16, #tpu.memory_space<vmem>>, vector<16x256xbf16>,
    %c16_22 = arith.constant 16 : index
    %c256_23 = arith.constant 256 : index
    %32 = vector.load %arg14[%c16_22, %c256_23] : memref<160x1280xbf16, #tpu.memory_space<vmem>>, vector<16x256xbf16>
    tpu.vector_store %arg14[%c16_22, %c256_23], %30 {strides = array<i32>} : memref<160x1280xbf16, #tpu.memory_space<vmem>>, vector<16x256xbf16>,
    %c0_24 = arith.constant 0 : index
    %c512 = arith.constant 512 : index
    %33 = vector.load %arg14[%c0_24, %c512] : memref<160x1280xbf16, #tpu.memory_space<vmem>>, vector<16x256xbf16>
    tpu.vector_store %arg14[%c0_24, %c512], %30 {strides = array<i32>} : memref<160x1280xbf16, #tpu.memory_space<vmem>>, vector<16x256xbf16>,
    %c96 = arith.constant 96 : index
    %c0_25 = arith.constant 0 : index
    %34 = vector.load %arg13[%c96, %c0_25] : memref<448x512xbf16, #tpu.memory_space<vmem>>, vector<16x512xbf16>
    %c112 = arith.constant 112 : index
    %c0_26 = arith.constant 0 : index
    %35 = vector.load %arg13[%c112, %c0_26] : memref<448x512xbf16, #tpu.memory_space<vmem>>, vector<16x512xbf16>
    %36 = arith.maximumf %34, %35 : vector<16x512xbf16>
    %37 = vector.extract_strided_slice %36 {offsets = [0, 0], sizes = [16, 256], strides = [1, 1]} : vector<16x512xbf16> to vector<16x256xbf16>
    %38 = vector.extract_strided_slice %36 {offsets = [0, 256], sizes = [16, 256], strides = [1, 1]} : vector<16x512xbf16> to vector<16x256xbf16>
    %39 = arith.maximumf %37, %38 : vector<16x256xbf16>
    %c48_27 = arith.constant 48 : index
    %c0_28 = arith.constant 0 : index
    %40 = vector.load %arg14[%c48_27, %c0_28] : memref<160x1280xbf16, #tpu.memory_space<vmem>>, vector<16x256xbf16>
    tpu.vector_store %arg14[%c48_27, %c0_28], %39 {strides = array<i32>} : memref<160x1280xbf16, #tpu.memory_space<vmem>>, vector<16x256xbf16>,
    %c32_29 = arith.constant 32 : index
    %c256_30 = arith.constant 256 : index
    %41 = vector.load %arg14[%c32_29, %c256_30] : memref<160x1280xbf16, #tpu.memory_space<vmem>>, vector<16x256xbf16>
    tpu.vector_store %arg14[%c32_29, %c256_30], %39 {strides = array<i32>} : memref<160x1280xbf16, #tpu.memory_space<vmem>>, vector<16x256xbf16>,
    %c16_31 = arith.constant 16 : index
    %c512_32 = arith.constant 512 : index
    %42 = vector.load %arg14[%c16_31, %c512_32] : memref<160x1280xbf16, #tpu.memory_space<vmem>>, vector<16x256xbf16>
    tpu.vector_store %arg14[%c16_31, %c512_32], %39 {strides = array<i32>} : memref<160x1280xbf16, #tpu.memory_space<vmem>>, vector<16x256xbf16>,
    %c0_33 = arith.constant 0 : index
    %c768 = arith.constant 768 : index
    %43 = vector.load %arg14[%c0_33, %c768] : memref<160x1280xbf16, #tpu.memory_space<vmem>>, vector<16x256xbf16>
    tpu.vector_store %arg14[%c0_33, %c768], %39 {strides = array<i32>} : memref<160x1280xbf16, #tpu.memory_space<vmem>>, vector<16x256xbf16>,
    %c128 = arith.constant 128 : index
    %c0_34 = arith.constant 0 : index
    %44 = vector.load %arg13[%c128, %c0_34] : memref<448x512xbf16, #tpu.memory_space<vmem>>, vector<16x512xbf16>
    %c144 = arith.constant 144 : index
    %c0_35 = arith.constant 0 : index
    %45 = vector.load %arg13[%c144, %c0_35] : memref<448x512xbf16, #tpu.memory_space<vmem>>, vector<16x512xbf16>
    %46 = arith.maximumf %44, %45 : vector<16x512xbf16>
    %47 = vector.extract_strided_slice %46 {offsets = [0, 0], sizes = [16, 256], strides = [1, 1]} : vector<16x512xbf16> to vector<16x256xbf16>
    %48 = vector.extract_strided_slice %46 {offsets = [0, 256], sizes = [16, 256], strides = [1, 1]} : vector<16x512xbf16> to vector<16x256xbf16>
    %49 = arith.maximumf %47, %48 : vector<16x256xbf16>
    %c64_36 = arith.constant 64 : index
    %c0_37 = arith.constant 0 : index
    %50 = vector.load %arg14[%c64_36, %c0_37] : memref<160x1280xbf16, #tpu.memory_space<vmem>>, vector<16x256xbf16>
    tpu.vector_store %arg14[%c64_36, %c0_37], %49 {strides = array<i32>} : memref<160x1280xbf16, #tpu.memory_space<vmem>>, vector<16x256xbf16>,
    %c48_38 = arith.constant 48 : index
    %c256_39 = arith.constant 256 : index
    %51 = vector.load %arg14[%c48_38, %c256_39] : memref<160x1280xbf16, #tpu.memory_space<vmem>>, vector<16x256xbf16>
    tpu.vector_store %arg14[%c48_38, %c256_39], %49 {strides = array<i32>} : memref<160x1280xbf16, #tpu.memory_space<vmem>>, vector<16x256xbf16>,
    %c32_40 = arith.constant 32 : index
    %c512_41 = arith.constant 512 : index
    %52 = vector.load %arg14[%c32_40, %c512_41] : memref<160x1280xbf16, #tpu.memory_space<vmem>>, vector<16x256xbf16>
    tpu.vector_store %arg14[%c32_40, %c512_41], %49 {strides = array<i32>} : memref<160x1280xbf16, #tpu.memory_space<vmem>>, vector<16x256xbf16>,
    %c16_42 = arith.constant 16 : index
    %c768_43 = arith.constant 768 : index
    %53 = vector.load %arg14[%c16_42, %c768_43] : memref<160x1280xbf16, #tpu.memory_space<vmem>>, vector<16x256xbf16>
    tpu.vector_store %arg14[%c16_42, %c768_43], %49 {strides = array<i32>} : memref<160x1280xbf16, #tpu.memory_space<vmem>>, vector<16x256xbf16>,
    %c0_44 = arith.constant 0 : index
    %c1024 = arith.constant 1024 : index
    %54 = vector.load %arg14[%c0_44, %c1024] : memref<160x1280xbf16, #tpu.memory_space<vmem>>, vector<16x256xbf16>
    tpu.vector_store %arg14[%c0_44, %c1024], %49 {strides = array<i32>} : memref<160x1280xbf16, #tpu.memory_space<vmem>>, vector<16x256xbf16>,
    %c160 = arith.constant 160 : index
    %c0_45 = arith.constant 0 : index
    %55 = vector.load %arg13[%c160, %c0_45] : memref<448x512xbf16, #tpu.memory_space<vmem>>, vector<16x512xbf16>
    %c176 = arith.constant 176 : index
    %c0_46 = arith.constant 0 : index
    %56 = vector.load %arg13[%c176, %c0_46] : memref<448x512xbf16, #tpu.memory_space<vmem>>, vector<16x512xbf16>
    %57 = arith.maximumf %55, %56 : vector<16x512xbf16>
    %58 = vector.extract_strided_slice %57 {offsets = [0, 0], sizes = [16, 256], strides = [1, 1]} : vector<16x512xbf16> to vector<16x256xbf16>
    %59 = vector.extract_strided_slice %57 {offsets = [0, 256], sizes = [16, 256], strides = [1, 1]} : vector<16x512xbf16> to vector<16x256xbf16>
    %60 = arith.maximumf %58, %59 : vector<16x256xbf16>
    %c80_47 = arith.constant 80 : index
    %c0_48 = arith.constant 0 : index
    %61 = vector.load %arg14[%c80_47, %c0_48] : memref<160x1280xbf16, #tpu.memory_space<vmem>>, vector<16x256xbf16>
    tpu.vector_store %arg14[%c80_47, %c0_48], %60 {strides = array<i32>} : memref<160x1280xbf16, #tpu.memory_space<vmem>>, vector<16x256xbf16>,
    %c64_49 = arith.constant 64 : index
    %c256_50 = arith.constant 256 : index
    %62 = vector.load %arg14[%c64_49, %c256_50] : memref<160x1280xbf16, #tpu.memory_space<vmem>>, vector<16x256xbf16>
    tpu.vector_store %arg14[%c64_49, %c256_50], %60 {strides = array<i32>} : memref<160x1280xbf16, #tpu.memory_space<vmem>>, vector<16x256xbf16>,
    %c48_51 = arith.constant 48 : index
    %c512_52 = arith.constant 512 : index
    %63 = vector.load %arg14[%c48_51, %c512_52] : memref<160x1280xbf16, #tpu.memory_space<vmem>>, vector<16x256xbf16>
    tpu.vector_store %arg14[%c48_51, %c512_52], %60 {strides = array<i32>} : memref<160x1280xbf16, #tpu.memory_space<vmem>>, vector<16x256xbf16>,
    %c32_53 = arith.constant 32 : index
    %c768_54 = arith.constant 768 : index
    %64 = vector.load %arg14[%c32_53, %c768_54] : memref<160x1280xbf16, #tpu.memory_space<vmem>>, vector<16x256xbf16>
    tpu.vector_store %arg14[%c32_53, %c768_54], %60 {strides = array<i32>} : memref<160x1280xbf16, #tpu.memory_space<vmem>>, vector<16x256xbf16>,
    %c16_55 = arith.constant 16 : index
    %c1024_56 = arith.constant 1024 : index
    %65 = vector.load %arg14[%c16_55, %c1024_56] : memref<160x1280xbf16, #tpu.memory_space<vmem>>, vector<16x256xbf16>
    tpu.vector_store %arg14[%c16_55, %c1024_56], %60 {strides = array<i32>} : memref<160x1280xbf16, #tpu.memory_space<vmem>>, vector<16x256xbf16>,
    %c192 = arith.constant 192 : index
    %c0_57 = arith.constant 0 : index
    %66 = vector.load %arg13[%c192, %c0_57] : memref<448x512xbf16, #tpu.memory_space<vmem>>, vector<16x512xbf16>
    %c208 = arith.constant 208 : index
    %c0_58 = arith.constant 0 : index
    %67 = vector.load %arg13[%c208, %c0_58] : memref<448x512xbf16, #tpu.memory_space<vmem>>, vector<16x512xbf16>
    %68 = arith.maximumf %66, %67 : vector<16x512xbf16>
    %69 = vector.extract_strided_slice %68 {offsets = [0, 0], sizes = [16, 256], strides = [1, 1]} : vector<16x512xbf16> to vector<16x256xbf16>
    %70 = vector.extract_strided_slice %68 {offsets = [0, 256], sizes = [16, 256], strides = [1, 1]} : vector<16x512xbf16> to vector<16x256xbf16>
    %71 = arith.maximumf %69, %70 : vector<16x256xbf16>
    %c96_59 = arith.constant 96 : index
    %c0_60 = arith.constant 0 : index
    %72 = vector.load %arg14[%c96_59, %c0_60] : memref<160x1280xbf16, #tpu.memory_space<vmem>>, vector<16x256xbf16>
    tpu.vector_store %arg14[%c96_59, %c0_60], %71 {strides = array<i32>} : memref<160x1280xbf16, #tpu.memory_space<vmem>>, vector<16x256xbf16>,
    %c80_61 = arith.constant 80 : index
    %c256_62 = arith.constant 256 : index
    %73 = vector.load %arg14[%c80_61, %c256_62] : memref<160x1280xbf16, #tpu.memory_space<vmem>>, vector<16x256xbf16>
    tpu.vector_store %arg14[%c80_61, %c256_62], %71 {strides = array<i32>} : memref<160x1280xbf16, #tpu.memory_space<vmem>>, vector<16x256xbf16>,
    %c64_63 = arith.constant 64 : index
    %c512_64 = arith.constant 512 : index
    %74 = vector.load %arg14[%c64_63, %c512_64] : memref<160x1280xbf16, #tpu.memory_space<vmem>>, vector<16x256xbf16>
    tpu.vector_store %arg14[%c64_63, %c512_64], %71 {strides = array<i32>} : memref<160x1280xbf16, #tpu.memory_space<vmem>>, vector<16x256xbf16>,
    %c48_65 = arith.constant 48 : index
    %c768_66 = arith.constant 768 : index
    %75 = vector.load %arg14[%c48_65, %c768_66] : memref<160x1280xbf16, #tpu.memory_space<vmem>>, vector<16x256xbf16>
    tpu.vector_store %arg14[%c48_65, %c768_66], %71 {strides = array<i32>} : memref<160x1280xbf16, #tpu.memory_space<vmem>>, vector<16x256xbf16>,
    %c32_67 = arith.constant 32 : index
    %c1024_68 = arith.constant 1024 : index
    %76 = vector.load %arg14[%c32_67, %c1024_68] : memref<160x1280xbf16, #tpu.memory_space<vmem>>, vector<16x256xbf16>
    tpu.vector_store %arg14[%c32_67, %c1024_68], %71 {strides = array<i32>} : memref<160x1280xbf16, #tpu.memory_space<vmem>>, vector<16x256xbf16>,
    %c224 = arith.constant 224 : index
    %c0_69 = arith.constant 0 : index
    %77 = vector.load %arg13[%c224, %c0_69] : memref<448x512xbf16, #tpu.memory_space<vmem>>, vector<16x512xbf16>
    %c240 = arith.constant 240 : index
    %c0_70 = arith.constant 0 : index
    %78 = vector.load %arg13[%c240, %c0_70] : memref<448x512xbf16, #tpu.memory_space<vmem>>, vector<16x512xbf16>
    %79 = arith.maximumf %77, %78 : vector<16x512xbf16>
    %80 = vector.extract_strided_slice %79 {offsets = [0, 0], sizes = [16, 256], strides = [1, 1]} : vector<16x512xbf16> to vector<16x256xbf16>
    %81 = vector.extract_strided_slice %79 {offsets = [0, 256], sizes = [16, 256], strides = [1, 1]} : vector<16x512xbf16> to vector<16x256xbf16>
    %82 = arith.maximumf %80, %81 : vector<16x256xbf16>
    %c112_71 = arith.constant 112 : index
    %c0_72 = arith.constant 0 : index
    %83 = vector.load %arg14[%c112_71, %c0_72] : memref<160x1280xbf16, #tpu.memory_space<vmem>>, vector<16x256xbf16>
    tpu.vector_store %arg14[%c112_71, %c0_72], %82 {strides = array<i32>} : memref<160x1280xbf16, #tpu.memory_space<vmem>>, vector<16x256xbf16>,
    %c96_73 = arith.constant 96 : index
    %c256_74 = arith.constant 256 : index
    %84 = vector.load %arg14[%c96_73, %c256_74] : memref<160x1280xbf16, #tpu.memory_space<vmem>>, vector<16x256xbf16>
    tpu.vector_store %arg14[%c96_73, %c256_74], %82 {strides = array<i32>} : memref<160x1280xbf16, #tpu.memory_space<vmem>>, vector<16x256xbf16>,
    %c80_75 = arith.constant 80 : index
    %c512_76 = arith.constant 512 : index
    %85 = vector.load %arg14[%c80_75, %c512_76] : memref<160x1280xbf16, #tpu.memory_space<vmem>>, vector<16x256xbf16>
    tpu.vector_store %arg14[%c80_75, %c512_76], %82 {strides = array<i32>} : memref<160x1280xbf16, #tpu.memory_space<vmem>>, vector<16x256xbf16>,
    %c64_77 = arith.constant 64 : index
    %c768_78 = arith.constant 768 : index
    %86 = vector.load %arg14[%c64_77, %c768_78] : memref<160x1280xbf16, #tpu.memory_space<vmem>>, vector<16x256xbf16>
    tpu.vector_store %arg14[%c64_77, %c768_78], %82 {strides = array<i32>} : memref<160x1280xbf16, #tpu.memory_space<vmem>>, vector<16x256xbf16>,
    %c48_79 = arith.constant 48 : index
    %c1024_80 = arith.constant 1024 : index
    %87 = vector.load %arg14[%c48_79, %c1024_80] : memref<160x1280xbf16, #tpu.memory_space<vmem>>, vector<16x256xbf16>
    tpu.vector_store %arg14[%c48_79, %c1024_80], %82 {strides = array<i32>} : memref<160x1280xbf16, #tpu.memory_space<vmem>>, vector<16x256xbf16>,
    %c256_81 = arith.constant 256 : index
    %c0_82 = arith.constant 0 : index
    %88 = vector.load %arg13[%c256_81, %c0_82] : memref<448x512xbf16, #tpu.memory_space<vmem>>, vector<16x512xbf16>
    %c272 = arith.constant 272 : index
    %c0_83 = arith.constant 0 : index
    %89 = vector.load %arg13[%c272, %c0_83] : memref<448x512xbf16, #tpu.memory_space<vmem>>, vector<16x512xbf16>
    %90 = arith.maximumf %88, %89 : vector<16x512xbf16>
    %91 = vector.extract_strided_slice %90 {offsets = [0, 0], sizes = [16, 256], strides = [1, 1]} : vector<16x512xbf16> to vector<16x256xbf16>
    %92 = vector.extract_strided_slice %90 {offsets = [0, 256], sizes = [16, 256], strides = [1, 1]} : vector<16x512xbf16> to vector<16x256xbf16>
    %93 = arith.maximumf %91, %92 : vector<16x256xbf16>
    %c128_84 = arith.constant 128 : index
    %c0_85 = arith.constant 0 : index
    %94 = vector.load %arg14[%c128_84, %c0_85] : memref<160x1280xbf16, #tpu.memory_space<vmem>>, vector<16x256xbf16>
    tpu.vector_store %arg14[%c128_84, %c0_85], %93 {strides = array<i32>} : memref<160x1280xbf16, #tpu.memory_space<vmem>>, vector<16x256xbf16>,
    %c112_86 = arith.constant 112 : index
    %c256_87 = arith.constant 256 : index
    %95 = vector.load %arg14[%c112_86, %c256_87] : memref<160x1280xbf16, #tpu.memory_space<vmem>>, vector<16x256xbf16>
    tpu.vector_store %arg14[%c112_86, %c256_87], %93 {strides = array<i32>} : memref<160x1280xbf16, #tpu.memory_space<vmem>>, vector<16x256xbf16>,
    %c96_88 = arith.constant 96 : index
    %c512_89 = arith.constant 512 : index
    %96 = vector.load %arg14[%c96_88, %c512_89] : memref<160x1280xbf16, #tpu.memory_space<vmem>>, vector<16x256xbf16>
    tpu.vector_store %arg14[%c96_88, %c512_89], %93 {strides = array<i32>} : memref<160x1280xbf16, #tpu.memory_space<vmem>>, vector<16x256xbf16>,
    %c80_90 = arith.constant 80 : index
    %c768_91 = arith.constant 768 : index
    %97 = vector.load %arg14[%c80_90, %c768_91] : memref<160x1280xbf16, #tpu.memory_space<vmem>>, vector<16x256xbf16>
    tpu.vector_store %arg14[%c80_90, %c768_91], %93 {strides = array<i32>} : memref<160x1280xbf16, #tpu.memory_space<vmem>>, vector<16x256xbf16>,
    %c64_92 = arith.constant 64 : index
    %c1024_93 = arith.constant 1024 : index
    %98 = vector.load %arg14[%c64_92, %c1024_93] : memref<160x1280xbf16, #tpu.memory_space<vmem>>, vector<16x256xbf16>
    tpu.vector_store %arg14[%c64_92, %c1024_93], %93 {strides = array<i32>} : memref<160x1280xbf16, #tpu.memory_space<vmem>>, vector<16x256xbf16>,
    %c288 = arith.constant 288 : index
    %c0_94 = arith.constant 0 : index
    %99 = vector.load %arg13[%c288, %c0_94] : memref<448x512xbf16, #tpu.memory_space<vmem>>, vector<16x512xbf16>
    %c304 = arith.constant 304 : index
    %c0_95 = arith.constant 0 : index
    %100 = vector.load %arg13[%c304, %c0_95] : memref<448x512xbf16, #tpu.memory_space<vmem>>, vector<16x512xbf16>
    %101 = arith.maximumf %99, %100 : vector<16x512xbf16>
    %102 = vector.extract_strided_slice %101 {offsets = [0, 0], sizes = [16, 256], strides = [1, 1]} : vector<16x512xbf16> to vector<16x256xbf16>
    %103 = vector.extract_strided_slice %101 {offsets = [0, 256], sizes = [16, 256], strides = [1, 1]} : vector<16x512xbf16> to vector<16x256xbf16>
    %104 = arith.maximumf %102, %103 : vector<16x256xbf16>
    %c144_96 = arith.constant 144 : index
    %c0_97 = arith.constant 0 : index
    %105 = vector.load %arg14[%c144_96, %c0_97] : memref<160x1280xbf16, #tpu.memory_space<vmem>>, vector<16x256xbf16>
    tpu.vector_store %arg14[%c144_96, %c0_97], %104 {strides = array<i32>} : memref<160x1280xbf16, #tpu.memory_space<vmem>>, vector<16x256xbf16>,
    %c128_98 = arith.constant 128 : index
    %c256_99 = arith.constant 256 : index
    %106 = vector.load %arg14[%c128_98, %c256_99] : memref<160x1280xbf16, #tpu.memory_space<vmem>>, vector<16x256xbf16>
    tpu.vector_store %arg14[%c128_98, %c256_99], %104 {strides = array<i32>} : memref<160x1280xbf16, #tpu.memory_space<vmem>>, vector<16x256xbf16>,
    %c112_100 = arith.constant 112 : index
    %c512_101 = arith.constant 512 : index
    %107 = vector.load %arg14[%c112_100, %c512_101] : memref<160x1280xbf16, #tpu.memory_space<vmem>>, vector<16x256xbf16>
    tpu.vector_store %arg14[%c112_100, %c512_101], %104 {strides = array<i32>} : memref<160x1280xbf16, #tpu.memory_space<vmem>>, vector<16x256xbf16>,
    %c96_102 = arith.constant 96 : index
    %c768_103 = arith.constant 768 : index
    %108 = vector.load %arg14[%c96_102, %c768_103] : memref<160x1280xbf16, #tpu.memory_space<vmem>>, vector<16x256xbf16>
    tpu.vector_store %arg14[%c96_102, %c768_103], %104 {strides = array<i32>} : memref<160x1280xbf16, #tpu.memory_space<vmem>>, vector<16x256xbf16>,
    %c80_104 = arith.constant 80 : index
    %c1024_105 = arith.constant 1024 : index
    %109 = vector.load %arg14[%c80_104, %c1024_105] : memref<160x1280xbf16, #tpu.memory_space<vmem>>, vector<16x256xbf16>
    tpu.vector_store %arg14[%c80_104, %c1024_105], %104 {strides = array<i32>} : memref<160x1280xbf16, #tpu.memory_space<vmem>>, vector<16x256xbf16>,
    %c320 = arith.constant 320 : index
    %c0_106 = arith.constant 0 : index
    %110 = vector.load %arg13[%c320, %c0_106] : memref<448x512xbf16, #tpu.memory_space<vmem>>, vector<16x512xbf16>
    %c336 = arith.constant 336 : index
    %c0_107 = arith.constant 0 : index
    %111 = vector.load %arg13[%c336, %c0_107] : memref<448x512xbf16, #tpu.memory_space<vmem>>, vector<16x512xbf16>
    %112 = arith.maximumf %110, %111 : vector<16x512xbf16>
    %113 = vector.extract_strided_slice %112 {offsets = [0, 0], sizes = [16, 256], strides = [1, 1]} : vector<16x512xbf16> to vector<16x256xbf16>
    %114 = vector.extract_strided_slice %112 {offsets = [0, 256], sizes = [16, 256], strides = [1, 1]} : vector<16x512xbf16> to vector<16x256xbf16>
    %115 = arith.maximumf %113, %114 : vector<16x256xbf16>
    %c144_108 = arith.constant 144 : index
    %c256_109 = arith.constant 256 : index
    %116 = vector.load %arg14[%c144_108, %c256_109] : memref<160x1280xbf16, #tpu.memory_space<vmem>>, vector<16x256xbf16>
    tpu.vector_store %arg14[%c144_108, %c256_109], %115 {strides = array<i32>} : memref<160x1280xbf16, #tpu.memory_space<vmem>>, vector<16x256xbf16>,
    %c128_110 = arith.constant 128 : index
    %c512_111 = arith.constant 512 : index
    %117 = vector.load %arg14[%c128_110, %c512_111] : memref<160x1280xbf16, #tpu.memory_space<vmem>>, vector<16x256xbf16>
    tpu.vector_store %arg14[%c128_110, %c512_111], %115 {strides = array<i32>} : memref<160x1280xbf16, #tpu.memory_space<vmem>>, vector<16x256xbf16>,
    %c112_112 = arith.constant 112 : index
    %c768_113 = arith.constant 768 : index
    %118 = vector.load %arg14[%c112_112, %c768_113] : memref<160x1280xbf16, #tpu.memory_space<vmem>>, vector<16x256xbf16>
    tpu.vector_store %arg14[%c112_112, %c768_113], %115 {strides = array<i32>} : memref<160x1280xbf16, #tpu.memory_space<vmem>>, vector<16x256xbf16>,
    %c96_114 = arith.constant 96 : index
    %c1024_115 = arith.constant 1024 : index
    %119 = vector.load %arg14[%c96_114, %c1024_115] : memref<160x1280xbf16, #tpu.memory_space<vmem>>, vector<16x256xbf16>
    tpu.vector_store %arg14[%c96_114, %c1024_115], %115 {strides = array<i32>} : memref<160x1280xbf16, #tpu.memory_space<vmem>>, vector<16x256xbf16>,
    %c352 = arith.constant 352 : index
    %c0_116 = arith.constant 0 : index
    %120 = vector.load %arg13[%c352, %c0_116] : memref<448x512xbf16, #tpu.memory_space<vmem>>, vector<16x512xbf16>
    %c368 = arith.constant 368 : index
    %c0_117 = arith.constant 0 : index
    %121 = vector.load %arg13[%c368, %c0_117] : memref<448x512xbf16, #tpu.memory_space<vmem>>, vector<16x512xbf16>
    %122 = arith.maximumf %120, %121 : vector<16x512xbf16>
    %123 = vector.extract_strided_slice %122 {offsets = [0, 0], sizes = [16, 256], strides = [1, 1]} : vector<16x512xbf16> to vector<16x256xbf16>
    %124 = vector.extract_strided_slice %122 {offsets = [0, 256], sizes = [16, 256], strides = [1, 1]} : vector<16x512xbf16> to vector<16x256xbf16>
    %125 = arith.maximumf %123, %124 : vector<16x256xbf16>
    %c144_118 = arith.constant 144 : index
    %c512_119 = arith.constant 512 : index
    %126 = vector.load %arg14[%c144_118, %c512_119] : memref<160x1280xbf16, #tpu.memory_space<vmem>>, vector<16x256xbf16>
    tpu.vector_store %arg14[%c144_118, %c512_119], %125 {strides = array<i32>} : memref<160x1280xbf16, #tpu.memory_space<vmem>>, vector<16x256xbf16>,
    %c128_120 = arith.constant 128 : index
    %c768_121 = arith.constant 768 : index
    %127 = vector.load %arg14[%c128_120, %c768_121] : memref<160x1280xbf16, #tpu.memory_space<vmem>>, vector<16x256xbf16>
    tpu.vector_store %arg14[%c128_120, %c768_121], %125 {strides = array<i32>} : memref<160x1280xbf16, #tpu.memory_space<vmem>>, vector<16x256xbf16>,
    %c112_122 = arith.constant 112 : index
    %c1024_123 = arith.constant 1024 : index
    %128 = vector.load %arg14[%c112_122, %c1024_123] : memref<160x1280xbf16, #tpu.memory_space<vmem>>, vector<16x256xbf16>
    tpu.vector_store %arg14[%c112_122, %c1024_123], %125 {strides = array<i32>} : memref<160x1280xbf16, #tpu.memory_space<vmem>>, vector<16x256xbf16>,
    %c384 = arith.constant 384 : index
    %c0_124 = arith.constant 0 : index
    %129 = vector.load %arg13[%c384, %c0_124] : memref<448x512xbf16, #tpu.memory_space<vmem>>, vector<16x512xbf16>
    %c400 = arith.constant 400 : index
    %c0_125 = arith.constant 0 : index
    %130 = vector.load %arg13[%c400, %c0_125] : memref<448x512xbf16, #tpu.memory_space<vmem>>, vector<16x512xbf16>
    %131 = arith.maximumf %129, %130 : vector<16x512xbf16>
    %132 = vector.extract_strided_slice %131 {offsets = [0, 0], sizes = [16, 256], strides = [1, 1]} : vector<16x512xbf16> to vector<16x256xbf16>
    %133 = vector.extract_strided_slice %131 {offsets = [0, 256], sizes = [16, 256], strides = [1, 1]} : vector<16x512xbf16> to vector<16x256xbf16>
    %134 = arith.maximumf %132, %133 : vector<16x256xbf16>
    %c144_126 = arith.constant 144 : index
    %c768_127 = arith.constant 768 : index
    %135 = vector.load %arg14[%c144_126, %c768_127] : memref<160x1280xbf16, #tpu.memory_space<vmem>>, vector<16x256xbf16>
    tpu.vector_store %arg14[%c144_126, %c768_127], %134 {strides = array<i32>} : memref<160x1280xbf16, #tpu.memory_space<vmem>>, vector<16x256xbf16>,
    %c128_128 = arith.constant 128 : index
    %c1024_129 = arith.constant 1024 : index
    %136 = vector.load %arg14[%c128_128, %c1024_129] : memref<160x1280xbf16, #tpu.memory_space<vmem>>, vector<16x256xbf16>
    tpu.vector_store %arg14[%c128_128, %c1024_129], %134 {strides = array<i32>} : memref<160x1280xbf16, #tpu.memory_space<vmem>>, vector<16x256xbf16>,
    %c416 = arith.constant 416 : index
    %c0_130 = arith.constant 0 : index
    %137 = vector.load %arg13[%c416, %c0_130] : memref<448x512xbf16, #tpu.memory_space<vmem>>, vector<16x512xbf16>
    %c432 = arith.constant 432 : index
    %c0_131 = arith.constant 0 : index
    %138 = vector.load %arg13[%c432, %c0_131] : memref<448x512xbf16, #tpu.memory_space<vmem>>, vector<16x512xbf16>
    %139 = arith.maximumf %137, %138 : vector<16x512xbf16>
    %140 = vector.extract_strided_slice %139 {offsets = [0, 0], sizes = [16, 256], strides = [1, 1]} : vector<16x512xbf16> to vector<16x256xbf16>
    %141 = vector.extract_strided_slice %139 {offsets = [0, 256], sizes = [16, 256], strides = [1, 1]} : vector<16x512xbf16> to vector<16x256xbf16>
    %142 = arith.maximumf %140, %141 : vector<16x256xbf16>
    %c144_132 = arith.constant 144 : index
    %c1024_133 = arith.constant 1024 : index
    %143 = vector.load %arg14[%c144_132, %c1024_133] : memref<160x1280xbf16, #tpu.memory_space<vmem>>, vector<16x256xbf16>
    tpu.vector_store %arg14[%c144_132, %c1024_133], %142 {strides = array<i32>} : memref<160x1280xbf16, #tpu.memory_space<vmem>>, vector<16x256xbf16>,
    %c0_134 = arith.constant 0 : index
    %c0_135 = arith.constant 0 : index
    %144 = vector.load %arg14[%c0_134, %c0_135] : memref<160x1280xbf16, #tpu.memory_space<vmem>>, vector<160x1280xbf16>
    %c0_136 = arith.constant 0 : index
    %c0_137 = arith.constant 0 : index
    %145 = vector.load %arg4[%c0_136, %c0_137] : memref<1280x512xbf16, #tpu.memory_space<vmem>>, vector<1280x512xbf16>
    %cst_138 = arith.constant dense<0.000000e+00> : vector<160x512xf32>
    %146 = tpu.matmul %144, %145, %cst_138 {dimension_numbers = #tpu.dot_dimension_numbers<[1], [0], [0], [1], [0, 0, 1, 1], [], []>} : vector<160x1280xbf16>, vector<1280x512xbf16>, vector<160x512xf32> -> vector<160x512xf32>
    %c0_139 = arith.constant 0 : index
    %c0_140 = arith.constant 0 : index
    %147 = vector.load %arg5[%c0_139, %c0_140] : memref<1x512xf32, #tpu.memory_space<vmem>>, vector<1x512xf32>
    %148 = vector.broadcast %147 : vector<1x512xf32> to vector<160x512xf32>
    %149 = arith.addf %146, %148 : vector<160x512xf32>
    %cst_141 = arith.constant 0.000000e+00 : f32
    %150 = vector.broadcast %cst_141 : f32 to vector<160x512xf32>
    %151 = arith.maximumf %149, %150 : vector<160x512xf32>
    %152 = arith.truncf %151 : vector<160x512xf32> to vector<160x512xbf16>
    %c0_142 = arith.constant 0 : index
    %c0_143 = arith.constant 0 : index
    %153 = vector.load %arg15[%c0_142, %c0_143] : memref<160x512xbf16, #tpu.memory_space<vmem>>, vector<160x512xbf16>
    tpu.vector_store %arg15[%c0_142, %c0_143], %152 {strides = array<i32>} : memref<160x512xbf16, #tpu.memory_space<vmem>>, vector<160x512xbf16>,
    %c0_144 = arith.constant 0 : index
    %c0_145 = arith.constant 0 : index
    %154 = vector.load %arg15[%c0_144, %c0_145] : memref<160x512xbf16, #tpu.memory_space<vmem>>, vector<16x512xbf16>
    %c16_146 = arith.constant 16 : index
    %c0_147 = arith.constant 0 : index
    %155 = vector.load %arg15[%c16_146, %c0_147] : memref<160x512xbf16, #tpu.memory_space<vmem>>, vector<16x512xbf16>
    %156 = arith.maximumf %154, %155 : vector<16x512xbf16>
    %157 = vector.extract_strided_slice %156 {offsets = [0, 0], sizes = [16, 256], strides = [1, 1]} : vector<16x512xbf16> to vector<16x256xbf16>
    %158 = vector.extract_strided_slice %156 {offsets = [0, 256], sizes = [16, 256], strides = [1, 1]} : vector<16x512xbf16> to vector<16x256xbf16>
    %159 = arith.maximumf %157, %158 : vector<16x256xbf16>
    %c0_148 = arith.constant 0 : index
    %c0_149 = arith.constant 0 : index
    %160 = vector.load %arg16[%c0_148, %c0_149] : memref<16x1280xbf16, #tpu.memory_space<vmem>>, vector<16x256xbf16>
    tpu.vector_store %arg16[%c0_148, %c0_149], %159 {strides = array<i32>} : memref<16x1280xbf16, #tpu.memory_space<vmem>>, vector<16x256xbf16>,
    %c32_150 = arith.constant 32 : index
    %c0_151 = arith.constant 0 : index
    %161 = vector.load %arg15[%c32_150, %c0_151] : memref<160x512xbf16, #tpu.memory_space<vmem>>, vector<16x512xbf16>
    %c48_152 = arith.constant 48 : index
    %c0_153 = arith.constant 0 : index
    %162 = vector.load %arg15[%c48_152, %c0_153] : memref<160x512xbf16, #tpu.memory_space<vmem>>, vector<16x512xbf16>
    %163 = arith.maximumf %161, %162 : vector<16x512xbf16>
    %164 = vector.extract_strided_slice %163 {offsets = [0, 0], sizes = [16, 256], strides = [1, 1]} : vector<16x512xbf16> to vector<16x256xbf16>
    %165 = vector.extract_strided_slice %163 {offsets = [0, 256], sizes = [16, 256], strides = [1, 1]} : vector<16x512xbf16> to vector<16x256xbf16>
    %166 = arith.maximumf %164, %165 : vector<16x256xbf16>
    %c0_154 = arith.constant 0 : index
    %c256_155 = arith.constant 256 : index
    %167 = vector.load %arg16[%c0_154, %c256_155] : memref<16x1280xbf16, #tpu.memory_space<vmem>>, vector<16x256xbf16>
    tpu.vector_store %arg16[%c0_154, %c256_155], %166 {strides = array<i32>} : memref<16x1280xbf16, #tpu.memory_space<vmem>>, vector<16x256xbf16>,
    %c64_156 = arith.constant 64 : index
    %c0_157 = arith.constant 0 : index
    %168 = vector.load %arg15[%c64_156, %c0_157] : memref<160x512xbf16, #tpu.memory_space<vmem>>, vector<16x512xbf16>
    %c80_158 = arith.constant 80 : index
    %c0_159 = arith.constant 0 : index
    %169 = vector.load %arg15[%c80_158, %c0_159] : memref<160x512xbf16, #tpu.memory_space<vmem>>, vector<16x512xbf16>
    %170 = arith.maximumf %168, %169 : vector<16x512xbf16>
    %171 = vector.extract_strided_slice %170 {offsets = [0, 0], sizes = [16, 256], strides = [1, 1]} : vector<16x512xbf16> to vector<16x256xbf16>
    %172 = vector.extract_strided_slice %170 {offsets = [0, 256], sizes = [16, 256], strides = [1, 1]} : vector<16x512xbf16> to vector<16x256xbf16>
    %173 = arith.maximumf %171, %172 : vector<16x256xbf16>
    %c0_160 = arith.constant 0 : index
    %c512_161 = arith.constant 512 : index
    %174 = vector.load %arg16[%c0_160, %c512_161] : memref<16x1280xbf16, #tpu.memory_space<vmem>>, vector<16x256xbf16>
    tpu.vector_store %arg16[%c0_160, %c512_161], %173 {strides = array<i32>} : memref<16x1280xbf16, #tpu.memory_space<vmem>>, vector<16x256xbf16>,
    %c96_162 = arith.constant 96 : index
    %c0_163 = arith.constant 0 : index
    %175 = vector.load %arg15[%c96_162, %c0_163] : memref<160x512xbf16, #tpu.memory_space<vmem>>, vector<16x512xbf16>
    %c112_164 = arith.constant 112 : index
    %c0_165 = arith.constant 0 : index
    %176 = vector.load %arg15[%c112_164, %c0_165] : memref<160x512xbf16, #tpu.memory_space<vmem>>, vector<16x512xbf16>
    %177 = arith.maximumf %175, %176 : vector<16x512xbf16>
    %178 = vector.extract_strided_slice %177 {offsets = [0, 0], sizes = [16, 256], strides = [1, 1]} : vector<16x512xbf16> to vector<16x256xbf16>
    %179 = vector.extract_strided_slice %177 {offsets = [0, 256], sizes = [16, 256], strides = [1, 1]} : vector<16x512xbf16> to vector<16x256xbf16>
    %180 = arith.maximumf %178, %179 : vector<16x256xbf16>
    %c0_166 = arith.constant 0 : index
    %c768_167 = arith.constant 768 : index
    %181 = vector.load %arg16[%c0_166, %c768_167] : memref<16x1280xbf16, #tpu.memory_space<vmem>>, vector<16x256xbf16>
    tpu.vector_store %arg16[%c0_166, %c768_167], %180 {strides = array<i32>} : memref<16x1280xbf16, #tpu.memory_space<vmem>>, vector<16x256xbf16>,
    %c128_168 = arith.constant 128 : index
    %c0_169 = arith.constant 0 : index
    %182 = vector.load %arg15[%c128_168, %c0_169] : memref<160x512xbf16, #tpu.memory_space<vmem>>, vector<16x512xbf16>
    %c144_170 = arith.constant 144 : index
    %c0_171 = arith.constant 0 : index
    %183 = vector.load %arg15[%c144_170, %c0_171] : memref<160x512xbf16, #tpu.memory_space<vmem>>, vector<16x512xbf16>
    %184 = arith.maximumf %182, %183 : vector<16x512xbf16>
    %185 = vector.extract_strided_slice %184 {offsets = [0, 0], sizes = [16, 256], strides = [1, 1]} : vector<16x512xbf16> to vector<16x256xbf16>
    %186 = vector.extract_strided_slice %184 {offsets = [0, 256], sizes = [16, 256], strides = [1, 1]} : vector<16x512xbf16> to vector<16x256xbf16>
    %187 = arith.maximumf %185, %186 : vector<16x256xbf16>
    %c0_172 = arith.constant 0 : index
    %c1024_173 = arith.constant 1024 : index
    %188 = vector.load %arg16[%c0_172, %c1024_173] : memref<16x1280xbf16, #tpu.memory_space<vmem>>, vector<16x256xbf16>
    tpu.vector_store %arg16[%c0_172, %c1024_173], %187 {strides = array<i32>} : memref<16x1280xbf16, #tpu.memory_space<vmem>>, vector<16x256xbf16>,
    %c0_174 = arith.constant 0 : index
    %c0_175 = arith.constant 0 : index
    %189 = vector.load %arg16[%c0_174, %c0_175] : memref<16x1280xbf16, #tpu.memory_space<vmem>>, vector<16x1280xbf16>
    %c0_176 = arith.constant 0 : index
    %c0_177 = arith.constant 0 : index
    %190 = vector.load %arg6[%c0_176, %c0_177] : memref<1280x128xbf16, #tpu.memory_space<vmem>>, vector<1280x128xbf16>
    %cst_178 = arith.constant dense<0.000000e+00> : vector<16x128xf32>
    %191 = tpu.matmul %189, %190, %cst_178 {dimension_numbers = #tpu.dot_dimension_numbers<[1], [0], [0], [1], [0, 0, 1, 1], [], []>} : vector<16x1280xbf16>, vector<1280x128xbf16>, vector<16x128xf32> -> vector<16x128xf32>
    %c0_179 = arith.constant 0 : index
    %c0_180 = arith.constant 0 : index
    %192 = vector.load %arg7[%c0_179, %c0_180] : memref<1x128xf32, #tpu.memory_space<vmem>>, vector<1x128xf32>
    %193 = vector.broadcast %192 : vector<1x128xf32> to vector<16x128xf32>
    %194 = arith.addf %191, %193 : vector<16x128xf32>
    %cst_181 = arith.constant 0.000000e+00 : f32
    %195 = vector.broadcast %cst_181 : f32 to vector<16x128xf32>
    %196 = arith.maximumf %194, %195 : vector<16x128xf32>
    %197 = arith.truncf %196 : vector<16x128xf32> to vector<16x128xbf16>
    %c0_182 = arith.constant 0 : index
    %c0_183 = arith.constant 0 : index
    %198 = vector.load %arg8[%c0_182, %c0_183] : memref<128x128xbf16, #tpu.memory_space<vmem>>, vector<128x128xbf16>
    %cst_184 = arith.constant dense<0.000000e+00> : vector<16x128xf32>
    %199 = tpu.matmul %197, %198, %cst_184 {dimension_numbers = #tpu.dot_dimension_numbers<[1], [0], [0], [1], [0, 0, 1, 1], [], []>} : vector<16x128xbf16>, vector<128x128xbf16>, vector<16x128xf32> -> vector<16x128xf32>
    %c0_185 = arith.constant 0 : index
    %c0_186 = arith.constant 0 : index
    %200 = vector.load %arg9[%c0_185, %c0_186] : memref<1x128xf32, #tpu.memory_space<vmem>>, vector<1x128xf32>
    %201 = vector.broadcast %200 : vector<1x128xf32> to vector<16x128xf32>
    %202 = arith.addf %199, %201 : vector<16x128xf32>
    %cst_187 = arith.constant 0.000000e+00 : f32
    %203 = vector.broadcast %cst_187 : f32 to vector<16x128xf32>
    %204 = arith.maximumf %202, %203 : vector<16x128xf32>
    %205 = arith.truncf %204 : vector<16x128xf32> to vector<16x128xbf16>
    %c0_188 = arith.constant 0 : index
    %c0_189 = arith.constant 0 : index
    %206 = vector.load %arg10[%c0_188, %c0_189] : memref<128x128xbf16, #tpu.memory_space<vmem>>, vector<128x128xbf16>
    %cst_190 = arith.constant dense<0.000000e+00> : vector<16x128xf32>
    %207 = tpu.matmul %205, %206, %cst_190 {dimension_numbers = #tpu.dot_dimension_numbers<[1], [0], [0], [1], [0, 0, 1, 1], [], []>} : vector<16x128xbf16>, vector<128x128xbf16>, vector<16x128xf32> -> vector<16x128xf32>
    %c0_191 = arith.constant 0 : index
    %c0_192 = arith.constant 0 : index
    %208 = vector.load %arg11[%c0_191, %c0_192] : memref<1x128xf32, #tpu.memory_space<vmem>>, vector<1x128xf32>
    %209 = vector.broadcast %208 : vector<1x128xf32> to vector<16x128xf32>
    %210 = arith.addf %207, %209 : vector<16x128xf32>
    %c0_193 = arith.constant 0 : index
    %c0_194 = arith.constant 0 : index
    %211 = vector.load %arg12[%c0_193, %c0_194] : memref<16x128xf32, #tpu.memory_space<vmem>>, vector<16x128xf32>
    tpu.vector_store %arg12[%c0_193, %c0_194], %210 {strides = array<i32>} : memref<16x128xf32, #tpu.memory_space<vmem>>, vector<16x128xf32>,
    return
  }
  func.func @transform_0(%arg0: i32) -> (i32, i32) {
    %c0_i32 = arith.constant 0 : i32
    %c0_i32_0 = arith.constant 0 : i32
    return %arg0, %c0_i32 : i32, i32
  }
  func.func @transform_1(%arg0: i32) -> (i32, i32) {
    %c0_i32 = arith.constant 0 : i32
    %c0_i32_0 = arith.constant 0 : i32
    %c0_i32_1 = arith.constant 0 : i32
    return %c0_i32, %c0_i32_0 : i32, i32
  }
  func.func @transform_2(%arg0: i32) -> (i32, i32) {
    %c0_i32 = arith.constant 0 : i32
    %c0_i32_0 = arith.constant 0 : i32
    %c0_i32_1 = arith.constant 0 : i32
    return %c0_i32, %c0_i32_0 : i32, i32
  }
  func.func @transform_3(%arg0: i32) -> (i32, i32) {
    %c0_i32 = arith.constant 0 : i32
    %c0_i32_0 = arith.constant 0 : i32
    %c0_i32_1 = arith.constant 0 : i32
    return %c0_i32, %c0_i32_0 : i32, i32
  }
  func.func @transform_4(%arg0: i32) -> (i32, i32) {
    %c0_i32 = arith.constant 0 : i32
    %c0_i32_0 = arith.constant 0 : i32
    %c0_i32_1 = arith.constant 0 : i32
    return %c0_i32, %c0_i32_0 : i32, i32
  }
  func.func @transform_5(%arg0: i32) -> (i32, i32) {
    %c0_i32 = arith.constant 0 : i32
    %c0_i32_0 = arith.constant 0 : i32
    %c0_i32_1 = arith.constant 0 : i32
    return %c0_i32, %c0_i32_0 : i32, i32
  }
  func.func @transform_6(%arg0: i32) -> (i32, i32) {
    %c0_i32 = arith.constant 0 : i32
    %c0_i32_0 = arith.constant 0 : i32
    %c0_i32_1 = arith.constant 0 : i32
    return %c0_i32, %c0_i32_0 : i32, i32
  }
  func.func @transform_7(%arg0: i32) -> (i32, i32) {
    %c0_i32 = arith.constant 0 : i32
    %c0_i32_0 = arith.constant 0 : i32
    %c0_i32_1 = arith.constant 0 : i32
    return %c0_i32, %c0_i32_0 : i32, i32
  }
  func.func @transform_8(%arg0: i32) -> (i32, i32) {
    %c0_i32 = arith.constant 0 : i32
    %c0_i32_0 = arith.constant 0 : i32
    %c0_i32_1 = arith.constant 0 : i32
    return %c0_i32, %c0_i32_0 : i32, i32
  }
  func.func @transform_9(%arg0: i32) -> (i32, i32) {
    %c0_i32 = arith.constant 0 : i32
    %c0_i32_0 = arith.constant 0 : i32
    %c0_i32_1 = arith.constant 0 : i32
    return %c0_i32, %c0_i32_0 : i32, i32
  }
  func.func @transform_10(%arg0: i32) -> (i32, i32) {
    %c0_i32 = arith.constant 0 : i32
    %c0_i32_0 = arith.constant 0 : i32
    %c0_i32_1 = arith.constant 0 : i32
    return %c0_i32, %c0_i32_0 : i32, i32
  }
  func.func @transform_11(%arg0: i32) -> (i32, i32) {
    %c0_i32 = arith.constant 0 : i32
    %c0_i32_0 = arith.constant 0 : i32
    return %arg0, %c0_i32 : i32, i32
  }
}

</mosaic_0001>

<llo_original>
// kernel: tpu_custom_call.1
$region0: #{tpu_custom_call.1}
  #allocation0 [shape = 'u32[]', space=smem, size = 0x4, offset = 0x4, fixed_abs, tag = 'smem constant byte address 0x4 - core index']
  #allocation1 [shape = 'u32[144,128]{1,0:T(1,128)}', space=vmem, size = 0x12000, scoped, tag = 'internal scratch']
  #allocation2 [shape = 'bf16[448,512]{1,0:T(16,128)(2,1)}', space=vmem, size = 0x70000, scoped, tag = 'scratch operand']
  #allocation3 [shape = 'bf16[160,1280]{1,0:T(16,128)(2,1)}', space=vmem, size = 0x64000, scoped, tag = 'scratch operand']
  #allocation4 [shape = 'bf16[160,512]{1,0:T(16,128)(2,1)}', space=vmem, size = 0x28000, scoped, tag = 'scratch operand']
  #allocation5 [shape = 'bf16[16,1280]{1,0:T(16,128)(2,1)}', space=vmem, size = 0xa000, scoped, tag = 'scratch operand']
  %s0 = inlined_call_operand.vmem [shape: bf16[448,160], index: 0, kind: input, shape index: {}]
  %s1 = inlined_call_operand.hbm [shape: bf16[160,512], index: 1, kind: input, shape index: {}]
  %s2 = inlined_call_operand.hbm [shape: f32[1,512], index: 2, kind: input, shape index: {}]
  %s3 = inlined_call_operand.hbm [shape: bf16[1280,512], index: 3, kind: input, shape index: {}]
  %s4 = inlined_call_operand.hbm [shape: f32[1,512], index: 4, kind: input, shape index: {}]
  %s5 = inlined_call_operand.hbm [shape: bf16[1280,128], index: 5, kind: input, shape index: {}]
  %s6 = inlined_call_operand.hbm [shape: f32[1,128], index: 6, kind: input, shape index: {}]
  %s7 = inlined_call_operand.hbm [shape: bf16[128,128], index: 7, kind: input, shape index: {}]
  %s8 = inlined_call_operand.hbm [shape: f32[1,128], index: 8, kind: input, shape index: {}]
  %s9 = inlined_call_operand.hbm [shape: bf16[128,128], index: 9, kind: input, shape index: {}]
  %s10 = inlined_call_operand.hbm [shape: f32[1,128], index: 10, kind: input, shape index: {}]
  %s11 = inlined_call_operand.hbm [shape: f32[16,128], index: 11, kind: output, shape index: {}]
  %s12 = sld [smem:[#allocation0]]
  $region94: #{tpu_custom_call.1} parent=0
    _
  %s14 = ssub.s32 1, %s12
  %s15 = scalar_select 0, %s14, %s12
  $region1: #{tpu_custom_call.1} parent=0
    #allocation6 [shape = 'u8[163840]{0}', space=vmem, size = 0x28000, scoped, tag = 'input window, operand 1, single buffered']
    #allocation7 [shape = 's32[1]{0}', space=sflag, size = 0x4, scoped, tag = 'scoped memory for tpu_custom_call.1']
    #allocation8 [shape = 's32[1]{0}', space=sflag, size = 0x4, scoped, tag = 'scoped memory for tpu_custom_call.1']
    #allocation9 [shape = 'u8[2048]{0}', space=vmem, size = 0x800, scoped, tag = 'input window, operand 2, single buffered']
    #allocation10 [shape = 's32[1]{0}', space=sflag, size = 0x4, scoped, tag = 'scoped memory for tpu_custom_call.1']
    #allocation11 [shape = 'u8[1310720]{0}', space=vmem, size = 0x140000, scoped, tag = 'input window, operand 3, single buffered']
    #allocation12 [shape = 'u8[2048]{0}', space=vmem, size = 0x800, scoped, tag = 'input window, operand 4, single buffered']
    #allocation13 [shape = 's32[1]{0}', space=sflag, size = 0x4, scoped, tag = 'scoped memory for tpu_custom_call.1']
    #allocation14 [shape = 'u8[327680]{0}', space=vmem, size = 0x50000, scoped, tag = 'input window, operand 5, single buffered']
    #allocation15 [shape = 'u8[512]{0}', space=vmem, size = 0x400, scoped, tag = 'input window, operand 6, single buffered']
    #allocation16 [shape = 's32[1]{0}', space=sflag, size = 0x4, scoped, tag = 'scoped memory for tpu_custom_call.1']
    #allocation17 [shape = 'u8[32768]{0}', space=vmem, size = 0x8000, scoped, tag = 'input window, operand 7, single buffered']
    #allocation18 [shape = 'u8[512]{0}', space=vmem, size = 0x400, scoped, tag = 'input window, operand 8, single buffered']
    #allocation19 [shape = 's32[1]{0}', space=sflag, size = 0x4, scoped, tag = 'scoped memory for tpu_custom_call.1']
    #allocation20 [shape = 'u8[32768]{0}', space=vmem, size = 0x8000, scoped, tag = 'input window, operand 9, single buffered']
    #allocation21 [shape = 'u8[512]{0}', space=vmem, size = 0x400, scoped, tag = 'input window, operand 10, single buffered']
    #allocation22 [shape = 's32[1]{0}', space=sflag, size = 0x4, scoped, tag = 'scoped memory for tpu_custom_call.1']
    #allocation23 [shape = 'u8[8192]{0}', space=vmem, size = 0x2000, scoped, tag = 'output window, operand 0, single buffered']
    %16 = vsyncpa [#allocation7], 0
    %17 = vsyncpa [#allocation10], 0
    %18 = vsyncpa [#allocation13], 0
    %19 = vsyncpa [#allocation16], 0
    %20 = vsyncpa [#allocation19], 0
    %21 = vsyncpa [#allocation22], 0
    %22 = vsyncpa [#allocation8], 0
    // Predicated region
    $region2: #{tpu_custom_call.1} parent=1 // pred_check
      _
    $region3: #{tpu_custom_call.1} parent=1 // pred_check_branch
      %24 = sbr.rel (0) target = $region5
    $region4: #{tpu_custom_call.1} parent=1 // pred_region
      _
    $region5: #{tpu_custom_call.1} parent=1 // pred_fallthru
      _
    // Predicated region
    $region6: #{tpu_custom_call.1} parent=1 // pred_check
      _
    $region7: #{tpu_custom_call.1} parent=1 // pred_check_branch
      %26 = sbr.rel (0) target = $region9
    $region8: #{tpu_custom_call.1} parent=1 // pred_region
      %s28 = ssub.s32 5120, 5120
      %29 = vsyncadd [#allocation7], %s28
      %s30 = sshll.u32 [#allocation6], 4
      %s31 = int_to_ptr.vmem [resolvable:$true] %s30
      %36 = dma.hbm_to_vmem [thread:$0]  %s1, 5120, %s31, [#allocation7], 256, 256, 16
    $region9: #{tpu_custom_call.1} parent=1 // pred_fallthru
      _
    // Predicated region
    $region10: #{tpu_custom_call.1} parent=1 // pred_check
      _
    $region11: #{tpu_custom_call.1} parent=1 // pred_check_branch
      %38 = sbr.rel (0) target = $region13
    $region12: #{tpu_custom_call.1} parent=1 // pred_region
      %s40 = ssub.s32 64, 64
      %41 = vsyncadd [#allocation10], %s40
      %s43 = sshll.u32 [#allocation9], 4
      %s44 = int_to_ptr.vmem [resolvable:$true] %s43
      %46 = dma.hbm_to_vmem [thread:$0]  %s2, 64, %s44, [#allocation10]
    $region13: #{tpu_custom_call.1} parent=1 // pred_fallthru
      _
    // Predicated region
    $region14: #{tpu_custom_call.1} parent=1 // pred_check
      _
    $region15: #{tpu_custom_call.1} parent=1 // pred_check_branch
      %48 = sbr.rel (0) target = $region17
    $region16: #{tpu_custom_call.1} parent=1 // pred_region
      %s50 = ssub.s32 40960, 40960
      %51 = vsyncadd [#allocation10], %s50
      %s52 = sshll.u32 [#allocation11], 4
      %s53 = int_to_ptr.vmem [resolvable:$true] %s52
      %58 = dma.hbm_to_vmem [thread:$0]  %s3, 40960, %s53, [#allocation10], 256, 256, 16
    $region17: #{tpu_custom_call.1} parent=1 // pred_fallthru
      _
    // Predicated region
    $region18: #{tpu_custom_call.1} parent=1 // pred_check
      _
    $region19: #{tpu_custom_call.1} parent=1 // pred_check_branch
      %60 = sbr.rel (0) target = $region21
    $region20: #{tpu_custom_call.1} parent=1 // pred_region
      %s62 = ssub.s32 64, 64
      %63 = vsyncadd [#allocation13], %s62
      %s65 = sshll.u32 [#allocation12], 4
      %s66 = int_to_ptr.vmem [resolvable:$true] %s65
      %68 = dma.hbm_to_vmem [thread:$0]  %s4, 64, %s66, [#allocation13]
    $region21: #{tpu_custom_call.1} parent=1 // pred_fallthru
      _
    // Predicated region
    $region22: #{tpu_custom_call.1} parent=1 // pred_check
      _
    $region23: #{tpu_custom_call.1} parent=1 // pred_check_branch
      %70 = sbr.rel (0) target = $region25
    $region24: #{tpu_custom_call.1} parent=1 // pred_region
      %s72 = ssub.s32 10240, 10240
      %73 = vsyncadd [#allocation13], %s72
      %s74 = sshll.u32 [#allocation14], 4
      %s75 = int_to_ptr.vmem [resolvable:$true] %s74
      %80 = dma.hbm_to_vmem [thread:$0]  %s5, 10240, %s75, [#allocation13], 64, 64, 4
    $region25: #{tpu_custom_call.1} parent=1 // pred_fallthru
      _
    // Predicated region
    $region26: #{tpu_custom_call.1} parent=1 // pred_check
      _
    $region27: #{tpu_custom_call.1} parent=1 // pred_check_branch
      %82 = sbr.rel (0) target = $region29
    $region28: #{tpu_custom_call.1} parent=1 // pred_region
      %s84 = ssub.s32 16, 16
      %85 = vsyncadd [#allocation16], %s84
      %s87 = sshll.u32 [#allocation15], 4
      %s88 = int_to_ptr.vmem [resolvable:$true] %s87
      %90 = dma.hbm_to_vmem [thread:$0]  %s6, 16, %s88, [#allocation16]
    $region29: #{tpu_custom_call.1} parent=1 // pred_fallthru
      _
    // Predicated region
    $region30: #{tpu_custom_call.1} parent=1 // pred_check
      _
    $region31: #{tpu_custom_call.1} parent=1 // pred_check_branch
      %92 = sbr.rel (0) target = $region33
    $region32: #{tpu_custom_call.1} parent=1 // pred_region
      %s94 = ssub.s32 1024, 1024
      %95 = vsyncadd [#allocation16], %s94
      %s96 = sshll.u32 [#allocation17], 4
      %s97 = int_to_ptr.vmem [resolvable:$true] %s96
      %102 = dma.hbm_to_vmem [thread:$0]  %s7, 1024, %s97, [#allocation16], 64, 64, 4
    $region33: #{tpu_custom_call.1} parent=1 // pred_fallthru
      _
    // Predicated region
    $region34: #{tpu_custom_call.1} parent=1 // pred_check
      _
    $region35: #{tpu_custom_call.1} parent=1 // pred_check_branch
      %104 = sbr.rel (0) target = $region37
    $region36: #{tpu_custom_call.1} parent=1 // pred_region
      %s106 = ssub.s32 16, 16
      %107 = vsyncadd [#allocation19], %s106
      %s109 = sshll.u32 [#allocation18], 4
      %s110 = int_to_ptr.vmem [resolvable:$true] %s109
      %112 = dma.hbm_to_vmem [thread:$0]  %s8, 16, %s110, [#allocation19]
    $region37: #{tpu_custom_call.1} parent=1 // pred_fallthru
      _
    // Predicated region
    $region38: #{tpu_custom_call.1} parent=1 // pred_check
      _
    $region39: #{tpu_custom_call.1} parent=1 // pred_check_branch
      %114 = sbr.rel (0) target = $region41
    $region40: #{tpu_custom_call.1} parent=1 // pred_region
      %s116 = ssub.s32 1024, 1024
      %117 = vsyncadd [#allocation19], %s116
      %s118 = sshll.u32 [#allocation20], 4
      %s119 = int_to_ptr.vmem [resolvable:$true] %s118
      %124 = dma.hbm_to_vmem [thread:$0]  %s9, 1024, %s119, [#allocation19], 64, 64, 4
    $region41: #{tpu_custom_call.1} parent=1 // pred_fallthru
      _
    // Predicated region
    $region42: #{tpu_custom_call.1} parent=1 // pred_check
      _
    $region43: #{tpu_custom_call.1} parent=1 // pred_check_branch
      %126 = sbr.rel (0) target = $region45
    $region44: #{tpu_custom_call.1} parent=1 // pred_region
      %s128 = ssub.s32 16, 16
      %129 = vsyncadd [#allocation22], %s128
      %s131 = sshll.u32 [#allocation21], 4
      %s132 = int_to_ptr.vmem [resolvable:$true] %s131
      %134 = dma.hbm_to_vmem [thread:$0]  %s10, 16, %s132, [#allocation22]
    $region45: #{tpu_custom_call.1} parent=1 // pred_fallthru
      _
    // Predicated region
    $region46: #{tpu_custom_call.1} parent=1 // pred_check
      _
    $region47: #{tpu_custom_call.1} parent=1 // pred_check_branch
      %136 = sbr.rel (0) target = $region49
    $region48: #{tpu_custom_call.1} parent=1 // pred_region
      %137 = dma.done [#allocation7], 5120
    $region49: #{tpu_custom_call.1} parent=1 // pred_fallthru
      _
    // Predicated region
    $region50: #{tpu_custom_call.1} parent=1 // pred_check
      _
    $region51: #{tpu_custom_call.1} parent=1 // pred_check_branch
      %139 = sbr.rel (0) target = $region53
    $region52: #{tpu_custom_call.1} parent=1 // pred_region
      %140 = dma.done [#allocation10], 64
    $region53: #{tpu_custom_call.1} parent=1 // pred_fallthru
      _
    // Predicated region
    $region54: #{tpu_custom_call.1} parent=1 // pred_check
      _
    $region55: #{tpu_custom_call.1} parent=1 // pred_check_branch
      %142 = sbr.rel (0) target = $region57
    $region56: #{tpu_custom_call.1} parent=1 // pred_region
      %143 = dma.done [#allocation10], 40960
    $region57: #{tpu_custom_call.1} parent=1 // pred_fallthru
      _
    // Predicated region
    $region58: #{tpu_custom_call.1} parent=1 // pred_check
      _
    $region59: #{tpu_custom_call.1} parent=1 // pred_check_branch
      %145 = sbr.rel (0) target = $region61
    $region60: #{tpu_custom_call.1} parent=1 // pred_region
      %146 = dma.done [#allocation13], 64
    $region61: #{tpu_custom_call.1} parent=1 // pred_fallthru
      _
    // Predicated region
    $region62: #{tpu_custom_call.1} parent=1 // pred_check
      _
    $region63: #{tpu_custom_call.1} parent=1 // pred_check_branch
      %148 = sbr.rel (0) target = $region65
    $region64: #{tpu_custom_call.1} parent=1 // pred_region
      %149 = dma.done [#allocation13], 10240
    $region65: #{tpu_custom_call.1} parent=1 // pred_fallthru
      _
    // Predicated region
    $region66: #{tpu_custom_call.1} parent=1 // pred_check
      _
    $region67: #{tpu_custom_call.1} parent=1 // pred_check_branch
      %151 = sbr.rel (0) target = $region69
    $region68: #{tpu_custom_call.1} parent=1 // pred_region
      %152 = dma.done [#allocation16], 16
    $region69: #{tpu_custom_call.1} parent=1 // pred_fallthru
      _
    // Predicated region
    $region70: #{tpu_custom_call.1} parent=1 // pred_check
      _
    $region71: #{tpu_custom_call.1} parent=1 // pred_check_branch
      %154 = sbr.rel (0) target = $region73
    $region72: #{tpu_custom_call.1} parent=1 // pred_region
      %155 = dma.done [#allocation16], 1024
    $region73: #{tpu_custom_call.1} parent=1 // pred_fallthru
      _
    // Predicated region
    $region74: #{tpu_custom_call.1} parent=1 // pred_check
      _
    $region75: #{tpu_custom_call.1} parent=1 // pred_check_branch
      %157 = sbr.rel (0) target = $region77
    $region76: #{tpu_custom_call.1} parent=1 // pred_region
      %158 = dma.done [#allocation19], 16
    $region77: #{tpu_custom_call.1} parent=1 // pred_fallthru
      _
    // Predicated region
    $region78: #{tpu_custom_call.1} parent=1 // pred_check
      _
    $region79: #{tpu_custom_call.1} parent=1 // pred_check_branch
      %160 = sbr.rel (0) target = $region81
    $region80: #{tpu_custom_call.1} parent=1 // pred_region
      %161 = dma.done [#allocation19], 1024
    $region81: #{tpu_custom_call.1} parent=1 // pred_fallthru
      _
    // Predicated region
    $region82: #{tpu_custom_call.1} parent=1 // pred_check
      _
    $region83: #{tpu_custom_call.1} parent=1 // pred_check_branch
      %163 = sbr.rel (0) target = $region85
    $region84: #{tpu_custom_call.1} parent=1 // pred_region
      %164 = dma.done [#allocation22], 16
    $region85: #{tpu_custom_call.1} parent=1 // pred_fallthru
      _
    %v166 = vld [vmem:[%s0] sm:$0xff]
    %v167 = vld [vmem:[%s0 + $0x8] sm:$0xff]
    %v168 = vld [vmem:[%s0 + $0x10] sm:$0xff]
    %v169 = vld [vmem:[%s0 + $0x18] sm:$0xff]
    %v170 = vld [vmem:[%s0 + $0x20] sm:$0xff]
    %v171 = vld [vmem:[%s0 + $0x28] sm:$0xff]
    %v172 = vld [vmem:[%s0 + $0x30] sm:$0xff]
    %v173 = vld [vmem:[%s0 + $0x38] sm:$0xff]
    %v174 = vld [vmem:[%s0 + $0x40] sm:$0xff]
    %v175 = vld [vmem:[%s0 + $0x48] sm:$0xff]
    %v176 = vld [vmem:[%s0 + $0x50] sm:$0xff]
    %v177 = vld [vmem:[%s0 + $0x58] sm:$0xff]
    %v178 = vld [vmem:[%s0 + $0x60] sm:$0xff]
    %v179 = vld [vmem:[%s0 + $0x68] sm:$0xff]
    %v180 = vld [vmem:[%s0 + $0x70] sm:$0xff]
    %v181 = vld [vmem:[%s0 + $0x78] sm:$0xff]
    %v182 = vld [vmem:[%s0 + $0x80] sm:$0xff]
    %v183 = vld [vmem:[%s0 + $0x88] sm:$0xff]
    %v184 = vld [vmem:[%s0 + $0x90] sm:$0xff]
    %v185 = vld [vmem:[%s0 + $0x98] sm:$0xff]
    %v186 = vld [vmem:[%s0 + $0xa0] sm:$0xff]
    %v187 = vld [vmem:[%s0 + $0xa8] sm:$0xff]
    %v188 = vld [vmem:[%s0 + $0xb0] sm:$0xff]
    %v189 = vld [vmem:[%s0 + $0xb8] sm:$0xff]
    %v190 = vld [vmem:[%s0 + $0xc0] sm:$0xff]
    %v191 = vld [vmem:[%s0 + $0xc8] sm:$0xff]
    %v192 = vld [vmem:[%s0 + $0xd0] sm:$0xff]
    %v193 = vld [vmem:[%s0 + $0xd8] sm:$0xff]
    %v194 = vld [vmem:[%s0 + $0xe0] sm:$0xff]
    %v195 = vld [vmem:[%s0 + $0xe8] sm:$0xff]
    %v196 = vld [vmem:[%s0 + $0xf0] sm:$0xff]
    %v197 = vld [vmem:[%s0 + $0xf8] sm:$0xff]
    %v198 = vld [vmem:[%s0 + $0x100] sm:$0xff]
    %v199 = vld [vmem:[%s0 + $0x108] sm:$0xff]
    %v200 = vld [vmem:[%s0 + $0x110] sm:$0xff]
    %v201 = vld [vmem:[%s0 + $0x118] sm:$0xff]
    %v202 = vld [vmem:[%s0 + $0x120] sm:$0xff]
    %v203 = vld [vmem:[%s0 + $0x128] sm:$0xff]
    %v204 = vld [vmem:[%s0 + $0x130] sm:$0xff]
    %v205 = vld [vmem:[%s0 + $0x138] sm:$0xff]
    %v206 = vld [vmem:[%s0 + $0x140] sm:$0xff]
    %v207 = vld [vmem:[%s0 + $0x148] sm:$0xff]
    %v208 = vld [vmem:[%s0 + $0x150] sm:$0xff]
    %v209 = vld [vmem:[%s0 + $0x158] sm:$0xff]
    %v210 = vld [vmem:[%s0 + $0x160] sm:$0xff]
    %v211 = vld [vmem:[%s0 + $0x168] sm:$0xff]
    %v212 = vld [vmem:[%s0 + $0x170] sm:$0xff]
    %v213 = vld [vmem:[%s0 + $0x178] sm:$0xff]
    %v214 = vld [vmem:[%s0 + $0x180] sm:$0xff]
    %v215 = vld [vmem:[%s0 + $0x188] sm:$0xff]
    %v216 = vld [vmem:[%s0 + $0x190] sm:$0xff]
    %v217 = vld [vmem:[%s0 + $0x198] sm:$0xff]
    %v218 = vld [vmem:[%s0 + $0x1a0] sm:$0xff]
    %v219 = vld [vmem:[%s0 + $0x1a8] sm:$0xff]
    %v220 = vld [vmem:[%s0 + $0x1b0] sm:$0xff]
    %v221 = vld [vmem:[%s0 + $0x1b8] sm:$0xff]
    %v222 = vld [vmem:[#allocation6] sm:$0xff]
    %v223 = vld [vmem:[#allocation6 + $0x8] sm:$0xff]
    %v224 = vld [vmem:[#allocation6 + $0x10] sm:$0xff]
    %v225 = vld [vmem:[#allocation6 + $0x18] sm:$0xff]
    %v226 = vld [vmem:[#allocation6 + $0x20] sm:$0xff]
    %v227 = vld [vmem:[#allocation6 + $0x28] sm:$0xff]
    %v228 = vld [vmem:[#allocation6 + $0x30] sm:$0xff]
    %v229 = vld [vmem:[#allocation6 + $0x38] sm:$0xff]
    %v230 = vld [vmem:[#allocation6 + $0x40] sm:$0xff]
    %v231 = vld [vmem:[#allocation6 + $0x48] sm:$0xff]
    %v232 = vld [vmem:[#allocation6 + $0x50] sm:$0xff]
    %v233 = vld [vmem:[#allocation6 + $0x58] sm:$0xff]
    %v234 = vld [vmem:[#allocation6 + $0x60] sm:$0xff]
    %v235 = vld [vmem:[#allocation6 + $0x68] sm:$0xff]
    %v236 = vld [vmem:[#allocation6 + $0x70] sm:$0xff]
    %v237 = vld [vmem:[#allocation6 + $0x78] sm:$0xff]
    %v238 = vld [vmem:[#allocation6 + $0x80] sm:$0xff]
    %v239 = vld [vmem:[#allocation6 + $0x88] sm:$0xff]
    %v240 = vld [vmem:[#allocation6 + $0x90] sm:$0xff]
    %v241 = vld [vmem:[#allocation6 + $0x98] sm:$0xff]
    %v242 = vld [vmem:[#allocation6 + $0xa0] sm:$0xff]
    %v243 = vld [vmem:[#allocation6 + $0xa8] sm:$0xff]
    %v244 = vld [vmem:[#allocation6 + $0xb0] sm:$0xff]
    %v245 = vld [vmem:[#allocation6 + $0xb8] sm:$0xff]
    %v246 = vld [vmem:[#allocation6 + $0xc0] sm:$0xff]
    %v247 = vld [vmem:[#allocation6 + $0xc8] sm:$0xff]
    %v248 = vld [vmem:[#allocation6 + $0xd0] sm:$0xff]
    %v249 = vld [vmem:[#allocation6 + $0xd8] sm:$0xff]
    %v250 = vld [vmem:[#allocation6 + $0xe0] sm:$0xff]
    %v251 = vld [vmem:[#allocation6 + $0xe8] sm:$0xff]
    %v252 = vld [vmem:[#allocation6 + $0xf0] sm:$0xff]
    %v253 = vld [vmem:[#allocation6 + $0xf8] sm:$0xff]
    %v254 = vld [vmem:[#allocation6 + $0x100] sm:$0xff]
    %v255 = vld [vmem:[#allocation6 + $0x108] sm:$0xff]
    %v256 = vld [vmem:[#allocation6 + $0x110] sm:$0xff]
    %v257 = vld [vmem:[#allocation6 + $0x118] sm:$0xff]
    %v258 = vld [vmem:[#allocation6 + $0x120] sm:$0xff]
    %v259 = vld [vmem:[#allocation6 + $0x128] sm:$0xff]
    %v260 = vld [vmem:[#allocation6 + $0x130] sm:$0xff]
    %v261 = vld [vmem:[#allocation6 + $0x138] sm:$0xff]
    %v262 = vld [vmem:[#allocation9] sm:$0xf]
    %v264 = vlaneseq
    %v265 = vshrl.u32 %v264, 7
    %v266 = vsub.s32 0, %v265
    %v267 = vrot.slane %v262, %v266
    %v268 = vlaneseq
    %v269 = vshrl.u32 %v268, 7
    %v270 = vsub.s32 1, %v269
    %v271 = vrot.slane %v262, %v270
    %v272 = vlaneseq
    %v273 = vshrl.u32 %v272, 7
    %v274 = vsub.s32 2, %v273
    %v275 = vrot.slane %v262, %v274
    %v276 = vlaneseq
    %v277 = vshrl.u32 %v276, 7
    %v278 = vsub.s32 3, %v277
    %v279 = vrot.slane %v262, %v278
    %v340 = vunpack.c.l.b16 %v166
    %v341 = vunpack.c.h.b16 %v166
    %v342 = vunpack.c.l.b16 %v167
    %v343 = vunpack.c.h.b16 %v167
    %v344 = vunpack.c.l.b16 %v168
    %v345 = vunpack.c.h.b16 %v168
    %v346 = vunpack.c.l.b16 %v169
    %v347 = vunpack.c.h.b16 %v169
    %v348 = vunpack.c.l.b16 %v170
    %v349 = vunpack.c.h.b16 %v170
    %v350 = vunpack.c.l.b16 %v171
    %v351 = vunpack.c.h.b16 %v171
    %v352 = vunpack.c.l.b16 %v172
    %v353 = vunpack.c.h.b16 %v172
    %v354 = vunpack.c.l.b16 %v173
    %v355 = vunpack.c.h.b16 %v173
    %v356 = vunpack.c.l.b16 %v174
    %v357 = vunpack.c.h.b16 %v174
    %v358 = vunpack.c.l.b16 %v175
    %v359 = vunpack.c.h.b16 %v175
    %v360 = vunpack.c.l.b16 %v176
    %v361 = vunpack.c.h.b16 %v176
    %v362 = vunpack.c.l.b16 %v177
    %v363 = vunpack.c.h.b16 %v177
    %v364 = vunpack.c.l.b16 %v178
    %v365 = vunpack.c.h.b16 %v178
    %v366 = vunpack.c.l.b16 %v179
    %v367 = vunpack.c.h.b16 %v179
    %v368 = vunpack.c.l.b16 %v180
    %v369 = vunpack.c.h.b16 %v180
    %v370 = vunpack.c.l.b16 %v181
    %v371 = vunpack.c.h.b16 %v181
    %v372 = vunpack.c.l.b16 %v182
    %v373 = vunpack.c.h.b16 %v182
    %v374 = vunpack.c.l.b16 %v183
    %v375 = vunpack.c.h.b16 %v183
    %v376 = vunpack.c.l.b16 %v184
    %v377 = vunpack.c.h.b16 %v184
    %v378 = vunpack.c.l.b16 %v185
    %v379 = vunpack.c.h.b16 %v185
    %v380 = vunpack.c.l.b16 %v186
    %v381 = vunpack.c.h.b16 %v186
    %v382 = vunpack.c.l.b16 %v187
    %v383 = vunpack.c.h.b16 %v187
    %v384 = vunpack.c.l.b16 %v188
    %v385 = vunpack.c.h.b16 %v188
    %v386 = vunpack.c.l.b16 %v189
    %v387 = vunpack.c.h.b16 %v189
    %v388 = vunpack.c.l.b16 %v190
    %v389 = vunpack.c.h.b16 %v190
    %v390 = vunpack.c.l.b16 %v191
    %v391 = vunpack.c.h.b16 %v191
    %v392 = vunpack.c.l.b16 %v192
    %v393 = vunpack.c.h.b16 %v192
    %v394 = vunpack.c.l.b16 %v193
    %v395 = vunpack.c.h.b16 %v193
    %v396 = vunpack.c.l.b16 %v194
    %v397 = vunpack.c.h.b16 %v194
    %v398 = vunpack.c.l.b16 %v195
    %v399 = vunpack.c.h.b16 %v195
    %v400 = vunpack.c.l.b16 %v196
    %v401 = vunpack.c.h.b16 %v196
    %v402 = vunpack.c.l.b16 %v197
    %v403 = vunpack.c.h.b16 %v197
    %v404 = vunpack.c.l.b16 %v198
    %v405 = vunpack.c.h.b16 %v198
    %v406 = vunpack.c.l.b16 %v199
    %v407 = vunpack.c.h.b16 %v199
    %v408 = vunpack.c.l.b16 %v200
    %v409 = vunpack.c.h.b16 %v200
    %v410 = vunpack.c.l.b16 %v201
    %v411 = vunpack.c.h.b16 %v201
    %v412 = vunpack.c.l.b16 %v202
    %v413 = vunpack.c.h.b16 %v202
    %v414 = vunpack.c.l.b16 %v203
    %v415 = vunpack.c.h.b16 %v203
    %v416 = vunpack.c.l.b16 %v204
    %v417 = vunpack.c.h.b16 %v204
    %v418 = vunpack.c.l.b16 %v205
    %v419 = vunpack.c.h.b16 %v205
    %v420 = vunpack.c.l.b16 %v206
    %v421 = vunpack.c.h.b16 %v206
    %v422 = vunpack.c.l.b16 %v207
    %v423 = vunpack.c.h.b16 %v207
    %v424 = vunpack.c.l.b16 %v208
    %v425 = vunpack.c.h.b16 %v208
    %v426 = vunpack.c.l.b16 %v209
    %v427 = vunpack.c.h.b16 %v209
    %v428 = vunpack.c.l.b16 %v210
    %v429 = vunpack.c.h.b16 %v210
    %v430 = vunpack.c.l.b16 %v211
    %v431 = vunpack.c.h.b16 %v211
    %v432 = vunpack.c.l.b16 %v212
    %v433 = vunpack.c.h.b16 %v212
    %v434 = vunpack.c.l.b16 %v213
    %v435 = vunpack.c.h.b16 %v213
    %v436 = vunpack.c.l.b16 %v214
    %v437 = vunpack.c.h.b16 %v214
    %v438 = vunpack.c.l.b16 %v215
    %v439 = vunpack.c.h.b16 %v215
    %v440 = vunpack.c.l.b16 %v216
    %v441 = vunpack.c.h.b16 %v216
    %v442 = vunpack.c.l.b16 %v217
    %v443 = vunpack.c.h.b16 %v217
    %v444 = vunpack.c.l.b16 %v218
    %v445 = vunpack.c.h.b16 %v218
    %v446 = vunpack.c.l.b16 %v219
    %v447 = vunpack.c.h.b16 %v219
    %v448 = vunpack.c.l.b16 %v220
    %v449 = vunpack.c.h.b16 %v220
    %v450 = vunpack.c.l.b16 %v221
    %v451 = vunpack.c.h.b16 %v221
    %v452 = vpack.c.b16 %v342, %v340
    %v453 = vpack.c.b16 %v343, %v341
    %v454 = vpack.c.b16 %v346, %v344
    %v455 = vpack.c.b16 %v347, %v345
    %v456 = vpack.c.b16 %v350, %v348
    %v457 = vpack.c.b16 %v351, %v349
    %v458 = vpack.c.b16 %v354, %v352
    %v459 = vpack.c.b16 %v355, %v353
    %v460 = vpack.c.b16 %v358, %v356
    %v461 = vpack.c.b16 %v359, %v357
    %v462 = vpack.c.b16 %v362, %v360
    %v463 = vpack.c.b16 %v363, %v361
    %v464 = vpack.c.b16 %v366, %v364
    %v465 = vpack.c.b16 %v367, %v365
    %v466 = vpack.c.b16 %v370, %v368
    %v467 = vpack.c.b16 %v371, %v369
    %v468 = vpack.c.b16 %v374, %v372
    %v469 = vpack.c.b16 %v375, %v373
    %v470 = vpack.c.b16 %v378, %v376
    %v471 = vpack.c.b16 %v379, %v377
    %v472 = vpack.c.b16 %v382, %v380
    %v473 = vpack.c.b16 %v383, %v381
    %v474 = vpack.c.b16 %v386, %v384
    %v475 = vpack.c.b16 %v387, %v385
    %v476 = vpack.c.b16 %v390, %v388
    %v477 = vpack.c.b16 %v391, %v389
    %v478 = vpack.c.b16 %v394, %v392
    %v479 = vpack.c.b16 %v395, %v393
    %v480 = vpack.c.b16 %v398, %v396
    %v481 = vpack.c.b16 %v399, %v397
    %v482 = vpack.c.b16 %v402, %v400
    %v483 = vpack.c.b16 %v403, %v401
    %v484 = vpack.c.b16 %v406, %v404
    %v485 = vpack.c.b16 %v407, %v405
    %v486 = vpack.c.b16 %v410, %v408
    %v487 = vpack.c.b16 %v411, %v409
    %v488 = vpack.c.b16 %v414, %v412
    %v489 = vpack.c.b16 %v415, %v413
    %v490 = vpack.c.b16 %v418, %v416
    %v491 = vpack.c.b16 %v419, %v417
    %v492 = vpack.c.b16 %v422, %v420
    %v493 = vpack.c.b16 %v423, %v421
    %v494 = vpack.c.b16 %v426, %v424
    %v495 = vpack.c.b16 %v427, %v425
    %v496 = vpack.c.b16 %v430, %v428
    %v497 = vpack.c.b16 %v431, %v429
    %v498 = vpack.c.b16 %v434, %v432
    %v499 = vpack.c.b16 %v435, %v433
    %v500 = vpack.c.b16 %v438, %v436
    %v501 = vpack.c.b16 %v439, %v437
    %v502 = vpack.c.b16 %v442, %v440
    %v503 = vpack.c.b16 %v443, %v441
    %v504 = vpack.c.b16 %v446, %v444
    %v505 = vpack.c.b16 %v447, %v445
    %v506 = vpack.c.b16 %v450, %v448
    %v507 = vpack.c.b16 %v451, %v449
    %v576 = vunpack.c.l.b16 %v222
    %v577 = vunpack.c.h.b16 %v222
    %v578 = vunpack.c.l.b16 %v223
    %v579 = vunpack.c.h.b16 %v223
    %v580 = vunpack.c.l.b16 %v224
    %v581 = vunpack.c.h.b16 %v224
    %v582 = vunpack.c.l.b16 %v225
    %v583 = vunpack.c.h.b16 %v225
    %v584 = vunpack.c.l.b16 %v226
    %v585 = vunpack.c.h.b16 %v226
    %v586 = vunpack.c.l.b16 %v227
    %v587 = vunpack.c.h.b16 %v227
    %v588 = vunpack.c.l.b16 %v228
    %v589 = vunpack.c.h.b16 %v228
    %v590 = vunpack.c.l.b16 %v229
    %v591 = vunpack.c.h.b16 %v229
    %v592 = vunpack.c.l.b16 %v230
    %v593 = vunpack.c.h.b16 %v230
    %v594 = vunpack.c.l.b16 %v231
    %v595 = vunpack.c.h.b16 %v231
    %v596 = vunpack.c.l.b16 %v232
    %v597 = vunpack.c.h.b16 %v232
    %v598 = vunpack.c.l.b16 %v233
    %v599 = vunpack.c.h.b16 %v233
    %v600 = vunpack.c.l.b16 %v234
    %v601 = vunpack.c.h.b16 %v234
    %v602 = vunpack.c.l.b16 %v235
    %v603 = vunpack.c.h.b16 %v235
    %v604 = vunpack.c.l.b16 %v236
    %v605 = vunpack.c.h.b16 %v236
    %v606 = vunpack.c.l.b16 %v237
    %v607 = vunpack.c.h.b16 %v237
    %v608 = vunpack.c.l.b16 %v238
    %v609 = vunpack.c.h.b16 %v238
    %v610 = vunpack.c.l.b16 %v239
    %v611 = vunpack.c.h.b16 %v239
    %v612 = vunpack.c.l.b16 %v240
    %v613 = vunpack.c.h.b16 %v240
    %v614 = vunpack.c.l.b16 %v241
    %v615 = vunpack.c.h.b16 %v241
    %v616 = vunpack.c.l.b16 %v242
    %v617 = vunpack.c.h.b16 %v242
    %v618 = vunpack.c.l.b16 %v243
    %v619 = vunpack.c.h.b16 %v243
    %v620 = vunpack.c.l.b16 %v244
    %v621 = vunpack.c.h.b16 %v244
    %v622 = vunpack.c.l.b16 %v245
    %v623 = vunpack.c.h.b16 %v245
    %v624 = vunpack.c.l.b16 %v246
    %v625 = vunpack.c.h.b16 %v246
    %v626 = vunpack.c.l.b16 %v247
    %v627 = vunpack.c.h.b16 %v247
    %v628 = vunpack.c.l.b16 %v248
    %v629 = vunpack.c.h.b16 %v248
    %v630 = vunpack.c.l.b16 %v249
    %v631 = vunpack.c.h.b16 %v249
    %v632 = vunpack.c.l.b16 %v250
    %v633 = vunpack.c.h.b16 %v250
    %v634 = vunpack.c.l.b16 %v251
    %v635 = vunpack.c.h.b16 %v251
    %v636 = vunpack.c.l.b16 %v252
    %v637 = vunpack.c.h.b16 %v252
    %v638 = vunpack.c.l.b16 %v253
    %v639 = vunpack.c.h.b16 %v253
    %v640 = vunpack.c.l.b16 %v254
    %v641 = vunpack.c.h.b16 %v254
    %v642 = vunpack.c.l.b16 %v255
    %v643 = vunpack.c.h.b16 %v255
    %v644 = vunpack.c.l.b16 %v256
    %v645 = vunpack.c.h.b16 %v256
    %v646 = vunpack.c.l.b16 %v257
    %v647 = vunpack.c.h.b16 %v257
    %v648 = vunpack.c.l.b16 %v258
    %v649 = vunpack.c.h.b16 %v258
    %v650 = vunpack.c.l.b16 %v259
    %v651 = vunpack.c.h.b16 %v259
    %v652 = vunpack.c.l.b16 %v260
    %v653 = vunpack.c.h.b16 %v260
    %v654 = vunpack.c.l.b16 %v261
    %v655 = vunpack.c.h.b16 %v261
    %v656 = vpack.c.b16 %v580, %v576
    %v657 = vpack.c.b16 %v581, %v577
    %v658 = vpack.c.b16 %v582, %v578
    %v659 = vpack.c.b16 %v583, %v579
    %v660 = vpack.c.b16 %v588, %v584
    %v661 = vpack.c.b16 %v589, %v585
    %v662 = vpack.c.b16 %v590, %v586
    %v663 = vpack.c.b16 %v591, %v587
    %v664 = vpack.c.b16 %v596, %v592
    %v665 = vpack.c.b16 %v597, %v593
    %v666 = vpack.c.b16 %v598, %v594
    %v667 = vpack.c.b16 %v599, %v595
    %v668 = vpack.c.b16 %v604, %v600
    %v669 = vpack.c.b16 %v605, %v601
    %v670 = vpack.c.b16 %v606, %v602
    %v671 = vpack.c.b16 %v607, %v603
    %v672 = vpack.c.b16 %v612, %v608
    %v673 = vpack.c.b16 %v613, %v609
    %v674 = vpack.c.b16 %v614, %v610
    %v675 = vpack.c.b16 %v615, %v611
    %v676 = vpack.c.b16 %v620, %v616
    %v677 = vpack.c.b16 %v621, %v617
    %v678 = vpack.c.b16 %v622, %v618
    %v679 = vpack.c.b16 %v623, %v619
    %v680 = vpack.c.b16 %v628, %v624
    %v681 = vpack.c.b16 %v629, %v625
    %v682 = vpack.c.b16 %v630, %v626
    %v683 = vpack.c.b16 %v631, %v627
    %v684 = vpack.c.b16 %v636, %v632
    %v685 = vpack.c.b16 %v637, %v633
    %v686 = vpack.c.b16 %v638, %v634
    %v687 = vpack.c.b16 %v639, %v635
    %v688 = vpack.c.b16 %v644, %v640
    %v689 = vpack.c.b16 %v645, %v641
    %v690 = vpack.c.b16 %v646, %v642
    %v691 = vpack.c.b16 %v647, %v643
    %v692 = vpack.c.b16 %v652, %v648
    %v693 = vpack.c.b16 %v653, %v649
    %v694 = vpack.c.b16 %v654, %v650
    %v695 = vpack.c.b16 %v655, %v651
    %vm736 = vcmask 261120
    %v738 = vsel %vm736, %v453, 0
    %v741 = vsel %vm736, %v455, 0
    %v744 = vsel %vm736, %v457, 0
    %v747 = vsel %vm736, %v459, 0
    %v750 = vsel %vm736, %v461, 0
    %v753 = vsel %vm736, %v463, 0
    %v756 = vsel %vm736, %v465, 0
    %v759 = vsel %vm736, %v467, 0
    %v762 = vsel %vm736, %v469, 0
    %v765 = vsel %vm736, %v471, 0
    %v768 = vsel %vm736, %v473, 0
    %v771 = vsel %vm736, %v475, 0
    %v774 = vsel %vm736, %v477, 0
    %v777 = vsel %vm736, %v479, 0
    %v780 = vsel %vm736, %v481, 0
    %v783 = vsel %vm736, %v483, 0
    %v786 = vsel %vm736, %v485, 0
    %v789 = vsel %vm736, %v487, 0
    %v792 = vsel %vm736, %v489, 0
    %v795 = vsel %vm736, %v491, 0
    %v798 = vsel %vm736, %v493, 0
    %v801 = vsel %vm736, %v495, 0
    %v804 = vsel %vm736, %v497, 0
    %v807 = vsel %vm736, %v499, 0
    %v810 = vsel %vm736, %v501, 0
    %v813 = vsel %vm736, %v503, 0
    %v816 = vsel %vm736, %v505, 0
    %v819 = vsel %vm736, %v507, 0
    %821 = vmatprep.subr.bf16.mxu0 %v657
    %822 = vmatpush1.bf16.msra.mxu0 %v656
    %823 = vmatprep.subr.bf16.mxu0 %v661
    %824 = vmatpush1.bf16.msra.mxu0 %v660
    %825 = vmatprep.subr.bf16.mxu0 %v665
    %826 = vmatpush1.bf16.msra.mxu0 %v664
    %827 = vmatprep.subr.bf16.mxu0 %v669
    %828 = vmatpush1.bf16.msra.mxu0 %v668
    %829 = vmatprep.subr.bf16.mxu0 %v673
    %830 = vmatpush1.bf16.msra.mxu0 %v672
    %831 = vmatprep.subr.bf16.mxu0 %v677
    %832 = vmatpush1.bf16.msra.mxu0 %v676
    %833 = vmatprep.subr.bf16.mxu0 %v681
    %834 = vmatpush1.bf16.msra.mxu0 %v680
    %835 = vmatprep.subr.bf16.mxu0 %v685
    %836 = vmatpush1.bf16.msra.mxu0 %v684
    %837 = vmatprep.subr.bf16.mxu0 %v689
    %838 = vmatpush1.bf16.msra.mxu0 %v688
    %839 = vmatprep.subr.bf16.mxu0 %v693
    %840 = vmatpush1.bf16.msra.mxu0 %v692
    %841 = vmatprep.subr.bf16.mxu0 0
    %842 = vmatpush1.bf16.msra.mxu0 0
    %843 = vmatprep.subr.bf16.mxu0 0
    %844 = vmatpush1.bf16.msra.mxu0 0
    %845 = vmatprep.subr.bf16.mxu0 0
    %846 = vmatpush1.bf16.msra.mxu0 0
    %847 = vmatprep.subr.bf16.mxu0 0
    %848 = vmatpush1.bf16.msra.mxu0 0
    %849 = vmatprep.subr.bf16.mxu0 0
    %850 = vmatpush1.bf16.msra.mxu0 0
    %851 = vmatprep.subr.bf16.mxu0 0
    %852 = vmatpush1.bf16.msra.mxu0 0
    %853 = vmatprep.mubr.bf16.mxu0 %v738
    %854 = vmatmul.mubr.bf16.gmra.mrb[0].mxu0 %v452
    %v855 = vpop.f32.mrb[0].mxu0
    %v856 = vadd.f32 %v267, %v855
    %v857 = vpop.f32.mrb[0].mxu0
    %v858 = vadd.f32 %v271, %v857
    %v859 = vpop.f32.mrb[0].mxu0
    %v860 = vadd.f32 %v267, %v859
    %v861 = vpop.f32.mrb[0].mxu0
    %v862 = vadd.f32 %v271, %v861
    %863 = vmatprep.mubr.bf16.mxu0 %v741
    %864 = vmatmul.mubr.bf16.gmra.mrb[0].mxu0 %v454
    %v865 = vpop.f32.mrb[0].mxu0
    %v866 = vadd.f32 %v267, %v865
    %v867 = vpop.f32.mrb[0].mxu0
    %v868 = vadd.f32 %v271, %v867
    %v869 = vpop.f32.mrb[0].mxu0
    %v870 = vadd.f32 %v267, %v869
    %v871 = vpop.f32.mrb[0].mxu0
    %v872 = vadd.f32 %v271, %v871
    %873 = vmatprep.mubr.bf16.mxu0 %v744
    %874 = vmatmul.mubr.bf16.gmra.mrb[0].mxu0 %v456
    %v875 = vpop.f32.mrb[0].mxu0
    %v876 = vadd.f32 %v267, %v875
    %v877 = vpop.f32.mrb[0].mxu0
    %v878 = vadd.f32 %v271, %v877
    %v879 = vpop.f32.mrb[0].mxu0
    %v880 = vadd.f32 %v267, %v879
    %v881 = vpop.f32.mrb[0].mxu0
    %v882 = vadd.f32 %v271, %v881
    %883 = vmatprep.mubr.bf16.mxu0 %v747
    %884 = vmatmul.mubr.bf16.gmra.mrb[0].mxu0 %v458
    %v885 = vpop.f32.mrb[0].mxu0
    %v886 = vadd.f32 %v267, %v885
    %v887 = vpop.f32.mrb[0].mxu0
    %v888 = vadd.f32 %v271, %v887
    %v889 = vpop.f32.mrb[0].mxu0
    %v890 = vadd.f32 %v267, %v889
    %v891 = vpop.f32.mrb[0].mxu0
    %v892 = vadd.f32 %v271, %v891
    %893 = vmatprep.mubr.bf16.mxu0 %v750
    %894 = vmatmul.mubr.bf16.gmra.mrb[0].mxu0 %v460
    %v895 = vpop.f32.mrb[0].mxu0
    %v896 = vadd.f32 %v267, %v895
    %v897 = vpop.f32.mrb[0].mxu0
    %v898 = vadd.f32 %v271, %v897
    %v899 = vpop.f32.mrb[0].mxu0
    %v900 = vadd.f32 %v267, %v899
    %v901 = vpop.f32.mrb[0].mxu0
    %v902 = vadd.f32 %v271, %v901
    %903 = vmatprep.mubr.bf16.mxu0 %v753
    %904 = vmatmul.mubr.bf16.gmra.mrb[0].mxu0 %v462
    %v905 = vpop.f32.mrb[0].mxu0
    %v906 = vadd.f32 %v267, %v905
    %v907 = vpop.f32.mrb[0].mxu0
    %v908 = vadd.f32 %v271, %v907
    %v909 = vpop.f32.mrb[0].mxu0
    %v910 = vadd.f32 %v267, %v909
    %v911 = vpop.f32.mrb[0].mxu0
    %v912 = vadd.f32 %v271, %v911
    %913 = vmatprep.mubr.bf16.mxu0 %v756
    %914 = vmatmul.mubr.bf16.gmra.mrb[0].mxu0 %v464
    %v915 = vpop.f32.mrb[0].mxu0
    %v916 = vadd.f32 %v267, %v915
    %v917 = vpop.f32.mrb[0].mxu0
    %v918 = vadd.f32 %v271, %v917
    %v919 = vpop.f32.mrb[0].mxu0
    %v920 = vadd.f32 %v267, %v919
    %v921 = vpop.f32.mrb[0].mxu0
    %v922 = vadd.f32 %v271, %v921
    %923 = vmatprep.mubr.bf16.mxu0 %v759
    %924 = vmatmul.mubr.bf16.gmra.mrb[0].mxu0 %v466
    %v925 = vpop.f32.mrb[0].mxu0
    %v926 = vadd.f32 %v267, %v925
    %v927 = vpop.f32.mrb[0].mxu0
    %v928 = vadd.f32 %v271, %v927
    %v929 = vpop.f32.mrb[0].mxu0
    %v930 = vadd.f32 %v267, %v929
    %v931 = vpop.f32.mrb[0].mxu0
    %v932 = vadd.f32 %v271, %v931
    %933 = vmatprep.mubr.bf16.mxu0 %v762
    %934 = vmatmul.mubr.bf16.gmra.mrb[0].mxu0 %v468
    %v935 = vpop.f32.mrb[0].mxu0
    %v936 = vadd.f32 %v267, %v935
    %v937 = vpop.f32.mrb[0].mxu0
    %v938 = vadd.f32 %v271, %v937
    %v939 = vpop.f32.mrb[0].mxu0
    %v940 = vadd.f32 %v267, %v939
    %v941 = vpop.f32.mrb[0].mxu0
    %v942 = vadd.f32 %v271, %v941
    %943 = vmatprep.mubr.bf16.mxu0 %v765
    %944 = vmatmul.mubr.bf16.gmra.mrb[0].mxu0 %v470
    %v945 = vpop.f32.mrb[0].mxu0
    %v946 = vadd.f32 %v267, %v945
    %v947 = vpop.f32.mrb[0].mxu0
    %v948 = vadd.f32 %v271, %v947
    %v949 = vpop.f32.mrb[0].mxu0
    %v950 = vadd.f32 %v267, %v949
    %v951 = vpop.f32.mrb[0].mxu0
    %v952 = vadd.f32 %v271, %v951
    %953 = vmatprep.mubr.bf16.mxu0 %v768
    %954 = vmatmul.mubr.bf16.gmra.mrb[0].mxu0 %v472
    %v955 = vpop.f32.mrb[0].mxu0
    %v956 = vadd.f32 %v267, %v955
    %v957 = vpop.f32.mrb[0].mxu0
    %v958 = vadd.f32 %v271, %v957
    %v959 = vpop.f32.mrb[0].mxu0
    %v960 = vadd.f32 %v267, %v959
    %v961 = vpop.f32.mrb[0].mxu0
    %v962 = vadd.f32 %v271, %v961
    %963 = vmatprep.mubr.bf16.mxu0 %v771
    %964 = vmatmul.mubr.bf16.gmra.mrb[0].mxu0 %v474
    %v965 = vpop.f32.mrb[0].mxu0
    %v966 = vadd.f32 %v267, %v965
    %v967 = vpop.f32.mrb[0].mxu0
    %v968 = vadd.f32 %v271, %v967
    %v969 = vpop.f32.mrb[0].mxu0
    %v970 = vadd.f32 %v267, %v969
    %v971 = vpop.f32.mrb[0].mxu0
    %v972 = vadd.f32 %v271, %v971
    %973 = vmatprep.mubr.bf16.mxu0 %v774
    %974 = vmatmul.mubr.bf16.gmra.mrb[0].mxu0 %v476
    %v975 = vpop.f32.mrb[0].mxu0
    %v976 = vadd.f32 %v267, %v975
    %v977 = vpop.f32.mrb[0].mxu0
    %v978 = vadd.f32 %v271, %v977
    %v979 = vpop.f32.mrb[0].mxu0
    %v980 = vadd.f32 %v267, %v979
    %v981 = vpop.f32.mrb[0].mxu0
    %v982 = vadd.f32 %v271, %v981
    %983 = vmatprep.mubr.bf16.mxu0 %v777
    %984 = vmatmul.mubr.bf16.gmra.mrb[0].mxu0 %v478
    %v985 = vpop.f32.mrb[0].mxu0
    %v986 = vadd.f32 %v267, %v985
    %v987 = vpop.f32.mrb[0].mxu0
    %v988 = vadd.f32 %v271, %v987
    %v989 = vpop.f32.mrb[0].mxu0
    %v990 = vadd.f32 %v267, %v989
    %v991 = vpop.f32.mrb[0].mxu0
    %v992 = vadd.f32 %v271, %v991
    %993 = vmatprep.mubr.bf16.mxu0 %v780
    %994 = vmatmul.mubr.bf16.gmra.mrb[0].mxu0 %v480
    %v995 = vpop.f32.mrb[0].mxu0
    %v996 = vadd.f32 %v267, %v995
    %v997 = vpop.f32.mrb[0].mxu0
    %v998 = vadd.f32 %v271, %v997
    %v999 = vpop.f32.mrb[0].mxu0
    %v1000 = vadd.f32 %v267, %v999
    %v1001 = vpop.f32.mrb[0].mxu0
    %v1002 = vadd.f32 %v271, %v1001
    %1003 = vmatprep.mubr.bf16.mxu0 %v783
    %1004 = vmatmul.mubr.bf16.gmra.mrb[0].mxu0 %v482
    %v1005 = vpop.f32.mrb[0].mxu0
    %v1006 = vadd.f32 %v267, %v1005
    %v1007 = vpop.f32.mrb[0].mxu0
    %v1008 = vadd.f32 %v271, %v1007
    %v1009 = vpop.f32.mrb[0].mxu0
    %v1010 = vadd.f32 %v267, %v1009
    %v1011 = vpop.f32.mrb[0].mxu0
    %v1012 = vadd.f32 %v271, %v1011
    %1013 = vmatprep.mubr.bf16.mxu0 %v786
    %1014 = vmatmul.mubr.bf16.gmra.mrb[0].mxu0 %v484
    %v1015 = vpop.f32.mrb[0].mxu0
    %v1016 = vadd.f32 %v267, %v1015
    %v1017 = vpop.f32.mrb[0].mxu0
    %v1018 = vadd.f32 %v271, %v1017
    %v1019 = vpop.f32.mrb[0].mxu0
    %v1020 = vadd.f32 %v267, %v1019
    %v1021 = vpop.f32.mrb[0].mxu0
    %v1022 = vadd.f32 %v271, %v1021
    %1023 = vmatprep.mubr.bf16.mxu0 %v789
    %1024 = vmatmul.mubr.bf16.gmra.mrb[0].mxu0 %v486
    %v1025 = vpop.f32.mrb[0].mxu0
    %v1026 = vadd.f32 %v267, %v1025
    %v1027 = vpop.f32.mrb[0].mxu0
    %v1028 = vadd.f32 %v271, %v1027
    %v1029 = vpop.f32.mrb[0].mxu0
    %v1030 = vadd.f32 %v267, %v1029
    %v1031 = vpop.f32.mrb[0].mxu0
    %v1032 = vadd.f32 %v271, %v1031
    %1033 = vmatprep.mubr.bf16.mxu0 %v792
    %1034 = vmatmul.mubr.bf16.gmra.mrb[0].mxu0 %v488
    %v1035 = vpop.f32.mrb[0].mxu0
    %v1036 = vadd.f32 %v267, %v1035
    %v1037 = vpop.f32.mrb[0].mxu0
    %v1038 = vadd.f32 %v271, %v1037
    %v1039 = vpop.f32.mrb[0].mxu0
    %v1040 = vadd.f32 %v267, %v1039
    %v1041 = vpop.f32.mrb[0].mxu0
    %v1042 = vadd.f32 %v271, %v1041
    %1043 = vmatprep.mubr.bf16.mxu0 %v795
    %1044 = vmatmul.mubr.bf16.gmra.mrb[0].mxu0 %v490
    %v1045 = vpop.f32.mrb[0].mxu0
    %v1046 = vadd.f32 %v267, %v1045
    %v1047 = vpop.f32.mrb[0].mxu0
    %v1048 = vadd.f32 %v271, %v1047
    %v1049 = vpop.f32.mrb[0].mxu0
    %v1050 = vadd.f32 %v267, %v1049
    %v1051 = vpop.f32.mrb[0].mxu0
    %v1052 = vadd.f32 %v271, %v1051
    %1053 = vmatprep.mubr.bf16.mxu0 %v798
    %1054 = vmatmul.mubr.bf16.gmra.mrb[0].mxu0 %v492
    %v1055 = vpop.f32.mrb[0].mxu0
    %v1056 = vadd.f32 %v267, %v1055
    %v1057 = vpop.f32.mrb[0].mxu0
    %v1058 = vadd.f32 %v271, %v1057
    %v1059 = vpop.f32.mrb[0].mxu0
    %v1060 = vadd.f32 %v267, %v1059
    %v1061 = vpop.f32.mrb[0].mxu0
    %v1062 = vadd.f32 %v271, %v1061
    %1063 = vmatprep.mubr.bf16.mxu0 %v801
    %1064 = vmatmul.mubr.bf16.gmra.mrb[0].mxu0 %v494
    %v1065 = vpop.f32.mrb[0].mxu0
    %v1066 = vadd.f32 %v267, %v1065
    %v1067 = vpop.f32.mrb[0].mxu0
    %v1068 = vadd.f32 %v271, %v1067
    %v1069 = vpop.f32.mrb[0].mxu0
    %v1070 = vadd.f32 %v267, %v1069
    %v1071 = vpop.f32.mrb[0].mxu0
    %v1072 = vadd.f32 %v271, %v1071
    %1073 = vmatprep.mubr.bf16.mxu0 %v804
    %1074 = vmatmul.mubr.bf16.gmra.mrb[0].mxu0 %v496
    %v1075 = vpop.f32.mrb[0].mxu0
    %v1076 = vadd.f32 %v267, %v1075
    %v1077 = vpop.f32.mrb[0].mxu0
    %v1078 = vadd.f32 %v271, %v1077
    %v1079 = vpop.f32.mrb[0].mxu0
    %v1080 = vadd.f32 %v267, %v1079
    %v1081 = vpop.f32.mrb[0].mxu0
    %v1082 = vadd.f32 %v271, %v1081
    %1083 = vmatprep.mubr.bf16.mxu0 %v807
    %1084 = vmatmul.mubr.bf16.gmra.mrb[0].mxu0 %v498
    %v1085 = vpop.f32.mrb[0].mxu0
    %v1086 = vadd.f32 %v267, %v1085
    %v1087 = vpop.f32.mrb[0].mxu0
    %v1088 = vadd.f32 %v271, %v1087
    %v1089 = vpop.f32.mrb[0].mxu0
    %v1090 = vadd.f32 %v267, %v1089
    %v1091 = vpop.f32.mrb[0].mxu0
    %v1092 = vadd.f32 %v271, %v1091
    %1093 = vmatprep.mubr.bf16.mxu0 %v810
    %1094 = vmatmul.mubr.bf16.gmra.mrb[0].mxu0 %v500
    %v1095 = vpop.f32.mrb[0].mxu0
    %v1096 = vadd.f32 %v267, %v1095
    %v1097 = vpop.f32.mrb[0].mxu0
    %v1098 = vadd.f32 %v271, %v1097
    %v1099 = vpop.f32.mrb[0].mxu0
    %v1100 = vadd.f32 %v267, %v1099
    %v1101 = vpop.f32.mrb[0].mxu0
    %v1102 = vadd.f32 %v271, %v1101
    %1103 = vmatprep.mubr.bf16.mxu0 %v813
    %1104 = vmatmul.mubr.bf16.gmra.mrb[0].mxu0 %v502
    %v1105 = vpop.f32.mrb[0].mxu0
    %v1106 = vadd.f32 %v267, %v1105
    %v1107 = vpop.f32.mrb[0].mxu0
    %v1108 = vadd.f32 %v271, %v1107
    %v1109 = vpop.f32.mrb[0].mxu0
    %v1110 = vadd.f32 %v267, %v1109
    %v1111 = vpop.f32.mrb[0].mxu0
    %v1112 = vadd.f32 %v271, %v1111
    %1113 = vmatprep.mubr.bf16.mxu0 %v816
    %1114 = vmatmul.mubr.bf16.gmra.mrb[0].mxu0 %v504
    %v1115 = vpop.f32.mrb[0].mxu0
    %v1116 = vadd.f32 %v267, %v1115
    %v1117 = vpop.f32.mrb[0].mxu0
    %v1118 = vadd.f32 %v271, %v1117
    %v1119 = vpop.f32.mrb[0].mxu0
    %v1120 = vadd.f32 %v267, %v1119
    %v1121 = vpop.f32.mrb[0].mxu0
    %v1122 = vadd.f32 %v271, %v1121
    %1123 = vmatprep.mubr.bf16.mxu0 %v819
    %1124 = vmatmul.mubr.bf16.gmra.mrb[0].mxu0 %v506
    %v1125 = vpop.f32.mrb[0].mxu0
    %v1126 = vadd.f32 %v267, %v1125
    %v1127 = vpop.f32.mrb[0].mxu0
    %v1128 = vadd.f32 %v271, %v1127
    %v1129 = vpop.f32.mrb[0].mxu0
    %v1130 = vadd.f32 %v267, %v1129
    %v1131 = vpop.f32.mrb[0].mxu0
    %v1132 = vadd.f32 %v271, %v1131
    %1133 = vdwg.mxu0
    %1134 = vmatprep.subr.bf16.mxu0 %v659
    %1135 = vmatpush1.bf16.msra.mxu0 %v658
    %1136 = vmatprep.subr.bf16.mxu0 %v663
    %1137 = vmatpush1.bf16.msra.mxu0 %v662
    %1138 = vmatprep.subr.bf16.mxu0 %v667
    %1139 = vmatpush1.bf16.msra.mxu0 %v666
    %1140 = vmatprep.subr.bf16.mxu0 %v671
    %1141 = vmatpush1.bf16.msra.mxu0 %v670
    %1142 = vmatprep.subr.bf16.mxu0 %v675
    %1143 = vmatpush1.bf16.msra.mxu0 %v674
    %1144 = vmatprep.subr.bf16.mxu0 %v679
    %1145 = vmatpush1.bf16.msra.mxu0 %v678
    %1146 = vmatprep.subr.bf16.mxu0 %v683
    %1147 = vmatpush1.bf16.msra.mxu0 %v682
    %1148 = vmatprep.subr.bf16.mxu0 %v687
    %1149 = vmatpush1.bf16.msra.mxu0 %v686
    %1150 = vmatprep.subr.bf16.mxu0 %v691
    %1151 = vmatpush1.bf16.msra.mxu0 %v690
    %1152 = vmatprep.subr.bf16.mxu0 %v695
    %1153 = vmatpush1.bf16.msra.mxu0 %v694
    %1154 = vmatprep.subr.bf16.mxu0 0
    %1155 = vmatpush1.bf16.msra.mxu0 0
    %1156 = vmatprep.subr.bf16.mxu0 0
    %1157 = vmatpush1.bf16.msra.mxu0 0
    %1158 = vmatprep.subr.bf16.mxu0 0
    %1159 = vmatpush1.bf16.msra.mxu0 0
    %1160 = vmatprep.subr.bf16.mxu0 0
    %1161 = vmatpush1.bf16.msra.mxu0 0
    %1162 = vmatprep.subr.bf16.mxu0 0
    %1163 = vmatpush1.bf16.msra.mxu0 0
    %1164 = vmatprep.subr.bf16.mxu0 0
    %1165 = vmatpush1.bf16.msra.mxu0 0
    %1166 = vmatprep.mubr.bf16.mxu0 %v738
    %1167 = vmatmul.mubr.bf16.gmra.mrb[0].mxu0 %v452
    %v1168 = vpop.f32.mrb[0].mxu0
    %v1169 = vadd.f32 %v275, %v1168
    %v1170 = vpop.f32.mrb[0].mxu0
    %v1171 = vadd.f32 %v279, %v1170
    %v1172 = vpop.f32.mrb[0].mxu0
    %v1173 = vadd.f32 %v275, %v1172
    %v1174 = vpop.f32.mrb[0].mxu0
    %v1175 = vadd.f32 %v279, %v1174
    %1176 = vmatprep.mubr.bf16.mxu0 %v741
    %1177 = vmatmul.mubr.bf16.gmra.mrb[0].mxu0 %v454
    %v1178 = vpop.f32.mrb[0].mxu0
    %v1179 = vadd.f32 %v275, %v1178
    %v1180 = vpop.f32.mrb[0].mxu0
    %v1181 = vadd.f32 %v279, %v1180
    %v1182 = vpop.f32.mrb[0].mxu0
    %v1183 = vadd.f32 %v275, %v1182
    %v1184 = vpop.f32.mrb[0].mxu0
    %v1185 = vadd.f32 %v279, %v1184
    %1186 = vmatprep.mubr.bf16.mxu0 %v744
    %1187 = vmatmul.mubr.bf16.gmra.mrb[0].mxu0 %v456
    %v1188 = vpop.f32.mrb[0].mxu0
    %v1189 = vadd.f32 %v275, %v1188
    %v1190 = vpop.f32.mrb[0].mxu0
    %v1191 = vadd.f32 %v279, %v1190
    %v1192 = vpop.f32.mrb[0].mxu0
    %v1193 = vadd.f32 %v275, %v1192
    %v1194 = vpop.f32.mrb[0].mxu0
    %v1195 = vadd.f32 %v279, %v1194
    %1196 = vmatprep.mubr.bf16.mxu0 %v747
    %1197 = vmatmul.mubr.bf16.gmra.mrb[0].mxu0 %v458
    %v1198 = vpop.f32.mrb[0].mxu0
    %v1199 = vadd.f32 %v275, %v1198
    %v1200 = vpop.f32.mrb[0].mxu0
    %v1201 = vadd.f32 %v279, %v1200
    %v1202 = vpop.f32.mrb[0].mxu0
    %v1203 = vadd.f32 %v275, %v1202
    %v1204 = vpop.f32.mrb[0].mxu0
    %v1205 = vadd.f32 %v279, %v1204
    %1206 = vmatprep.mubr.bf16.mxu0 %v750
    %1207 = vmatmul.mubr.bf16.gmra.mrb[0].mxu0 %v460
    %v1208 = vpop.f32.mrb[0].mxu0
    %v1209 = vadd.f32 %v275, %v1208
    %v1210 = vpop.f32.mrb[0].mxu0
    %v1211 = vadd.f32 %v279, %v1210
    %v1212 = vpop.f32.mrb[0].mxu0
    %v1213 = vadd.f32 %v275, %v1212
    %v1214 = vpop.f32.mrb[0].mxu0
    %v1215 = vadd.f32 %v279, %v1214
    %1216 = vmatprep.mubr.bf16.mxu0 %v753
    %1217 = vmatmul.mubr.bf16.gmra.mrb[0].mxu0 %v462
    %v1218 = vpop.f32.mrb[0].mxu0
    %v1219 = vadd.f32 %v275, %v1218
    %v1220 = vpop.f32.mrb[0].mxu0
    %v1221 = vadd.f32 %v279, %v1220
    %v1222 = vpop.f32.mrb[0].mxu0
    %v1223 = vadd.f32 %v275, %v1222
    %v1224 = vpop.f32.mrb[0].mxu0
    %v1225 = vadd.f32 %v279, %v1224
    %1226 = vmatprep.mubr.bf16.mxu0 %v756
    %1227 = vmatmul.mubr.bf16.gmra.mrb[0].mxu0 %v464
    %v1228 = vpop.f32.mrb[0].mxu0
    %v1229 = vadd.f32 %v275, %v1228
    %v1230 = vpop.f32.mrb[0].mxu0
    %v1231 = vadd.f32 %v279, %v1230
    %v1232 = vpop.f32.mrb[0].mxu0
    %v1233 = vadd.f32 %v275, %v1232
    %v1234 = vpop.f32.mrb[0].mxu0
    %v1235 = vadd.f32 %v279, %v1234
    %1236 = vmatprep.mubr.bf16.mxu0 %v759
    %1237 = vmatmul.mubr.bf16.gmra.mrb[0].mxu0 %v466
    %v1238 = vpop.f32.mrb[0].mxu0
    %v1239 = vadd.f32 %v275, %v1238
    %v1240 = vpop.f32.mrb[0].mxu0
    %v1241 = vadd.f32 %v279, %v1240
    %v1242 = vpop.f32.mrb[0].mxu0
    %v1243 = vadd.f32 %v275, %v1242
    %v1244 = vpop.f32.mrb[0].mxu0
    %v1245 = vadd.f32 %v279, %v1244
    %1246 = vmatprep.mubr.bf16.mxu0 %v762
    %1247 = vmatmul.mubr.bf16.gmra.mrb[0].mxu0 %v468
    %v1248 = vpop.f32.mrb[0].mxu0
    %v1249 = vadd.f32 %v275, %v1248
    %v1250 = vpop.f32.mrb[0].mxu0
    %v1251 = vadd.f32 %v279, %v1250
    %v1252 = vpop.f32.mrb[0].mxu0
    %v1253 = vadd.f32 %v275, %v1252
    %v1254 = vpop.f32.mrb[0].mxu0
    %v1255 = vadd.f32 %v279, %v1254
    %1256 = vmatprep.mubr.bf16.mxu0 %v765
    %1257 = vmatmul.mubr.bf16.gmra.mrb[0].mxu0 %v470
    %v1258 = vpop.f32.mrb[0].mxu0
    %v1259 = vadd.f32 %v275, %v1258
    %v1260 = vpop.f32.mrb[0].mxu0
    %v1261 = vadd.f32 %v279, %v1260
    %v1262 = vpop.f32.mrb[0].mxu0
    %v1263 = vadd.f32 %v275, %v1262
    %v1264 = vpop.f32.mrb[0].mxu0
    %v1265 = vadd.f32 %v279, %v1264
    %1266 = vmatprep.mubr.bf16.mxu0 %v768
    %1267 = vmatmul.mubr.bf16.gmra.mrb[0].mxu0 %v472
    %v1268 = vpop.f32.mrb[0].mxu0
    %v1269 = vadd.f32 %v275, %v1268
    %v1270 = vpop.f32.mrb[0].mxu0
    %v1271 = vadd.f32 %v279, %v1270
    %v1272 = vpop.f32.mrb[0].mxu0
    %v1273 = vadd.f32 %v275, %v1272
    %v1274 = vpop.f32.mrb[0].mxu0
    %v1275 = vadd.f32 %v279, %v1274
    %1276 = vmatprep.mubr.bf16.mxu0 %v771
    %1277 = vmatmul.mubr.bf16.gmra.mrb[0].mxu0 %v474
    %v1278 = vpop.f32.mrb[0].mxu0
    %v1279 = vadd.f32 %v275, %v1278
    %v1280 = vpop.f32.mrb[0].mxu0
    %v1281 = vadd.f32 %v279, %v1280
    %v1282 = vpop.f32.mrb[0].mxu0
    %v1283 = vadd.f32 %v275, %v1282
    %v1284 = vpop.f32.mrb[0].mxu0
    %v1285 = vadd.f32 %v279, %v1284
    %1286 = vmatprep.mubr.bf16.mxu0 %v774
    %1287 = vmatmul.mubr.bf16.gmra.mrb[0].mxu0 %v476
    %v1288 = vpop.f32.mrb[0].mxu0
    %v1289 = vadd.f32 %v275, %v1288
    %v1290 = vpop.f32.mrb[0].mxu0
    %v1291 = vadd.f32 %v279, %v1290
    %v1292 = vpop.f32.mrb[0].mxu0
    %v1293 = vadd.f32 %v275, %v1292
    %v1294 = vpop.f32.mrb[0].mxu0
    %v1295 = vadd.f32 %v279, %v1294
    %1296 = vmatprep.mubr.bf16.mxu0 %v777
    %1297 = vmatmul.mubr.bf16.gmra.mrb[0].mxu0 %v478
    %v1298 = vpop.f32.mrb[0].mxu0
    %v1299 = vadd.f32 %v275, %v1298
    %v1300 = vpop.f32.mrb[0].mxu0
    %v1301 = vadd.f32 %v279, %v1300
    %v1302 = vpop.f32.mrb[0].mxu0
    %v1303 = vadd.f32 %v275, %v1302
    %v1304 = vpop.f32.mrb[0].mxu0
    %v1305 = vadd.f32 %v279, %v1304
    %1306 = vmatprep.mubr.bf16.mxu0 %v780
    %1307 = vmatmul.mubr.bf16.gmra.mrb[0].mxu0 %v480
    %v1308 = vpop.f32.mrb[0].mxu0
    %v1309 = vadd.f32 %v275, %v1308
    %v1310 = vpop.f32.mrb[0].mxu0
    %v1311 = vadd.f32 %v279, %v1310
    %v1312 = vpop.f32.mrb[0].mxu0
    %v1313 = vadd.f32 %v275, %v1312
    %v1314 = vpop.f32.mrb[0].mxu0
    %v1315 = vadd.f32 %v279, %v1314
    %1316 = vmatprep.mubr.bf16.mxu0 %v783
    %1317 = vmatmul.mubr.bf16.gmra.mrb[0].mxu0 %v482
    %v1318 = vpop.f32.mrb[0].mxu0
    %v1319 = vadd.f32 %v275, %v1318
    %v1320 = vpop.f32.mrb[0].mxu0
    %v1321 = vadd.f32 %v279, %v1320
    %v1322 = vpop.f32.mrb[0].mxu0
    %v1323 = vadd.f32 %v275, %v1322
    %v1324 = vpop.f32.mrb[0].mxu0
    %v1325 = vadd.f32 %v279, %v1324
    %1326 = vmatprep.mubr.bf16.mxu0 %v786
    %1327 = vmatmul.mubr.bf16.gmra.mrb[0].mxu0 %v484
    %v1328 = vpop.f32.mrb[0].mxu0
    %v1329 = vadd.f32 %v275, %v1328
    %v1330 = vpop.f32.mrb[0].mxu0
    %v1331 = vadd.f32 %v279, %v1330
    %v1332 = vpop.f32.mrb[0].mxu0
    %v1333 = vadd.f32 %v275, %v1332
    %v1334 = vpop.f32.mrb[0].mxu0
    %v1335 = vadd.f32 %v279, %v1334
    %1336 = vmatprep.mubr.bf16.mxu0 %v789
    %1337 = vmatmul.mubr.bf16.gmra.mrb[0].mxu0 %v486
    %v1338 = vpop.f32.mrb[0].mxu0
    %v1339 = vadd.f32 %v275, %v1338
    %v1340 = vpop.f32.mrb[0].mxu0
    %v1341 = vadd.f32 %v279, %v1340
    %v1342 = vpop.f32.mrb[0].mxu0
    %v1343 = vadd.f32 %v275, %v1342
    %v1344 = vpop.f32.mrb[0].mxu0
    %v1345 = vadd.f32 %v279, %v1344
    %1346 = vmatprep.mubr.bf16.mxu0 %v792
    %1347 = vmatmul.mubr.bf16.gmra.mrb[0].mxu0 %v488
    %v1348 = vpop.f32.mrb[0].mxu0
    %v1349 = vadd.f32 %v275, %v1348
    %v1350 = vpop.f32.mrb[0].mxu0
    %v1351 = vadd.f32 %v279, %v1350
    %v1352 = vpop.f32.mrb[0].mxu0
    %v1353 = vadd.f32 %v275, %v1352
    %v1354 = vpop.f32.mrb[0].mxu0
    %v1355 = vadd.f32 %v279, %v1354
    %1356 = vmatprep.mubr.bf16.mxu0 %v795
    %1357 = vmatmul.mubr.bf16.gmra.mrb[0].mxu0 %v490
    %v1358 = vpop.f32.mrb[0].mxu0
    %v1359 = vadd.f32 %v275, %v1358
    %v1360 = vpop.f32.mrb[0].mxu0
    %v1361 = vadd.f32 %v279, %v1360
    %v1362 = vpop.f32.mrb[0].mxu0
    %v1363 = vadd.f32 %v275, %v1362
    %v1364 = vpop.f32.mrb[0].mxu0
    %v1365 = vadd.f32 %v279, %v1364
    %1366 = vmatprep.mubr.bf16.mxu0 %v798
    %1367 = vmatmul.mubr.bf16.gmra.mrb[0].mxu0 %v492
    %v1368 = vpop.f32.mrb[0].mxu0
    %v1369 = vadd.f32 %v275, %v1368
    %v1370 = vpop.f32.mrb[0].mxu0
    %v1371 = vadd.f32 %v279, %v1370
    %v1372 = vpop.f32.mrb[0].mxu0
    %v1373 = vadd.f32 %v275, %v1372
    %v1374 = vpop.f32.mrb[0].mxu0
    %v1375 = vadd.f32 %v279, %v1374
    %1376 = vmatprep.mubr.bf16.mxu0 %v801
    %1377 = vmatmul.mubr.bf16.gmra.mrb[0].mxu0 %v494
    %v1378 = vpop.f32.mrb[0].mxu0
    %v1379 = vadd.f32 %v275, %v1378
    %v1380 = vpop.f32.mrb[0].mxu0
    %v1381 = vadd.f32 %v279, %v1380
    %v1382 = vpop.f32.mrb[0].mxu0
    %v1383 = vadd.f32 %v275, %v1382
    %v1384 = vpop.f32.mrb[0].mxu0
    %v1385 = vadd.f32 %v279, %v1384
    %1386 = vmatprep.mubr.bf16.mxu0 %v804
    %1387 = vmatmul.mubr.bf16.gmra.mrb[0].mxu0 %v496
    %v1388 = vpop.f32.mrb[0].mxu0
    %v1389 = vadd.f32 %v275, %v1388
    %v1390 = vpop.f32.mrb[0].mxu0
    %v1391 = vadd.f32 %v279, %v1390
    %v1392 = vpop.f32.mrb[0].mxu0
    %v1393 = vadd.f32 %v275, %v1392
    %v1394 = vpop.f32.mrb[0].mxu0
    %v1395 = vadd.f32 %v279, %v1394
    %1396 = vmatprep.mubr.bf16.mxu0 %v807
    %1397 = vmatmul.mubr.bf16.gmra.mrb[0].mxu0 %v498
    %v1398 = vpop.f32.mrb[0].mxu0
    %v1399 = vadd.f32 %v275, %v1398
    %v1400 = vpop.f32.mrb[0].mxu0
    %v1401 = vadd.f32 %v279, %v1400
    %v1402 = vpop.f32.mrb[0].mxu0
    %v1403 = vadd.f32 %v275, %v1402
    %v1404 = vpop.f32.mrb[0].mxu0
    %v1405 = vadd.f32 %v279, %v1404
    %1406 = vmatprep.mubr.bf16.mxu0 %v810
    %1407 = vmatmul.mubr.bf16.gmra.mrb[0].mxu0 %v500
    %v1408 = vpop.f32.mrb[0].mxu0
    %v1409 = vadd.f32 %v275, %v1408
    %v1410 = vpop.f32.mrb[0].mxu0
    %v1411 = vadd.f32 %v279, %v1410
    %v1412 = vpop.f32.mrb[0].mxu0
    %v1413 = vadd.f32 %v275, %v1412
    %v1414 = vpop.f32.mrb[0].mxu0
    %v1415 = vadd.f32 %v279, %v1414
    %1416 = vmatprep.mubr.bf16.mxu0 %v813
    %1417 = vmatmul.mubr.bf16.gmra.mrb[0].mxu0 %v502
    %v1418 = vpop.f32.mrb[0].mxu0
    %v1419 = vadd.f32 %v275, %v1418
    %v1420 = vpop.f32.mrb[0].mxu0
    %v1421 = vadd.f32 %v279, %v1420
    %v1422 = vpop.f32.mrb[0].mxu0
    %v1423 = vadd.f32 %v275, %v1422
    %v1424 = vpop.f32.mrb[0].mxu0
    %v1425 = vadd.f32 %v279, %v1424
    %1426 = vmatprep.mubr.bf16.mxu0 %v816
    %1427 = vmatmul.mubr.bf16.gmra.mrb[0].mxu0 %v504
    %v1428 = vpop.f32.mrb[0].mxu0
    %v1429 = vadd.f32 %v275, %v1428
    %v1430 = vpop.f32.mrb[0].mxu0
    %v1431 = vadd.f32 %v279, %v1430
    %v1432 = vpop.f32.mrb[0].mxu0
    %v1433 = vadd.f32 %v275, %v1432
    %v1434 = vpop.f32.mrb[0].mxu0
    %v1435 = vadd.f32 %v279, %v1434
    %1436 = vmatprep.mubr.bf16.mxu0 %v819
    %1437 = vmatmul.mubr.bf16.gmra.mrb[0].mxu0 %v506
    %v1438 = vpop.f32.mrb[0].mxu0
    %v1439 = vadd.f32 %v275, %v1438
    %v1440 = vpop.f32.mrb[0].mxu0
    %v1441 = vadd.f32 %v279, %v1440
    %v1442 = vpop.f32.mrb[0].mxu0
    %v1443 = vadd.f32 %v275, %v1442
    %v1444 = vpop.f32.mrb[0].mxu0
    %v1445 = vadd.f32 %v279, %v1444
    %1446 = vdwg.mxu0
    %v1447 = vmax.f32 %v856, 0.0
    %v1448 = vmax.f32 %v858, 0.0
    %v1449 = vmax.f32 %v1169, 0.0
    %v1450 = vmax.f32 %v1171, 0.0
    %v1451 = vmax.f32 %v860, 0.0
    %v1452 = vmax.f32 %v862, 0.0
    %v1453 = vmax.f32 %v1173, 0.0
    %v1454 = vmax.f32 %v1175, 0.0
    %v1455 = vmax.f32 %v866, 0.0
    %v1456 = vmax.f32 %v868, 0.0
    %v1457 = vmax.f32 %v1179, 0.0
    %v1458 = vmax.f32 %v1181, 0.0
    %v1459 = vmax.f32 %v870, 0.0
    %v1460 = vmax.f32 %v872, 0.0
    %v1461 = vmax.f32 %v1183, 0.0
    %v1462 = vmax.f32 %v1185, 0.0
    %v1463 = vmax.f32 %v876, 0.0
    %v1464 = vmax.f32 %v878, 0.0
    %v1465 = vmax.f32 %v1189, 0.0
    %v1466 = vmax.f32 %v1191, 0.0
    %v1467 = vmax.f32 %v880, 0.0
    %v1468 = vmax.f32 %v882, 0.0
    %v1469 = vmax.f32 %v1193, 0.0
    %v1470 = vmax.f32 %v1195, 0.0
    %v1471 = vmax.f32 %v886, 0.0
    %v1472 = vmax.f32 %v888, 0.0
    %v1473 = vmax.f32 %v1199, 0.0
    %v1474 = vmax.f32 %v1201, 0.0
    %v1475 = vmax.f32 %v890, 0.0
    %v1476 = vmax.f32 %v892, 0.0
    %v1477 = vmax.f32 %v1203, 0.0
    %v1478 = vmax.f32 %v1205, 0.0
    %v1479 = vmax.f32 %v896, 0.0
    %v1480 = vmax.f32 %v898, 0.0
    %v1481 = vmax.f32 %v1209, 0.0
    %v1482 = vmax.f32 %v1211, 0.0
    %v1483 = vmax.f32 %v900, 0.0
    %v1484 = vmax.f32 %v902, 0.0
    %v1485 = vmax.f32 %v1213, 0.0
    %v1486 = vmax.f32 %v1215, 0.0
    %v1487 = vmax.f32 %v906, 0.0
    %v1488 = vmax.f32 %v908, 0.0
    %v1489 = vmax.f32 %v1219, 0.0
    %v1490 = vmax.f32 %v1221, 0.0
    %v1491 = vmax.f32 %v910, 0.0
    %v1492 = vmax.f32 %v912, 0.0
    %v1493 = vmax.f32 %v1223, 0.0
    %v1494 = vmax.f32 %v1225, 0.0
    %v1495 = vmax.f32 %v916, 0.0
    %v1496 = vmax.f32 %v918, 0.0
    %v1497 = vmax.f32 %v1229, 0.0
    %v1498 = vmax.f32 %v1231, 0.0
    %v1499 = vmax.f32 %v920, 0.0
    %v1500 = vmax.f32 %v922, 0.0
    %v1501 = vmax.f32 %v1233, 0.0
    %v1502 = vmax.f32 %v1235, 0.0
    %v1503 = vmax.f32 %v926, 0.0
    %v1504 = vmax.f32 %v928, 0.0
    %v1505 = vmax.f32 %v1239, 0.0
    %v1506 = vmax.f32 %v1241, 0.0
    %v1507 = vmax.f32 %v930, 0.0
    %v1508 = vmax.f32 %v932, 0.0
    %v1509 = vmax.f32 %v1243, 0.0
    %v1510 = vmax.f32 %v1245, 0.0
    %v1511 = vmax.f32 %v936, 0.0
    %v1512 = vmax.f32 %v938, 0.0
    %v1513 = vmax.f32 %v1249, 0.0
    %v1514 = vmax.f32 %v1251, 0.0
    %v1515 = vmax.f32 %v940, 0.0
    %v1516 = vmax.f32 %v942, 0.0
    %v1517 = vmax.f32 %v1253, 0.0
    %v1518 = vmax.f32 %v1255, 0.0
    %v1519 = vmax.f32 %v946, 0.0
    %v1520 = vmax.f32 %v948, 0.0
    %v1521 = vmax.f32 %v1259, 0.0
    %v1522 = vmax.f32 %v1261, 0.0
    %v1523 = vmax.f32 %v950, 0.0
    %v1524 = vmax.f32 %v952, 0.0
    %v1525 = vmax.f32 %v1263, 0.0
    %v1526 = vmax.f32 %v1265, 0.0
    %v1527 = vmax.f32 %v956, 0.0
    %v1528 = vmax.f32 %v958, 0.0
    %v1529 = vmax.f32 %v1269, 0.0
    %v1530 = vmax.f32 %v1271, 0.0
    %v1531 = vmax.f32 %v960, 0.0
    %v1532 = vmax.f32 %v962, 0.0
    %v1533 = vmax.f32 %v1273, 0.0
    %v1534 = vmax.f32 %v1275, 0.0
    %v1535 = vmax.f32 %v966, 0.0
    %v1536 = vmax.f32 %v968, 0.0
    %v1537 = vmax.f32 %v1279, 0.0
    %v1538 = vmax.f32 %v1281, 0.0
    %v1539 = vmax.f32 %v970, 0.0
    %v1540 = vmax.f32 %v972, 0.0
    %v1541 = vmax.f32 %v1283, 0.0
    %v1542 = vmax.f32 %v1285, 0.0
    %v1543 = vmax.f32 %v976, 0.0
    %v1544 = vmax.f32 %v978, 0.0
    %v1545 = vmax.f32 %v1289, 0.0
    %v1546 = vmax.f32 %v1291, 0.0
    %v1547 = vmax.f32 %v980, 0.0
    %v1548 = vmax.f32 %v982, 0.0
    %v1549 = vmax.f32 %v1293, 0.0
    %v1550 = vmax.f32 %v1295, 0.0
    %v1551 = vmax.f32 %v986, 0.0
    %v1552 = vmax.f32 %v988, 0.0
    %v1553 = vmax.f32 %v1299, 0.0
    %v1554 = vmax.f32 %v1301, 0.0
    %v1555 = vmax.f32 %v990, 0.0
    %v1556 = vmax.f32 %v992, 0.0
    %v1557 = vmax.f32 %v1303, 0.0
    %v1558 = vmax.f32 %v1305, 0.0
    %v1559 = vmax.f32 %v996, 0.0
    %v1560 = vmax.f32 %v998, 0.0
    %v1561 = vmax.f32 %v1309, 0.0
    %v1562 = vmax.f32 %v1311, 0.0
    %v1563 = vmax.f32 %v1000, 0.0
    %v1564 = vmax.f32 %v1002, 0.0
    %v1565 = vmax.f32 %v1313, 0.0
    %v1566 = vmax.f32 %v1315, 0.0
    %v1567 = vmax.f32 %v1006, 0.0
    %v1568 = vmax.f32 %v1008, 0.0
    %v1569 = vmax.f32 %v1319, 0.0
    %v1570 = vmax.f32 %v1321, 0.0
    %v1571 = vmax.f32 %v1010, 0.0
    %v1572 = vmax.f32 %v1012, 0.0
    %v1573 = vmax.f32 %v1323, 0.0
    %v1574 = vmax.f32 %v1325, 0.0
    %v1575 = vmax.f32 %v1016, 0.0
    %v1576 = vmax.f32 %v1018, 0.0
    %v1577 = vmax.f32 %v1329, 0.0
    %v1578 = vmax.f32 %v1331, 0.0
    %v1579 = vmax.f32 %v1020, 0.0
    %v1580 = vmax.f32 %v1022, 0.0
    %v1581 = vmax.f32 %v1333, 0.0
    %v1582 = vmax.f32 %v1335, 0.0
    %v1583 = vmax.f32 %v1026, 0.0
    %v1584 = vmax.f32 %v1028, 0.0
    %v1585 = vmax.f32 %v1339, 0.0
    %v1586 = vmax.f32 %v1341, 0.0
    %v1587 = vmax.f32 %v1030, 0.0
    %v1588 = vmax.f32 %v1032, 0.0
    %v1589 = vmax.f32 %v1343, 0.0
    %v1590 = vmax.f32 %v1345, 0.0
    %v1591 = vmax.f32 %v1036, 0.0
    %v1592 = vmax.f32 %v1038, 0.0
    %v1593 = vmax.f32 %v1349, 0.0
    %v1594 = vmax.f32 %v1351, 0.0
    %v1595 = vmax.f32 %v1040, 0.0
    %v1596 = vmax.f32 %v1042, 0.0
    %v1597 = vmax.f32 %v1353, 0.0
    %v1598 = vmax.f32 %v1355, 0.0
    %v1599 = vmax.f32 %v1046, 0.0
    %v1600 = vmax.f32 %v1048, 0.0
    %v1601 = vmax.f32 %v1359, 0.0
    %v1602 = vmax.f32 %v1361, 0.0
    %v1603 = vmax.f32 %v1050, 0.0
    %v1604 = vmax.f32 %v1052, 0.0
    %v1605 = vmax.f32 %v1363, 0.0
    %v1606 = vmax.f32 %v1365, 0.0
    %v1607 = vmax.f32 %v1056, 0.0
    %v1608 = vmax.f32 %v1058, 0.0
    %v1609 = vmax.f32 %v1369, 0.0
    %v1610 = vmax.f32 %v1371, 0.0
    %v1611 = vmax.f32 %v1060, 0.0
    %v1612 = vmax.f32 %v1062, 0.0
    %v1613 = vmax.f32 %v1373, 0.0
    %v1614 = vmax.f32 %v1375, 0.0
    %v1615 = vmax.f32 %v1066, 0.0
    %v1616 = vmax.f32 %v1068, 0.0
    %v1617 = vmax.f32 %v1379, 0.0
    %v1618 = vmax.f32 %v1381, 0.0
    %v1619 = vmax.f32 %v1070, 0.0
    %v1620 = vmax.f32 %v1072, 0.0
    %v1621 = vmax.f32 %v1383, 0.0
    %v1622 = vmax.f32 %v1385, 0.0
    %v1623 = vmax.f32 %v1076, 0.0
    %v1624 = vmax.f32 %v1078, 0.0
    %v1625 = vmax.f32 %v1389, 0.0
    %v1626 = vmax.f32 %v1391, 0.0
    %v1627 = vmax.f32 %v1080, 0.0
    %v1628 = vmax.f32 %v1082, 0.0
    %v1629 = vmax.f32 %v1393, 0.0
    %v1630 = vmax.f32 %v1395, 0.0
    %v1631 = vmax.f32 %v1086, 0.0
    %v1632 = vmax.f32 %v1088, 0.0
    %v1633 = vmax.f32 %v1399, 0.0
    %v1634 = vmax.f32 %v1401, 0.0
    %v1635 = vmax.f32 %v1090, 0.0
    %v1636 = vmax.f32 %v1092, 0.0
    %v1637 = vmax.f32 %v1403, 0.0
    %v1638 = vmax.f32 %v1405, 0.0
    %v1639 = vmax.f32 %v1096, 0.0
    %v1640 = vmax.f32 %v1098, 0.0
    %v1641 = vmax.f32 %v1409, 0.0
    %v1642 = vmax.f32 %v1411, 0.0
    %v1643 = vmax.f32 %v1100, 0.0
    %v1644 = vmax.f32 %v1102, 0.0
    %v1645 = vmax.f32 %v1413, 0.0
    %v1646 = vmax.f32 %v1415, 0.0
    %v1647 = vmax.f32 %v1106, 0.0
    %v1648 = vmax.f32 %v1108, 0.0
    %v1649 = vmax.f32 %v1419, 0.0
    %v1650 = vmax.f32 %v1421, 0.0
    %v1651 = vmax.f32 %v1110, 0.0
    %v1652 = vmax.f32 %v1112, 0.0
    %v1653 = vmax.f32 %v1423, 0.0
    %v1654 = vmax.f32 %v1425, 0.0
    %v1655 = vmax.f32 %v1116, 0.0
    %v1656 = vmax.f32 %v1118, 0.0
    %v1657 = vmax.f32 %v1429, 0.0
    %v1658 = vmax.f32 %v1431, 0.0
    %v1659 = vmax.f32 %v1120, 0.0
    %v1660 = vmax.f32 %v1122, 0.0
    %v1661 = vmax.f32 %v1433, 0.0
    %v1662 = vmax.f32 %v1435, 0.0
    %v1663 = vmax.f32 %v1126, 0.0
    %v1664 = vmax.f32 %v1128, 0.0
    %v1665 = vmax.f32 %v1439, 0.0
    %v1666 = vmax.f32 %v1441, 0.0
    %v1667 = vmax.f32 %v1130, 0.0
    %v1668 = vmax.f32 %v1132, 0.0
    %v1669 = vmax.f32 %v1443, 0.0
    %v1670 = vmax.f32 %v1445, 0.0
    %v1671 = vpack.c.bf16 %v1451, %v1447
    %v1672 = vpack.c.bf16 %v1452, %v1448
    %v1673 = vpack.c.bf16 %v1453, %v1449
    %v1674 = vpack.c.bf16 %v1454, %v1450
    %v1675 = vpack.c.bf16 %v1459, %v1455
    %v1676 = vpack.c.bf16 %v1460, %v1456
    %v1677 = vpack.c.bf16 %v1461, %v1457
    %v1678 = vpack.c.bf16 %v1462, %v1458
    %v1679 = vpack.c.bf16 %v1467, %v1463
    %v1680 = vpack.c.bf16 %v1468, %v1464
    %v1681 = vpack.c.bf16 %v1469, %v1465
    %v1682 = vpack.c.bf16 %v1470, %v1466
    %v1683 = vpack.c.bf16 %v1475, %v1471
    %v1684 = vpack.c.bf16 %v1476, %v1472
    %v1685 = vpack.c.bf16 %v1477, %v1473
    %v1686 = vpack.c.bf16 %v1478, %v1474
    %v1687 = vpack.c.bf16 %v1483, %v1479
    %v1688 = vpack.c.bf16 %v1484, %v1480
    %v1689 = vpack.c.bf16 %v1485, %v1481
    %v1690 = vpack.c.bf16 %v1486, %v1482
    %v1691 = vpack.c.bf16 %v1491, %v1487
    %v1692 = vpack.c.bf16 %v1492, %v1488
    %v1693 = vpack.c.bf16 %v1493, %v1489
    %v1694 = vpack.c.bf16 %v1494, %v1490
    %v1695 = vpack.c.bf16 %v1499, %v1495
    %v1696 = vpack.c.bf16 %v1500, %v1496
    %v1697 = vpack.c.bf16 %v1501, %v1497
    %v1698 = vpack.c.bf16 %v1502, %v1498
    %v1699 = vpack.c.bf16 %v1507, %v1503
    %v1700 = vpack.c.bf16 %v1508, %v1504
    %v1701 = vpack.c.bf16 %v1509, %v1505
    %v1702 = vpack.c.bf16 %v1510, %v1506
    %v1703 = vpack.c.bf16 %v1515, %v1511
    %v1704 = vpack.c.bf16 %v1516, %v1512
    %v1705 = vpack.c.bf16 %v1517, %v1513
    %v1706 = vpack.c.bf16 %v1518, %v1514
    %v1707 = vpack.c.bf16 %v1523, %v1519
    %v1708 = vpack.c.bf16 %v1524, %v1520
    %v1709 = vpack.c.bf16 %v1525, %v1521
    %v1710 = vpack.c.bf16 %v1526, %v1522
    %v1711 = vpack.c.bf16 %v1531, %v1527
    %v1712 = vpack.c.bf16 %v1532, %v1528
    %v1713 = vpack.c.bf16 %v1533, %v1529
    %v1714 = vpack.c.bf16 %v1534, %v1530
    %v1715 = vpack.c.bf16 %v1539, %v1535
    %v1716 = vpack.c.bf16 %v1540, %v1536
    %v1717 = vpack.c.bf16 %v1541, %v1537
    %v1718 = vpack.c.bf16 %v1542, %v1538
    %v1719 = vpack.c.bf16 %v1547, %v1543
    %v1720 = vpack.c.bf16 %v1548, %v1544
    %v1721 = vpack.c.bf16 %v1549, %v1545
    %v1722 = vpack.c.bf16 %v1550, %v1546
    %v1723 = vpack.c.bf16 %v1555, %v1551
    %v1724 = vpack.c.bf16 %v1556, %v1552
    %v1725 = vpack.c.bf16 %v1557, %v1553
    %v1726 = vpack.c.bf16 %v1558, %v1554
    %v1727 = vpack.c.bf16 %v1563, %v1559
    %v1728 = vpack.c.bf16 %v1564, %v1560
    %v1729 = vpack.c.bf16 %v1565, %v1561
    %v1730 = vpack.c.bf16 %v1566, %v1562
    %v1731 = vpack.c.bf16 %v1571, %v1567
    %v1732 = vpack.c.bf16 %v1572, %v1568
    %v1733 = vpack.c.bf16 %v1573, %v1569
    %v1734 = vpack.c.bf16 %v1574, %v1570
    %v1735 = vpack.c.bf16 %v1579, %v1575
    %v1736 = vpack.c.bf16 %v1580, %v1576
    %v1737 = vpack.c.bf16 %v1581, %v1577
    %v1738 = vpack.c.bf16 %v1582, %v1578
    %v1739 = vpack.c.bf16 %v1587, %v1583
    %v1740 = vpack.c.bf16 %v1588, %v1584
    %v1741 = vpack.c.bf16 %v1589, %v1585
    %v1742 = vpack.c.bf16 %v1590, %v1586
    %v1743 = vpack.c.bf16 %v1595, %v1591
    %v1744 = vpack.c.bf16 %v1596, %v1592
    %v1745 = vpack.c.bf16 %v1597, %v1593
    %v1746 = vpack.c.bf16 %v1598, %v1594
    %v1747 = vpack.c.bf16 %v1603, %v1599
    %v1748 = vpack.c.bf16 %v1604, %v1600
    %v1749 = vpack.c.bf16 %v1605, %v1601
    %v1750 = vpack.c.bf16 %v1606, %v1602
    %v1751 = vpack.c.bf16 %v1611, %v1607
    %v1752 = vpack.c.bf16 %v1612, %v1608
    %v1753 = vpack.c.bf16 %v1613, %v1609
    %v1754 = vpack.c.bf16 %v1614, %v1610
    %v1755 = vpack.c.bf16 %v1619, %v1615
    %v1756 = vpack.c.bf16 %v1620, %v1616
    %v1757 = vpack.c.bf16 %v1621, %v1617
    %v1758 = vpack.c.bf16 %v1622, %v1618
    %v1759 = vpack.c.bf16 %v1627, %v1623
    %v1760 = vpack.c.bf16 %v1628, %v1624
    %v1761 = vpack.c.bf16 %v1629, %v1625
    %v1762 = vpack.c.bf16 %v1630, %v1626
    %v1763 = vpack.c.bf16 %v1635, %v1631
    %v1764 = vpack.c.bf16 %v1636, %v1632
    %v1765 = vpack.c.bf16 %v1637, %v1633
    %v1766 = vpack.c.bf16 %v1638, %v1634
    %v1767 = vpack.c.bf16 %v1643, %v1639
    %v1768 = vpack.c.bf16 %v1644, %v1640
    %v1769 = vpack.c.bf16 %v1645, %v1641
    %v1770 = vpack.c.bf16 %v1646, %v1642
    %v1771 = vpack.c.bf16 %v1651, %v1647
    %v1772 = vpack.c.bf16 %v1652, %v1648
    %v1773 = vpack.c.bf16 %v1653, %v1649
    %v1774 = vpack.c.bf16 %v1654, %v1650
    %v1775 = vpack.c.bf16 %v1659, %v1655
    %v1776 = vpack.c.bf16 %v1660, %v1656
    %v1777 = vpack.c.bf16 %v1661, %v1657
    %v1778 = vpack.c.bf16 %v1662, %v1658
    %v1779 = vpack.c.bf16 %v1667, %v1663
    %v1780 = vpack.c.bf16 %v1668, %v1664
    %v1781 = vpack.c.bf16 %v1669, %v1665
    %v1782 = vpack.c.bf16 %v1670, %v1666
    %1783 = vst [vmem:[#allocation2] sm:$0xff] %v1671
    %1784 = vst [vmem:[#allocation2 + $0x8] sm:$0xff] %v1672
    %1785 = vst [vmem:[#allocation2 + $0x10] sm:$0xff] %v1673
    %1786 = vst [vmem:[#allocation2 + $0x18] sm:$0xff] %v1674
    %1787 = vst [vmem:[#allocation2 + $0x20] sm:$0xff] %v1675
    %1788 = vst [vmem:[#allocation2 + $0x28] sm:$0xff] %v1676
    %1789 = vst [vmem:[#allocation2 + $0x30] sm:$0xff] %v1677
    %1790 = vst [vmem:[#allocation2 + $0x38] sm:$0xff] %v1678
    %1791 = vst [vmem:[#allocation2 + $0x40] sm:$0xff] %v1679
    %1792 = vst [vmem:[#allocation2 + $0x48] sm:$0xff] %v1680
    %1793 = vst [vmem:[#allocation2 + $0x50] sm:$0xff] %v1681
    %1794 = vst [vmem:[#allocation2 + $0x58] sm:$0xff] %v1682
    %1795 = vst [vmem:[#allocation2 + $0x60] sm:$0xff] %v1683
    %1796 = vst [vmem:[#allocation2 + $0x68] sm:$0xff] %v1684
    %1797 = vst [vmem:[#allocation2 + $0x70] sm:$0xff] %v1685
    %1798 = vst [vmem:[#allocation2 + $0x78] sm:$0xff] %v1686
    %1799 = vst [vmem:[#allocation2 + $0x80] sm:$0xff] %v1687
    %1800 = vst [vmem:[#allocation2 + $0x88] sm:$0xff] %v1688
    %1801 = vst [vmem:[#allocation2 + $0x90] sm:$0xff] %v1689
    %1802 = vst [vmem:[#allocation2 + $0x98] sm:$0xff] %v1690
    %1803 = vst [vmem:[#allocation2 + $0xa0] sm:$0xff] %v1691
    %1804 = vst [vmem:[#allocation2 + $0xa8] sm:$0xff] %v1692
    %1805 = vst [vmem:[#allocation2 + $0xb0] sm:$0xff] %v1693
    %1806 = vst [vmem:[#allocation2 + $0xb8] sm:$0xff] %v1694
    %1807 = vst [vmem:[#allocation2 + $0xc0] sm:$0xff] %v1695
    %1808 = vst [vmem:[#allocation2 + $0xc8] sm:$0xff] %v1696
    %1809 = vst [vmem:[#allocation2 + $0xd0] sm:$0xff] %v1697
    %1810 = vst [vmem:[#allocation2 + $0xd8] sm:$0xff] %v1698
    %1811 = vst [vmem:[#allocation2 + $0xe0] sm:$0xff] %v1699
    %1812 = vst [vmem:[#allocation2 + $0xe8] sm:$0xff] %v1700
    %1813 = vst [vmem:[#allocation2 + $0xf0] sm:$0xff] %v1701
    %1814 = vst [vmem:[#allocation2 + $0xf8] sm:$0xff] %v1702
    %1815 = vst [vmem:[#allocation2 + $0x100] sm:$0xff] %v1703
    %1816 = vst [vmem:[#allocation2 + $0x108] sm:$0xff] %v1704
    %1817 = vst [vmem:[#allocation2 + $0x110] sm:$0xff] %v1705
    %1818 = vst [vmem:[#allocation2 + $0x118] sm:$0xff] %v1706
    %1819 = vst [vmem:[#allocation2 + $0x120] sm:$0xff] %v1707
    %1820 = vst [vmem:[#allocation2 + $0x128] sm:$0xff] %v1708
    %1821 = vst [vmem:[#allocation2 + $0x130] sm:$0xff] %v1709
    %1822 = vst [vmem:[#allocation2 + $0x138] sm:$0xff] %v1710
    %1823 = vst [vmem:[#allocation2 + $0x140] sm:$0xff] %v1711
    %1824 = vst [vmem:[#allocation2 + $0x148] sm:$0xff] %v1712
    %1825 = vst [vmem:[#allocation2 + $0x150] sm:$0xff] %v1713
    %1826 = vst [vmem:[#allocation2 + $0x158] sm:$0xff] %v1714
    %1827 = vst [vmem:[#allocation2 + $0x160] sm:$0xff] %v1715
    %1828 = vst [vmem:[#allocation2 + $0x168] sm:$0xff] %v1716
    %1829 = vst [vmem:[#allocation2 + $0x170] sm:$0xff] %v1717
    %1830 = vst [vmem:[#allocation2 + $0x178] sm:$0xff] %v1718
    %1831 = vst [vmem:[#allocation2 + $0x180] sm:$0xff] %v1719
    %1832 = vst [vmem:[#allocation2 + $0x188] sm:$0xff] %v1720
    %1833 = vst [vmem:[#allocation2 + $0x190] sm:$0xff] %v1721
    %1834 = vst [vmem:[#allocation2 + $0x198] sm:$0xff] %v1722
    %1835 = vst [vmem:[#allocation2 + $0x1a0] sm:$0xff] %v1723
    %1836 = vst [vmem:[#allocation2 + $0x1a8] sm:$0xff] %v1724
    %1837 = vst [vmem:[#allocation2 + $0x1b0] sm:$0xff] %v1725
    %1838 = vst [vmem:[#allocation2 + $0x1b8] sm:$0xff] %v1726
    %1839 = vst [vmem:[#allocation2 + $0x1c0] sm:$0xff] %v1727
    %1840 = vst [vmem:[#allocation2 + $0x1c8] sm:$0xff] %v1728
    %1841 = vst [vmem:[#allocation2 + $0x1d0] sm:$0xff] %v1729
    %1842 = vst [vmem:[#allocation2 + $0x1d8] sm:$0xff] %v1730
    %1843 = vst [vmem:[#allocation2 + $0x1e0] sm:$0xff] %v1731
    %1844 = vst [vmem:[#allocation2 + $0x1e8] sm:$0xff] %v1732
    %1845 = vst [vmem:[#allocation2 + $0x1f0] sm:$0xff] %v1733
    %1846 = vst [vmem:[#allocation2 + $0x1f8] sm:$0xff] %v1734
    %1847 = vst [vmem:[#allocation2 + $0x200] sm:$0xff] %v1735
    %1848 = vst [vmem:[#allocation2 + $0x208] sm:$0xff] %v1736
    %1849 = vst [vmem:[#allocation2 + $0x210] sm:$0xff] %v1737
    %1850 = vst [vmem:[#allocation2 + $0x218] sm:$0xff] %v1738
    %1851 = vst [vmem:[#allocation2 + $0x220] sm:$0xff] %v1739
    %1852 = vst [vmem:[#allocation2 + $0x228] sm:$0xff] %v1740
    %1853 = vst [vmem:[#allocation2 + $0x230] sm:$0xff] %v1741
    %1854 = vst [vmem:[#allocation2 + $0x238] sm:$0xff] %v1742
    %1855 = vst [vmem:[#allocation2 + $0x240] sm:$0xff] %v1743
    %1856 = vst [vmem:[#allocation2 + $0x248] sm:$0xff] %v1744
    %1857 = vst [vmem:[#allocation2 + $0x250] sm:$0xff] %v1745
    %1858 = vst [vmem:[#allocation2 + $0x258] sm:$0xff] %v1746
    %1859 = vst [vmem:[#allocation2 + $0x260] sm:$0xff] %v1747
    %1860 = vst [vmem:[#allocation2 + $0x268] sm:$0xff] %v1748
    %1861 = vst [vmem:[#allocation2 + $0x270] sm:$0xff] %v1749
    %1862 = vst [vmem:[#allocation2 + $0x278] sm:$0xff] %v1750
    %1863 = vst [vmem:[#allocation2 + $0x280] sm:$0xff] %v1751
    %1864 = vst [vmem:[#allocation2 + $0x288] sm:$0xff] %v1752
    %1865 = vst [vmem:[#allocation2 + $0x290] sm:$0xff] %v1753
    %1866 = vst [vmem:[#allocation2 + $0x298] sm:$0xff] %v1754
    %1867 = vst [vmem:[#allocation2 + $0x2a0] sm:$0xff] %v1755
    %1868 = vst [vmem:[#allocation2 + $0x2a8] sm:$0xff] %v1756
    %1869 = vst [vmem:[#allocation2 + $0x2b0] sm:$0xff] %v1757
    %1870 = vst [vmem:[#allocation2 + $0x2b8] sm:$0xff] %v1758
    %1871 = vst [vmem:[#allocation2 + $0x2c0] sm:$0xff] %v1759
    %1872 = vst [vmem:[#allocation2 + $0x2c8] sm:$0xff] %v1760
    %1873 = vst [vmem:[#allocation2 + $0x2d0] sm:$0xff] %v1761
    %1874 = vst [vmem:[#allocation2 + $0x2d8] sm:$0xff] %v1762
    %1875 = vst [vmem:[#allocation2 + $0x2e0] sm:$0xff] %v1763
    %1876 = vst [vmem:[#allocation2 + $0x2e8] sm:$0xff] %v1764
    %1877 = vst [vmem:[#allocation2 + $0x2f0] sm:$0xff] %v1765
    %1878 = vst [vmem:[#allocation2 + $0x2f8] sm:$0xff] %v1766
    %1879 = vst [vmem:[#allocation2 + $0x300] sm:$0xff] %v1767
    %1880 = vst [vmem:[#allocation2 + $0x308] sm:$0xff] %v1768
    %1881 = vst [vmem:[#allocation2 + $0x310] sm:$0xff] %v1769
    %1882 = vst [vmem:[#allocation2 + $0x318] sm:$0xff] %v1770
    %1883 = vst [vmem:[#allocation2 + $0x320] sm:$0xff] %v1771
    %1884 = vst [vmem:[#allocation2 + $0x328] sm:$0xff] %v1772
    %1885 = vst [vmem:[#allocation2 + $0x330] sm:$0xff] %v1773
    %1886 = vst [vmem:[#allocation2 + $0x338] sm:$0xff] %v1774
    %1887 = vst [vmem:[#allocation2 + $0x340] sm:$0xff] %v1775
    %1888 = vst [vmem:[#allocation2 + $0x348] sm:$0xff] %v1776
    %1889 = vst [vmem:[#allocation2 + $0x350] sm:$0xff] %v1777
    %1890 = vst [vmem:[#allocation2 + $0x358] sm:$0xff] %v1778
    %1891 = vst [vmem:[#allocation2 + $0x360] sm:$0xff] %v1779
    %1892 = vst [vmem:[#allocation2 + $0x368] sm:$0xff] %v1780
    %1893 = vst [vmem:[#allocation2 + $0x370] sm:$0xff] %v1781
    %1894 = vst [vmem:[#allocation2 + $0x378] sm:$0xff] %v1782
    %v1895 = vld [vmem:[#allocation2] sm:$0xff]
    %v1896 = vld [vmem:[#allocation2 + $0x8] sm:$0xff]
    %v1897 = vld [vmem:[#allocation2 + $0x10] sm:$0xff]
    %v1898 = vld [vmem:[#allocation2 + $0x18] sm:$0xff]
    %v1899 = vld [vmem:[#allocation2 + $0x20] sm:$0xff]
    %v1900 = vld [vmem:[#allocation2 + $0x28] sm:$0xff]
    %v1901 = vld [vmem:[#allocation2 + $0x30] sm:$0xff]
    %v1902 = vld [vmem:[#allocation2 + $0x38] sm:$0xff]
    %v1903 = vmax.bf16 %v1895, %v1899
    %v1904 = vmax.bf16 %v1896, %v1900
    %v1905 = vmax.bf16 %v1897, %v1901
    %v1906 = vmax.bf16 %v1898, %v1902
    %v1907 = vmax.bf16 %v1903, %v1905
    %v1908 = vmax.bf16 %v1904, %v1906
    %1909 = vst [vmem:[#allocation3] sm:$0xff] %v1907
    %1910 = vst [vmem:[#allocation3 + $0x8] sm:$0xff] %v1908
    %v1911 = vld [vmem:[#allocation2 + $0x40] sm:$0xff]
    %v1912 = vld [vmem:[#allocation2 + $0x48] sm:$0xff]
    %v1913 = vld [vmem:[#allocation2 + $0x50] sm:$0xff]
    %v1914 = vld [vmem:[#allocation2 + $0x58] sm:$0xff]
    %v1915 = vld [vmem:[#allocation2 + $0x60] sm:$0xff]
    %v1916 = vld [vmem:[#allocation2 + $0x68] sm:$0xff]
    %v1917 = vld [vmem:[#allocation2 + $0x70] sm:$0xff]
    %v1918 = vld [vmem:[#allocation2 + $0x78] sm:$0xff]
    %v1919 = vmax.bf16 %v1911, %v1915
    %v1920 = vmax.bf16 %v1912, %v1916
    %v1921 = vmax.bf16 %v1913, %v1917
    %v1922 = vmax.bf16 %v1914, %v1918
    %v1923 = vmax.bf16 %v1919, %v1921
    %v1924 = vmax.bf16 %v1920, %v1922
    %1925 = vst [vmem:[#allocation3 + $0x50] sm:$0xff] %v1923
    %1926 = vst [vmem:[#allocation3 + $0x58] sm:$0xff] %v1924
    %1927 = vst [vmem:[#allocation3 + $0x10] sm:$0xff] %v1923
    %1928 = vst [vmem:[#allocation3 + $0x18] sm:$0xff] %v1924
    %v1929 = vld [vmem:[#allocation2 + $0x80] sm:$0xff]
    %v1930 = vld [vmem:[#allocation2 + $0x88] sm:$0xff]
    %v1931 = vld [vmem:[#allocation2 + $0x90] sm:$0xff]
    %v1932 = vld [vmem:[#allocation2 + $0x98] sm:$0xff]
    %v1933 = vld [vmem:[#allocation2 + $0xa0] sm:$0xff]
    %v1934 = vld [vmem:[#allocation2 + $0xa8] sm:$0xff]
    %v1935 = vld [vmem:[#allocation2 + $0xb0] sm:$0xff]
    %v1936 = vld [vmem:[#allocation2 + $0xb8] sm:$0xff]
    %v1937 = vmax.bf16 %v1929, %v1933
    %v1938 = vmax.bf16 %v1930, %v1934
    %v1939 = vmax.bf16 %v1931, %v1935
    %v1940 = vmax.bf16 %v1932, %v1936
    %v1941 = vmax.bf16 %v1937, %v1939
    %v1942 = vmax.bf16 %v1938, %v1940
    %1943 = vst [vmem:[#allocation3 + $0xa0] sm:$0xff] %v1941
    %1944 = vst [vmem:[#allocation3 + $0xa8] sm:$0xff] %v1942
    %1945 = vst [vmem:[#allocation3 + $0x60] sm:$0xff] %v1941
    %1946 = vst [vmem:[#allocation3 + $0x68] sm:$0xff] %v1942
    %1947 = vst [vmem:[#allocation3 + $0x20] sm:$0xff] %v1941
    %1948 = vst [vmem:[#allocation3 + $0x28] sm:$0xff] %v1942
    %v1949 = vld [vmem:[#allocation2 + $0xc0] sm:$0xff]
    %v1950 = vld [vmem:[#allocation2 + $0xc8] sm:$0xff]
    %v1951 = vld [vmem:[#allocation2 + $0xd0] sm:$0xff]
    %v1952 = vld [vmem:[#allocation2 + $0xd8] sm:$0xff]
    %v1953 = vld [vmem:[#allocation2 + $0xe0] sm:$0xff]
    %v1954 = vld [vmem:[#allocation2 + $0xe8] sm:$0xff]
    %v1955 = vld [vmem:[#allocation2 + $0xf0] sm:$0xff]
    %v1956 = vld [vmem:[#allocation2 + $0xf8] sm:$0xff]
    %v1957 = vmax.bf16 %v1949, %v1953
    %v1958 = vmax.bf16 %v1950, %v1954
    %v1959 = vmax.bf16 %v1951, %v1955
    %v1960 = vmax.bf16 %v1952, %v1956
    %v1961 = vmax.bf16 %v1957, %v1959
    %v1962 = vmax.bf16 %v1958, %v1960
    %1963 = vst [vmem:[#allocation3 + $0xf0] sm:$0xff] %v1961
    %1964 = vst [vmem:[#allocation3 + $0xf8] sm:$0xff] %v1962
    %1965 = vst [vmem:[#allocation3 + $0xb0] sm:$0xff] %v1961
    %1966 = vst [vmem:[#allocation3 + $0xb8] sm:$0xff] %v1962
    %1967 = vst [vmem:[#allocation3 + $0x70] sm:$0xff] %v1961
    %1968 = vst [vmem:[#allocation3 + $0x78] sm:$0xff] %v1962
    %1969 = vst [vmem:[#allocation3 + $0x30] sm:$0xff] %v1961
    %1970 = vst [vmem:[#allocation3 + $0x38] sm:$0xff] %v1962
    %v1971 = vld [vmem:[#allocation2 + $0x100] sm:$0xff]
    %v1972 = vld [vmem:[#allocation2 + $0x108] sm:$0xff]
    %v1973 = vld [vmem:[#allocation2 + $0x110] sm:$0xff]
    %v1974 = vld [vmem:[#allocation2 + $0x118] sm:$0xff]
    %v1975 = vld [vmem:[#allocation2 + $0x120] sm:$0xff]
    %v1976 = vld [vmem:[#allocation2 + $0x128] sm:$0xff]
    %v1977 = vld [vmem:[#allocation2 + $0x130] sm:$0xff]
    %v1978 = vld [vmem:[#allocation2 + $0x138] sm:$0xff]
    %v1979 = vmax.bf16 %v1971, %v1975
    %v1980 = vmax.bf16 %v1972, %v1976
    %v1981 = vmax.bf16 %v1973, %v1977
    %v1982 = vmax.bf16 %v1974, %v1978
    %v1983 = vmax.bf16 %v1979, %v1981
    %v1984 = vmax.bf16 %v1980, %v1982
    %1985 = vst [vmem:[#allocation3 + $0x140] sm:$0xff] %v1983
    %1986 = vst [vmem:[#allocation3 + $0x148] sm:$0xff] %v1984
    %1987 = vst [vmem:[#allocation3 + $0x100] sm:$0xff] %v1983
    %1988 = vst [vmem:[#allocation3 + $0x108] sm:$0xff] %v1984
    %1989 = vst [vmem:[#allocation3 + $0xc0] sm:$0xff] %v1983
    %1990 = vst [vmem:[#allocation3 + $0xc8] sm:$0xff] %v1984
    %1991 = vst [vmem:[#allocation3 + $0x80] sm:$0xff] %v1983
    %1992 = vst [vmem:[#allocation3 + $0x88] sm:$0xff] %v1984
    %1993 = vst [vmem:[#allocation3 + $0x40] sm:$0xff] %v1983
    %1994 = vst [vmem:[#allocation3 + $0x48] sm:$0xff] %v1984
    %v1995 = vld [vmem:[#allocation2 + $0x140] sm:$0xff]
    %v1996 = vld [vmem:[#allocation2 + $0x148] sm:$0xff]
    %v1997 = vld [vmem:[#allocation2 + $0x150] sm:$0xff]
    %v1998 = vld [vmem:[#allocation2 + $0x158] sm:$0xff]
    %v1999 = vld [vmem:[#allocation2 + $0x160] sm:$0xff]
    %v2000 = vld [vmem:[#allocation2 + $0x168] sm:$0xff]
    %v2001 = vld [vmem:[#allocation2 + $0x170] sm:$0xff]
    %v2002 = vld [vmem:[#allocation2 + $0x178] sm:$0xff]
    %v2003 = vmax.bf16 %v1995, %v1999
    %v2004 = vmax.bf16 %v1996, %v2000
    %v2005 = vmax.bf16 %v1997, %v2001
    %v2006 = vmax.bf16 %v1998, %v2002
    %v2007 = vmax.bf16 %v2003, %v2005
    %v2008 = vmax.bf16 %v2004, %v2006
    %2009 = vst [vmem:[#allocation3 + $0x190] sm:$0xff] %v2007
    %2010 = vst [vmem:[#allocation3 + $0x198] sm:$0xff] %v2008
    %2011 = vst [vmem:[#allocation3 + $0x150] sm:$0xff] %v2007
    %2012 = vst [vmem:[#allocation3 + $0x158] sm:$0xff] %v2008
    %2013 = vst [vmem:[#allocation3 + $0x110] sm:$0xff] %v2007
    %2014 = vst [vmem:[#allocation3 + $0x118] sm:$0xff] %v2008
    %2015 = vst [vmem:[#allocation3 + $0xd0] sm:$0xff] %v2007
    %2016 = vst [vmem:[#allocation3 + $0xd8] sm:$0xff] %v2008
    %2017 = vst [vmem:[#allocation3 + $0x90] sm:$0xff] %v2007
    %2018 = vst [vmem:[#allocation3 + $0x98] sm:$0xff] %v2008
    %v2019 = vld [vmem:[#allocation2 + $0x180] sm:$0xff]
    %v2020 = vld [vmem:[#allocation2 + $0x188] sm:$0xff]
    %v2021 = vld [vmem:[#allocation2 + $0x190] sm:$0xff]
    %v2022 = vld [vmem:[#allocation2 + $0x198] sm:$0xff]
    %v2023 = vld [vmem:[#allocation2 + $0x1a0] sm:$0xff]
    %v2024 = vld [vmem:[#allocation2 + $0x1a8] sm:$0xff]
    %v2025 = vld [vmem:[#allocation2 + $0x1b0] sm:$0xff]
    %v2026 = vld [vmem:[#allocation2 + $0x1b8] sm:$0xff]
    %v2027 = vmax.bf16 %v2019, %v2023
    %v2028 = vmax.bf16 %v2020, %v2024
    %v2029 = vmax.bf16 %v2021, %v2025
    %v2030 = vmax.bf16 %v2022, %v2026
    %v2031 = vmax.bf16 %v2027, %v2029
    %v2032 = vmax.bf16 %v2028, %v2030
    %2033 = vst [vmem:[#allocation3 + $0x1e0] sm:$0xff] %v2031
    %2034 = vst [vmem:[#allocation3 + $0x1e8] sm:$0xff] %v2032
    %2035 = vst [vmem:[#allocation3 + $0x1a0] sm:$0xff] %v2031
    %2036 = vst [vmem:[#allocation3 + $0x1a8] sm:$0xff] %v2032
    %2037 = vst [vmem:[#allocation3 + $0x160] sm:$0xff] %v2031
    %2038 = vst [vmem:[#allocation3 + $0x168] sm:$0xff] %v2032
    %2039 = vst [vmem:[#allocation3 + $0x120] sm:$0xff] %v2031
    %2040 = vst [vmem:[#allocation3 + $0x128] sm:$0xff] %v2032
    %2041 = vst [vmem:[#allocation3 + $0xe0] sm:$0xff] %v2031
    %2042 = vst [vmem:[#allocation3 + $0xe8] sm:$0xff] %v2032
    %v2043 = vld [vmem:[#allocation2 + $0x1c0] sm:$0xff]
    %v2044 = vld [vmem:[#allocation2 + $0x1c8] sm:$0xff]
    %v2045 = vld [vmem:[#allocation2 + $0x1d0] sm:$0xff]
    %v2046 = vld [vmem:[#allocation2 + $0x1d8] sm:$0xff]
    %v2047 = vld [vmem:[#allocation2 + $0x1e0] sm:$0xff]
    %v2048 = vld [vmem:[#allocation2 + $0x1e8] sm:$0xff]
    %v2049 = vld [vmem:[#allocation2 + $0x1f0] sm:$0xff]
    %v2050 = vld [vmem:[#allocation2 + $0x1f8] sm:$0xff]
    %v2051 = vmax.bf16 %v2043, %v2047
    %v2052 = vmax.bf16 %v2044, %v2048
    %v2053 = vmax.bf16 %v2045, %v2049
    %v2054 = vmax.bf16 %v2046, %v2050
    %v2055 = vmax.bf16 %v2051, %v2053
    %v2056 = vmax.bf16 %v2052, %v2054
    %2057 = vst [vmem:[#allocation3 + $0x230] sm:$0xff] %v2055
    %2058 = vst [vmem:[#allocation3 + $0x238] sm:$0xff] %v2056
    %2059 = vst [vmem:[#allocation3 + $0x1f0] sm:$0xff] %v2055
    %2060 = vst [vmem:[#allocation3 + $0x1f8] sm:$0xff] %v2056
    %2061 = vst [vmem:[#allocation3 + $0x1b0] sm:$0xff] %v2055
    %2062 = vst [vmem:[#allocation3 + $0x1b8] sm:$0xff] %v2056
    %2063 = vst [vmem:[#allocation3 + $0x170] sm:$0xff] %v2055
    %2064 = vst [vmem:[#allocation3 + $0x178] sm:$0xff] %v2056
    %2065 = vst [vmem:[#allocation3 + $0x130] sm:$0xff] %v2055
    %2066 = vst [vmem:[#allocation3 + $0x138] sm:$0xff] %v2056
    %v2067 = vld [vmem:[#allocation2 + $0x200] sm:$0xff]
    %v2068 = vld [vmem:[#allocation2 + $0x208] sm:$0xff]
    %v2069 = vld [vmem:[#allocation2 + $0x210] sm:$0xff]
    %v2070 = vld [vmem:[#allocation2 + $0x218] sm:$0xff]
    %v2071 = vld [vmem:[#allocation2 + $0x220] sm:$0xff]
    %v2072 = vld [vmem:[#allocation2 + $0x228] sm:$0xff]
    %v2073 = vld [vmem:[#allocation2 + $0x230] sm:$0xff]
    %v2074 = vld [vmem:[#allocation2 + $0x238] sm:$0xff]
    %v2075 = vmax.bf16 %v2067, %v2071
    %v2076 = vmax.bf16 %v2068, %v2072
    %v2077 = vmax.bf16 %v2069, %v2073
    %v2078 = vmax.bf16 %v2070, %v2074
    %v2079 = vmax.bf16 %v2075, %v2077
    %v2080 = vmax.bf16 %v2076, %v2078
    %2081 = vst [vmem:[#allocation3 + $0x280] sm:$0xff] %v2079
    %2082 = vst [vmem:[#allocation3 + $0x288] sm:$0xff] %v2080
    %2083 = vst [vmem:[#allocation3 + $0x240] sm:$0xff] %v2079
    %2084 = vst [vmem:[#allocation3 + $0x248] sm:$0xff] %v2080
    %2085 = vst [vmem:[#allocation3 + $0x200] sm:$0xff] %v2079
    %2086 = vst [vmem:[#allocation3 + $0x208] sm:$0xff] %v2080
    %2087 = vst [vmem:[#allocation3 + $0x1c0] sm:$0xff] %v2079
    %2088 = vst [vmem:[#allocation3 + $0x1c8] sm:$0xff] %v2080
    %2089 = vst [vmem:[#allocation3 + $0x180] sm:$0xff] %v2079
    %2090 = vst [vmem:[#allocation3 + $0x188] sm:$0xff] %v2080
    %v2091 = vld [vmem:[#allocation2 + $0x240] sm:$0xff]
    %v2092 = vld [vmem:[#allocation2 + $0x248] sm:$0xff]
    %v2093 = vld [vmem:[#allocation2 + $0x250] sm:$0xff]
    %v2094 = vld [vmem:[#allocation2 + $0x258] sm:$0xff]
    %v2095 = vld [vmem:[#allocation2 + $0x260] sm:$0xff]
    %v2096 = vld [vmem:[#allocation2 + $0x268] sm:$0xff]
    %v2097 = vld [vmem:[#allocation2 + $0x270] sm:$0xff]
    %v2098 = vld [vmem:[#allocation2 + $0x278] sm:$0xff]
    %v2099 = vmax.bf16 %v2091, %v2095
    %v2100 = vmax.bf16 %v2092, %v2096
    %v2101 = vmax.bf16 %v2093, %v2097
    %v2102 = vmax.bf16 %v2094, %v2098
    %v2103 = vmax.bf16 %v2099, %v2101
    %v2104 = vmax.bf16 %v2100, %v2102
    %2105 = vst [vmem:[#allocation3 + $0x2d0] sm:$0xff] %v2103
    %2106 = vst [vmem:[#allocation3 + $0x2d8] sm:$0xff] %v2104
    %2107 = vst [vmem:[#allocation3 + $0x290] sm:$0xff] %v2103
    %2108 = vst [vmem:[#allocation3 + $0x298] sm:$0xff] %v2104
    %2109 = vst [vmem:[#allocation3 + $0x250] sm:$0xff] %v2103
    %2110 = vst [vmem:[#allocation3 + $0x258] sm:$0xff] %v2104
    %2111 = vst [vmem:[#allocation3 + $0x210] sm:$0xff] %v2103
    %2112 = vst [vmem:[#allocation3 + $0x218] sm:$0xff] %v2104
    %2113 = vst [vmem:[#allocation3 + $0x1d0] sm:$0xff] %v2103
    %2114 = vst [vmem:[#allocation3 + $0x1d8] sm:$0xff] %v2104
    %v2115 = vld [vmem:[#allocation2 + $0x280] sm:$0xff]
    %v2116 = vld [vmem:[#allocation2 + $0x288] sm:$0xff]
    %v2117 = vld [vmem:[#allocation2 + $0x290] sm:$0xff]
    %v2118 = vld [vmem:[#allocation2 + $0x298] sm:$0xff]
    %v2119 = vld [vmem:[#allocation2 + $0x2a0] sm:$0xff]
    %v2120 = vld [vmem:[#allocation2 + $0x2a8] sm:$0xff]
    %v2121 = vld [vmem:[#allocation2 + $0x2b0] sm:$0xff]
    %v2122 = vld [vmem:[#allocation2 + $0x2b8] sm:$0xff]
    %v2123 = vmax.bf16 %v2115, %v2119
    %v2124 = vmax.bf16 %v2116, %v2120
    %v2125 = vmax.bf16 %v2117, %v2121
    %v2126 = vmax.bf16 %v2118, %v2122
    %v2127 = vmax.bf16 %v2123, %v2125
    %v2128 = vmax.bf16 %v2124, %v2126
    %2129 = vst [vmem:[#allocation3 + $0x2e0] sm:$0xff] %v2127
    %2130 = vst [vmem:[#allocation3 + $0x2e8] sm:$0xff] %v2128
    %2131 = vst [vmem:[#allocation3 + $0x2a0] sm:$0xff] %v2127
    %2132 = vst [vmem:[#allocation3 + $0x2a8] sm:$0xff] %v2128
    %2133 = vst [vmem:[#allocation3 + $0x260] sm:$0xff] %v2127
    %2134 = vst [vmem:[#allocation3 + $0x268] sm:$0xff] %v2128
    %2135 = vst [vmem:[#allocation3 + $0x220] sm:$0xff] %v2127
    %2136 = vst [vmem:[#allocation3 + $0x228] sm:$0xff] %v2128
    %v2137 = vld [vmem:[#allocation2 + $0x2c0] sm:$0xff]
    %v2138 = vld [vmem:[#allocation2 + $0x2c8] sm:$0xff]
    %v2139 = vld [vmem:[#allocation2 + $0x2d0] sm:$0xff]
    %v2140 = vld [vmem:[#allocation2 + $0x2d8] sm:$0xff]
    %v2141 = vld [vmem:[#allocation2 + $0x2e0] sm:$0xff]
    %v2142 = vld [vmem:[#allocation2 + $0x2e8] sm:$0xff]
    %v2143 = vld [vmem:[#allocation2 + $0x2f0] sm:$0xff]
    %v2144 = vld [vmem:[#allocation2 + $0x2f8] sm:$0xff]
    %v2145 = vmax.bf16 %v2137, %v2141
    %v2146 = vmax.bf16 %v2138, %v2142
    %v2147 = vmax.bf16 %v2139, %v2143
    %v2148 = vmax.bf16 %v2140, %v2144
    %v2149 = vmax.bf16 %v2145, %v2147
    %v2150 = vmax.bf16 %v2146, %v2148
    %2151 = vst [vmem:[#allocation3 + $0x2f0] sm:$0xff] %v2149
    %2152 = vst [vmem:[#allocation3 + $0x2f8] sm:$0xff] %v2150
    %2153 = vst [vmem:[#allocation3 + $0x2b0] sm:$0xff] %v2149
    %2154 = vst [vmem:[#allocation3 + $0x2b8] sm:$0xff] %v2150
    %2155 = vst [vmem:[#allocation3 + $0x270] sm:$0xff] %v2149
    %2156 = vst [vmem:[#allocation3 + $0x278] sm:$0xff] %v2150
    %v2157 = vld [vmem:[#allocation2 + $0x300] sm:$0xff]
    %v2158 = vld [vmem:[#allocation2 + $0x308] sm:$0xff]
    %v2159 = vld [vmem:[#allocation2 + $0x310] sm:$0xff]
    %v2160 = vld [vmem:[#allocation2 + $0x318] sm:$0xff]
    %v2161 = vld [vmem:[#allocation2 + $0x320] sm:$0xff]
    %v2162 = vld [vmem:[#allocation2 + $0x328] sm:$0xff]
    %v2163 = vld [vmem:[#allocation2 + $0x330] sm:$0xff]
    %v2164 = vld [vmem:[#allocation2 + $0x338] sm:$0xff]
    %v2165 = vmax.bf16 %v2157, %v2161
    %v2166 = vmax.bf16 %v2158, %v2162
    %v2167 = vmax.bf16 %v2159, %v2163
    %v2168 = vmax.bf16 %v2160, %v2164
    %v2169 = vmax.bf16 %v2165, %v2167
    %v2170 = vmax.bf16 %v2166, %v2168
    %2171 = vst [vmem:[#allocation3 + $0x300] sm:$0xff] %v2169
    %2172 = vst [vmem:[#allocation3 + $0x308] sm:$0xff] %v2170
    %2173 = vst [vmem:[#allocation3 + $0x2c0] sm:$0xff] %v2169
    %2174 = vst [vmem:[#allocation3 + $0x2c8] sm:$0xff] %v2170
    %v2175 = vld [vmem:[#allocation2 + $0x340] sm:$0xff]
    %v2176 = vld [vmem:[#allocation2 + $0x348] sm:$0xff]
    %v2177 = vld [vmem:[#allocation2 + $0x350] sm:$0xff]
    %v2178 = vld [vmem:[#allocation2 + $0x358] sm:$0xff]
    %v2179 = vld [vmem:[#allocation2 + $0x360] sm:$0xff]
    %v2180 = vld [vmem:[#allocation2 + $0x368] sm:$0xff]
    %v2181 = vld [vmem:[#allocation2 + $0x370] sm:$0xff]
    %v2182 = vld [vmem:[#allocation2 + $0x378] sm:$0xff]
    %v2183 = vmax.bf16 %v2175, %v2179
    %v2184 = vmax.bf16 %v2176, %v2180
    %v2185 = vmax.bf16 %v2177, %v2181
    %v2186 = vmax.bf16 %v2178, %v2182
    %v2187 = vmax.bf16 %v2183, %v2185
    %v2188 = vmax.bf16 %v2184, %v2186
    %2189 = vst [vmem:[#allocation3 + $0x310] sm:$0xff] %v2187
    %2190 = vst [vmem:[#allocation3 + $0x318] sm:$0xff] %v2188
    %v2191 = vld [vmem:[#allocation3] sm:$0xff]
    %v2192 = vld [vmem:[#allocation3 + $0x8] sm:$0xff]
    %v2193 = vld [vmem:[#allocation3 + $0x10] sm:$0xff]
    %v2194 = vld [vmem:[#allocation3 + $0x18] sm:$0xff]
    %v2195 = vld [vmem:[#allocation3 + $0x20] sm:$0xff]
    %v2196 = vld [vmem:[#allocation3 + $0x28] sm:$0xff]
    %v2197 = vld [vmem:[#allocation3 + $0x30] sm:$0xff]
    %v2198 = vld [vmem:[#allocation3 + $0x38] sm:$0xff]
    %v2199 = vld [vmem:[#allocation3 + $0x40] sm:$0xff]
    %v2200 = vld [vmem:[#allocation3 + $0x48] sm:$0xff]
    %v2201 = vld [vmem:[#allocation3 + $0x50] sm:$0xff]
    %v2202 = vld [vmem:[#allocation3 + $0x58] sm:$0xff]
    %v2203 = vld [vmem:[#allocation3 + $0x60] sm:$0xff]
    %v2204 = vld [vmem:[#allocation3 + $0x68] sm:$0xff]
    %v2205 = vld [vmem:[#allocation3 + $0x70] sm:$0xff]
    %v2206 = vld [vmem:[#allocation3 + $0x78] sm:$0xff]
    %v2207 = vld [vmem:[#allocation3 + $0x80] sm:$0xff]
    %v2208 = vld [vmem:[#allocation3 + $0x88] sm:$0xff]
    %v2209 = vld [vmem:[#allocation3 + $0x90] sm:$0xff]
    %v2210 = vld [vmem:[#allocation3 + $0x98] sm:$0xff]
    %v2211 = vld [vmem:[#allocation3 + $0xa0] sm:$0xff]
    %v2212 = vld [vmem:[#allocation3 + $0xa8] sm:$0xff]
    %v2213 = vld [vmem:[#allocation3 + $0xb0] sm:$0xff]
    %v2214 = vld [vmem:[#allocation3 + $0xb8] sm:$0xff]
    %v2215 = vld [vmem:[#allocation3 + $0xc0] sm:$0xff]
    %v2216 = vld [vmem:[#allocation3 + $0xc8] sm:$0xff]
    %v2217 = vld [vmem:[#allocation3 + $0xd0] sm:$0xff]
    %v2218 = vld [vmem:[#allocation3 + $0xd8] sm:$0xff]
    %v2219 = vld [vmem:[#allocation3 + $0xe0] sm:$0xff]
    %v2220 = vld [vmem:[#allocation3 + $0xe8] sm:$0xff]
    %v2221 = vld [vmem:[#allocation3 + $0xf0] sm:$0xff]
    %v2222 = vld [vmem:[#allocation3 + $0xf8] sm:$0xff]
    %v2223 = vld [vmem:[#allocation3 + $0x100] sm:$0xff]
    %v2224 = vld [vmem:[#allocation3 + $0x108] sm:$0xff]
    %v2225 = vld [vmem:[#allocation3 + $0x110] sm:$0xff]
    %v2226 = vld [vmem:[#allocation3 + $0x118] sm:$0xff]
    %v2227 = vld [vmem:[#allocation3 + $0x120] sm:$0xff]
    %v2228 = vld [vmem:[#allocation3 + $0x128] sm:$0xff]
    %v2229 = vld [vmem:[#allocation3 + $0x130] sm:$0xff]
    %v2230 = vld [vmem:[#allocation3 + $0x138] sm:$0xff]
    %v2231 = vld [vmem:[#allocation3 + $0x140] sm:$0xff]
    %v2232 = vld [vmem:[#allocation3 + $0x148] sm:$0xff]
    %v2233 = vld [vmem:[#allocation3 + $0x150] sm:$0xff]
    %v2234 = vld [vmem:[#allocation3 + $0x158] sm:$0xff]
    %v2235 = vld [vmem:[#allocation3 + $0x160] sm:$0xff]
    %v2236 = vld [vmem:[#allocation3 + $0x168] sm:$0xff]
    %v2237 = vld [vmem:[#allocation3 + $0x170] sm:$0xff]
    %v2238 = vld [vmem:[#allocation3 + $0x178] sm:$0xff]
    %v2239 = vld [vmem:[#allocation3 + $0x180] sm:$0xff]
    %v2240 = vld [vmem:[#allocation3 + $0x188] sm:$0xff]
    %v2241 = vld [vmem:[#allocation3 + $0x190] sm:$0xff]
    %v2242 = vld [vmem:[#allocation3 + $0x198] sm:$0xff]
    %v2243 = vld [vmem:[#allocation3 + $0x1a0] sm:$0xff]
    %v2244 = vld [vmem:[#allocation3 + $0x1a8] sm:$0xff]
    %v2245 = vld [vmem:[#allocation3 + $0x1b0] sm:$0xff]
    %v2246 = vld [vmem:[#allocation3 + $0x1b8] sm:$0xff]
    %v2247 = vld [vmem:[#allocation3 + $0x1c0] sm:$0xff]
    %v2248 = vld [vmem:[#allocation3 + $0x1c8] sm:$0xff]
    %v2249 = vld [vmem:[#allocation3 + $0x1d0] sm:$0xff]
    %v2250 = vld [vmem:[#allocation3 + $0x1d8] sm:$0xff]
    %v2251 = vld [vmem:[#allocation3 + $0x1e0] sm:$0xff]
    %v2252 = vld [vmem:[#allocation3 + $0x1e8] sm:$0xff]
    %v2253 = vld [vmem:[#allocation3 + $0x1f0] sm:$0xff]
    %v2254 = vld [vmem:[#allocation3 + $0x1f8] sm:$0xff]
    %v2255 = vld [vmem:[#allocation3 + $0x200] sm:$0xff]
    %v2256 = vld [vmem:[#allocation3 + $0x208] sm:$0xff]
    %v2257 = vld [vmem:[#allocation3 + $0x210] sm:$0xff]
    %v2258 = vld [vmem:[#allocation3 + $0x218] sm:$0xff]
    %v2259 = vld [vmem:[#allocation3 + $0x220] sm:$0xff]
    %v2260 = vld [vmem:[#allocation3 + $0x228] sm:$0xff]
    %v2261 = vld [vmem:[#allocation3 + $0x230] sm:$0xff]
    %v2262 = vld [vmem:[#allocation3 + $0x238] sm:$0xff]
    %v2263 = vld [vmem:[#allocation3 + $0x240] sm:$0xff]
    %v2264 = vld [vmem:[#allocation3 + $0x248] sm:$0xff]
    %v2265 = vld [vmem:[#allocation3 + $0x250] sm:$0xff]
    %v2266 = vld [vmem:[#allocation3 + $0x258] sm:$0xff]
    %v2267 = vld [vmem:[#allocation3 + $0x260] sm:$0xff]
    %v2268 = vld [vmem:[#allocation3 + $0x268] sm:$0xff]
    %v2269 = vld [vmem:[#allocation3 + $0x270] sm:$0xff]
    %v2270 = vld [vmem:[#allocation3 + $0x278] sm:$0xff]
    %v2271 = vld [vmem:[#allocation3 + $0x280] sm:$0xff]
    %v2272 = vld [vmem:[#allocation3 + $0x288] sm:$0xff]
    %v2273 = vld [vmem:[#allocation3 + $0x290] sm:$0xff]
    %v2274 = vld [vmem:[#allocation3 + $0x298] sm:$0xff]
    %v2275 = vld [vmem:[#allocation3 + $0x2a0] sm:$0xff]
    %v2276 = vld [vmem:[#allocation3 + $0x2a8] sm:$0xff]
    %v2277 = vld [vmem:[#allocation3 + $0x2b0] sm:$0xff]
    %v2278 = vld [vmem:[#allocation3 + $0x2b8] sm:$0xff]
    %v2279 = vld [vmem:[#allocation3 + $0x2c0] sm:$0xff]
    %v2280 = vld [vmem:[#allocation3 + $0x2c8] sm:$0xff]
    %v2281 = vld [vmem:[#allocation3 + $0x2d0] sm:$0xff]
    %v2282 = vld [vmem:[#allocation3 + $0x2d8] sm:$0xff]
    %v2283 = vld [vmem:[#allocation3 + $0x2e0] sm:$0xff]
    %v2284 = vld [vmem:[#allocation3 + $0x2e8] sm:$0xff]
    %v2285 = vld [vmem:[#allocation3 + $0x2f0] sm:$0xff]
    %v2286 = vld [vmem:[#allocation3 + $0x2f8] sm:$0xff]
    %v2287 = vld [vmem:[#allocation3 + $0x300] sm:$0xff]
    %v2288 = vld [vmem:[#allocation3 + $0x308] sm:$0xff]
    %v2289 = vld [vmem:[#allocation3 + $0x310] sm:$0xff]
    %v2290 = vld [vmem:[#allocation3 + $0x318] sm:$0xff]
    %v2291 = vld [vmem:[#allocation11] sm:$0xff]
    %v2292 = vld [vmem:[#allocation11 + $0x8] sm:$0xff]
    %v2293 = vld [vmem:[#allocation11 + $0x10] sm:$0xff]
    %v2294 = vld [vmem:[#allocation11 + $0x18] sm:$0xff]
    %v2295 = vld [vmem:[#allocation11 + $0x20] sm:$0xff]
    %v2296 = vld [vmem:[#allocation11 + $0x28] sm:$0xff]
    %v2297 = vld [vmem:[#allocation11 + $0x30] sm:$0xff]
    %v2298 = vld [vmem:[#allocation11 + $0x38] sm:$0xff]
    %v2299 = vld [vmem:[#allocation11 + $0x40] sm:$0xff]
    %v2300 = vld [vmem:[#allocation11 + $0x48] sm:$0xff]
    %v2301 = vld [vmem:[#allocation11 + $0x50] sm:$0xff]
    %v2302 = vld [vmem:[#allocation11 + $0x58] sm:$0xff]
    %v2303 = vld [vmem:[#allocation11 + $0x60] sm:$0xff]
    %v2304 = vld [vmem:[#allocation11 + $0x68] sm:$0xff]
    %v2305 = vld [vmem:[#allocation11 + $0x70] sm:$0xff]
    %v2306 = vld [vmem:[#allocation11 + $0x78] sm:$0xff]
    %v2307 = vld [vmem:[#allocation11 + $0x80] sm:$0xff]
    %v2308 = vld [vmem:[#allocation11 + $0x88] sm:$0xff]
    %v2309 = vld [vmem:[#allocation11 + $0x90] sm:$0xff]
    %v2310 = vld [vmem:[#allocation11 + $0x98] sm:$0xff]
    %v2311 = vld [vmem:[#allocation11 + $0xa0] sm:$0xff]
    %v2312 = vld [vmem:[#allocation11 + $0xa8] sm:$0xff]
    %v2313 = vld [vmem:[#allocation11 + $0xb0] sm:$0xff]
    %v2314 = vld [vmem:[#allocation11 + $0xb8] sm:$0xff]
    %v2315 = vld [vmem:[#allocation11 + $0xc0] sm:$0xff]
    %v2316 = vld [vmem:[#allocation11 + $0xc8] sm:$0xff]
    %v2317 = vld [vmem:[#allocation11 + $0xd0] sm:$0xff]
    %v2318 = vld [vmem:[#allocation11 + $0xd8] sm:$0xff]
    %v2319 = vld [vmem:[#allocation11 + $0xe0] sm:$0xff]
    %v2320 = vld [vmem:[#allocation11 + $0xe8] sm:$0xff]
    %v2321 = vld [vmem:[#allocation11 + $0xf0] sm:$0xff]
    %v2322 = vld [vmem:[#allocation11 + $0xf8] sm:$0xff]
    %v2323 = vld [vmem:[#allocation11 + $0x100] sm:$0xff]
    %v2324 = vld [vmem:[#allocation11 + $0x108] sm:$0xff]
    %v2325 = vld [vmem:[#allocation11 + $0x110] sm:$0xff]
    %v2326 = vld [vmem:[#allocation11 + $0x118] sm:$0xff]
    %v2327 = vld [vmem:[#allocation11 + $0x120] sm:$0xff]
    %v2328 = vld [vmem:[#allocation11 + $0x128] sm:$0xff]
    %v2329 = vld [vmem:[#allocation11 + $0x130] sm:$0xff]
    %v2330 = vld [vmem:[#allocation11 + $0x138] sm:$0xff]
    %v2331 = vld [vmem:[#allocation11 + $0x140] sm:$0xff]
    %v2332 = vld [vmem:[#allocation11 + $0x148] sm:$0xff]
    %v2333 = vld [vmem:[#allocation11 + $0x150] sm:$0xff]
    %v2334 = vld [vmem:[#allocation11 + $0x158] sm:$0xff]
    %v2335 = vld [vmem:[#allocation11 + $0x160] sm:$0xff]
    %v2336 = vld [vmem:[#allocation11 + $0x168] sm:$0xff]
    %v2337 = vld [vmem:[#allocation11 + $0x170] sm:$0xff]
    %v2338 = vld [vmem:[#allocation11 + $0x178] sm:$0xff]
    %v2339 = vld [vmem:[#allocation11 + $0x180] sm:$0xff]
    %v2340 = vld [vmem:[#allocation11 + $0x188] sm:$0xff]
    %v2341 = vld [vmem:[#allocation11 + $0x190] sm:$0xff]
    %v2342 = vld [vmem:[#allocation11 + $0x198] sm:$0xff]
    %v2343 = vld [vmem:[#allocation11 + $0x1a0] sm:$0xff]
    %v2344 = vld [vmem:[#allocation11 + $0x1a8] sm:$0xff]
    %v2345 = vld [vmem:[#allocation11 + $0x1b0] sm:$0xff]
    %v2346 = vld [vmem:[#allocation11 + $0x1b8] sm:$0xff]
    %v2347 = vld [vmem:[#allocation11 + $0x1c0] sm:$0xff]
    %v2348 = vld [vmem:[#allocation11 + $0x1c8] sm:$0xff]
    %v2349 = vld [vmem:[#allocation11 + $0x1d0] sm:$0xff]
    %v2350 = vld [vmem:[#allocation11 + $0x1d8] sm:$0xff]
    %v2351 = vld [vmem:[#allocation11 + $0x1e0] sm:$0xff]
    %v2352 = vld [vmem:[#allocation11 + $0x1e8] sm:$0xff]
    %v2353 = vld [vmem:[#allocation11 + $0x1f0] sm:$0xff]
    %v2354 = vld [vmem:[#allocation11 + $0x1f8] sm:$0xff]
    %v2355 = vld [vmem:[#allocation11 + $0x200] sm:$0xff]
    %v2356 = vld [vmem:[#allocation11 + $0x208] sm:$0xff]
    %v2357 = vld [vmem:[#allocation11 + $0x210] sm:$0xff]
    %v2358 = vld [vmem:[#allocation11 + $0x218] sm:$0xff]
    %v2359 = vld [vmem:[#allocation11 + $0x220] sm:$0xff]
    %v2360 = vld [vmem:[#allocation11 + $0x228] sm:$0xff]
    %v2361 = vld [vmem:[#allocation11 + $0x230] sm:$0xff]
    %v2362 = vld [vmem:[#allocation11 + $0x238] sm:$0xff]
    %v2363 = vld [vmem:[#allocation11 + $0x240] sm:$0xff]
    %v2364 = vld [vmem:[#allocation11 + $0x248] sm:$0xff]
    %v2365 = vld [vmem:[#allocation11 + $0x250] sm:$0xff]
    %v2366 = vld [vmem:[#allocation11 + $0x258] sm:$0xff]
    %v2367 = vld [vmem:[#allocation11 + $0x260] sm:$0xff]
    %v2368 = vld [vmem:[#allocation11 + $0x268] sm:$0xff]
    %v2369 = vld [vmem:[#allocation11 + $0x270] sm:$0xff]
    %v2370 = vld [vmem:[#allocation11 + $0x278] sm:$0xff]
    %v2371 = vld [vmem:[#allocation11 + $0x280] sm:$0xff]
    %v2372 = vld [vmem:[#allocation11 + $0x288] sm:$0xff]
    %v2373 = vld [vmem:[#allocation11 + $0x290] sm:$0xff]
    %v2374 = vld [vmem:[#allocation11 + $0x298] sm:$0xff]
    %v2375 = vld [vmem:[#allocation11 + $0x2a0] sm:$0xff]
    %v2376 = vld [vmem:[#allocation11 + $0x2a8] sm:$0xff]
    %v2377 = vld [vmem:[#allocation11 + $0x2b0] sm:$0xff]
    %v2378 = vld [vmem:[#allocation11 + $0x2b8] sm:$0xff]
    %v2379 = vld [vmem:[#allocation11 + $0x2c0] sm:$0xff]
    %v2380 = vld [vmem:[#allocation11 + $0x2c8] sm:$0xff]
    %v2381 = vld [vmem:[#allocation11 + $0x2d0] sm:$0xff]
    %v2382 = vld [vmem:[#allocation11 + $0x2d8] sm:$0xff]
    %v2383 = vld [vmem:[#allocation11 + $0x2e0] sm:$0xff]
    %v2384 = vld [vmem:[#allocation11 + $0x2e8] sm:$0xff]
    %v2385 = vld [vmem:[#allocation11 + $0x2f0] sm:$0xff]
    %v2386 = vld [vmem:[#allocation11 + $0x2f8] sm:$0xff]
    %v2387 = vld [vmem:[#allocation11 + $0x300] sm:$0xff]
    %v2388 = vld [vmem:[#allocation11 + $0x308] sm:$0xff]
    %v2389 = vld [vmem:[#allocation11 + $0x310] sm:$0xff]
    %v2390 = vld [vmem:[#allocation11 + $0x318] sm:$0xff]
    %v2391 = vld [vmem:[#allocation11 + $0x320] sm:$0xff]
    %v2392 = vld [vmem:[#allocation11 + $0x328] sm:$0xff]
    %v2393 = vld [vmem:[#allocation11 + $0x330] sm:$0xff]
    %v2394 = vld [vmem:[#allocation11 + $0x338] sm:$0xff]
    %v2395 = vld [vmem:[#allocation11 + $0x340] sm:$0xff]
    %v2396 = vld [vmem:[#allocation11 + $0x348] sm:$0xff]
    %v2397 = vld [vmem:[#allocation11 + $0x350] sm:$0xff]
    %v2398 = vld [vmem:[#allocation11 + $0x358] sm:$0xff]
    %v2399 = vld [vmem:[#allocation11 + $0x360] sm:$0xff]
    %v2400 = vld [vmem:[#allocation11 + $0x368] sm:$0xff]
    %v2401 = vld [vmem:[#allocation11 + $0x370] sm:$0xff]
    %v2402 = vld [vmem:[#allocation11 + $0x378] sm:$0xff]
    %v2403 = vld [vmem:[#allocation11 + $0x380] sm:$0xff]
    %v2404 = vld [vmem:[#allocation11 + $0x388] sm:$0xff]
    %v2405 = vld [vmem:[#allocation11 + $0x390] sm:$0xff]
    %v2406 = vld [vmem:[#allocation11 + $0x398] sm:$0xff]
    %v2407 = vld [vmem:[#allocation11 + $0x3a0] sm:$0xff]
    %v2408 = vld [vmem:[#allocation11 + $0x3a8] sm:$0xff]
    %v2409 = vld [vmem:[#allocation11 + $0x3b0] sm:$0xff]
    %v2410 = vld [vmem:[#allocation11 + $0x3b8] sm:$0xff]
    %v2411 = vld [vmem:[#allocation11 + $0x3c0] sm:$0xff]
    %v2412 = vld [vmem:[#allocation11 + $0x3c8] sm:$0xff]
    %v2413 = vld [vmem:[#allocation11 + $0x3d0] sm:$0xff]
    %v2414 = vld [vmem:[#allocation11 + $0x3d8] sm:$0xff]
    %v2415 = vld [vmem:[#allocation11 + $0x3e0] sm:$0xff]
    %v2416 = vld [vmem:[#allocation11 + $0x3e8] sm:$0xff]
    %v2417 = vld [vmem:[#allocation11 + $0x3f0] sm:$0xff]
    %v2418 = vld [vmem:[#allocation11 + $0x3f8] sm:$0xff]
    %v2419 = vld [vmem:[#allocation11 + $0x400] sm:$0xff]
    %v2420 = vld [vmem:[#allocation11 + $0x408] sm:$0xff]
    %v2421 = vld [vmem:[#allocation11 + $0x410] sm:$0xff]
    %v2422 = vld [vmem:[#allocation11 + $0x418] sm:$0xff]
    %v2423 = vld [vmem:[#allocation11 + $0x420] sm:$0xff]
    %v2424 = vld [vmem:[#allocation11 + $0x428] sm:$0xff]
    %v2425 = vld [vmem:[#allocation11 + $0x430] sm:$0xff]
    %v2426 = vld [vmem:[#allocation11 + $0x438] sm:$0xff]
    %v2427 = vld [vmem:[#allocation11 + $0x440] sm:$0xff]
    %v2428 = vld [vmem:[#allocation11 + $0x448] sm:$0xff]
    %v2429 = vld [vmem:[#allocation11 + $0x450] sm:$0xff]
    %v2430 = vld [vmem:[#allocation11 + $0x458] sm:$0xff]
    %v2431 = vld [vmem:[#allocation11 + $0x460] sm:$0xff]
    %v2432 = vld [vmem:[#allocation11 + $0x468] sm:$0xff]
    %v2433 = vld [vmem:[#allocation11 + $0x470] sm:$0xff]
    %v2434 = vld [vmem:[#allocation11 + $0x478] sm:$0xff]
    %v2435 = vld [vmem:[#allocation11 + $0x480] sm:$0xff]
    %v2436 = vld [vmem:[#allocation11 + $0x488] sm:$0xff]
    %v2437 = vld [vmem:[#allocation11 + $0x490] sm:$0xff]
    %v2438 = vld [vmem:[#allocation11 + $0x498] sm:$0xff]
    %v2439 = vld [vmem:[#allocation11 + $0x4a0] sm:$0xff]
    %v2440 = vld [vmem:[#allocation11 + $0x4a8] sm:$0xff]
    %v2441 = vld [vmem:[#allocation11 + $0x4b0] sm:$0xff]
    %v2442 = vld [vmem:[#allocation11 + $0x4b8] sm:$0xff]
    %v2443 = vld [vmem:[#allocation11 + $0x4c0] sm:$0xff]
    %v2444 = vld [vmem:[#allocation11 + $0x4c8] sm:$0xff]
    %v2445 = vld [vmem:[#allocation11 + $0x4d0] sm:$0xff]
    %v2446 = vld [vmem:[#allocation11 + $0x4d8] sm:$0xff]
    %v2447 = vld [vmem:[#allocation11 + $0x4e0] sm:$0xff]
    %v2448 = vld [vmem:[#allocation11 + $0x4e8] sm:$0xff]
    %v2449 = vld [vmem:[#allocation11 + $0x4f0] sm:$0xff]
    %v2450 = vld [vmem:[#allocation11 + $0x4f8] sm:$0xff]
    %v2451 = vld [vmem:[#allocation11 + $0x500] sm:$0xff]
    %v2452 = vld [vmem:[#allocation11 + $0x508] sm:$0xff]
    %v2453 = vld [vmem:[#allocation11 + $0x510] sm:$0xff]
    %v2454 = vld [vmem:[#allocation11 + $0x518] sm:$0xff]
    %v2455 = vld [vmem:[#allocation11 + $0x520] sm:$0xff]
    %v2456 = vld [vmem:[#allocation11 + $0x528] sm:$0xff]
    %v2457 = vld [vmem:[#allocation11 + $0x530] sm:$0xff]
    %v2458 = vld [vmem:[#allocation11 + $0x538] sm:$0xff]
    %v2459 = vld [vmem:[#allocation11 + $0x540] sm:$0xff]
    %v2460 = vld [vmem:[#allocation11 + $0x548] sm:$0xff]
    %v2461 = vld [vmem:[#allocation11 + $0x550] sm:$0xff]
    %v2462 = vld [vmem:[#allocation11 + $0x558] sm:$0xff]
    %v2463 = vld [vmem:[#allocation11 + $0x560] sm:$0xff]
    %v2464 = vld [vmem:[#allocation11 + $0x568] sm:$0xff]
    %v2465 = vld [vmem:[#allocation11 + $0x570] sm:$0xff]
    %v2466 = vld [vmem:[#allocation11 + $0x578] sm:$0xff]
    %v2467 = vld [vmem:[#allocation11 + $0x580] sm:$0xff]
    %v2468 = vld [vmem:[#allocation11 + $0x588] sm:$0xff]
    %v2469 = vld [vmem:[#allocation11 + $0x590] sm:$0xff]
    %v2470 = vld [vmem:[#allocation11 + $0x598] sm:$0xff]
    %v2471 = vld [vmem:[#allocation11 + $0x5a0] sm:$0xff]
    %v2472 = vld [vmem:[#allocation11 + $0x5a8] sm:$0xff]
    %v2473 = vld [vmem:[#allocation11 + $0x5b0] sm:$0xff]
    %v2474 = vld [vmem:[#allocation11 + $0x5b8] sm:$0xff]
    %v2475 = vld [vmem:[#allocation11 + $0x5c0] sm:$0xff]
    %v2476 = vld [vmem:[#allocation11 + $0x5c8] sm:$0xff]
    %v2477 = vld [vmem:[#allocation11 + $0x5d0] sm:$0xff]
    %v2478 = vld [vmem:[#allocation11 + $0x5d8] sm:$0xff]
    %v2479 = vld [vmem:[#allocation11 + $0x5e0] sm:$0xff]
    %v2480 = vld [vmem:[#allocation11 + $0x5e8] sm:$0xff]
    %v2481 = vld [vmem:[#allocation11 + $0x5f0] sm:$0xff]
    %v2482 = vld [vmem:[#allocation11 + $0x5f8] sm:$0xff]
    %v2483 = vld [vmem:[#allocation11 + $0x600] sm:$0xff]
    %v2484 = vld [vmem:[#allocation11 + $0x608] sm:$0xff]
    %v2485 = vld [vmem:[#allocation11 + $0x610] sm:$0xff]
    %v2486 = vld [vmem:[#allocation11 + $0x618] sm:$0xff]
    %v2487 = vld [vmem:[#allocation11 + $0x620] sm:$0xff]
    %v2488 = vld [vmem:[#allocation11 + $0x628] sm:$0xff]
    %v2489 = vld [vmem:[#allocation11 + $0x630] sm:$0xff]
    %v2490 = vld [vmem:[#allocation11 + $0x638] sm:$0xff]
    %v2491 = vld [vmem:[#allocation11 + $0x640] sm:$0xff]
    %v2492 = vld [vmem:[#allocation11 + $0x648] sm:$0xff]
    %v2493 = vld [vmem:[#allocation11 + $0x650] sm:$0xff]
    %v2494 = vld [vmem:[#allocation11 + $0x658] sm:$0xff]
    %v2495 = vld [vmem:[#allocation11 + $0x660] sm:$0xff]
    %v2496 = vld [vmem:[#allocation11 + $0x668] sm:$0xff]
    %v2497 = vld [vmem:[#allocation11 + $0x670] sm:$0xff]
    %v2498 = vld [vmem:[#allocation11 + $0x678] sm:$0xff]
    %v2499 = vld [vmem:[#allocation11 + $0x680] sm:$0xff]
    %v2500 = vld [vmem:[#allocation11 + $0x688] sm:$0xff]
    %v2501 = vld [vmem:[#allocation11 + $0x690] sm:$0xff]
    %v2502 = vld [vmem:[#allocation11 + $0x698] sm:$0xff]
    %v2503 = vld [vmem:[#allocation11 + $0x6a0] sm:$0xff]
    %v2504 = vld [vmem:[#allocation11 + $0x6a8] sm:$0xff]
    %v2505 = vld [vmem:[#allocation11 + $0x6b0] sm:$0xff]
    %v2506 = vld [vmem:[#allocation11 + $0x6b8] sm:$0xff]
    %v2507 = vld [vmem:[#allocation11 + $0x6c0] sm:$0xff]
    %v2508 = vld [vmem:[#allocation11 + $0x6c8] sm:$0xff]
    %v2509 = vld [vmem:[#allocation11 + $0x6d0] sm:$0xff]
    %v2510 = vld [vmem:[#allocation11 + $0x6d8] sm:$0xff]
    %v2511 = vld [vmem:[#allocation11 + $0x6e0] sm:$0xff]
    %v2512 = vld [vmem:[#allocation11 + $0x6e8] sm:$0xff]
    %v2513 = vld [vmem:[#allocation11 + $0x6f0] sm:$0xff]
    %v2514 = vld [vmem:[#allocation11 + $0x6f8] sm:$0xff]
    %v2515 = vld [vmem:[#allocation11 + $0x700] sm:$0xff]
    %v2516 = vld [vmem:[#allocation11 + $0x708] sm:$0xff]
    %v2517 = vld [vmem:[#allocation11 + $0x710] sm:$0xff]
    %v2518 = vld [vmem:[#allocation11 + $0x718] sm:$0xff]
    %v2519 = vld [vmem:[#allocation11 + $0x720] sm:$0xff]
    %v2520 = vld [vmem:[#allocation11 + $0x728] sm:$0xff]
    %v2521 = vld [vmem:[#allocation11 + $0x730] sm:$0xff]
    %v2522 = vld [vmem:[#allocation11 + $0x738] sm:$0xff]
    %v2523 = vld [vmem:[#allocation11 + $0x740] sm:$0xff]
    %v2524 = vld [vmem:[#allocation11 + $0x748] sm:$0xff]
    %v2525 = vld [vmem:[#allocation11 + $0x750] sm:$0xff]
    %v2526 = vld [vmem:[#allocation11 + $0x758] sm:$0xff]
    %v2527 = vld [vmem:[#allocation11 + $0x760] sm:$0xff]
    %v2528 = vld [vmem:[#allocation11 + $0x768] sm:$0xff]
    %v2529 = vld [vmem:[#allocation11 + $0x770] sm:$0xff]
    %v2530 = vld [vmem:[#allocation11 + $0x778] sm:$0xff]
    %v2531 = vld [vmem:[#allocation11 + $0x780] sm:$0xff]
    %v2532 = vld [vmem:[#allocation11 + $0x788] sm:$0xff]
    %v2533 = vld [vmem:[#allocation11 + $0x790] sm:$0xff]
    %v2534 = vld [vmem:[#allocation11 + $0x798] sm:$0xff]
    %v2535 = vld [vmem:[#allocation11 + $0x7a0] sm:$0xff]
    %v2536 = vld [vmem:[#allocation11 + $0x7a8] sm:$0xff]
    %v2537 = vld [vmem:[#allocation11 + $0x7b0] sm:$0xff]
    %v2538 = vld [vmem:[#allocation11 + $0x7b8] sm:$0xff]
    %v2539 = vld [vmem:[#allocation11 + $0x7c0] sm:$0xff]
    %v2540 = vld [vmem:[#allocation11 + $0x7c8] sm:$0xff]
    %v2541 = vld [vmem:[#allocation11 + $0x7d0] sm:$0xff]
    %v2542 = vld [vmem:[#allocation11 + $0x7d8] sm:$0xff]
    %v2543 = vld [vmem:[#allocation11 + $0x7e0] sm:$0xff]
    %v2544 = vld [vmem:[#allocation11 + $0x7e8] sm:$0xff]
    %v2545 = vld [vmem:[#allocation11 + $0x7f0] sm:$0xff]
    %v2546 = vld [vmem:[#allocation11 + $0x7f8] sm:$0xff]
    %v2547 = vld [vmem:[#allocation11 + $0x800] sm:$0xff]
    %v2548 = vld [vmem:[#allocation11 + $0x808] sm:$0xff]
    %v2549 = vld [vmem:[#allocation11 + $0x810] sm:$0xff]
    %v2550 = vld [vmem:[#allocation11 + $0x818] sm:$0xff]
    %v2551 = vld [vmem:[#allocation11 + $0x820] sm:$0xff]
    %v2552 = vld [vmem:[#allocation11 + $0x828] sm:$0xff]
    %v2553 = vld [vmem:[#allocation11 + $0x830] sm:$0xff]
    %v2554 = vld [vmem:[#allocation11 + $0x838] sm:$0xff]
    %v2555 = vld [vmem:[#allocation11 + $0x840] sm:$0xff]
    %v2556 = vld [vmem:[#allocation11 + $0x848] sm:$0xff]
    %v2557 = vld [vmem:[#allocation11 + $0x850] sm:$0xff]
    %v2558 = vld [vmem:[#allocation11 + $0x858] sm:$0xff]
    %v2559 = vld [vmem:[#allocation11 + $0x860] sm:$0xff]
    %v2560 = vld [vmem:[#allocation11 + $0x868] sm:$0xff]
    %v2561 = vld [vmem:[#allocation11 + $0x870] sm:$0xff]
    %v2562 = vld [vmem:[#allocation11 + $0x878] sm:$0xff]
    %v2563 = vld [vmem:[#allocation11 + $0x880] sm:$0xff]
    %v2564 = vld [vmem:[#allocation11 + $0x888] sm:$0xff]
    %v2565 = vld [vmem:[#allocation11 + $0x890] sm:$0xff]
    %v2566 = vld [vmem:[#allocation11 + $0x898] sm:$0xff]
    %v2567 = vld [vmem:[#allocation11 + $0x8a0] sm:$0xff]
    %v2568 = vld [vmem:[#allocation11 + $0x8a8] sm:$0xff]
    %v2569 = vld [vmem:[#allocation11 + $0x8b0] sm:$0xff]
    %v2570 = vld [vmem:[#allocation11 + $0x8b8] sm:$0xff]
    %v2571 = vld [vmem:[#allocation11 + $0x8c0] sm:$0xff]
    %v2572 = vld [vmem:[#allocation11 + $0x8c8] sm:$0xff]
    %v2573 = vld [vmem:[#allocation11 + $0x8d0] sm:$0xff]
    %v2574 = vld [vmem:[#allocation11 + $0x8d8] sm:$0xff]
    %v2575 = vld [vmem:[#allocation11 + $0x8e0] sm:$0xff]
    %v2576 = vld [vmem:[#allocation11 + $0x8e8] sm:$0xff]
    %v2577 = vld [vmem:[#allocation11 + $0x8f0] sm:$0xff]
    %v2578 = vld [vmem:[#allocation11 + $0x8f8] sm:$0xff]
    %v2579 = vld [vmem:[#allocation11 + $0x900] sm:$0xff]
    %v2580 = vld [vmem:[#allocation11 + $0x908] sm:$0xff]
    %v2581 = vld [vmem:[#allocation11 + $0x910] sm:$0xff]
    %v2582 = vld [vmem:[#allocation11 + $0x918] sm:$0xff]
    %v2583 = vld [vmem:[#allocation11 + $0x920] sm:$0xff]
    %v2584 = vld [vmem:[#allocation11 + $0x928] sm:$0xff]
    %v2585 = vld [vmem:[#allocation11 + $0x930] sm:$0xff]
    %v2586 = vld [vmem:[#allocation11 + $0x938] sm:$0xff]
    %v2587 = vld [vmem:[#allocation11 + $0x940] sm:$0xff]
    %v2588 = vld [vmem:[#allocation11 + $0x948] sm:$0xff]
    %v2589 = vld [vmem:[#allocation11 + $0x950] sm:$0xff]
    %v2590 = vld [vmem:[#allocation11 + $0x958] sm:$0xff]
    %v2591 = vld [vmem:[#allocation11 + $0x960] sm:$0xff]
    %v2592 = vld [vmem:[#allocation11 + $0x968] sm:$0xff]
    %v2593 = vld [vmem:[#allocation11 + $0x970] sm:$0xff]
    %v2594 = vld [vmem:[#allocation11 + $0x978] sm:$0xff]
    %v2595 = vld [vmem:[#allocation11 + $0x980] sm:$0xff]
    %v2596 = vld [vmem:[#allocation11 + $0x988] sm:$0xff]
    %v2597 = vld [vmem:[#allocation11 + $0x990] sm:$0xff]
    %v2598 = vld [vmem:[#allocation11 + $0x998] sm:$0xff]
    %v2599 = vld [vmem:[#allocation11 + $0x9a0] sm:$0xff]
    %v2600 = vld [vmem:[#allocation11 + $0x9a8] sm:$0xff]
    %v2601 = vld [vmem:[#allocation11 + $0x9b0] sm:$0xff]
    %v2602 = vld [vmem:[#allocation11 + $0x9b8] sm:$0xff]
    %v2603 = vld [vmem:[#allocation11 + $0x9c0] sm:$0xff]
    %v2604 = vld [vmem:[#allocation11 + $0x9c8] sm:$0xff]
    %v2605 = vld [vmem:[#allocation11 + $0x9d0] sm:$0xff]
    %v2606 = vld [vmem:[#allocation11 + $0x9d8] sm:$0xff]
    %v2607 = vld [vmem:[#allocation11 + $0x9e0] sm:$0xff]
    %v2608 = vld [vmem:[#allocation11 + $0x9e8] sm:$0xff]
    %v2609 = vld [vmem:[#allocation11 + $0x9f0] sm:$0xff]
    %v2610 = vld [vmem:[#allocation11 + $0x9f8] sm:$0xff]
    %v2611 = vld [vmem:[#allocation12] sm:$0xf]
    %v2613 = vlaneseq
    %v2614 = vshrl.u32 %v2613, 7
    %v2615 = vsub.s32 0, %v2614
    %v2616 = vrot.slane %v2611, %v2615
    %v2617 = vlaneseq
    %v2618 = vshrl.u32 %v2617, 7
    %v2619 = vsub.s32 1, %v2618
    %v2620 = vrot.slane %v2611, %v2619
    %v2621 = vlaneseq
    %v2622 = vshrl.u32 %v2621, 7
    %v2623 = vsub.s32 2, %v2622
    %v2624 = vrot.slane %v2611, %v2623
    %v2625 = vlaneseq
    %v2626 = vshrl.u32 %v2625, 7
    %v2627 = vsub.s32 3, %v2626
    %v2628 = vrot.slane %v2611, %v2627
    %v2953 = vunpack.c.l.b16 %v2291
    %v2954 = vunpack.c.h.b16 %v2291
    %v2955 = vunpack.c.l.b16 %v2292
    %v2956 = vunpack.c.h.b16 %v2292
    %v2957 = vunpack.c.l.b16 %v2293
    %v2958 = vunpack.c.h.b16 %v2293
    %v2959 = vunpack.c.l.b16 %v2294
    %v2960 = vunpack.c.h.b16 %v2294
    %v2961 = vunpack.c.l.b16 %v2295
    %v2962 = vunpack.c.h.b16 %v2295
    %v2963 = vunpack.c.l.b16 %v2296
    %v2964 = vunpack.c.h.b16 %v2296
    %v2965 = vunpack.c.l.b16 %v2297
    %v2966 = vunpack.c.h.b16 %v2297
    %v2967 = vunpack.c.l.b16 %v2298
    %v2968 = vunpack.c.h.b16 %v2298
    %v2969 = vunpack.c.l.b16 %v2299
    %v2970 = vunpack.c.h.b16 %v2299
    %v2971 = vunpack.c.l.b16 %v2300
    %v2972 = vunpack.c.h.b16 %v2300
    %v2973 = vunpack.c.l.b16 %v2301
    %v2974 = vunpack.c.h.b16 %v2301
    %v2975 = vunpack.c.l.b16 %v2302
    %v2976 = vunpack.c.h.b16 %v2302
    %v2977 = vunpack.c.l.b16 %v2303
    %v2978 = vunpack.c.h.b16 %v2303
    %v2979 = vunpack.c.l.b16 %v2304
    %v2980 = vunpack.c.h.b16 %v2304
    %v2981 = vunpack.c.l.b16 %v2305
    %v2982 = vunpack.c.h.b16 %v2305
    %v2983 = vunpack.c.l.b16 %v2306
    %v2984 = vunpack.c.h.b16 %v2306
    %v2985 = vunpack.c.l.b16 %v2307
    %v2986 = vunpack.c.h.b16 %v2307
    %v2987 = vunpack.c.l.b16 %v2308
    %v2988 = vunpack.c.h.b16 %v2308
    %v2989 = vunpack.c.l.b16 %v2309
    %v2990 = vunpack.c.h.b16 %v2309
    %v2991 = vunpack.c.l.b16 %v2310
    %v2992 = vunpack.c.h.b16 %v2310
    %v2993 = vunpack.c.l.b16 %v2311
    %v2994 = vunpack.c.h.b16 %v2311
    %v2995 = vunpack.c.l.b16 %v2312
    %v2996 = vunpack.c.h.b16 %v2312
    %v2997 = vunpack.c.l.b16 %v2313
    %v2998 = vunpack.c.h.b16 %v2313
    %v2999 = vunpack.c.l.b16 %v2314
    %v3000 = vunpack.c.h.b16 %v2314
    %v3001 = vunpack.c.l.b16 %v2315
    %v3002 = vunpack.c.h.b16 %v2315
    %v3003 = vunpack.c.l.b16 %v2316
    %v3004 = vunpack.c.h.b16 %v2316
    %v3005 = vunpack.c.l.b16 %v2317
    %v3006 = vunpack.c.h.b16 %v2317
    %v3007 = vunpack.c.l.b16 %v2318
    %v3008 = vunpack.c.h.b16 %v2318
    %v3009 = vunpack.c.l.b16 %v2319
    %v3010 = vunpack.c.h.b16 %v2319
    %v3011 = vunpack.c.l.b16 %v2320
    %v3012 = vunpack.c.h.b16 %v2320
    %v3013 = vunpack.c.l.b16 %v2321
    %v3014 = vunpack.c.h.b16 %v2321
    %v3015 = vunpack.c.l.b16 %v2322
    %v3016 = vunpack.c.h.b16 %v2322
    %v3017 = vunpack.c.l.b16 %v2323
    %v3018 = vunpack.c.h.b16 %v2323
    %v3019 = vunpack.c.l.b16 %v2324
    %v3020 = vunpack.c.h.b16 %v2324
    %v3021 = vunpack.c.l.b16 %v2325
    %v3022 = vunpack.c.h.b16 %v2325
    %v3023 = vunpack.c.l.b16 %v2326
    %v3024 = vunpack.c.h.b16 %v2326
    %v3025 = vunpack.c.l.b16 %v2327
    %v3026 = vunpack.c.h.b16 %v2327
    %v3027 = vunpack.c.l.b16 %v2328
    %v3028 = vunpack.c.h.b16 %v2328
    %v3029 = vunpack.c.l.b16 %v2329
    %v3030 = vunpack.c.h.b16 %v2329
    %v3031 = vunpack.c.l.b16 %v2330
    %v3032 = vunpack.c.h.b16 %v2330
    %v3033 = vunpack.c.l.b16 %v2331
    %v3034 = vunpack.c.h.b16 %v2331
    %v3035 = vunpack.c.l.b16 %v2332
    %v3036 = vunpack.c.h.b16 %v2332
    %v3037 = vunpack.c.l.b16 %v2333
    %v3038 = vunpack.c.h.b16 %v2333
    %v3039 = vunpack.c.l.b16 %v2334
    %v3040 = vunpack.c.h.b16 %v2334
    %v3041 = vunpack.c.l.b16 %v2335
    %v3042 = vunpack.c.h.b16 %v2335
    %v3043 = vunpack.c.l.b16 %v2336
    %v3044 = vunpack.c.h.b16 %v2336
    %v3045 = vunpack.c.l.b16 %v2337
    %v3046 = vunpack.c.h.b16 %v2337
    %v3047 = vunpack.c.l.b16 %v2338
    %v3048 = vunpack.c.h.b16 %v2338
    %v3049 = vunpack.c.l.b16 %v2339
    %v3050 = vunpack.c.h.b16 %v2339
    %v3051 = vunpack.c.l.b16 %v2340
    %v3052 = vunpack.c.h.b16 %v2340
    %v3053 = vunpack.c.l.b16 %v2341
    %v3054 = vunpack.c.h.b16 %v2341
    %v3055 = vunpack.c.l.b16 %v2342
    %v3056 = vunpack.c.h.b16 %v2342
    %v3057 = vunpack.c.l.b16 %v2343
    %v3058 = vunpack.c.h.b16 %v2343
    %v3059 = vunpack.c.l.b16 %v2344
    %v3060 = vunpack.c.h.b16 %v2344
    %v3061 = vunpack.c.l.b16 %v2345
    %v3062 = vunpack.c.h.b16 %v2345
    %v3063 = vunpack.c.l.b16 %v2346
    %v3064 = vunpack.c.h.b16 %v2346
    %v3065 = vunpack.c.l.b16 %v2347
    %v3066 = vunpack.c.h.b16 %v2347
    %v3067 = vunpack.c.l.b16 %v2348
    %v3068 = vunpack.c.h.b16 %v2348
    %v3069 = vunpack.c.l.b16 %v2349
    %v3070 = vunpack.c.h.b16 %v2349
    %v3071 = vunpack.c.l.b16 %v2350
    %v3072 = vunpack.c.h.b16 %v2350
    %v3073 = vunpack.c.l.b16 %v2351
    %v3074 = vunpack.c.h.b16 %v2351
    %v3075 = vunpack.c.l.b16 %v2352
    %v3076 = vunpack.c.h.b16 %v2352
    %v3077 = vunpack.c.l.b16 %v2353
    %v3078 = vunpack.c.h.b16 %v2353
    %v3079 = vunpack.c.l.b16 %v2354
    %v3080 = vunpack.c.h.b16 %v2354
    %v3081 = vunpack.c.l.b16 %v2355
    %v3082 = vunpack.c.h.b16 %v2355
    %v3083 = vunpack.c.l.b16 %v2356
    %v3084 = vunpack.c.h.b16 %v2356
    %v3085 = vunpack.c.l.b16 %v2357
    %v3086 = vunpack.c.h.b16 %v2357
    %v3087 = vunpack.c.l.b16 %v2358
    %v3088 = vunpack.c.h.b16 %v2358
    %v3089 = vunpack.c.l.b16 %v2359
    %v3090 = vunpack.c.h.b16 %v2359
    %v3091 = vunpack.c.l.b16 %v2360
    %v3092 = vunpack.c.h.b16 %v2360
    %v3093 = vunpack.c.l.b16 %v2361
    %v3094 = vunpack.c.h.b16 %v2361
    %v3095 = vunpack.c.l.b16 %v2362
    %v3096 = vunpack.c.h.b16 %v2362
    %v3097 = vunpack.c.l.b16 %v2363
    %v3098 = vunpack.c.h.b16 %v2363
    %v3099 = vunpack.c.l.b16 %v2364
    %v3100 = vunpack.c.h.b16 %v2364
    %v3101 = vunpack.c.l.b16 %v2365
    %v3102 = vunpack.c.h.b16 %v2365
    %v3103 = vunpack.c.l.b16 %v2366
    %v3104 = vunpack.c.h.b16 %v2366
    %v3105 = vunpack.c.l.b16 %v2367
    %v3106 = vunpack.c.h.b16 %v2367
    %v3107 = vunpack.c.l.b16 %v2368
    %v3108 = vunpack.c.h.b16 %v2368
    %v3109 = vunpack.c.l.b16 %v2369
    %v3110 = vunpack.c.h.b16 %v2369
    %v3111 = vunpack.c.l.b16 %v2370
    %v3112 = vunpack.c.h.b16 %v2370
    %v3113 = vunpack.c.l.b16 %v2371
    %v3114 = vunpack.c.h.b16 %v2371
    %v3115 = vunpack.c.l.b16 %v2372
    %v3116 = vunpack.c.h.b16 %v2372
    %v3117 = vunpack.c.l.b16 %v2373
    %v3118 = vunpack.c.h.b16 %v2373
    %v3119 = vunpack.c.l.b16 %v2374
    %v3120 = vunpack.c.h.b16 %v2374
    %v3121 = vunpack.c.l.b16 %v2375
    %v3122 = vunpack.c.h.b16 %v2375
    %v3123 = vunpack.c.l.b16 %v2376
    %v3124 = vunpack.c.h.b16 %v2376
    %v3125 = vunpack.c.l.b16 %v2377
    %v3126 = vunpack.c.h.b16 %v2377
    %v3127 = vunpack.c.l.b16 %v2378
    %v3128 = vunpack.c.h.b16 %v2378
    %v3129 = vunpack.c.l.b16 %v2379
    %v3130 = vunpack.c.h.b16 %v2379
    %v3131 = vunpack.c.l.b16 %v2380
    %v3132 = vunpack.c.h.b16 %v2380
    %v3133 = vunpack.c.l.b16 %v2381
    %v3134 = vunpack.c.h.b16 %v2381
    %v3135 = vunpack.c.l.b16 %v2382
    %v3136 = vunpack.c.h.b16 %v2382
    %v3137 = vunpack.c.l.b16 %v2383
    %v3138 = vunpack.c.h.b16 %v2383
    %v3139 = vunpack.c.l.b16 %v2384
    %v3140 = vunpack.c.h.b16 %v2384
    %v3141 = vunpack.c.l.b16 %v2385
    %v3142 = vunpack.c.h.b16 %v2385
    %v3143 = vunpack.c.l.b16 %v2386
    %v3144 = vunpack.c.h.b16 %v2386
    %v3145 = vunpack.c.l.b16 %v2387
    %v3146 = vunpack.c.h.b16 %v2387
    %v3147 = vunpack.c.l.b16 %v2388
    %v3148 = vunpack.c.h.b16 %v2388
    %v3149 = vunpack.c.l.b16 %v2389
    %v3150 = vunpack.c.h.b16 %v2389
    %v3151 = vunpack.c.l.b16 %v2390
    %v3152 = vunpack.c.h.b16 %v2390
    %v3153 = vunpack.c.l.b16 %v2391
    %v3154 = vunpack.c.h.b16 %v2391
    %v3155 = vunpack.c.l.b16 %v2392
    %v3156 = vunpack.c.h.b16 %v2392
    %v3157 = vunpack.c.l.b16 %v2393
    %v3158 = vunpack.c.h.b16 %v2393
    %v3159 = vunpack.c.l.b16 %v2394
    %v3160 = vunpack.c.h.b16 %v2394
    %v3161 = vunpack.c.l.b16 %v2395
    %v3162 = vunpack.c.h.b16 %v2395
    %v3163 = vunpack.c.l.b16 %v2396
    %v3164 = vunpack.c.h.b16 %v2396
    %v3165 = vunpack.c.l.b16 %v2397
    %v3166 = vunpack.c.h.b16 %v2397
    %v3167 = vunpack.c.l.b16 %v2398
    %v3168 = vunpack.c.h.b16 %v2398
    %v3169 = vunpack.c.l.b16 %v2399
    %v3170 = vunpack.c.h.b16 %v2399
    %v3171 = vunpack.c.l.b16 %v2400
    %v3172 = vunpack.c.h.b16 %v2400
    %v3173 = vunpack.c.l.b16 %v2401
    %v3174 = vunpack.c.h.b16 %v2401
    %v3175 = vunpack.c.l.b16 %v2402
    %v3176 = vunpack.c.h.b16 %v2402
    %v3177 = vunpack.c.l.b16 %v2403
    %v3178 = vunpack.c.h.b16 %v2403
    %v3179 = vunpack.c.l.b16 %v2404
    %v3180 = vunpack.c.h.b16 %v2404
    %v3181 = vunpack.c.l.b16 %v2405
    %v3182 = vunpack.c.h.b16 %v2405
    %v3183 = vunpack.c.l.b16 %v2406
    %v3184 = vunpack.c.h.b16 %v2406
    %v3185 = vunpack.c.l.b16 %v2407
    %v3186 = vunpack.c.h.b16 %v2407
    %v3187 = vunpack.c.l.b16 %v2408
    %v3188 = vunpack.c.h.b16 %v2408
    %v3189 = vunpack.c.l.b16 %v2409
    %v3190 = vunpack.c.h.b16 %v2409
    %v3191 = vunpack.c.l.b16 %v2410
    %v3192 = vunpack.c.h.b16 %v2410
    %v3193 = vunpack.c.l.b16 %v2411
    %v3194 = vunpack.c.h.b16 %v2411
    %v3195 = vunpack.c.l.b16 %v2412
    %v3196 = vunpack.c.h.b16 %v2412
    %v3197 = vunpack.c.l.b16 %v2413
    %v3198 = vunpack.c.h.b16 %v2413
    %v3199 = vunpack.c.l.b16 %v2414
    %v3200 = vunpack.c.h.b16 %v2414
    %v3201 = vunpack.c.l.b16 %v2415
    %v3202 = vunpack.c.h.b16 %v2415
    %v3203 = vunpack.c.l.b16 %v2416
    %v3204 = vunpack.c.h.b16 %v2416
    %v3205 = vunpack.c.l.b16 %v2417
    %v3206 = vunpack.c.h.b16 %v2417
    %v3207 = vunpack.c.l.b16 %v2418
    %v3208 = vunpack.c.h.b16 %v2418
    %v3209 = vunpack.c.l.b16 %v2419
    %v3210 = vunpack.c.h.b16 %v2419
    %v3211 = vunpack.c.l.b16 %v2420
    %v3212 = vunpack.c.h.b16 %v2420
    %v3213 = vunpack.c.l.b16 %v2421
    %v3214 = vunpack.c.h.b16 %v2421
    %v3215 = vunpack.c.l.b16 %v2422
    %v3216 = vunpack.c.h.b16 %v2422
    %v3217 = vunpack.c.l.b16 %v2423
    %v3218 = vunpack.c.h.b16 %v2423
    %v3219 = vunpack.c.l.b16 %v2424
    %v3220 = vunpack.c.h.b16 %v2424
    %v3221 = vunpack.c.l.b16 %v2425
    %v3222 = vunpack.c.h.b16 %v2425
    %v3223 = vunpack.c.l.b16 %v2426
    %v3224 = vunpack.c.h.b16 %v2426
    %v3225 = vunpack.c.l.b16 %v2427
    %v3226 = vunpack.c.h.b16 %v2427
    %v3227 = vunpack.c.l.b16 %v2428
    %v3228 = vunpack.c.h.b16 %v2428
    %v3229 = vunpack.c.l.b16 %v2429
    %v3230 = vunpack.c.h.b16 %v2429
    %v3231 = vunpack.c.l.b16 %v2430
    %v3232 = vunpack.c.h.b16 %v2430
    %v3233 = vunpack.c.l.b16 %v2431
    %v3234 = vunpack.c.h.b16 %v2431
    %v3235 = vunpack.c.l.b16 %v2432
    %v3236 = vunpack.c.h.b16 %v2432
    %v3237 = vunpack.c.l.b16 %v2433
    %v3238 = vunpack.c.h.b16 %v2433
    %v3239 = vunpack.c.l.b16 %v2434
    %v3240 = vunpack.c.h.b16 %v2434
    %v3241 = vunpack.c.l.b16 %v2435
    %v3242 = vunpack.c.h.b16 %v2435
    %v3243 = vunpack.c.l.b16 %v2436
    %v3244 = vunpack.c.h.b16 %v2436
    %v3245 = vunpack.c.l.b16 %v2437
    %v3246 = vunpack.c.h.b16 %v2437
    %v3247 = vunpack.c.l.b16 %v2438
    %v3248 = vunpack.c.h.b16 %v2438
    %v3249 = vunpack.c.l.b16 %v2439
    %v3250 = vunpack.c.h.b16 %v2439
    %v3251 = vunpack.c.l.b16 %v2440
    %v3252 = vunpack.c.h.b16 %v2440
    %v3253 = vunpack.c.l.b16 %v2441
    %v3254 = vunpack.c.h.b16 %v2441
    %v3255 = vunpack.c.l.b16 %v2442
    %v3256 = vunpack.c.h.b16 %v2442
    %v3257 = vunpack.c.l.b16 %v2443
    %v3258 = vunpack.c.h.b16 %v2443
    %v3259 = vunpack.c.l.b16 %v2444
    %v3260 = vunpack.c.h.b16 %v2444
    %v3261 = vunpack.c.l.b16 %v2445
    %v3262 = vunpack.c.h.b16 %v2445
    %v3263 = vunpack.c.l.b16 %v2446
    %v3264 = vunpack.c.h.b16 %v2446
    %v3265 = vunpack.c.l.b16 %v2447
    %v3266 = vunpack.c.h.b16 %v2447
    %v3267 = vunpack.c.l.b16 %v2448
    %v3268 = vunpack.c.h.b16 %v2448
    %v3269 = vunpack.c.l.b16 %v2449
    %v3270 = vunpack.c.h.b16 %v2449
    %v3271 = vunpack.c.l.b16 %v2450
    %v3272 = vunpack.c.h.b16 %v2450
    %v3273 = vunpack.c.l.b16 %v2451
    %v3274 = vunpack.c.h.b16 %v2451
    %v3275 = vunpack.c.l.b16 %v2452
    %v3276 = vunpack.c.h.b16 %v2452
    %v3277 = vunpack.c.l.b16 %v2453
    %v3278 = vunpack.c.h.b16 %v2453
    %v3279 = vunpack.c.l.b16 %v2454
    %v3280 = vunpack.c.h.b16 %v2454
    %v3281 = vunpack.c.l.b16 %v2455
    %v3282 = vunpack.c.h.b16 %v2455
    %v3283 = vunpack.c.l.b16 %v2456
    %v3284 = vunpack.c.h.b16 %v2456
    %v3285 = vunpack.c.l.b16 %v2457
    %v3286 = vunpack.c.h.b16 %v2457
    %v3287 = vunpack.c.l.b16 %v2458
    %v3288 = vunpack.c.h.b16 %v2458
    %v3289 = vunpack.c.l.b16 %v2459
    %v3290 = vunpack.c.h.b16 %v2459
    %v3291 = vunpack.c.l.b16 %v2460
    %v3292 = vunpack.c.h.b16 %v2460
    %v3293 = vunpack.c.l.b16 %v2461
    %v3294 = vunpack.c.h.b16 %v2461
    %v3295 = vunpack.c.l.b16 %v2462
    %v3296 = vunpack.c.h.b16 %v2462
    %v3297 = vunpack.c.l.b16 %v2463
    %v3298 = vunpack.c.h.b16 %v2463
    %v3299 = vunpack.c.l.b16 %v2464
    %v3300 = vunpack.c.h.b16 %v2464
    %v3301 = vunpack.c.l.b16 %v2465
    %v3302 = vunpack.c.h.b16 %v2465
    %v3303 = vunpack.c.l.b16 %v2466
    %v3304 = vunpack.c.h.b16 %v2466
    %v3305 = vunpack.c.l.b16 %v2467
    %v3306 = vunpack.c.h.b16 %v2467
    %v3307 = vunpack.c.l.b16 %v2468
    %v3308 = vunpack.c.h.b16 %v2468
    %v3309 = vunpack.c.l.b16 %v2469
    %v3310 = vunpack.c.h.b16 %v2469
    %v3311 = vunpack.c.l.b16 %v2470
    %v3312 = vunpack.c.h.b16 %v2470
    %v3313 = vunpack.c.l.b16 %v2471
    %v3314 = vunpack.c.h.b16 %v2471
    %v3315 = vunpack.c.l.b16 %v2472
    %v3316 = vunpack.c.h.b16 %v2472
    %v3317 = vunpack.c.l.b16 %v2473
    %v3318 = vunpack.c.h.b16 %v2473
    %v3319 = vunpack.c.l.b16 %v2474
    %v3320 = vunpack.c.h.b16 %v2474
    %v3321 = vunpack.c.l.b16 %v2475
    %v3322 = vunpack.c.h.b16 %v2475
    %v3323 = vunpack.c.l.b16 %v2476
    %v3324 = vunpack.c.h.b16 %v2476
    %v3325 = vunpack.c.l.b16 %v2477
    %v3326 = vunpack.c.h.b16 %v2477
    %v3327 = vunpack.c.l.b16 %v2478
    %v3328 = vunpack.c.h.b16 %v2478
    %v3329 = vunpack.c.l.b16 %v2479
    %v3330 = vunpack.c.h.b16 %v2479
    %v3331 = vunpack.c.l.b16 %v2480
    %v3332 = vunpack.c.h.b16 %v2480
    %v3333 = vunpack.c.l.b16 %v2481
    %v3334 = vunpack.c.h.b16 %v2481
    %v3335 = vunpack.c.l.b16 %v2482
    %v3336 = vunpack.c.h.b16 %v2482
    %v3337 = vunpack.c.l.b16 %v2483
    %v3338 = vunpack.c.h.b16 %v2483
    %v3339 = vunpack.c.l.b16 %v2484
    %v3340 = vunpack.c.h.b16 %v2484
    %v3341 = vunpack.c.l.b16 %v2485
    %v3342 = vunpack.c.h.b16 %v2485
    %v3343 = vunpack.c.l.b16 %v2486
    %v3344 = vunpack.c.h.b16 %v2486
    %v3345 = vunpack.c.l.b16 %v2487
    %v3346 = vunpack.c.h.b16 %v2487
    %v3347 = vunpack.c.l.b16 %v2488
    %v3348 = vunpack.c.h.b16 %v2488
    %v3349 = vunpack.c.l.b16 %v2489
    %v3350 = vunpack.c.h.b16 %v2489
    %v3351 = vunpack.c.l.b16 %v2490
    %v3352 = vunpack.c.h.b16 %v2490
    %v3353 = vunpack.c.l.b16 %v2491
    %v3354 = vunpack.c.h.b16 %v2491
    %v3355 = vunpack.c.l.b16 %v2492
    %v3356 = vunpack.c.h.b16 %v2492
    %v3357 = vunpack.c.l.b16 %v2493
    %v3358 = vunpack.c.h.b16 %v2493
    %v3359 = vunpack.c.l.b16 %v2494
    %v3360 = vunpack.c.h.b16 %v2494
    %v3361 = vunpack.c.l.b16 %v2495
    %v3362 = vunpack.c.h.b16 %v2495
    %v3363 = vunpack.c.l.b16 %v2496
    %v3364 = vunpack.c.h.b16 %v2496
    %v3365 = vunpack.c.l.b16 %v2497
    %v3366 = vunpack.c.h.b16 %v2497
    %v3367 = vunpack.c.l.b16 %v2498
    %v3368 = vunpack.c.h.b16 %v2498
    %v3369 = vunpack.c.l.b16 %v2499
    %v3370 = vunpack.c.h.b16 %v2499
    %v3371 = vunpack.c.l.b16 %v2500
    %v3372 = vunpack.c.h.b16 %v2500
    %v3373 = vunpack.c.l.b16 %v2501
    %v3374 = vunpack.c.h.b16 %v2501
    %v3375 = vunpack.c.l.b16 %v2502
    %v3376 = vunpack.c.h.b16 %v2502
    %v3377 = vunpack.c.l.b16 %v2503
    %v3378 = vunpack.c.h.b16 %v2503
    %v3379 = vunpack.c.l.b16 %v2504
    %v3380 = vunpack.c.h.b16 %v2504
    %v3381 = vunpack.c.l.b16 %v2505
    %v3382 = vunpack.c.h.b16 %v2505
    %v3383 = vunpack.c.l.b16 %v2506
    %v3384 = vunpack.c.h.b16 %v2506
    %v3385 = vunpack.c.l.b16 %v2507
    %v3386 = vunpack.c.h.b16 %v2507
    %v3387 = vunpack.c.l.b16 %v2508
    %v3388 = vunpack.c.h.b16 %v2508
    %v3389 = vunpack.c.l.b16 %v2509
    %v3390 = vunpack.c.h.b16 %v2509
    %v3391 = vunpack.c.l.b16 %v2510
    %v3392 = vunpack.c.h.b16 %v2510
    %v3393 = vunpack.c.l.b16 %v2511
    %v3394 = vunpack.c.h.b16 %v2511
    %v3395 = vunpack.c.l.b16 %v2512
    %v3396 = vunpack.c.h.b16 %v2512
    %v3397 = vunpack.c.l.b16 %v2513
    %v3398 = vunpack.c.h.b16 %v2513
    %v3399 = vunpack.c.l.b16 %v2514
    %v3400 = vunpack.c.h.b16 %v2514
    %v3401 = vunpack.c.l.b16 %v2515
    %v3402 = vunpack.c.h.b16 %v2515
    %v3403 = vunpack.c.l.b16 %v2516
    %v3404 = vunpack.c.h.b16 %v2516
    %v3405 = vunpack.c.l.b16 %v2517
    %v3406 = vunpack.c.h.b16 %v2517
    %v3407 = vunpack.c.l.b16 %v2518
    %v3408 = vunpack.c.h.b16 %v2518
    %v3409 = vunpack.c.l.b16 %v2519
    %v3410 = vunpack.c.h.b16 %v2519
    %v3411 = vunpack.c.l.b16 %v2520
    %v3412 = vunpack.c.h.b16 %v2520
    %v3413 = vunpack.c.l.b16 %v2521
    %v3414 = vunpack.c.h.b16 %v2521
    %v3415 = vunpack.c.l.b16 %v2522
    %v3416 = vunpack.c.h.b16 %v2522
    %v3417 = vunpack.c.l.b16 %v2523
    %v3418 = vunpack.c.h.b16 %v2523
    %v3419 = vunpack.c.l.b16 %v2524
    %v3420 = vunpack.c.h.b16 %v2524
    %v3421 = vunpack.c.l.b16 %v2525
    %v3422 = vunpack.c.h.b16 %v2525
    %v3423 = vunpack.c.l.b16 %v2526
    %v3424 = vunpack.c.h.b16 %v2526
    %v3425 = vunpack.c.l.b16 %v2527
    %v3426 = vunpack.c.h.b16 %v2527
    %v3427 = vunpack.c.l.b16 %v2528
    %v3428 = vunpack.c.h.b16 %v2528
    %v3429 = vunpack.c.l.b16 %v2529
    %v3430 = vunpack.c.h.b16 %v2529
    %v3431 = vunpack.c.l.b16 %v2530
    %v3432 = vunpack.c.h.b16 %v2530
    %v3433 = vunpack.c.l.b16 %v2531
    %v3434 = vunpack.c.h.b16 %v2531
    %v3435 = vunpack.c.l.b16 %v2532
    %v3436 = vunpack.c.h.b16 %v2532
    %v3437 = vunpack.c.l.b16 %v2533
    %v3438 = vunpack.c.h.b16 %v2533
    %v3439 = vunpack.c.l.b16 %v2534
    %v3440 = vunpack.c.h.b16 %v2534
    %v3441 = vunpack.c.l.b16 %v2535
    %v3442 = vunpack.c.h.b16 %v2535
    %v3443 = vunpack.c.l.b16 %v2536
    %v3444 = vunpack.c.h.b16 %v2536
    %v3445 = vunpack.c.l.b16 %v2537
    %v3446 = vunpack.c.h.b16 %v2537
    %v3447 = vunpack.c.l.b16 %v2538
    %v3448 = vunpack.c.h.b16 %v2538
    %v3449 = vunpack.c.l.b16 %v2539
    %v3450 = vunpack.c.h.b16 %v2539
    %v3451 = vunpack.c.l.b16 %v2540
    %v3452 = vunpack.c.h.b16 %v2540
    %v3453 = vunpack.c.l.b16 %v2541
    %v3454 = vunpack.c.h.b16 %v2541
    %v3455 = vunpack.c.l.b16 %v2542
    %v3456 = vunpack.c.h.b16 %v2542
    %v3457 = vunpack.c.l.b16 %v2543
    %v3458 = vunpack.c.h.b16 %v2543
    %v3459 = vunpack.c.l.b16 %v2544
    %v3460 = vunpack.c.h.b16 %v2544
    %v3461 = vunpack.c.l.b16 %v2545
    %v3462 = vunpack.c.h.b16 %v2545
    %v3463 = vunpack.c.l.b16 %v2546
    %v3464 = vunpack.c.h.b16 %v2546
    %v3465 = vunpack.c.l.b16 %v2547
    %v3466 = vunpack.c.h.b16 %v2547
    %v3467 = vunpack.c.l.b16 %v2548
    %v3468 = vunpack.c.h.b16 %v2548
    %v3469 = vunpack.c.l.b16 %v2549
    %v3470 = vunpack.c.h.b16 %v2549
    %v3471 = vunpack.c.l.b16 %v2550
    %v3472 = vunpack.c.h.b16 %v2550
    %v3473 = vunpack.c.l.b16 %v2551
    %v3474 = vunpack.c.h.b16 %v2551
    %v3475 = vunpack.c.l.b16 %v2552
    %v3476 = vunpack.c.h.b16 %v2552
    %v3477 = vunpack.c.l.b16 %v2553
    %v3478 = vunpack.c.h.b16 %v2553
    %v3479 = vunpack.c.l.b16 %v2554
    %v3480 = vunpack.c.h.b16 %v2554
    %v3481 = vunpack.c.l.b16 %v2555
    %v3482 = vunpack.c.h.b16 %v2555
    %v3483 = vunpack.c.l.b16 %v2556
    %v3484 = vunpack.c.h.b16 %v2556
    %v3485 = vunpack.c.l.b16 %v2557
    %v3486 = vunpack.c.h.b16 %v2557
    %v3487 = vunpack.c.l.b16 %v2558
    %v3488 = vunpack.c.h.b16 %v2558
    %v3489 = vunpack.c.l.b16 %v2559
    %v3490 = vunpack.c.h.b16 %v2559
    %v3491 = vunpack.c.l.b16 %v2560
    %v3492 = vunpack.c.h.b16 %v2560
    %v3493 = vunpack.c.l.b16 %v2561
    %v3494 = vunpack.c.h.b16 %v2561
    %v3495 = vunpack.c.l.b16 %v2562
    %v3496 = vunpack.c.h.b16 %v2562
    %v3497 = vunpack.c.l.b16 %v2563
    %v3498 = vunpack.c.h.b16 %v2563
    %v3499 = vunpack.c.l.b16 %v2564
    %v3500 = vunpack.c.h.b16 %v2564
    %v3501 = vunpack.c.l.b16 %v2565
    %v3502 = vunpack.c.h.b16 %v2565
    %v3503 = vunpack.c.l.b16 %v2566
    %v3504 = vunpack.c.h.b16 %v2566
    %v3505 = vunpack.c.l.b16 %v2567
    %v3506 = vunpack.c.h.b16 %v2567
    %v3507 = vunpack.c.l.b16 %v2568
    %v3508 = vunpack.c.h.b16 %v2568
    %v3509 = vunpack.c.l.b16 %v2569
    %v3510 = vunpack.c.h.b16 %v2569
    %v3511 = vunpack.c.l.b16 %v2570
    %v3512 = vunpack.c.h.b16 %v2570
    %v3513 = vunpack.c.l.b16 %v2571
    %v3514 = vunpack.c.h.b16 %v2571
    %v3515 = vunpack.c.l.b16 %v2572
    %v3516 = vunpack.c.h.b16 %v2572
    %v3517 = vunpack.c.l.b16 %v2573
    %v3518 = vunpack.c.h.b16 %v2573
    %v3519 = vunpack.c.l.b16 %v2574
    %v3520 = vunpack.c.h.b16 %v2574
    %v3521 = vunpack.c.l.b16 %v2575
    %v3522 = vunpack.c.h.b16 %v2575
    %v3523 = vunpack.c.l.b16 %v2576
    %v3524 = vunpack.c.h.b16 %v2576
    %v3525 = vunpack.c.l.b16 %v2577
    %v3526 = vunpack.c.h.b16 %v2577
    %v3527 = vunpack.c.l.b16 %v2578
    %v3528 = vunpack.c.h.b16 %v2578
    %v3529 = vunpack.c.l.b16 %v2579
    %v3530 = vunpack.c.h.b16 %v2579
    %v3531 = vunpack.c.l.b16 %v2580
    %v3532 = vunpack.c.h.b16 %v2580
    %v3533 = vunpack.c.l.b16 %v2581
    %v3534 = vunpack.c.h.b16 %v2581
    %v3535 = vunpack.c.l.b16 %v2582
    %v3536 = vunpack.c.h.b16 %v2582
    %v3537 = vunpack.c.l.b16 %v2583
    %v3538 = vunpack.c.h.b16 %v2583
    %v3539 = vunpack.c.l.b16 %v2584
    %v3540 = vunpack.c.h.b16 %v2584
    %v3541 = vunpack.c.l.b16 %v2585
    %v3542 = vunpack.c.h.b16 %v2585
    %v3543 = vunpack.c.l.b16 %v2586
    %v3544 = vunpack.c.h.b16 %v2586
    %v3545 = vunpack.c.l.b16 %v2587
    %v3546 = vunpack.c.h.b16 %v2587
    %v3547 = vunpack.c.l.b16 %v2588
    %v3548 = vunpack.c.h.b16 %v2588
    %v3549 = vunpack.c.l.b16 %v2589
    %v3550 = vunpack.c.h.b16 %v2589
    %v3551 = vunpack.c.l.b16 %v2590
    %v3552 = vunpack.c.h.b16 %v2590
    %v3553 = vunpack.c.l.b16 %v2591
    %v3554 = vunpack.c.h.b16 %v2591
    %v3555 = vunpack.c.l.b16 %v2592
    %v3556 = vunpack.c.h.b16 %v2592
    %v3557 = vunpack.c.l.b16 %v2593
    %v3558 = vunpack.c.h.b16 %v2593
    %v3559 = vunpack.c.l.b16 %v2594
    %v3560 = vunpack.c.h.b16 %v2594
    %v3561 = vunpack.c.l.b16 %v2595
    %v3562 = vunpack.c.h.b16 %v2595
    %v3563 = vunpack.c.l.b16 %v2596
    %v3564 = vunpack.c.h.b16 %v2596
    %v3565 = vunpack.c.l.b16 %v2597
    %v3566 = vunpack.c.h.b16 %v2597
    %v3567 = vunpack.c.l.b16 %v2598
    %v3568 = vunpack.c.h.b16 %v2598
    %v3569 = vunpack.c.l.b16 %v2599
    %v3570 = vunpack.c.h.b16 %v2599
    %v3571 = vunpack.c.l.b16 %v2600
    %v3572 = vunpack.c.h.b16 %v2600
    %v3573 = vunpack.c.l.b16 %v2601
    %v3574 = vunpack.c.h.b16 %v2601
    %v3575 = vunpack.c.l.b16 %v2602
    %v3576 = vunpack.c.h.b16 %v2602
    %v3577 = vunpack.c.l.b16 %v2603
    %v3578 = vunpack.c.h.b16 %v2603
    %v3579 = vunpack.c.l.b16 %v2604
    %v3580 = vunpack.c.h.b16 %v2604
    %v3581 = vunpack.c.l.b16 %v2605
    %v3582 = vunpack.c.h.b16 %v2605
    %v3583 = vunpack.c.l.b16 %v2606
    %v3584 = vunpack.c.h.b16 %v2606
    %v3585 = vunpack.c.l.b16 %v2607
    %v3586 = vunpack.c.h.b16 %v2607
    %v3587 = vunpack.c.l.b16 %v2608
    %v3588 = vunpack.c.h.b16 %v2608
    %v3589 = vunpack.c.l.b16 %v2609
    %v3590 = vunpack.c.h.b16 %v2609
    %v3591 = vunpack.c.l.b16 %v2610
    %v3592 = vunpack.c.h.b16 %v2610
    %v3593 = vpack.c.b16 %v2957, %v2953
    %v3594 = vpack.c.b16 %v2958, %v2954
    %v3595 = vpack.c.b16 %v2959, %v2955
    %v3596 = vpack.c.b16 %v2960, %v2956
    %v3597 = vpack.c.b16 %v2965, %v2961
    %v3598 = vpack.c.b16 %v2966, %v2962
    %v3599 = vpack.c.b16 %v2967, %v2963
    %v3600 = vpack.c.b16 %v2968, %v2964
    %v3601 = vpack.c.b16 %v2973, %v2969
    %v3602 = vpack.c.b16 %v2974, %v2970
    %v3603 = vpack.c.b16 %v2975, %v2971
    %v3604 = vpack.c.b16 %v2976, %v2972
    %v3605 = vpack.c.b16 %v2981, %v2977
    %v3606 = vpack.c.b16 %v2982, %v2978
    %v3607 = vpack.c.b16 %v2983, %v2979
    %v3608 = vpack.c.b16 %v2984, %v2980
    %v3609 = vpack.c.b16 %v2989, %v2985
    %v3610 = vpack.c.b16 %v2990, %v2986
    %v3611 = vpack.c.b16 %v2991, %v2987
    %v3612 = vpack.c.b16 %v2992, %v2988
    %v3613 = vpack.c.b16 %v2997, %v2993
    %v3614 = vpack.c.b16 %v2998, %v2994
    %v3615 = vpack.c.b16 %v2999, %v2995
    %v3616 = vpack.c.b16 %v3000, %v2996
    %v3617 = vpack.c.b16 %v3005, %v3001
    %v3618 = vpack.c.b16 %v3006, %v3002
    %v3619 = vpack.c.b16 %v3007, %v3003
    %v3620 = vpack.c.b16 %v3008, %v3004
    %v3621 = vpack.c.b16 %v3013, %v3009
    %v3622 = vpack.c.b16 %v3014, %v3010
    %v3623 = vpack.c.b16 %v3015, %v3011
    %v3624 = vpack.c.b16 %v3016, %v3012
    %v3625 = vpack.c.b16 %v3021, %v3017
    %v3626 = vpack.c.b16 %v3022, %v3018
    %v3627 = vpack.c.b16 %v3023, %v3019
    %v3628 = vpack.c.b16 %v3024, %v3020
    %v3629 = vpack.c.b16 %v3029, %v3025
    %v3630 = vpack.c.b16 %v3030, %v3026
    %v3631 = vpack.c.b16 %v3031, %v3027
    %v3632 = vpack.c.b16 %v3032, %v3028
    %v3633 = vpack.c.b16 %v3037, %v3033
    %v3634 = vpack.c.b16 %v3038, %v3034
    %v3635 = vpack.c.b16 %v3039, %v3035
    %v3636 = vpack.c.b16 %v3040, %v3036
    %v3637 = vpack.c.b16 %v3045, %v3041
    %v3638 = vpack.c.b16 %v3046, %v3042
    %v3639 = vpack.c.b16 %v3047, %v3043
    %v3640 = vpack.c.b16 %v3048, %v3044
    %v3641 = vpack.c.b16 %v3053, %v3049
    %v3642 = vpack.c.b16 %v3054, %v3050
    %v3643 = vpack.c.b16 %v3055, %v3051
    %v3644 = vpack.c.b16 %v3056, %v3052
    %v3645 = vpack.c.b16 %v3061, %v3057
    %v3646 = vpack.c.b16 %v3062, %v3058
    %v3647 = vpack.c.b16 %v3063, %v3059
    %v3648 = vpack.c.b16 %v3064, %v3060
    %v3649 = vpack.c.b16 %v3069, %v3065
    %v3650 = vpack.c.b16 %v3070, %v3066
    %v3651 = vpack.c.b16 %v3071, %v3067
    %v3652 = vpack.c.b16 %v3072, %v3068
    %v3653 = vpack.c.b16 %v3077, %v3073
    %v3654 = vpack.c.b16 %v3078, %v3074
    %v3655 = vpack.c.b16 %v3079, %v3075
    %v3656 = vpack.c.b16 %v3080, %v3076
    %v3657 = vpack.c.b16 %v3085, %v3081
    %v3658 = vpack.c.b16 %v3086, %v3082
    %v3659 = vpack.c.b16 %v3087, %v3083
    %v3660 = vpack.c.b16 %v3088, %v3084
    %v3661 = vpack.c.b16 %v3093, %v3089
    %v3662 = vpack.c.b16 %v3094, %v3090
    %v3663 = vpack.c.b16 %v3095, %v3091
    %v3664 = vpack.c.b16 %v3096, %v3092
    %v3665 = vpack.c.b16 %v3101, %v3097
    %v3666 = vpack.c.b16 %v3102, %v3098
    %v3667 = vpack.c.b16 %v3103, %v3099
    %v3668 = vpack.c.b16 %v3104, %v3100
    %v3669 = vpack.c.b16 %v3109, %v3105
    %v3670 = vpack.c.b16 %v3110, %v3106
    %v3671 = vpack.c.b16 %v3111, %v3107
    %v3672 = vpack.c.b16 %v3112, %v3108
    %v3673 = vpack.c.b16 %v3117, %v3113
    %v3674 = vpack.c.b16 %v3118, %v3114
    %v3675 = vpack.c.b16 %v3119, %v3115
    %v3676 = vpack.c.b16 %v3120, %v3116
    %v3677 = vpack.c.b16 %v3125, %v3121
    %v3678 = vpack.c.b16 %v3126, %v3122
    %v3679 = vpack.c.b16 %v3127, %v3123
    %v3680 = vpack.c.b16 %v3128, %v3124
    %v3681 = vpack.c.b16 %v3133, %v3129
    %v3682 = vpack.c.b16 %v3134, %v3130
    %v3683 = vpack.c.b16 %v3135, %v3131
    %v3684 = vpack.c.b16 %v3136, %v3132
    %v3685 = vpack.c.b16 %v3141, %v3137
    %v3686 = vpack.c.b16 %v3142, %v3138
    %v3687 = vpack.c.b16 %v3143, %v3139
    %v3688 = vpack.c.b16 %v3144, %v3140
    %v3689 = vpack.c.b16 %v3149, %v3145
    %v3690 = vpack.c.b16 %v3150, %v3146
    %v3691 = vpack.c.b16 %v3151, %v3147
    %v3692 = vpack.c.b16 %v3152, %v3148
    %v3693 = vpack.c.b16 %v3157, %v3153
    %v3694 = vpack.c.b16 %v3158, %v3154
    %v3695 = vpack.c.b16 %v3159, %v3155
    %v3696 = vpack.c.b16 %v3160, %v3156
    %v3697 = vpack.c.b16 %v3165, %v3161
    %v3698 = vpack.c.b16 %v3166, %v3162
    %v3699 = vpack.c.b16 %v3167, %v3163
    %v3700 = vpack.c.b16 %v3168, %v3164
    %v3701 = vpack.c.b16 %v3173, %v3169
    %v3702 = vpack.c.b16 %v3174, %v3170
    %v3703 = vpack.c.b16 %v3175, %v3171
    %v3704 = vpack.c.b16 %v3176, %v3172
    %v3705 = vpack.c.b16 %v3181, %v3177
    %v3706 = vpack.c.b16 %v3182, %v3178
    %v3707 = vpack.c.b16 %v3183, %v3179
    %v3708 = vpack.c.b16 %v3184, %v3180
    %v3709 = vpack.c.b16 %v3189, %v3185
    %v3710 = vpack.c.b16 %v3190, %v3186
    %v3711 = vpack.c.b16 %v3191, %v3187
    %v3712 = vpack.c.b16 %v3192, %v3188
    %v3713 = vpack.c.b16 %v3197, %v3193
    %v3714 = vpack.c.b16 %v3198, %v3194
    %v3715 = vpack.c.b16 %v3199, %v3195
    %v3716 = vpack.c.b16 %v3200, %v3196
    %v3717 = vpack.c.b16 %v3205, %v3201
    %v3718 = vpack.c.b16 %v3206, %v3202
    %v3719 = vpack.c.b16 %v3207, %v3203
    %v3720 = vpack.c.b16 %v3208, %v3204
    %v3721 = vpack.c.b16 %v3213, %v3209
    %v3722 = vpack.c.b16 %v3214, %v3210
    %v3723 = vpack.c.b16 %v3215, %v3211
    %v3724 = vpack.c.b16 %v3216, %v3212
    %v3725 = vpack.c.b16 %v3221, %v3217
    %v3726 = vpack.c.b16 %v3222, %v3218
    %v3727 = vpack.c.b16 %v3223, %v3219
    %v3728 = vpack.c.b16 %v3224, %v3220
    %v3729 = vpack.c.b16 %v3229, %v3225
    %v3730 = vpack.c.b16 %v3230, %v3226
    %v3731 = vpack.c.b16 %v3231, %v3227
    %v3732 = vpack.c.b16 %v3232, %v3228
    %v3733 = vpack.c.b16 %v3237, %v3233
    %v3734 = vpack.c.b16 %v3238, %v3234
    %v3735 = vpack.c.b16 %v3239, %v3235
    %v3736 = vpack.c.b16 %v3240, %v3236
    %v3737 = vpack.c.b16 %v3245, %v3241
    %v3738 = vpack.c.b16 %v3246, %v3242
    %v3739 = vpack.c.b16 %v3247, %v3243
    %v3740 = vpack.c.b16 %v3248, %v3244
    %v3741 = vpack.c.b16 %v3253, %v3249
    %v3742 = vpack.c.b16 %v3254, %v3250
    %v3743 = vpack.c.b16 %v3255, %v3251
    %v3744 = vpack.c.b16 %v3256, %v3252
    %v3745 = vpack.c.b16 %v3261, %v3257
    %v3746 = vpack.c.b16 %v3262, %v3258
    %v3747 = vpack.c.b16 %v3263, %v3259
    %v3748 = vpack.c.b16 %v3264, %v3260
    %v3749 = vpack.c.b16 %v3269, %v3265
    %v3750 = vpack.c.b16 %v3270, %v3266
    %v3751 = vpack.c.b16 %v3271, %v3267
    %v3752 = vpack.c.b16 %v3272, %v3268
    %v3753 = vpack.c.b16 %v3277, %v3273
    %v3754 = vpack.c.b16 %v3278, %v3274
    %v3755 = vpack.c.b16 %v3279, %v3275
    %v3756 = vpack.c.b16 %v3280, %v3276
    %v3757 = vpack.c.b16 %v3285, %v3281
    %v3758 = vpack.c.b16 %v3286, %v3282
    %v3759 = vpack.c.b16 %v3287, %v3283
    %v3760 = vpack.c.b16 %v3288, %v3284
    %v3761 = vpack.c.b16 %v3293, %v3289
    %v3762 = vpack.c.b16 %v3294, %v3290
    %v3763 = vpack.c.b16 %v3295, %v3291
    %v3764 = vpack.c.b16 %v3296, %v3292
    %v3765 = vpack.c.b16 %v3301, %v3297
    %v3766 = vpack.c.b16 %v3302, %v3298
    %v3767 = vpack.c.b16 %v3303, %v3299
    %v3768 = vpack.c.b16 %v3304, %v3300
    %v3769 = vpack.c.b16 %v3309, %v3305
    %v3770 = vpack.c.b16 %v3310, %v3306
    %v3771 = vpack.c.b16 %v3311, %v3307
    %v3772 = vpack.c.b16 %v3312, %v3308
    %v3773 = vpack.c.b16 %v3317, %v3313
    %v3774 = vpack.c.b16 %v3318, %v3314
    %v3775 = vpack.c.b16 %v3319, %v3315
    %v3776 = vpack.c.b16 %v3320, %v3316
    %v3777 = vpack.c.b16 %v3325, %v3321
    %v3778 = vpack.c.b16 %v3326, %v3322
    %v3779 = vpack.c.b16 %v3327, %v3323
    %v3780 = vpack.c.b16 %v3328, %v3324
    %v3781 = vpack.c.b16 %v3333, %v3329
    %v3782 = vpack.c.b16 %v3334, %v3330
    %v3783 = vpack.c.b16 %v3335, %v3331
    %v3784 = vpack.c.b16 %v3336, %v3332
    %v3785 = vpack.c.b16 %v3341, %v3337
    %v3786 = vpack.c.b16 %v3342, %v3338
    %v3787 = vpack.c.b16 %v3343, %v3339
    %v3788 = vpack.c.b16 %v3344, %v3340
    %v3789 = vpack.c.b16 %v3349, %v3345
    %v3790 = vpack.c.b16 %v3350, %v3346
    %v3791 = vpack.c.b16 %v3351, %v3347
    %v3792 = vpack.c.b16 %v3352, %v3348
    %v3793 = vpack.c.b16 %v3357, %v3353
    %v3794 = vpack.c.b16 %v3358, %v3354
    %v3795 = vpack.c.b16 %v3359, %v3355
    %v3796 = vpack.c.b16 %v3360, %v3356
    %v3797 = vpack.c.b16 %v3365, %v3361
    %v3798 = vpack.c.b16 %v3366, %v3362
    %v3799 = vpack.c.b16 %v3367, %v3363
    %v3800 = vpack.c.b16 %v3368, %v3364
    %v3801 = vpack.c.b16 %v3373, %v3369
    %v3802 = vpack.c.b16 %v3374, %v3370
    %v3803 = vpack.c.b16 %v3375, %v3371
    %v3804 = vpack.c.b16 %v3376, %v3372
    %v3805 = vpack.c.b16 %v3381, %v3377
    %v3806 = vpack.c.b16 %v3382, %v3378
    %v3807 = vpack.c.b16 %v3383, %v3379
    %v3808 = vpack.c.b16 %v3384, %v3380
    %v3809 = vpack.c.b16 %v3389, %v3385
    %v3810 = vpack.c.b16 %v3390, %v3386
    %v3811 = vpack.c.b16 %v3391, %v3387
    %v3812 = vpack.c.b16 %v3392, %v3388
    %v3813 = vpack.c.b16 %v3397, %v3393
    %v3814 = vpack.c.b16 %v3398, %v3394
    %v3815 = vpack.c.b16 %v3399, %v3395
    %v3816 = vpack.c.b16 %v3400, %v3396
    %v3817 = vpack.c.b16 %v3405, %v3401
    %v3818 = vpack.c.b16 %v3406, %v3402
    %v3819 = vpack.c.b16 %v3407, %v3403
    %v3820 = vpack.c.b16 %v3408, %v3404
    %v3821 = vpack.c.b16 %v3413, %v3409
    %v3822 = vpack.c.b16 %v3414, %v3410
    %v3823 = vpack.c.b16 %v3415, %v3411
    %v3824 = vpack.c.b16 %v3416, %v3412
    %v3825 = vpack.c.b16 %v3421, %v3417
    %v3826 = vpack.c.b16 %v3422, %v3418
    %v3827 = vpack.c.b16 %v3423, %v3419
    %v3828 = vpack.c.b16 %v3424, %v3420
    %v3829 = vpack.c.b16 %v3429, %v3425
    %v3830 = vpack.c.b16 %v3430, %v3426
    %v3831 = vpack.c.b16 %v3431, %v3427
    %v3832 = vpack.c.b16 %v3432, %v3428
    %v3833 = vpack.c.b16 %v3437, %v3433
    %v3834 = vpack.c.b16 %v3438, %v3434
    %v3835 = vpack.c.b16 %v3439, %v3435
    %v3836 = vpack.c.b16 %v3440, %v3436
    %v3837 = vpack.c.b16 %v3445, %v3441
    %v3838 = vpack.c.b16 %v3446, %v3442
    %v3839 = vpack.c.b16 %v3447, %v3443
    %v3840 = vpack.c.b16 %v3448, %v3444
    %v3841 = vpack.c.b16 %v3453, %v3449
    %v3842 = vpack.c.b16 %v3454, %v3450
    %v3843 = vpack.c.b16 %v3455, %v3451
    %v3844 = vpack.c.b16 %v3456, %v3452
    %v3845 = vpack.c.b16 %v3461, %v3457
    %v3846 = vpack.c.b16 %v3462, %v3458
    %v3847 = vpack.c.b16 %v3463, %v3459
    %v3848 = vpack.c.b16 %v3464, %v3460
    %v3849 = vpack.c.b16 %v3469, %v3465
    %v3850 = vpack.c.b16 %v3470, %v3466
    %v3851 = vpack.c.b16 %v3471, %v3467
    %v3852 = vpack.c.b16 %v3472, %v3468
    %v3853 = vpack.c.b16 %v3477, %v3473
    %v3854 = vpack.c.b16 %v3478, %v3474
    %v3855 = vpack.c.b16 %v3479, %v3475
    %v3856 = vpack.c.b16 %v3480, %v3476
    %v3857 = vpack.c.b16 %v3485, %v3481
    %v3858 = vpack.c.b16 %v3486, %v3482
    %v3859 = vpack.c.b16 %v3487, %v3483
    %v3860 = vpack.c.b16 %v3488, %v3484
    %v3861 = vpack.c.b16 %v3493, %v3489
    %v3862 = vpack.c.b16 %v3494, %v3490
    %v3863 = vpack.c.b16 %v3495, %v3491
    %v3864 = vpack.c.b16 %v3496, %v3492
    %v3865 = vpack.c.b16 %v3501, %v3497
    %v3866 = vpack.c.b16 %v3502, %v3498
    %v3867 = vpack.c.b16 %v3503, %v3499
    %v3868 = vpack.c.b16 %v3504, %v3500
    %v3869 = vpack.c.b16 %v3509, %v3505
    %v3870 = vpack.c.b16 %v3510, %v3506
    %v3871 = vpack.c.b16 %v3511, %v3507
    %v3872 = vpack.c.b16 %v3512, %v3508
    %v3873 = vpack.c.b16 %v3517, %v3513
    %v3874 = vpack.c.b16 %v3518, %v3514
    %v3875 = vpack.c.b16 %v3519, %v3515
    %v3876 = vpack.c.b16 %v3520, %v3516
    %v3877 = vpack.c.b16 %v3525, %v3521
    %v3878 = vpack.c.b16 %v3526, %v3522
    %v3879 = vpack.c.b16 %v3527, %v3523
    %v3880 = vpack.c.b16 %v3528, %v3524
    %v3881 = vpack.c.b16 %v3533, %v3529
    %v3882 = vpack.c.b16 %v3534, %v3530
    %v3883 = vpack.c.b16 %v3535, %v3531
    %v3884 = vpack.c.b16 %v3536, %v3532
    %v3885 = vpack.c.b16 %v3541, %v3537
    %v3886 = vpack.c.b16 %v3542, %v3538
    %v3887 = vpack.c.b16 %v3543, %v3539
    %v3888 = vpack.c.b16 %v3544, %v3540
    %v3889 = vpack.c.b16 %v3549, %v3545
    %v3890 = vpack.c.b16 %v3550, %v3546
    %v3891 = vpack.c.b16 %v3551, %v3547
    %v3892 = vpack.c.b16 %v3552, %v3548
    %v3893 = vpack.c.b16 %v3557, %v3553
    %v3894 = vpack.c.b16 %v3558, %v3554
    %v3895 = vpack.c.b16 %v3559, %v3555
    %v3896 = vpack.c.b16 %v3560, %v3556
    %v3897 = vpack.c.b16 %v3565, %v3561
    %v3898 = vpack.c.b16 %v3566, %v3562
    %v3899 = vpack.c.b16 %v3567, %v3563
    %v3900 = vpack.c.b16 %v3568, %v3564
    %v3901 = vpack.c.b16 %v3573, %v3569
    %v3902 = vpack.c.b16 %v3574, %v3570
    %v3903 = vpack.c.b16 %v3575, %v3571
    %v3904 = vpack.c.b16 %v3576, %v3572
    %v3905 = vpack.c.b16 %v3581, %v3577
    %v3906 = vpack.c.b16 %v3582, %v3578
    %v3907 = vpack.c.b16 %v3583, %v3579
    %v3908 = vpack.c.b16 %v3584, %v3580
    %v3909 = vpack.c.b16 %v3589, %v3585
    %v3910 = vpack.c.b16 %v3590, %v3586
    %v3911 = vpack.c.b16 %v3591, %v3587
    %v3912 = vpack.c.b16 %v3592, %v3588
    %4233 = vmatprep.subr.bf16.mxu0 %v3594
    %4234 = vmatpush1.bf16.msra.mxu0 %v3593
    %4235 = vmatprep.subr.bf16.mxu0 %v3598
    %4236 = vmatpush1.bf16.msra.mxu0 %v3597
    %4237 = vmatprep.subr.bf16.mxu0 %v3602
    %4238 = vmatpush1.bf16.msra.mxu0 %v3601
    %4239 = vmatprep.subr.bf16.mxu0 %v3606
    %4240 = vmatpush1.bf16.msra.mxu0 %v3605
    %4241 = vmatprep.subr.bf16.mxu0 %v3610
    %4242 = vmatpush1.bf16.msra.mxu0 %v3609
    %4243 = vmatprep.subr.bf16.mxu0 %v3614
    %4244 = vmatpush1.bf16.msra.mxu0 %v3613
    %4245 = vmatprep.subr.bf16.mxu0 %v3618
    %4246 = vmatpush1.bf16.msra.mxu0 %v3617
    %4247 = vmatprep.subr.bf16.mxu0 %v3622
    %4248 = vmatpush1.bf16.msra.mxu0 %v3621
    %4249 = vmatprep.subr.bf16.mxu0 %v3626
    %4250 = vmatpush1.bf16.msra.mxu0 %v3625
    %4251 = vmatprep.subr.bf16.mxu0 %v3630
    %4252 = vmatpush1.bf16.msra.mxu0 %v3629
    %4253 = vmatprep.subr.bf16.mxu0 %v3634
    %4254 = vmatpush1.bf16.msra.mxu0 %v3633
    %4255 = vmatprep.subr.bf16.mxu0 %v3638
    %4256 = vmatpush1.bf16.msra.mxu0 %v3637
    %4257 = vmatprep.subr.bf16.mxu0 %v3642
    %4258 = vmatpush1.bf16.msra.mxu0 %v3641
    %4259 = vmatprep.subr.bf16.mxu0 %v3646
    %4260 = vmatpush1.bf16.msra.mxu0 %v3645
    %4261 = vmatprep.subr.bf16.mxu0 %v3650
    %4262 = vmatpush1.bf16.msra.mxu0 %v3649
    %4263 = vmatprep.subr.bf16.mxu0 %v3654
    %4264 = vmatpush1.bf16.msra.mxu0 %v3653
    %4265 = vmatprep.mubr.bf16.mxu0 %v2192
    %4266 = vmatmul.mubr.bf16.gmra.mrb[0].mxu0 %v2191
    %v4267 = vpop.f32.mrb[0].mxu0
    %v4268 = vadd.f32 %v2616, %v4267
    %v4269 = vpop.f32.mrb[0].mxu0
    %v4270 = vadd.f32 %v2620, %v4269
    %v4271 = vpop.f32.mrb[0].mxu0
    %v4272 = vadd.f32 %v2616, %v4271
    %v4273 = vpop.f32.mrb[0].mxu0
    %v4274 = vadd.f32 %v2620, %v4273
    %4275 = vmatprep.mubr.bf16.mxu0 %v2202
    %4276 = vmatmul.mubr.bf16.gmra.mrb[0].mxu0 %v2201
    %v4277 = vpop.f32.mrb[0].mxu0
    %v4278 = vadd.f32 %v2616, %v4277
    %v4279 = vpop.f32.mrb[0].mxu0
    %v4280 = vadd.f32 %v2620, %v4279
    %v4281 = vpop.f32.mrb[0].mxu0
    %v4282 = vadd.f32 %v2616, %v4281
    %v4283 = vpop.f32.mrb[0].mxu0
    %v4284 = vadd.f32 %v2620, %v4283
    %4285 = vmatprep.mubr.bf16.mxu0 %v2212
    %4286 = vmatmul.mubr.bf16.gmra.mrb[0].mxu0 %v2211
    %v4287 = vpop.f32.mrb[0].mxu0
    %v4288 = vadd.f32 %v2616, %v4287
    %v4289 = vpop.f32.mrb[0].mxu0
    %v4290 = vadd.f32 %v2620, %v4289
    %v4291 = vpop.f32.mrb[0].mxu0
    %v4292 = vadd.f32 %v2616, %v4291
    %v4293 = vpop.f32.mrb[0].mxu0
    %v4294 = vadd.f32 %v2620, %v4293
    %4295 = vmatprep.mubr.bf16.mxu0 %v2222
    %4296 = vmatmul.mubr.bf16.gmra.mrb[0].mxu0 %v2221
    %v4297 = vpop.f32.mrb[0].mxu0
    %v4298 = vadd.f32 %v2616, %v4297
    %v4299 = vpop.f32.mrb[0].mxu0
    %v4300 = vadd.f32 %v2620, %v4299
    %v4301 = vpop.f32.mrb[0].mxu0
    %v4302 = vadd.f32 %v2616, %v4301
    %v4303 = vpop.f32.mrb[0].mxu0
    %v4304 = vadd.f32 %v2620, %v4303
    %4305 = vmatprep.mubr.bf16.mxu0 %v2232
    %4306 = vmatmul.mubr.bf16.gmra.mrb[0].mxu0 %v2231
    %v4307 = vpop.f32.mrb[0].mxu0
    %v4308 = vadd.f32 %v2616, %v4307
    %v4309 = vpop.f32.mrb[0].mxu0
    %v4310 = vadd.f32 %v2620, %v4309
    %v4311 = vpop.f32.mrb[0].mxu0
    %v4312 = vadd.f32 %v2616, %v4311
    %v4313 = vpop.f32.mrb[0].mxu0
    %v4314 = vadd.f32 %v2620, %v4313
    %4315 = vmatprep.mubr.bf16.mxu0 %v2242
    %4316 = vmatmul.mubr.bf16.gmra.mrb[0].mxu0 %v2241
    %v4317 = vpop.f32.mrb[0].mxu0
    %v4318 = vadd.f32 %v2616, %v4317
    %v4319 = vpop.f32.mrb[0].mxu0
    %v4320 = vadd.f32 %v2620, %v4319
    %v4321 = vpop.f32.mrb[0].mxu0
    %v4322 = vadd.f32 %v2616, %v4321
    %v4323 = vpop.f32.mrb[0].mxu0
    %v4324 = vadd.f32 %v2620, %v4323
    %4325 = vmatprep.mubr.bf16.mxu0 %v2252
    %4326 = vmatmul.mubr.bf16.gmra.mrb[0].mxu0 %v2251
    %v4327 = vpop.f32.mrb[0].mxu0
    %v4328 = vadd.f32 %v2616, %v4327
    %v4329 = vpop.f32.mrb[0].mxu0
    %v4330 = vadd.f32 %v2620, %v4329
    %v4331 = vpop.f32.mrb[0].mxu0
    %v4332 = vadd.f32 %v2616, %v4331
    %v4333 = vpop.f32.mrb[0].mxu0
    %v4334 = vadd.f32 %v2620, %v4333
    %4335 = vmatprep.mubr.bf16.mxu0 %v2262
    %4336 = vmatmul.mubr.bf16.gmra.mrb[0].mxu0 %v2261
    %v4337 = vpop.f32.mrb[0].mxu0
    %v4338 = vadd.f32 %v2616, %v4337
    %v4339 = vpop.f32.mrb[0].mxu0
    %v4340 = vadd.f32 %v2620, %v4339
    %v4341 = vpop.f32.mrb[0].mxu0
    %v4342 = vadd.f32 %v2616, %v4341
    %v4343 = vpop.f32.mrb[0].mxu0
    %v4344 = vadd.f32 %v2620, %v4343
    %4345 = vmatprep.mubr.bf16.mxu0 %v2272
    %4346 = vmatmul.mubr.bf16.gmra.mrb[0].mxu0 %v2271
    %v4347 = vpop.f32.mrb[0].mxu0
    %v4348 = vadd.f32 %v2616, %v4347
    %v4349 = vpop.f32.mrb[0].mxu0
    %v4350 = vadd.f32 %v2620, %v4349
    %v4351 = vpop.f32.mrb[0].mxu0
    %v4352 = vadd.f32 %v2616, %v4351
    %v4353 = vpop.f32.mrb[0].mxu0
    %v4354 = vadd.f32 %v2620, %v4353
    %4355 = vmatprep.mubr.bf16.mxu0 %v2282
    %4356 = vmatmul.mubr.bf16.gmra.mrb[0].mxu0 %v2281
    %v4357 = vpop.f32.mrb[0].mxu0
    %v4358 = vadd.f32 %v2616, %v4357
    %v4359 = vpop.f32.mrb[0].mxu0
    %v4360 = vadd.f32 %v2620, %v4359
    %v4361 = vpop.f32.mrb[0].mxu0
    %v4362 = vadd.f32 %v2616, %v4361
    %v4363 = vpop.f32.mrb[0].mxu0
    %v4364 = vadd.f32 %v2620, %v4363
    %4365 = vdwg.mxu0
    %4366 = vmatprep.subr.bf16.mxu0 %v3658
    %4367 = vmatpush1.bf16.msra.mxu0 %v3657
    %4368 = vmatprep.subr.bf16.mxu0 %v3662
    %4369 = vmatpush1.bf16.msra.mxu0 %v3661
    %4370 = vmatprep.subr.bf16.mxu0 %v3666
    %4371 = vmatpush1.bf16.msra.mxu0 %v3665
    %4372 = vmatprep.subr.bf16.mxu0 %v3670
    %4373 = vmatpush1.bf16.msra.mxu0 %v3669
    %4374 = vmatprep.subr.bf16.mxu0 %v3674
    %4375 = vmatpush1.bf16.msra.mxu0 %v3673
    %4376 = vmatprep.subr.bf16.mxu0 %v3678
    %4377 = vmatpush1.bf16.msra.mxu0 %v3677
    %4378 = vmatprep.subr.bf16.mxu0 %v3682
    %4379 = vmatpush1.bf16.msra.mxu0 %v3681
    %4380 = vmatprep.subr.bf16.mxu0 %v3686
    %4381 = vmatpush1.bf16.msra.mxu0 %v3685
    %4382 = vmatprep.subr.bf16.mxu0 %v3690
    %4383 = vmatpush1.bf16.msra.mxu0 %v3689
    %4384 = vmatprep.subr.bf16.mxu0 %v3694
    %4385 = vmatpush1.bf16.msra.mxu0 %v3693
    %4386 = vmatprep.subr.bf16.mxu0 %v3698
    %4387 = vmatpush1.bf16.msra.mxu0 %v3697
    %4388 = vmatprep.subr.bf16.mxu0 %v3702
    %4389 = vmatpush1.bf16.msra.mxu0 %v3701
    %4390 = vmatprep.subr.bf16.mxu0 %v3706
    %4391 = vmatpush1.bf16.msra.mxu0 %v3705
    %4392 = vmatprep.subr.bf16.mxu0 %v3710
    %4393 = vmatpush1.bf16.msra.mxu0 %v3709
    %4394 = vmatprep.subr.bf16.mxu0 %v3714
    %4395 = vmatpush1.bf16.msra.mxu0 %v3713
    %4396 = vmatprep.subr.bf16.mxu0 %v3718
    %4397 = vmatpush1.bf16.msra.mxu0 %v3717
    %4398 = vmatprep.mubr.bf16.mxu0 %v2194
    %4399 = vmatmul.mubr.bf16.gmra.mrb[0].mxu0 %v2193
    %v4400 = vpop.f32.mrb[0].mxu0
    %v4401 = vadd.f32 %v4268, %v4400
    %v4402 = vpop.f32.mrb[0].mxu0
    %v4403 = vadd.f32 %v4270, %v4402
    %v4404 = vpop.f32.mrb[0].mxu0
    %v4405 = vadd.f32 %v4272, %v4404
    %v4406 = vpop.f32.mrb[0].mxu0
    %v4407 = vadd.f32 %v4274, %v4406
    %4408 = vmatprep.mubr.bf16.mxu0 %v2204
    %4409 = vmatmul.mubr.bf16.gmra.mrb[0].mxu0 %v2203
    %v4410 = vpop.f32.mrb[0].mxu0
    %v4411 = vadd.f32 %v4278, %v4410
    %v4412 = vpop.f32.mrb[0].mxu0
    %v4413 = vadd.f32 %v4280, %v4412
    %v4414 = vpop.f32.mrb[0].mxu0
    %v4415 = vadd.f32 %v4282, %v4414
    %v4416 = vpop.f32.mrb[0].mxu0
    %v4417 = vadd.f32 %v4284, %v4416
    %4418 = vmatprep.mubr.bf16.mxu0 %v2214
    %4419 = vmatmul.mubr.bf16.gmra.mrb[0].mxu0 %v2213
    %v4420 = vpop.f32.mrb[0].mxu0
    %v4421 = vadd.f32 %v4288, %v4420
    %v4422 = vpop.f32.mrb[0].mxu0
    %v4423 = vadd.f32 %v4290, %v4422
    %v4424 = vpop.f32.mrb[0].mxu0
    %v4425 = vadd.f32 %v4292, %v4424
    %v4426 = vpop.f32.mrb[0].mxu0
    %v4427 = vadd.f32 %v4294, %v4426
    %4428 = vmatprep.mubr.bf16.mxu0 %v2224
    %4429 = vmatmul.mubr.bf16.gmra.mrb[0].mxu0 %v2223
    %v4430 = vpop.f32.mrb[0].mxu0
    %v4431 = vadd.f32 %v4298, %v4430
    %v4432 = vpop.f32.mrb[0].mxu0
    %v4433 = vadd.f32 %v4300, %v4432
    %v4434 = vpop.f32.mrb[0].mxu0
    %v4435 = vadd.f32 %v4302, %v4434
    %v4436 = vpop.f32.mrb[0].mxu0
    %v4437 = vadd.f32 %v4304, %v4436
    %4438 = vmatprep.mubr.bf16.mxu0 %v2234
    %4439 = vmatmul.mubr.bf16.gmra.mrb[0].mxu0 %v2233
    %v4440 = vpop.f32.mrb[0].mxu0
    %v4441 = vadd.f32 %v4308, %v4440
    %v4442 = vpop.f32.mrb[0].mxu0
    %v4443 = vadd.f32 %v4310, %v4442
    %v4444 = vpop.f32.mrb[0].mxu0
    %v4445 = vadd.f32 %v4312, %v4444
    %v4446 = vpop.f32.mrb[0].mxu0
    %v4447 = vadd.f32 %v4314, %v4446
    %4448 = vmatprep.mubr.bf16.mxu0 %v2244
    %4449 = vmatmul.mubr.bf16.gmra.mrb[0].mxu0 %v2243
    %v4450 = vpop.f32.mrb[0].mxu0
    %v4451 = vadd.f32 %v4318, %v4450
    %v4452 = vpop.f32.mrb[0].mxu0
    %v4453 = vadd.f32 %v4320, %v4452
    %v4454 = vpop.f32.mrb[0].mxu0
    %v4455 = vadd.f32 %v4322, %v4454
    %v4456 = vpop.f32.mrb[0].mxu0
    %v4457 = vadd.f32 %v4324, %v4456
    %4458 = vmatprep.mubr.bf16.mxu0 %v2254
    %4459 = vmatmul.mubr.bf16.gmra.mrb[0].mxu0 %v2253
    %v4460 = vpop.f32.mrb[0].mxu0
    %v4461 = vadd.f32 %v4328, %v4460
    %v4462 = vpop.f32.mrb[0].mxu0
    %v4463 = vadd.f32 %v4330, %v4462
    %v4464 = vpop.f32.mrb[0].mxu0
    %v4465 = vadd.f32 %v4332, %v4464
    %v4466 = vpop.f32.mrb[0].mxu0
    %v4467 = vadd.f32 %v4334, %v4466
    %4468 = vmatprep.mubr.bf16.mxu0 %v2264
    %4469 = vmatmul.mubr.bf16.gmra.mrb[0].mxu0 %v2263
    %v4470 = vpop.f32.mrb[0].mxu0
    %v4471 = vadd.f32 %v4338, %v4470
    %v4472 = vpop.f32.mrb[0].mxu0
    %v4473 = vadd.f32 %v4340, %v4472
    %v4474 = vpop.f32.mrb[0].mxu0
    %v4475 = vadd.f32 %v4342, %v4474
    %v4476 = vpop.f32.mrb[0].mxu0
    %v4477 = vadd.f32 %v4344, %v4476
    %4478 = vmatprep.mubr.bf16.mxu0 %v2274
    %4479 = vmatmul.mubr.bf16.gmra.mrb[0].mxu0 %v2273
    %v4480 = vpop.f32.mrb[0].mxu0
    %v4481 = vadd.f32 %v4348, %v4480
    %v4482 = vpop.f32.mrb[0].mxu0
    %v4483 = vadd.f32 %v4350, %v4482
    %v4484 = vpop.f32.mrb[0].mxu0
    %v4485 = vadd.f32 %v4352, %v4484
    %v4486 = vpop.f32.mrb[0].mxu0
    %v4487 = vadd.f32 %v4354, %v4486
    %4488 = vmatprep.mubr.bf16.mxu0 %v2284
    %4489 = vmatmul.mubr.bf16.gmra.mrb[0].mxu0 %v2283
    %v4490 = vpop.f32.mrb[0].mxu0
    %v4491 = vadd.f32 %v4358, %v4490
    %v4492 = vpop.f32.mrb[0].mxu0
    %v4493 = vadd.f32 %v4360, %v4492
    %v4494 = vpop.f32.mrb[0].mxu0
    %v4495 = vadd.f32 %v4362, %v4494
    %v4496 = vpop.f32.mrb[0].mxu0
    %v4497 = vadd.f32 %v4364, %v4496
    %4498 = vdwg.mxu0
    %4499 = vmatprep.subr.bf16.mxu0 %v3722
    %4500 = vmatpush1.bf16.msra.mxu0 %v3721
    %4501 = vmatprep.subr.bf16.mxu0 %v3726
    %4502 = vmatpush1.bf16.msra.mxu0 %v3725
    %4503 = vmatprep.subr.bf16.mxu0 %v3730
    %4504 = vmatpush1.bf16.msra.mxu0 %v3729
    %4505 = vmatprep.subr.bf16.mxu0 %v3734
    %4506 = vmatpush1.bf16.msra.mxu0 %v3733
    %4507 = vmatprep.subr.bf16.mxu0 %v3738
    %4508 = vmatpush1.bf16.msra.mxu0 %v3737
    %4509 = vmatprep.subr.bf16.mxu0 %v3742
    %4510 = vmatpush1.bf16.msra.mxu0 %v3741
    %4511 = vmatprep.subr.bf16.mxu0 %v3746
    %4512 = vmatpush1.bf16.msra.mxu0 %v3745
    %4513 = vmatprep.subr.bf16.mxu0 %v3750
    %4514 = vmatpush1.bf16.msra.mxu0 %v3749
    %4515 = vmatprep.subr.bf16.mxu0 %v3754
    %4516 = vmatpush1.bf16.msra.mxu0 %v3753
    %4517 = vmatprep.subr.bf16.mxu0 %v3758
    %4518 = vmatpush1.bf16.msra.mxu0 %v3757
    %4519 = vmatprep.subr.bf16.mxu0 %v3762
    %4520 = vmatpush1.bf16.msra.mxu0 %v3761
    %4521 = vmatprep.subr.bf16.mxu0 %v3766
    %4522 = vmatpush1.bf16.msra.mxu0 %v3765
    %4523 = vmatprep.subr.bf16.mxu0 %v3770
    %4524 = vmatpush1.bf16.msra.mxu0 %v3769
    %4525 = vmatprep.subr.bf16.mxu0 %v3774
    %4526 = vmatpush1.bf16.msra.mxu0 %v3773
    %4527 = vmatprep.subr.bf16.mxu0 %v3778
    %4528 = vmatpush1.bf16.msra.mxu0 %v3777
    %4529 = vmatprep.subr.bf16.mxu0 %v3782
    %4530 = vmatpush1.bf16.msra.mxu0 %v3781
    %4531 = vmatprep.mubr.bf16.mxu0 %v2196
    %4532 = vmatmul.mubr.bf16.gmra.mrb[0].mxu0 %v2195
    %v4533 = vpop.f32.mrb[0].mxu0
    %v4534 = vadd.f32 %v4401, %v4533
    %v4535 = vpop.f32.mrb[0].mxu0
    %v4536 = vadd.f32 %v4403, %v4535
    %v4537 = vpop.f32.mrb[0].mxu0
    %v4538 = vadd.f32 %v4405, %v4537
    %v4539 = vpop.f32.mrb[0].mxu0
    %v4540 = vadd.f32 %v4407, %v4539
    %4541 = vmatprep.mubr.bf16.mxu0 %v2206
    %4542 = vmatmul.mubr.bf16.gmra.mrb[0].mxu0 %v2205
    %v4543 = vpop.f32.mrb[0].mxu0
    %v4544 = vadd.f32 %v4411, %v4543
    %v4545 = vpop.f32.mrb[0].mxu0
    %v4546 = vadd.f32 %v4413, %v4545
    %v4547 = vpop.f32.mrb[0].mxu0
    %v4548 = vadd.f32 %v4415, %v4547
    %v4549 = vpop.f32.mrb[0].mxu0
    %v4550 = vadd.f32 %v4417, %v4549
    %4551 = vmatprep.mubr.bf16.mxu0 %v2216
    %4552 = vmatmul.mubr.bf16.gmra.mrb[0].mxu0 %v2215
    %v4553 = vpop.f32.mrb[0].mxu0
    %v4554 = vadd.f32 %v4421, %v4553
    %v4555 = vpop.f32.mrb[0].mxu0
    %v4556 = vadd.f32 %v4423, %v4555
    %v4557 = vpop.f32.mrb[0].mxu0
    %v4558 = vadd.f32 %v4425, %v4557
    %v4559 = vpop.f32.mrb[0].mxu0
    %v4560 = vadd.f32 %v4427, %v4559
    %4561 = vmatprep.mubr.bf16.mxu0 %v2226
    %4562 = vmatmul.mubr.bf16.gmra.mrb[0].mxu0 %v2225
    %v4563 = vpop.f32.mrb[0].mxu0
    %v4564 = vadd.f32 %v4431, %v4563
    %v4565 = vpop.f32.mrb[0].mxu0
    %v4566 = vadd.f32 %v4433, %v4565
    %v4567 = vpop.f32.mrb[0].mxu0
    %v4568 = vadd.f32 %v4435, %v4567
    %v4569 = vpop.f32.mrb[0].mxu0
    %v4570 = vadd.f32 %v4437, %v4569
    %4571 = vmatprep.mubr.bf16.mxu0 %v2236
    %4572 = vmatmul.mubr.bf16.gmra.mrb[0].mxu0 %v2235
    %v4573 = vpop.f32.mrb[0].mxu0
    %v4574 = vadd.f32 %v4441, %v4573
    %v4575 = vpop.f32.mrb[0].mxu0
    %v4576 = vadd.f32 %v4443, %v4575
    %v4577 = vpop.f32.mrb[0].mxu0
    %v4578 = vadd.f32 %v4445, %v4577
    %v4579 = vpop.f32.mrb[0].mxu0
    %v4580 = vadd.f32 %v4447, %v4579
    %4581 = vmatprep.mubr.bf16.mxu0 %v2246
    %4582 = vmatmul.mubr.bf16.gmra.mrb[0].mxu0 %v2245
    %v4583 = vpop.f32.mrb[0].mxu0
    %v4584 = vadd.f32 %v4451, %v4583
    %v4585 = vpop.f32.mrb[0].mxu0
    %v4586 = vadd.f32 %v4453, %v4585
    %v4587 = vpop.f32.mrb[0].mxu0
    %v4588 = vadd.f32 %v4455, %v4587
    %v4589 = vpop.f32.mrb[0].mxu0
    %v4590 = vadd.f32 %v4457, %v4589
    %4591 = vmatprep.mubr.bf16.mxu0 %v2256
    %4592 = vmatmul.mubr.bf16.gmra.mrb[0].mxu0 %v2255
    %v4593 = vpop.f32.mrb[0].mxu0
    %v4594 = vadd.f32 %v4461, %v4593
    %v4595 = vpop.f32.mrb[0].mxu0
    %v4596 = vadd.f32 %v4463, %v4595
    %v4597 = vpop.f32.mrb[0].mxu0
    %v4598 = vadd.f32 %v4465, %v4597
    %v4599 = vpop.f32.mrb[0].mxu0
    %v4600 = vadd.f32 %v4467, %v4599
    %4601 = vmatprep.mubr.bf16.mxu0 %v2266
    %4602 = vmatmul.mubr.bf16.gmra.mrb[0].mxu0 %v2265
    %v4603 = vpop.f32.mrb[0].mxu0
    %v4604 = vadd.f32 %v4471, %v4603
    %v4605 = vpop.f32.mrb[0].mxu0
    %v4606 = vadd.f32 %v4473, %v4605
    %v4607 = vpop.f32.mrb[0].mxu0
    %v4608 = vadd.f32 %v4475, %v4607
    %v4609 = vpop.f32.mrb[0].mxu0
    %v4610 = vadd.f32 %v4477, %v4609
    %4611 = vmatprep.mubr.bf16.mxu0 %v2276
    %4612 = vmatmul.mubr.bf16.gmra.mrb[0].mxu0 %v2275
    %v4613 = vpop.f32.mrb[0].mxu0
    %v4614 = vadd.f32 %v4481, %v4613
    %v4615 = vpop.f32.mrb[0].mxu0
    %v4616 = vadd.f32 %v4483, %v4615
    %v4617 = vpop.f32.mrb[0].mxu0
    %v4618 = vadd.f32 %v4485, %v4617
    %v4619 = vpop.f32.mrb[0].mxu0
    %v4620 = vadd.f32 %v4487, %v4619
    %4621 = vmatprep.mubr.bf16.mxu0 %v2286
    %4622 = vmatmul.mubr.bf16.gmra.mrb[0].mxu0 %v2285
    %v4623 = vpop.f32.mrb[0].mxu0
    %v4624 = vadd.f32 %v4491, %v4623
    %v4625 = vpop.f32.mrb[0].mxu0
    %v4626 = vadd.f32 %v4493, %v4625
    %v4627 = vpop.f32.mrb[0].mxu0
    %v4628 = vadd.f32 %v4495, %v4627
    %v4629 = vpop.f32.mrb[0].mxu0
    %v4630 = vadd.f32 %v4497, %v4629
    %4631 = vdwg.mxu0
    %4632 = vmatprep.subr.bf16.mxu0 %v3786
    %4633 = vmatpush1.bf16.msra.mxu0 %v3785
    %4634 = vmatprep.subr.bf16.mxu0 %v3790
    %4635 = vmatpush1.bf16.msra.mxu0 %v3789
    %4636 = vmatprep.subr.bf16.mxu0 %v3794
    %4637 = vmatpush1.bf16.msra.mxu0 %v3793
    %4638 = vmatprep.subr.bf16.mxu0 %v3798
    %4639 = vmatpush1.bf16.msra.mxu0 %v3797
    %4640 = vmatprep.subr.bf16.mxu0 %v3802
    %4641 = vmatpush1.bf16.msra.mxu0 %v3801
    %4642 = vmatprep.subr.bf16.mxu0 %v3806
    %4643 = vmatpush1.bf16.msra.mxu0 %v3805
    %4644 = vmatprep.subr.bf16.mxu0 %v3810
    %4645 = vmatpush1.bf16.msra.mxu0 %v3809
    %4646 = vmatprep.subr.bf16.mxu0 %v3814
    %4647 = vmatpush1.bf16.msra.mxu0 %v3813
    %4648 = vmatprep.subr.bf16.mxu0 %v3818
    %4649 = vmatpush1.bf16.msra.mxu0 %v3817
    %4650 = vmatprep.subr.bf16.mxu0 %v3822
    %4651 = vmatpush1.bf16.msra.mxu0 %v3821
    %4652 = vmatprep.subr.bf16.mxu0 %v3826
    %4653 = vmatpush1.bf16.msra.mxu0 %v3825
    %4654 = vmatprep.subr.bf16.mxu0 %v3830
    %4655 = vmatpush1.bf16.msra.mxu0 %v3829
    %4656 = vmatprep.subr.bf16.mxu0 %v3834
    %4657 = vmatpush1.bf16.msra.mxu0 %v3833
    %4658 = vmatprep.subr.bf16.mxu0 %v3838
    %4659 = vmatpush1.bf16.msra.mxu0 %v3837
    %4660 = vmatprep.subr.bf16.mxu0 %v3842
    %4661 = vmatpush1.bf16.msra.mxu0 %v3841
    %4662 = vmatprep.subr.bf16.mxu0 %v3846
    %4663 = vmatpush1.bf16.msra.mxu0 %v3845
    %4664 = vmatprep.mubr.bf16.mxu0 %v2198
    %4665 = vmatmul.mubr.bf16.gmra.mrb[0].mxu0 %v2197
    %v4666 = vpop.f32.mrb[0].mxu0
    %v4667 = vadd.f32 %v4534, %v4666
    %v4668 = vpop.f32.mrb[0].mxu0
    %v4669 = vadd.f32 %v4536, %v4668
    %v4670 = vpop.f32.mrb[0].mxu0
    %v4671 = vadd.f32 %v4538, %v4670
    %v4672 = vpop.f32.mrb[0].mxu0
    %v4673 = vadd.f32 %v4540, %v4672
    %4674 = vmatprep.mubr.bf16.mxu0 %v2208
    %4675 = vmatmul.mubr.bf16.gmra.mrb[0].mxu0 %v2207
    %v4676 = vpop.f32.mrb[0].mxu0
    %v4677 = vadd.f32 %v4544, %v4676
    %v4678 = vpop.f32.mrb[0].mxu0
    %v4679 = vadd.f32 %v4546, %v4678
    %v4680 = vpop.f32.mrb[0].mxu0
    %v4681 = vadd.f32 %v4548, %v4680
    %v4682 = vpop.f32.mrb[0].mxu0
    %v4683 = vadd.f32 %v4550, %v4682
    %4684 = vmatprep.mubr.bf16.mxu0 %v2218
    %4685 = vmatmul.mubr.bf16.gmra.mrb[0].mxu0 %v2217
    %v4686 = vpop.f32.mrb[0].mxu0
    %v4687 = vadd.f32 %v4554, %v4686
    %v4688 = vpop.f32.mrb[0].mxu0
    %v4689 = vadd.f32 %v4556, %v4688
    %v4690 = vpop.f32.mrb[0].mxu0
    %v4691 = vadd.f32 %v4558, %v4690
    %v4692 = vpop.f32.mrb[0].mxu0
    %v4693 = vadd.f32 %v4560, %v4692
    %4694 = vmatprep.mubr.bf16.mxu0 %v2228
    %4695 = vmatmul.mubr.bf16.gmra.mrb[0].mxu0 %v2227
    %v4696 = vpop.f32.mrb[0].mxu0
    %v4697 = vadd.f32 %v4564, %v4696
    %v4698 = vpop.f32.mrb[0].mxu0
    %v4699 = vadd.f32 %v4566, %v4698
    %v4700 = vpop.f32.mrb[0].mxu0
    %v4701 = vadd.f32 %v4568, %v4700
    %v4702 = vpop.f32.mrb[0].mxu0
    %v4703 = vadd.f32 %v4570, %v4702
    %4704 = vmatprep.mubr.bf16.mxu0 %v2238
    %4705 = vmatmul.mubr.bf16.gmra.mrb[0].mxu0 %v2237
    %v4706 = vpop.f32.mrb[0].mxu0
    %v4707 = vadd.f32 %v4574, %v4706
    %v4708 = vpop.f32.mrb[0].mxu0
    %v4709 = vadd.f32 %v4576, %v4708
    %v4710 = vpop.f32.mrb[0].mxu0
    %v4711 = vadd.f32 %v4578, %v4710
    %v4712 = vpop.f32.mrb[0].mxu0
    %v4713 = vadd.f32 %v4580, %v4712
    %4714 = vmatprep.mubr.bf16.mxu0 %v2248
    %4715 = vmatmul.mubr.bf16.gmra.mrb[0].mxu0 %v2247
    %v4716 = vpop.f32.mrb[0].mxu0
    %v4717 = vadd.f32 %v4584, %v4716
    %v4718 = vpop.f32.mrb[0].mxu0
    %v4719 = vadd.f32 %v4586, %v4718
    %v4720 = vpop.f32.mrb[0].mxu0
    %v4721 = vadd.f32 %v4588, %v4720
    %v4722 = vpop.f32.mrb[0].mxu0
    %v4723 = vadd.f32 %v4590, %v4722
    %4724 = vmatprep.mubr.bf16.mxu0 %v2258
    %4725 = vmatmul.mubr.bf16.gmra.mrb[0].mxu0 %v2257
    %v4726 = vpop.f32.mrb[0].mxu0
    %v4727 = vadd.f32 %v4594, %v4726
    %v4728 = vpop.f32.mrb[0].mxu0
    %v4729 = vadd.f32 %v4596, %v4728
    %v4730 = vpop.f32.mrb[0].mxu0
    %v4731 = vadd.f32 %v4598, %v4730
    %v4732 = vpop.f32.mrb[0].mxu0
    %v4733 = vadd.f32 %v4600, %v4732
    %4734 = vmatprep.mubr.bf16.mxu0 %v2268
    %4735 = vmatmul.mubr.bf16.gmra.mrb[0].mxu0 %v2267
    %v4736 = vpop.f32.mrb[0].mxu0
    %v4737 = vadd.f32 %v4604, %v4736
    %v4738 = vpop.f32.mrb[0].mxu0
    %v4739 = vadd.f32 %v4606, %v4738
    %v4740 = vpop.f32.mrb[0].mxu0
    %v4741 = vadd.f32 %v4608, %v4740
    %v4742 = vpop.f32.mrb[0].mxu0
    %v4743 = vadd.f32 %v4610, %v4742
    %4744 = vmatprep.mubr.bf16.mxu0 %v2278
    %4745 = vmatmul.mubr.bf16.gmra.mrb[0].mxu0 %v2277
    %v4746 = vpop.f32.mrb[0].mxu0
    %v4747 = vadd.f32 %v4614, %v4746
    %v4748 = vpop.f32.mrb[0].mxu0
    %v4749 = vadd.f32 %v4616, %v4748
    %v4750 = vpop.f32.mrb[0].mxu0
    %v4751 = vadd.f32 %v4618, %v4750
    %v4752 = vpop.f32.mrb[0].mxu0
    %v4753 = vadd.f32 %v4620, %v4752
    %4754 = vmatprep.mubr.bf16.mxu0 %v2288
    %4755 = vmatmul.mubr.bf16.gmra.mrb[0].mxu0 %v2287
    %v4756 = vpop.f32.mrb[0].mxu0
    %v4757 = vadd.f32 %v4624, %v4756
    %v4758 = vpop.f32.mrb[0].mxu0
    %v4759 = vadd.f32 %v4626, %v4758
    %v4760 = vpop.f32.mrb[0].mxu0
    %v4761 = vadd.f32 %v4628, %v4760
    %v4762 = vpop.f32.mrb[0].mxu0
    %v4763 = vadd.f32 %v4630, %v4762
    %4764 = vdwg.mxu0
    %4765 = vmatprep.subr.bf16.mxu0 %v3850
    %4766 = vmatpush1.bf16.msra.mxu0 %v3849
    %4767 = vmatprep.subr.bf16.mxu0 %v3854
    %4768 = vmatpush1.bf16.msra.mxu0 %v3853
    %4769 = vmatprep.subr.bf16.mxu0 %v3858
    %4770 = vmatpush1.bf16.msra.mxu0 %v3857
    %4771 = vmatprep.subr.bf16.mxu0 %v3862
    %4772 = vmatpush1.bf16.msra.mxu0 %v3861
    %4773 = vmatprep.subr.bf16.mxu0 %v3866
    %4774 = vmatpush1.bf16.msra.mxu0 %v3865
    %4775 = vmatprep.subr.bf16.mxu0 %v3870
    %4776 = vmatpush1.bf16.msra.mxu0 %v3869
    %4777 = vmatprep.subr.bf16.mxu0 %v3874
    %4778 = vmatpush1.bf16.msra.mxu0 %v3873
    %4779 = vmatprep.subr.bf16.mxu0 %v3878
    %4780 = vmatpush1.bf16.msra.mxu0 %v3877
    %4781 = vmatprep.subr.bf16.mxu0 %v3882
    %4782 = vmatpush1.bf16.msra.mxu0 %v3881
    %4783 = vmatprep.subr.bf16.mxu0 %v3886
    %4784 = vmatpush1.bf16.msra.mxu0 %v3885
    %4785 = vmatprep.subr.bf16.mxu0 %v3890
    %4786 = vmatpush1.bf16.msra.mxu0 %v3889
    %4787 = vmatprep.subr.bf16.mxu0 %v3894
    %4788 = vmatpush1.bf16.msra.mxu0 %v3893
    %4789 = vmatprep.subr.bf16.mxu0 %v3898
    %4790 = vmatpush1.bf16.msra.mxu0 %v3897
    %4791 = vmatprep.subr.bf16.mxu0 %v3902
    %4792 = vmatpush1.bf16.msra.mxu0 %v3901
    %4793 = vmatprep.subr.bf16.mxu0 %v3906
    %4794 = vmatpush1.bf16.msra.mxu0 %v3905
    %4795 = vmatprep.subr.bf16.mxu0 %v3910
    %4796 = vmatpush1.bf16.msra.mxu0 %v3909
    %4797 = vmatprep.mubr.bf16.mxu0 %v2200
    %4798 = vmatmul.mubr.bf16.gmra.mrb[0].mxu0 %v2199
    %v4799 = vpop.f32.mrb[0].mxu0
    %v4800 = vadd.f32 %v4667, %v4799
    %v4801 = vpop.f32.mrb[0].mxu0
    %v4802 = vadd.f32 %v4669, %v4801
    %v4803 = vpop.f32.mrb[0].mxu0
    %v4804 = vadd.f32 %v4671, %v4803
    %v4805 = vpop.f32.mrb[0].mxu0
    %v4806 = vadd.f32 %v4673, %v4805
    %4807 = vmatprep.mubr.bf16.mxu0 %v2210
    %4808 = vmatmul.mubr.bf16.gmra.mrb[0].mxu0 %v2209
    %v4809 = vpop.f32.mrb[0].mxu0
    %v4810 = vadd.f32 %v4677, %v4809
    %v4811 = vpop.f32.mrb[0].mxu0
    %v4812 = vadd.f32 %v4679, %v4811
    %v4813 = vpop.f32.mrb[0].mxu0
    %v4814 = vadd.f32 %v4681, %v4813
    %v4815 = vpop.f32.mrb[0].mxu0
    %v4816 = vadd.f32 %v4683, %v4815
    %4817 = vmatprep.mubr.bf16.mxu0 %v2220
    %4818 = vmatmul.mubr.bf16.gmra.mrb[0].mxu0 %v2219
    %v4819 = vpop.f32.mrb[0].mxu0
    %v4820 = vadd.f32 %v4687, %v4819
    %v4821 = vpop.f32.mrb[0].mxu0
    %v4822 = vadd.f32 %v4689, %v4821
    %v4823 = vpop.f32.mrb[0].mxu0
    %v4824 = vadd.f32 %v4691, %v4823
    %v4825 = vpop.f32.mrb[0].mxu0
    %v4826 = vadd.f32 %v4693, %v4825
    %4827 = vmatprep.mubr.bf16.mxu0 %v2230
    %4828 = vmatmul.mubr.bf16.gmra.mrb[0].mxu0 %v2229
    %v4829 = vpop.f32.mrb[0].mxu0
    %v4830 = vadd.f32 %v4697, %v4829
    %v4831 = vpop.f32.mrb[0].mxu0
    %v4832 = vadd.f32 %v4699, %v4831
    %v4833 = vpop.f32.mrb[0].mxu0
    %v4834 = vadd.f32 %v4701, %v4833
    %v4835 = vpop.f32.mrb[0].mxu0
    %v4836 = vadd.f32 %v4703, %v4835
    %4837 = vmatprep.mubr.bf16.mxu0 %v2240
    %4838 = vmatmul.mubr.bf16.gmra.mrb[0].mxu0 %v2239
    %v4839 = vpop.f32.mrb[0].mxu0
    %v4840 = vadd.f32 %v4707, %v4839
    %v4841 = vpop.f32.mrb[0].mxu0
    %v4842 = vadd.f32 %v4709, %v4841
    %v4843 = vpop.f32.mrb[0].mxu0
    %v4844 = vadd.f32 %v4711, %v4843
    %v4845 = vpop.f32.mrb[0].mxu0
    %v4846 = vadd.f32 %v4713, %v4845
    %4847 = vmatprep.mubr.bf16.mxu0 %v2250
    %4848 = vmatmul.mubr.bf16.gmra.mrb[0].mxu0 %v2249
    %v4849 = vpop.f32.mrb[0].mxu0
    %v4850 = vadd.f32 %v4717, %v4849
    %v4851 = vpop.f32.mrb[0].mxu0
    %v4852 = vadd.f32 %v4719, %v4851
    %v4853 = vpop.f32.mrb[0].mxu0
    %v4854 = vadd.f32 %v4721, %v4853
    %v4855 = vpop.f32.mrb[0].mxu0
    %v4856 = vadd.f32 %v4723, %v4855
    %4857 = vmatprep.mubr.bf16.mxu0 %v2260
    %4858 = vmatmul.mubr.bf16.gmra.mrb[0].mxu0 %v2259
    %v4859 = vpop.f32.mrb[0].mxu0
    %v4860 = vadd.f32 %v4727, %v4859
    %v4861 = vpop.f32.mrb[0].mxu0
    %v4862 = vadd.f32 %v4729, %v4861
    %v4863 = vpop.f32.mrb[0].mxu0
    %v4864 = vadd.f32 %v4731, %v4863
    %v4865 = vpop.f32.mrb[0].mxu0
    %v4866 = vadd.f32 %v4733, %v4865
    %4867 = vmatprep.mubr.bf16.mxu0 %v2270
    %4868 = vmatmul.mubr.bf16.gmra.mrb[0].mxu0 %v2269
    %v4869 = vpop.f32.mrb[0].mxu0
    %v4870 = vadd.f32 %v4737, %v4869
    %v4871 = vpop.f32.mrb[0].mxu0
    %v4872 = vadd.f32 %v4739, %v4871
    %v4873 = vpop.f32.mrb[0].mxu0
    %v4874 = vadd.f32 %v4741, %v4873
    %v4875 = vpop.f32.mrb[0].mxu0
    %v4876 = vadd.f32 %v4743, %v4875
    %4877 = vmatprep.mubr.bf16.mxu0 %v2280
    %4878 = vmatmul.mubr.bf16.gmra.mrb[0].mxu0 %v2279
    %v4879 = vpop.f32.mrb[0].mxu0
    %v4880 = vadd.f32 %v4747, %v4879
    %v4881 = vpop.f32.mrb[0].mxu0
    %v4882 = vadd.f32 %v4749, %v4881
    %v4883 = vpop.f32.mrb[0].mxu0
    %v4884 = vadd.f32 %v4751, %v4883
    %v4885 = vpop.f32.mrb[0].mxu0
    %v4886 = vadd.f32 %v4753, %v4885
    %4887 = vmatprep.mubr.bf16.mxu0 %v2290
    %4888 = vmatmul.mubr.bf16.gmra.mrb[0].mxu0 %v2289
    %v4889 = vpop.f32.mrb[0].mxu0
    %v4890 = vadd.f32 %v4757, %v4889
    %v4891 = vpop.f32.mrb[0].mxu0
    %v4892 = vadd.f32 %v4759, %v4891
    %v4893 = vpop.f32.mrb[0].mxu0
    %v4894 = vadd.f32 %v4761, %v4893
    %v4895 = vpop.f32.mrb[0].mxu0
    %v4896 = vadd.f32 %v4763, %v4895
    %4897 = vdwg.mxu0
    %4898 = vmatprep.subr.bf16.mxu0 %v3596
    %4899 = vmatpush1.bf16.msra.mxu0 %v3595
    %4900 = vmatprep.subr.bf16.mxu0 %v3600
    %4901 = vmatpush1.bf16.msra.mxu0 %v3599
    %4902 = vmatprep.subr.bf16.mxu0 %v3604
    %4903 = vmatpush1.bf16.msra.mxu0 %v3603
    %4904 = vmatprep.subr.bf16.mxu0 %v3608
    %4905 = vmatpush1.bf16.msra.mxu0 %v3607
    %4906 = vmatprep.subr.bf16.mxu0 %v3612
    %4907 = vmatpush1.bf16.msra.mxu0 %v3611
    %4908 = vmatprep.subr.bf16.mxu0 %v3616
    %4909 = vmatpush1.bf16.msra.mxu0 %v3615
    %4910 = vmatprep.subr.bf16.mxu0 %v3620
    %4911 = vmatpush1.bf16.msra.mxu0 %v3619
    %4912 = vmatprep.subr.bf16.mxu0 %v3624
    %4913 = vmatpush1.bf16.msra.mxu0 %v3623
    %4914 = vmatprep.subr.bf16.mxu0 %v3628
    %4915 = vmatpush1.bf16.msra.mxu0 %v3627
    %4916 = vmatprep.subr.bf16.mxu0 %v3632
    %4917 = vmatpush1.bf16.msra.mxu0 %v3631
    %4918 = vmatprep.subr.bf16.mxu0 %v3636
    %4919 = vmatpush1.bf16.msra.mxu0 %v3635
    %4920 = vmatprep.subr.bf16.mxu0 %v3640
    %4921 = vmatpush1.bf16.msra.mxu0 %v3639
    %4922 = vmatprep.subr.bf16.mxu0 %v3644
    %4923 = vmatpush1.bf16.msra.mxu0 %v3643
    %4924 = vmatprep.subr.bf16.mxu0 %v3648
    %4925 = vmatpush1.bf16.msra.mxu0 %v3647
    %4926 = vmatprep.subr.bf16.mxu0 %v3652
    %4927 = vmatpush1.bf16.msra.mxu0 %v3651
    %4928 = vmatprep.subr.bf16.mxu0 %v3656
    %4929 = vmatpush1.bf16.msra.mxu0 %v3655
    %4930 = vmatprep.mubr.bf16.mxu0 %v2192
    %4931 = vmatmul.mubr.bf16.gmra.mrb[0].mxu0 %v2191
    %v4932 = vpop.f32.mrb[0].mxu0
    %v4933 = vadd.f32 %v2624, %v4932
    %v4934 = vpop.f32.mrb[0].mxu0
    %v4935 = vadd.f32 %v2628, %v4934
    %v4936 = vpop.f32.mrb[0].mxu0
    %v4937 = vadd.f32 %v2624, %v4936
    %v4938 = vpop.f32.mrb[0].mxu0
    %v4939 = vadd.f32 %v2628, %v4938
    %4940 = vmatprep.mubr.bf16.mxu0 %v2202
    %4941 = vmatmul.mubr.bf16.gmra.mrb[0].mxu0 %v2201
    %v4942 = vpop.f32.mrb[0].mxu0
    %v4943 = vadd.f32 %v2624, %v4942
    %v4944 = vpop.f32.mrb[0].mxu0
    %v4945 = vadd.f32 %v2628, %v4944
    %v4946 = vpop.f32.mrb[0].mxu0
    %v4947 = vadd.f32 %v2624, %v4946
    %v4948 = vpop.f32.mrb[0].mxu0
    %v4949 = vadd.f32 %v2628, %v4948
    %4950 = vmatprep.mubr.bf16.mxu0 %v2212
    %4951 = vmatmul.mubr.bf16.gmra.mrb[0].mxu0 %v2211
    %v4952 = vpop.f32.mrb[0].mxu0
    %v4953 = vadd.f32 %v2624, %v4952
    %v4954 = vpop.f32.mrb[0].mxu0
    %v4955 = vadd.f32 %v2628, %v4954
    %v4956 = vpop.f32.mrb[0].mxu0
    %v4957 = vadd.f32 %v2624, %v4956
    %v4958 = vpop.f32.mrb[0].mxu0
    %v4959 = vadd.f32 %v2628, %v4958
    %4960 = vmatprep.mubr.bf16.mxu0 %v2222
    %4961 = vmatmul.mubr.bf16.gmra.mrb[0].mxu0 %v2221
    %v4962 = vpop.f32.mrb[0].mxu0
    %v4963 = vadd.f32 %v2624, %v4962
    %v4964 = vpop.f32.mrb[0].mxu0
    %v4965 = vadd.f32 %v2628, %v4964
    %v4966 = vpop.f32.mrb[0].mxu0
    %v4967 = vadd.f32 %v2624, %v4966
    %v4968 = vpop.f32.mrb[0].mxu0
    %v4969 = vadd.f32 %v2628, %v4968
    %4970 = vmatprep.mubr.bf16.mxu0 %v2232
    %4971 = vmatmul.mubr.bf16.gmra.mrb[0].mxu0 %v2231
    %v4972 = vpop.f32.mrb[0].mxu0
    %v4973 = vadd.f32 %v2624, %v4972
    %v4974 = vpop.f32.mrb[0].mxu0
    %v4975 = vadd.f32 %v2628, %v4974
    %v4976 = vpop.f32.mrb[0].mxu0
    %v4977 = vadd.f32 %v2624, %v4976
    %v4978 = vpop.f32.mrb[0].mxu0
    %v4979 = vadd.f32 %v2628, %v4978
    %4980 = vmatprep.mubr.bf16.mxu0 %v2242
    %4981 = vmatmul.mubr.bf16.gmra.mrb[0].mxu0 %v2241
    %v4982 = vpop.f32.mrb[0].mxu0
    %v4983 = vadd.f32 %v2624, %v4982
    %v4984 = vpop.f32.mrb[0].mxu0
    %v4985 = vadd.f32 %v2628, %v4984
    %v4986 = vpop.f32.mrb[0].mxu0
    %v4987 = vadd.f32 %v2624, %v4986
    %v4988 = vpop.f32.mrb[0].mxu0
    %v4989 = vadd.f32 %v2628, %v4988
    %4990 = vmatprep.mubr.bf16.mxu0 %v2252
    %4991 = vmatmul.mubr.bf16.gmra.mrb[0].mxu0 %v2251
    %v4992 = vpop.f32.mrb[0].mxu0
    %v4993 = vadd.f32 %v2624, %v4992
    %v4994 = vpop.f32.mrb[0].mxu0
    %v4995 = vadd.f32 %v2628, %v4994
    %v4996 = vpop.f32.mrb[0].mxu0
    %v4997 = vadd.f32 %v2624, %v4996
    %v4998 = vpop.f32.mrb[0].mxu0
    %v4999 = vadd.f32 %v2628, %v4998
    %5000 = vmatprep.mubr.bf16.mxu0 %v2262
    %5001 = vmatmul.mubr.bf16.gmra.mrb[0].mxu0 %v2261
    %v5002 = vpop.f32.mrb[0].mxu0
    %v5003 = vadd.f32 %v2624, %v5002
    %v5004 = vpop.f32.mrb[0].mxu0
    %v5005 = vadd.f32 %v2628, %v5004
    %v5006 = vpop.f32.mrb[0].mxu0
    %v5007 = vadd.f32 %v2624, %v5006
    %v5008 = vpop.f32.mrb[0].mxu0
    %v5009 = vadd.f32 %v2628, %v5008
    %5010 = vmatprep.mubr.bf16.mxu0 %v2272
    %5011 = vmatmul.mubr.bf16.gmra.mrb[0].mxu0 %v2271
    %v5012 = vpop.f32.mrb[0].mxu0
    %v5013 = vadd.f32 %v2624, %v5012
    %v5014 = vpop.f32.mrb[0].mxu0
    %v5015 = vadd.f32 %v2628, %v5014
    %v5016 = vpop.f32.mrb[0].mxu0
    %v5017 = vadd.f32 %v2624, %v5016
    %v5018 = vpop.f32.mrb[0].mxu0
    %v5019 = vadd.f32 %v2628, %v5018
    %5020 = vmatprep.mubr.bf16.mxu0 %v2282
    %5021 = vmatmul.mubr.bf16.gmra.mrb[0].mxu0 %v2281
    %v5022 = vpop.f32.mrb[0].mxu0
    %v5023 = vadd.f32 %v2624, %v5022
    %v5024 = vpop.f32.mrb[0].mxu0
    %v5025 = vadd.f32 %v2628, %v5024
    %v5026 = vpop.f32.mrb[0].mxu0
    %v5027 = vadd.f32 %v2624, %v5026
    %v5028 = vpop.f32.mrb[0].mxu0
    %v5029 = vadd.f32 %v2628, %v5028
    %5030 = vdwg.mxu0
    %5031 = vmatprep.subr.bf16.mxu0 %v3660
    %5032 = vmatpush1.bf16.msra.mxu0 %v3659
    %5033 = vmatprep.subr.bf16.mxu0 %v3664
    %5034 = vmatpush1.bf16.msra.mxu0 %v3663
    %5035 = vmatprep.subr.bf16.mxu0 %v3668
    %5036 = vmatpush1.bf16.msra.mxu0 %v3667
    %5037 = vmatprep.subr.bf16.mxu0 %v3672
    %5038 = vmatpush1.bf16.msra.mxu0 %v3671
    %5039 = vmatprep.subr.bf16.mxu0 %v3676
    %5040 = vmatpush1.bf16.msra.mxu0 %v3675
    %5041 = vmatprep.subr.bf16.mxu0 %v3680
    %5042 = vmatpush1.bf16.msra.mxu0 %v3679
    %5043 = vmatprep.subr.bf16.mxu0 %v3684
    %5044 = vmatpush1.bf16.msra.mxu0 %v3683
    %5045 = vmatprep.subr.bf16.mxu0 %v3688
    %5046 = vmatpush1.bf16.msra.mxu0 %v3687
    %5047 = vmatprep.subr.bf16.mxu0 %v3692
    %5048 = vmatpush1.bf16.msra.mxu0 %v3691
    %5049 = vmatprep.subr.bf16.mxu0 %v3696
    %5050 = vmatpush1.bf16.msra.mxu0 %v3695
    %5051 = vmatprep.subr.bf16.mxu0 %v3700
    %5052 = vmatpush1.bf16.msra.mxu0 %v3699
    %5053 = vmatprep.subr.bf16.mxu0 %v3704
    %5054 = vmatpush1.bf16.msra.mxu0 %v3703
    %5055 = vmatprep.subr.bf16.mxu0 %v3708
    %5056 = vmatpush1.bf16.msra.mxu0 %v3707
    %5057 = vmatprep.subr.bf16.mxu0 %v3712
    %5058 = vmatpush1.bf16.msra.mxu0 %v3711
    %5059 = vmatprep.subr.bf16.mxu0 %v3716
    %5060 = vmatpush1.bf16.msra.mxu0 %v3715
    %5061 = vmatprep.subr.bf16.mxu0 %v3720
    %5062 = vmatpush1.bf16.msra.mxu0 %v3719
    %5063 = vmatprep.mubr.bf16.mxu0 %v2194
    %5064 = vmatmul.mubr.bf16.gmra.mrb[0].mxu0 %v2193
    %v5065 = vpop.f32.mrb[0].mxu0
    %v5066 = vadd.f32 %v4933, %v5065
    %v5067 = vpop.f32.mrb[0].mxu0
    %v5068 = vadd.f32 %v4935, %v5067
    %v5069 = vpop.f32.mrb[0].mxu0
    %v5070 = vadd.f32 %v4937, %v5069
    %v5071 = vpop.f32.mrb[0].mxu0
    %v5072 = vadd.f32 %v4939, %v5071
    %5073 = vmatprep.mubr.bf16.mxu0 %v2204
    %5074 = vmatmul.mubr.bf16.gmra.mrb[0].mxu0 %v2203
    %v5075 = vpop.f32.mrb[0].mxu0
    %v5076 = vadd.f32 %v4943, %v5075
    %v5077 = vpop.f32.mrb[0].mxu0
    %v5078 = vadd.f32 %v4945, %v5077
    %v5079 = vpop.f32.mrb[0].mxu0
    %v5080 = vadd.f32 %v4947, %v5079
    %v5081 = vpop.f32.mrb[0].mxu0
    %v5082 = vadd.f32 %v4949, %v5081
    %5083 = vmatprep.mubr.bf16.mxu0 %v2214
    %5084 = vmatmul.mubr.bf16.gmra.mrb[0].mxu0 %v2213
    %v5085 = vpop.f32.mrb[0].mxu0
    %v5086 = vadd.f32 %v4953, %v5085
    %v5087 = vpop.f32.mrb[0].mxu0
    %v5088 = vadd.f32 %v4955, %v5087
    %v5089 = vpop.f32.mrb[0].mxu0
    %v5090 = vadd.f32 %v4957, %v5089
    %v5091 = vpop.f32.mrb[0].mxu0
    %v5092 = vadd.f32 %v4959, %v5091
    %5093 = vmatprep.mubr.bf16.mxu0 %v2224
    %5094 = vmatmul.mubr.bf16.gmra.mrb[0].mxu0 %v2223
    %v5095 = vpop.f32.mrb[0].mxu0
    %v5096 = vadd.f32 %v4963, %v5095
    %v5097 = vpop.f32.mrb[0].mxu0
    %v5098 = vadd.f32 %v4965, %v5097
    %v5099 = vpop.f32.mrb[0].mxu0
    %v5100 = vadd.f32 %v4967, %v5099
    %v5101 = vpop.f32.mrb[0].mxu0
    %v5102 = vadd.f32 %v4969, %v5101
    %5103 = vmatprep.mubr.bf16.mxu0 %v2234
    %5104 = vmatmul.mubr.bf16.gmra.mrb[0].mxu0 %v2233
    %v5105 = vpop.f32.mrb[0].mxu0
    %v5106 = vadd.f32 %v4973, %v5105
    %v5107 = vpop.f32.mrb[0].mxu0
    %v5108 = vadd.f32 %v4975, %v5107
    %v5109 = vpop.f32.mrb[0].mxu0
    %v5110 = vadd.f32 %v4977, %v5109
    %v5111 = vpop.f32.mrb[0].mxu0
    %v5112 = vadd.f32 %v4979, %v5111
    %5113 = vmatprep.mubr.bf16.mxu0 %v2244
    %5114 = vmatmul.mubr.bf16.gmra.mrb[0].mxu0 %v2243
    %v5115 = vpop.f32.mrb[0].mxu0
    %v5116 = vadd.f32 %v4983, %v5115
    %v5117 = vpop.f32.mrb[0].mxu0
    %v5118 = vadd.f32 %v4985, %v5117
    %v5119 = vpop.f32.mrb[0].mxu0
    %v5120 = vadd.f32 %v4987, %v5119
    %v5121 = vpop.f32.mrb[0].mxu0
    %v5122 = vadd.f32 %v4989, %v5121
    %5123 = vmatprep.mubr.bf16.mxu0 %v2254
    %5124 = vmatmul.mubr.bf16.gmra.mrb[0].mxu0 %v2253
    %v5125 = vpop.f32.mrb[0].mxu0
    %v5126 = vadd.f32 %v4993, %v5125
    %v5127 = vpop.f32.mrb[0].mxu0
    %v5128 = vadd.f32 %v4995, %v5127
    %v5129 = vpop.f32.mrb[0].mxu0
    %v5130 = vadd.f32 %v4997, %v5129
    %v5131 = vpop.f32.mrb[0].mxu0
    %v5132 = vadd.f32 %v4999, %v5131
    %5133 = vmatprep.mubr.bf16.mxu0 %v2264
    %5134 = vmatmul.mubr.bf16.gmra.mrb[0].mxu0 %v2263
    %v5135 = vpop.f32.mrb[0].mxu0
    %v5136 = vadd.f32 %v5003, %v5135
    %v5137 = vpop.f32.mrb[0].mxu0
    %v5138 = vadd.f32 %v5005, %v5137
    %v5139 = vpop.f32.mrb[0].mxu0
    %v5140 = vadd.f32 %v5007, %v5139
    %v5141 = vpop.f32.mrb[0].mxu0
    %v5142 = vadd.f32 %v5009, %v5141
    %5143 = vmatprep.mubr.bf16.mxu0 %v2274
    %5144 = vmatmul.mubr.bf16.gmra.mrb[0].mxu0 %v2273
    %v5145 = vpop.f32.mrb[0].mxu0
    %v5146 = vadd.f32 %v5013, %v5145
    %v5147 = vpop.f32.mrb[0].mxu0
    %v5148 = vadd.f32 %v5015, %v5147
    %v5149 = vpop.f32.mrb[0].mxu0
    %v5150 = vadd.f32 %v5017, %v5149
    %v5151 = vpop.f32.mrb[0].mxu0
    %v5152 = vadd.f32 %v5019, %v5151
    %5153 = vmatprep.mubr.bf16.mxu0 %v2284
    %5154 = vmatmul.mubr.bf16.gmra.mrb[0].mxu0 %v2283
    %v5155 = vpop.f32.mrb[0].mxu0
    %v5156 = vadd.f32 %v5023, %v5155
    %v5157 = vpop.f32.mrb[0].mxu0
    %v5158 = vadd.f32 %v5025, %v5157
    %v5159 = vpop.f32.mrb[0].mxu0
    %v5160 = vadd.f32 %v5027, %v5159
    %v5161 = vpop.f32.mrb[0].mxu0
    %v5162 = vadd.f32 %v5029, %v5161
    %5163 = vdwg.mxu0
    %5164 = vmatprep.subr.bf16.mxu0 %v3724
    %5165 = vmatpush1.bf16.msra.mxu0 %v3723
    %5166 = vmatprep.subr.bf16.mxu0 %v3728
    %5167 = vmatpush1.bf16.msra.mxu0 %v3727
    %5168 = vmatprep.subr.bf16.mxu0 %v3732
    %5169 = vmatpush1.bf16.msra.mxu0 %v3731
    %5170 = vmatprep.subr.bf16.mxu0 %v3736
    %5171 = vmatpush1.bf16.msra.mxu0 %v3735
    %5172 = vmatprep.subr.bf16.mxu0 %v3740
    %5173 = vmatpush1.bf16.msra.mxu0 %v3739
    %5174 = vmatprep.subr.bf16.mxu0 %v3744
    %5175 = vmatpush1.bf16.msra.mxu0 %v3743
    %5176 = vmatprep.subr.bf16.mxu0 %v3748
    %5177 = vmatpush1.bf16.msra.mxu0 %v3747
    %5178 = vmatprep.subr.bf16.mxu0 %v3752
    %5179 = vmatpush1.bf16.msra.mxu0 %v3751
    %5180 = vmatprep.subr.bf16.mxu0 %v3756
    %5181 = vmatpush1.bf16.msra.mxu0 %v3755
    %5182 = vmatprep.subr.bf16.mxu0 %v3760
    %5183 = vmatpush1.bf16.msra.mxu0 %v3759
    %5184 = vmatprep.subr.bf16.mxu0 %v3764
    %5185 = vmatpush1.bf16.msra.mxu0 %v3763
    %5186 = vmatprep.subr.bf16.mxu0 %v3768
    %5187 = vmatpush1.bf16.msra.mxu0 %v3767
    %5188 = vmatprep.subr.bf16.mxu0 %v3772
    %5189 = vmatpush1.bf16.msra.mxu0 %v3771
    %5190 = vmatprep.subr.bf16.mxu0 %v3776
    %5191 = vmatpush1.bf16.msra.mxu0 %v3775
    %5192 = vmatprep.subr.bf16.mxu0 %v3780
    %5193 = vmatpush1.bf16.msra.mxu0 %v3779
    %5194 = vmatprep.subr.bf16.mxu0 %v3784
    %5195 = vmatpush1.bf16.msra.mxu0 %v3783
    %5196 = vmatprep.mubr.bf16.mxu0 %v2196
    %5197 = vmatmul.mubr.bf16.gmra.mrb[0].mxu0 %v2195
    %v5198 = vpop.f32.mrb[0].mxu0
    %v5199 = vadd.f32 %v5066, %v5198
    %v5200 = vpop.f32.mrb[0].mxu0
    %v5201 = vadd.f32 %v5068, %v5200
    %v5202 = vpop.f32.mrb[0].mxu0
    %v5203 = vadd.f32 %v5070, %v5202
    %v5204 = vpop.f32.mrb[0].mxu0
    %v5205 = vadd.f32 %v5072, %v5204
    %5206 = vmatprep.mubr.bf16.mxu0 %v2206
    %5207 = vmatmul.mubr.bf16.gmra.mrb[0].mxu0 %v2205
    %v5208 = vpop.f32.mrb[0].mxu0
    %v5209 = vadd.f32 %v5076, %v5208
    %v5210 = vpop.f32.mrb[0].mxu0
    %v5211 = vadd.f32 %v5078, %v5210
    %v5212 = vpop.f32.mrb[0].mxu0
    %v5213 = vadd.f32 %v5080, %v5212
    %v5214 = vpop.f32.mrb[0].mxu0
    %v5215 = vadd.f32 %v5082, %v5214
    %5216 = vmatprep.mubr.bf16.mxu0 %v2216
    %5217 = vmatmul.mubr.bf16.gmra.mrb[0].mxu0 %v2215
    %v5218 = vpop.f32.mrb[0].mxu0
    %v5219 = vadd.f32 %v5086, %v5218
    %v5220 = vpop.f32.mrb[0].mxu0
    %v5221 = vadd.f32 %v5088, %v5220
    %v5222 = vpop.f32.mrb[0].mxu0
    %v5223 = vadd.f32 %v5090, %v5222
    %v5224 = vpop.f32.mrb[0].mxu0
    %v5225 = vadd.f32 %v5092, %v5224
    %5226 = vmatprep.mubr.bf16.mxu0 %v2226
    %5227 = vmatmul.mubr.bf16.gmra.mrb[0].mxu0 %v2225
    %v5228 = vpop.f32.mrb[0].mxu0
    %v5229 = vadd.f32 %v5096, %v5228
    %v5230 = vpop.f32.mrb[0].mxu0
    %v5231 = vadd.f32 %v5098, %v5230
    %v5232 = vpop.f32.mrb[0].mxu0
    %v5233 = vadd.f32 %v5100, %v5232
    %v5234 = vpop.f32.mrb[0].mxu0
    %v5235 = vadd.f32 %v5102, %v5234
    %5236 = vmatprep.mubr.bf16.mxu0 %v2236
    %5237 = vmatmul.mubr.bf16.gmra.mrb[0].mxu0 %v2235
    %v5238 = vpop.f32.mrb[0].mxu0
    %v5239 = vadd.f32 %v5106, %v5238
    %v5240 = vpop.f32.mrb[0].mxu0
    %v5241 = vadd.f32 %v5108, %v5240
    %v5242 = vpop.f32.mrb[0].mxu0
    %v5243 = vadd.f32 %v5110, %v5242
    %v5244 = vpop.f32.mrb[0].mxu0
    %v5245 = vadd.f32 %v5112, %v5244
    %5246 = vmatprep.mubr.bf16.mxu0 %v2246
    %5247 = vmatmul.mubr.bf16.gmra.mrb[0].mxu0 %v2245
    %v5248 = vpop.f32.mrb[0].mxu0
    %v5249 = vadd.f32 %v5116, %v5248
    %v5250 = vpop.f32.mrb[0].mxu0
    %v5251 = vadd.f32 %v5118, %v5250
    %v5252 = vpop.f32.mrb[0].mxu0
    %v5253 = vadd.f32 %v5120, %v5252
    %v5254 = vpop.f32.mrb[0].mxu0
    %v5255 = vadd.f32 %v5122, %v5254
    %5256 = vmatprep.mubr.bf16.mxu0 %v2256
    %5257 = vmatmul.mubr.bf16.gmra.mrb[0].mxu0 %v2255
    %v5258 = vpop.f32.mrb[0].mxu0
    %v5259 = vadd.f32 %v5126, %v5258
    %v5260 = vpop.f32.mrb[0].mxu0
    %v5261 = vadd.f32 %v5128, %v5260
    %v5262 = vpop.f32.mrb[0].mxu0
    %v5263 = vadd.f32 %v5130, %v5262
    %v5264 = vpop.f32.mrb[0].mxu0
    %v5265 = vadd.f32 %v5132, %v5264
    %5266 = vmatprep.mubr.bf16.mxu0 %v2266
    %5267 = vmatmul.mubr.bf16.gmra.mrb[0].mxu0 %v2265
    %v5268 = vpop.f32.mrb[0].mxu0
    %v5269 = vadd.f32 %v5136, %v5268
    %v5270 = vpop.f32.mrb[0].mxu0
    %v5271 = vadd.f32 %v5138, %v5270
    %v5272 = vpop.f32.mrb[0].mxu0
    %v5273 = vadd.f32 %v5140, %v5272
    %v5274 = vpop.f32.mrb[0].mxu0
    %v5275 = vadd.f32 %v5142, %v5274
    %5276 = vmatprep.mubr.bf16.mxu0 %v2276
    %5277 = vmatmul.mubr.bf16.gmra.mrb[0].mxu0 %v2275
    %v5278 = vpop.f32.mrb[0].mxu0
    %v5279 = vadd.f32 %v5146, %v5278
    %v5280 = vpop.f32.mrb[0].mxu0
    %v5281 = vadd.f32 %v5148, %v5280
    %v5282 = vpop.f32.mrb[0].mxu0
    %v5283 = vadd.f32 %v5150, %v5282
    %v5284 = vpop.f32.mrb[0].mxu0
    %v5285 = vadd.f32 %v5152, %v5284
    %5286 = vmatprep.mubr.bf16.mxu0 %v2286
    %5287 = vmatmul.mubr.bf16.gmra.mrb[0].mxu0 %v2285
    %v5288 = vpop.f32.mrb[0].mxu0
    %v5289 = vadd.f32 %v5156, %v5288
    %v5290 = vpop.f32.mrb[0].mxu0
    %v5291 = vadd.f32 %v5158, %v5290
    %v5292 = vpop.f32.mrb[0].mxu0
    %v5293 = vadd.f32 %v5160, %v5292
    %v5294 = vpop.f32.mrb[0].mxu0
    %v5295 = vadd.f32 %v5162, %v5294
    %5296 = vdwg.mxu0
    %5297 = vmatprep.subr.bf16.mxu0 %v3788
    %5298 = vmatpush1.bf16.msra.mxu0 %v3787
    %5299 = vmatprep.subr.bf16.mxu0 %v3792
    %5300 = vmatpush1.bf16.msra.mxu0 %v3791
    %5301 = vmatprep.subr.bf16.mxu0 %v3796
    %5302 = vmatpush1.bf16.msra.mxu0 %v3795
    %5303 = vmatprep.subr.bf16.mxu0 %v3800
    %5304 = vmatpush1.bf16.msra.mxu0 %v3799
    %5305 = vmatprep.subr.bf16.mxu0 %v3804
    %5306 = vmatpush1.bf16.msra.mxu0 %v3803
    %5307 = vmatprep.subr.bf16.mxu0 %v3808
    %5308 = vmatpush1.bf16.msra.mxu0 %v3807
    %5309 = vmatprep.subr.bf16.mxu0 %v3812
    %5310 = vmatpush1.bf16.msra.mxu0 %v3811
    %5311 = vmatprep.subr.bf16.mxu0 %v3816
    %5312 = vmatpush1.bf16.msra.mxu0 %v3815
    %5313 = vmatprep.subr.bf16.mxu0 %v3820
    %5314 = vmatpush1.bf16.msra.mxu0 %v3819
    %5315 = vmatprep.subr.bf16.mxu0 %v3824
    %5316 = vmatpush1.bf16.msra.mxu0 %v3823
    %5317 = vmatprep.subr.bf16.mxu0 %v3828
    %5318 = vmatpush1.bf16.msra.mxu0 %v3827
    %5319 = vmatprep.subr.bf16.mxu0 %v3832
    %5320 = vmatpush1.bf16.msra.mxu0 %v3831
    %5321 = vmatprep.subr.bf16.mxu0 %v3836
    %5322 = vmatpush1.bf16.msra.mxu0 %v3835
    %5323 = vmatprep.subr.bf16.mxu0 %v3840
    %5324 = vmatpush1.bf16.msra.mxu0 %v3839
    %5325 = vmatprep.subr.bf16.mxu0 %v3844
    %5326 = vmatpush1.bf16.msra.mxu0 %v3843
    %5327 = vmatprep.subr.bf16.mxu0 %v3848
    %5328 = vmatpush1.bf16.msra.mxu0 %v3847
    %5329 = vmatprep.mubr.bf16.mxu0 %v2198
    %5330 = vmatmul.mubr.bf16.gmra.mrb[0].mxu0 %v2197
    %v5331 = vpop.f32.mrb[0].mxu0
    %v5332 = vadd.f32 %v5199, %v5331
    %v5333 = vpop.f32.mrb[0].mxu0
    %v5334 = vadd.f32 %v5201, %v5333
    %v5335 = vpop.f32.mrb[0].mxu0
    %v5336 = vadd.f32 %v5203, %v5335
    %v5337 = vpop.f32.mrb[0].mxu0
    %v5338 = vadd.f32 %v5205, %v5337
    %5339 = vmatprep.mubr.bf16.mxu0 %v2208
    %5340 = vmatmul.mubr.bf16.gmra.mrb[0].mxu0 %v2207
    %v5341 = vpop.f32.mrb[0].mxu0
    %v5342 = vadd.f32 %v5209, %v5341
    %v5343 = vpop.f32.mrb[0].mxu0
    %v5344 = vadd.f32 %v5211, %v5343
    %v5345 = vpop.f32.mrb[0].mxu0
    %v5346 = vadd.f32 %v5213, %v5345
    %v5347 = vpop.f32.mrb[0].mxu0
    %v5348 = vadd.f32 %v5215, %v5347
    %5349 = vmatprep.mubr.bf16.mxu0 %v2218
    %5350 = vmatmul.mubr.bf16.gmra.mrb[0].mxu0 %v2217
    %v5351 = vpop.f32.mrb[0].mxu0
    %v5352 = vadd.f32 %v5219, %v5351
    %v5353 = vpop.f32.mrb[0].mxu0
    %v5354 = vadd.f32 %v5221, %v5353
    %v5355 = vpop.f32.mrb[0].mxu0
    %v5356 = vadd.f32 %v5223, %v5355
    %v5357 = vpop.f32.mrb[0].mxu0
    %v5358 = vadd.f32 %v5225, %v5357
    %5359 = vmatprep.mubr.bf16.mxu0 %v2228
    %5360 = vmatmul.mubr.bf16.gmra.mrb[0].mxu0 %v2227
    %v5361 = vpop.f32.mrb[0].mxu0
    %v5362 = vadd.f32 %v5229, %v5361
    %v5363 = vpop.f32.mrb[0].mxu0
    %v5364 = vadd.f32 %v5231, %v5363
    %v5365 = vpop.f32.mrb[0].mxu0
    %v5366 = vadd.f32 %v5233, %v5365
    %v5367 = vpop.f32.mrb[0].mxu0
    %v5368 = vadd.f32 %v5235, %v5367
    %5369 = vmatprep.mubr.bf16.mxu0 %v2238
    %5370 = vmatmul.mubr.bf16.gmra.mrb[0].mxu0 %v2237
    %v5371 = vpop.f32.mrb[0].mxu0
    %v5372 = vadd.f32 %v5239, %v5371
    %v5373 = vpop.f32.mrb[0].mxu0
    %v5374 = vadd.f32 %v5241, %v5373
    %v5375 = vpop.f32.mrb[0].mxu0
    %v5376 = vadd.f32 %v5243, %v5375
    %v5377 = vpop.f32.mrb[0].mxu0
    %v5378 = vadd.f32 %v5245, %v5377
    %5379 = vmatprep.mubr.bf16.mxu0 %v2248
    %5380 = vmatmul.mubr.bf16.gmra.mrb[0].mxu0 %v2247
    %v5381 = vpop.f32.mrb[0].mxu0
    %v5382 = vadd.f32 %v5249, %v5381
    %v5383 = vpop.f32.mrb[0].mxu0
    %v5384 = vadd.f32 %v5251, %v5383
    %v5385 = vpop.f32.mrb[0].mxu0
    %v5386 = vadd.f32 %v5253, %v5385
    %v5387 = vpop.f32.mrb[0].mxu0
    %v5388 = vadd.f32 %v5255, %v5387
    %5389 = vmatprep.mubr.bf16.mxu0 %v2258
    %5390 = vmatmul.mubr.bf16.gmra.mrb[0].mxu0 %v2257
    %v5391 = vpop.f32.mrb[0].mxu0
    %v5392 = vadd.f32 %v5259, %v5391
    %v5393 = vpop.f32.mrb[0].mxu0
    %v5394 = vadd.f32 %v5261, %v5393
    %v5395 = vpop.f32.mrb[0].mxu0
    %v5396 = vadd.f32 %v5263, %v5395
    %v5397 = vpop.f32.mrb[0].mxu0
    %v5398 = vadd.f32 %v5265, %v5397
    %5399 = vmatprep.mubr.bf16.mxu0 %v2268
    %5400 = vmatmul.mubr.bf16.gmra.mrb[0].mxu0 %v2267
    %v5401 = vpop.f32.mrb[0].mxu0
    %v5402 = vadd.f32 %v5269, %v5401
    %v5403 = vpop.f32.mrb[0].mxu0
    %v5404 = vadd.f32 %v5271, %v5403
    %v5405 = vpop.f32.mrb[0].mxu0
    %v5406 = vadd.f32 %v5273, %v5405
    %v5407 = vpop.f32.mrb[0].mxu0
    %v5408 = vadd.f32 %v5275, %v5407
    %5409 = vmatprep.mubr.bf16.mxu0 %v2278
    %5410 = vmatmul.mubr.bf16.gmra.mrb[0].mxu0 %v2277
    %v5411 = vpop.f32.mrb[0].mxu0
    %v5412 = vadd.f32 %v5279, %v5411
    %v5413 = vpop.f32.mrb[0].mxu0
    %v5414 = vadd.f32 %v5281, %v5413
    %v5415 = vpop.f32.mrb[0].mxu0
    %v5416 = vadd.f32 %v5283, %v5415
    %v5417 = vpop.f32.mrb[0].mxu0
    %v5418 = vadd.f32 %v5285, %v5417
    %5419 = vmatprep.mubr.bf16.mxu0 %v2288
    %5420 = vmatmul.mubr.bf16.gmra.mrb[0].mxu0 %v2287
    %v5421 = vpop.f32.mrb[0].mxu0
    %v5422 = vadd.f32 %v5289, %v5421
    %v5423 = vpop.f32.mrb[0].mxu0
    %v5424 = vadd.f32 %v5291, %v5423
    %v5425 = vpop.f32.mrb[0].mxu0
    %v5426 = vadd.f32 %v5293, %v5425
    %v5427 = vpop.f32.mrb[0].mxu0
    %v5428 = vadd.f32 %v5295, %v5427
    %5429 = vdwg.mxu0
    %5430 = vmatprep.subr.bf16.mxu0 %v3852
    %5431 = vmatpush1.bf16.msra.mxu0 %v3851
    %5432 = vmatprep.subr.bf16.mxu0 %v3856
    %5433 = vmatpush1.bf16.msra.mxu0 %v3855
    %5434 = vmatprep.subr.bf16.mxu0 %v3860
    %5435 = vmatpush1.bf16.msra.mxu0 %v3859
    %5436 = vmatprep.subr.bf16.mxu0 %v3864
    %5437 = vmatpush1.bf16.msra.mxu0 %v3863
    %5438 = vmatprep.subr.bf16.mxu0 %v3868
    %5439 = vmatpush1.bf16.msra.mxu0 %v3867
    %5440 = vmatprep.subr.bf16.mxu0 %v3872
    %5441 = vmatpush1.bf16.msra.mxu0 %v3871
    %5442 = vmatprep.subr.bf16.mxu0 %v3876
    %5443 = vmatpush1.bf16.msra.mxu0 %v3875
    %5444 = vmatprep.subr.bf16.mxu0 %v3880
    %5445 = vmatpush1.bf16.msra.mxu0 %v3879
    %5446 = vmatprep.subr.bf16.mxu0 %v3884
    %5447 = vmatpush1.bf16.msra.mxu0 %v3883
    %5448 = vmatprep.subr.bf16.mxu0 %v3888
    %5449 = vmatpush1.bf16.msra.mxu0 %v3887
    %5450 = vmatprep.subr.bf16.mxu0 %v3892
    %5451 = vmatpush1.bf16.msra.mxu0 %v3891
    %5452 = vmatprep.subr.bf16.mxu0 %v3896
    %5453 = vmatpush1.bf16.msra.mxu0 %v3895
    %5454 = vmatprep.subr.bf16.mxu0 %v3900
    %5455 = vmatpush1.bf16.msra.mxu0 %v3899
    %5456 = vmatprep.subr.bf16.mxu0 %v3904
    %5457 = vmatpush1.bf16.msra.mxu0 %v3903
    %5458 = vmatprep.subr.bf16.mxu0 %v3908
    %5459 = vmatpush1.bf16.msra.mxu0 %v3907
    %5460 = vmatprep.subr.bf16.mxu0 %v3912
    %5461 = vmatpush1.bf16.msra.mxu0 %v3911
    %5462 = vmatprep.mubr.bf16.mxu0 %v2200
    %5463 = vmatmul.mubr.bf16.gmra.mrb[0].mxu0 %v2199
    %v5464 = vpop.f32.mrb[0].mxu0
    %v5465 = vadd.f32 %v5332, %v5464
    %v5466 = vpop.f32.mrb[0].mxu0
    %v5467 = vadd.f32 %v5334, %v5466
    %v5468 = vpop.f32.mrb[0].mxu0
    %v5469 = vadd.f32 %v5336, %v5468
    %v5470 = vpop.f32.mrb[0].mxu0
    %v5471 = vadd.f32 %v5338, %v5470
    %5472 = vmatprep.mubr.bf16.mxu0 %v2210
    %5473 = vmatmul.mubr.bf16.gmra.mrb[0].mxu0 %v2209
    %v5474 = vpop.f32.mrb[0].mxu0
    %v5475 = vadd.f32 %v5342, %v5474
    %v5476 = vpop.f32.mrb[0].mxu0
    %v5477 = vadd.f32 %v5344, %v5476
    %v5478 = vpop.f32.mrb[0].mxu0
    %v5479 = vadd.f32 %v5346, %v5478
    %v5480 = vpop.f32.mrb[0].mxu0
    %v5481 = vadd.f32 %v5348, %v5480
    %5482 = vmatprep.mubr.bf16.mxu0 %v2220
    %5483 = vmatmul.mubr.bf16.gmra.mrb[0].mxu0 %v2219
    %v5484 = vpop.f32.mrb[0].mxu0
    %v5485 = vadd.f32 %v5352, %v5484
    %v5486 = vpop.f32.mrb[0].mxu0
    %v5487 = vadd.f32 %v5354, %v5486
    %v5488 = vpop.f32.mrb[0].mxu0
    %v5489 = vadd.f32 %v5356, %v5488
    %v5490 = vpop.f32.mrb[0].mxu0
    %v5491 = vadd.f32 %v5358, %v5490
    %5492 = vmatprep.mubr.bf16.mxu0 %v2230
    %5493 = vmatmul.mubr.bf16.gmra.mrb[0].mxu0 %v2229
    %v5494 = vpop.f32.mrb[0].mxu0
    %v5495 = vadd.f32 %v5362, %v5494
    %v5496 = vpop.f32.mrb[0].mxu0
    %v5497 = vadd.f32 %v5364, %v5496
    %v5498 = vpop.f32.mrb[0].mxu0
    %v5499 = vadd.f32 %v5366, %v5498
    %v5500 = vpop.f32.mrb[0].mxu0
    %v5501 = vadd.f32 %v5368, %v5500
    %5502 = vmatprep.mubr.bf16.mxu0 %v2240
    %5503 = vmatmul.mubr.bf16.gmra.mrb[0].mxu0 %v2239
    %v5504 = vpop.f32.mrb[0].mxu0
    %v5505 = vadd.f32 %v5372, %v5504
    %v5506 = vpop.f32.mrb[0].mxu0
    %v5507 = vadd.f32 %v5374, %v5506
    %v5508 = vpop.f32.mrb[0].mxu0
    %v5509 = vadd.f32 %v5376, %v5508
    %v5510 = vpop.f32.mrb[0].mxu0
    %v5511 = vadd.f32 %v5378, %v5510
    %5512 = vmatprep.mubr.bf16.mxu0 %v2250
    %5513 = vmatmul.mubr.bf16.gmra.mrb[0].mxu0 %v2249
    %v5514 = vpop.f32.mrb[0].mxu0
    %v5515 = vadd.f32 %v5382, %v5514
    %v5516 = vpop.f32.mrb[0].mxu0
    %v5517 = vadd.f32 %v5384, %v5516
    %v5518 = vpop.f32.mrb[0].mxu0
    %v5519 = vadd.f32 %v5386, %v5518
    %v5520 = vpop.f32.mrb[0].mxu0
    %v5521 = vadd.f32 %v5388, %v5520
    %5522 = vmatprep.mubr.bf16.mxu0 %v2260
    %5523 = vmatmul.mubr.bf16.gmra.mrb[0].mxu0 %v2259
    %v5524 = vpop.f32.mrb[0].mxu0
    %v5525 = vadd.f32 %v5392, %v5524
    %v5526 = vpop.f32.mrb[0].mxu0
    %v5527 = vadd.f32 %v5394, %v5526
    %v5528 = vpop.f32.mrb[0].mxu0
    %v5529 = vadd.f32 %v5396, %v5528
    %v5530 = vpop.f32.mrb[0].mxu0
    %v5531 = vadd.f32 %v5398, %v5530
    %5532 = vmatprep.mubr.bf16.mxu0 %v2270
    %5533 = vmatmul.mubr.bf16.gmra.mrb[0].mxu0 %v2269
    %v5534 = vpop.f32.mrb[0].mxu0
    %v5535 = vadd.f32 %v5402, %v5534
    %v5536 = vpop.f32.mrb[0].mxu0
    %v5537 = vadd.f32 %v5404, %v5536
    %v5538 = vpop.f32.mrb[0].mxu0
    %v5539 = vadd.f32 %v5406, %v5538
    %v5540 = vpop.f32.mrb[0].mxu0
    %v5541 = vadd.f32 %v5408, %v5540
    %5542 = vmatprep.mubr.bf16.mxu0 %v2280
    %5543 = vmatmul.mubr.bf16.gmra.mrb[0].mxu0 %v2279
    %v5544 = vpop.f32.mrb[0].mxu0
    %v5545 = vadd.f32 %v5412, %v5544
    %v5546 = vpop.f32.mrb[0].mxu0
    %v5547 = vadd.f32 %v5414, %v5546
    %v5548 = vpop.f32.mrb[0].mxu0
    %v5549 = vadd.f32 %v5416, %v5548
    %v5550 = vpop.f32.mrb[0].mxu0
    %v5551 = vadd.f32 %v5418, %v5550
    %5552 = vmatprep.mubr.bf16.mxu0 %v2290
    %5553 = vmatmul.mubr.bf16.gmra.mrb[0].mxu0 %v2289
    %v5554 = vpop.f32.mrb[0].mxu0
    %v5555 = vadd.f32 %v5422, %v5554
    %v5556 = vpop.f32.mrb[0].mxu0
    %v5557 = vadd.f32 %v5424, %v5556
    %v5558 = vpop.f32.mrb[0].mxu0
    %v5559 = vadd.f32 %v5426, %v5558
    %v5560 = vpop.f32.mrb[0].mxu0
    %v5561 = vadd.f32 %v5428, %v5560
    %5562 = vdwg.mxu0
    %v5563 = vmax.f32 %v4800, 0.0
    %v5564 = vmax.f32 %v4802, 0.0
    %v5565 = vmax.f32 %v5465, 0.0
    %v5566 = vmax.f32 %v5467, 0.0
    %v5567 = vmax.f32 %v4804, 0.0
    %v5568 = vmax.f32 %v4806, 0.0
    %v5569 = vmax.f32 %v5469, 0.0
    %v5570 = vmax.f32 %v5471, 0.0
    %v5571 = vmax.f32 %v4810, 0.0
    %v5572 = vmax.f32 %v4812, 0.0
    %v5573 = vmax.f32 %v5475, 0.0
    %v5574 = vmax.f32 %v5477, 0.0
    %v5575 = vmax.f32 %v4814, 0.0
    %v5576 = vmax.f32 %v4816, 0.0
    %v5577 = vmax.f32 %v5479, 0.0
    %v5578 = vmax.f32 %v5481, 0.0
    %v5579 = vmax.f32 %v4820, 0.0
    %v5580 = vmax.f32 %v4822, 0.0
    %v5581 = vmax.f32 %v5485, 0.0
    %v5582 = vmax.f32 %v5487, 0.0
    %v5583 = vmax.f32 %v4824, 0.0
    %v5584 = vmax.f32 %v4826, 0.0
    %v5585 = vmax.f32 %v5489, 0.0
    %v5586 = vmax.f32 %v5491, 0.0
    %v5587 = vmax.f32 %v4830, 0.0
    %v5588 = vmax.f32 %v4832, 0.0
    %v5589 = vmax.f32 %v5495, 0.0
    %v5590 = vmax.f32 %v5497, 0.0
    %v5591 = vmax.f32 %v4834, 0.0
    %v5592 = vmax.f32 %v4836, 0.0
    %v5593 = vmax.f32 %v5499, 0.0
    %v5594 = vmax.f32 %v5501, 0.0
    %v5595 = vmax.f32 %v4840, 0.0
    %v5596 = vmax.f32 %v4842, 0.0
    %v5597 = vmax.f32 %v5505, 0.0
    %v5598 = vmax.f32 %v5507, 0.0
    %v5599 = vmax.f32 %v4844, 0.0
    %v5600 = vmax.f32 %v4846, 0.0
    %v5601 = vmax.f32 %v5509, 0.0
    %v5602 = vmax.f32 %v5511, 0.0
    %v5603 = vmax.f32 %v4850, 0.0
    %v5604 = vmax.f32 %v4852, 0.0
    %v5605 = vmax.f32 %v5515, 0.0
    %v5606 = vmax.f32 %v5517, 0.0
    %v5607 = vmax.f32 %v4854, 0.0
    %v5608 = vmax.f32 %v4856, 0.0
    %v5609 = vmax.f32 %v5519, 0.0
    %v5610 = vmax.f32 %v5521, 0.0
    %v5611 = vmax.f32 %v4860, 0.0
    %v5612 = vmax.f32 %v4862, 0.0
    %v5613 = vmax.f32 %v5525, 0.0
    %v5614 = vmax.f32 %v5527, 0.0
    %v5615 = vmax.f32 %v4864, 0.0
    %v5616 = vmax.f32 %v4866, 0.0
    %v5617 = vmax.f32 %v5529, 0.0
    %v5618 = vmax.f32 %v5531, 0.0
    %v5619 = vmax.f32 %v4870, 0.0
    %v5620 = vmax.f32 %v4872, 0.0
    %v5621 = vmax.f32 %v5535, 0.0
    %v5622 = vmax.f32 %v5537, 0.0
    %v5623 = vmax.f32 %v4874, 0.0
    %v5624 = vmax.f32 %v4876, 0.0
    %v5625 = vmax.f32 %v5539, 0.0
    %v5626 = vmax.f32 %v5541, 0.0
    %v5627 = vmax.f32 %v4880, 0.0
    %v5628 = vmax.f32 %v4882, 0.0
    %v5629 = vmax.f32 %v5545, 0.0
    %v5630 = vmax.f32 %v5547, 0.0
    %v5631 = vmax.f32 %v4884, 0.0
    %v5632 = vmax.f32 %v4886, 0.0
    %v5633 = vmax.f32 %v5549, 0.0
    %v5634 = vmax.f32 %v5551, 0.0
    %v5635 = vmax.f32 %v4890, 0.0
    %v5636 = vmax.f32 %v4892, 0.0
    %v5637 = vmax.f32 %v5555, 0.0
    %v5638 = vmax.f32 %v5557, 0.0
    %v5639 = vmax.f32 %v4894, 0.0
    %v5640 = vmax.f32 %v4896, 0.0
    %v5641 = vmax.f32 %v5559, 0.0
    %v5642 = vmax.f32 %v5561, 0.0
    %v5643 = vpack.c.bf16 %v5567, %v5563
    %v5644 = vpack.c.bf16 %v5568, %v5564
    %v5645 = vpack.c.bf16 %v5569, %v5565
    %v5646 = vpack.c.bf16 %v5570, %v5566
    %v5647 = vpack.c.bf16 %v5575, %v5571
    %v5648 = vpack.c.bf16 %v5576, %v5572
    %v5649 = vpack.c.bf16 %v5577, %v5573
    %v5650 = vpack.c.bf16 %v5578, %v5574
    %v5651 = vpack.c.bf16 %v5583, %v5579
    %v5652 = vpack.c.bf16 %v5584, %v5580
    %v5653 = vpack.c.bf16 %v5585, %v5581
    %v5654 = vpack.c.bf16 %v5586, %v5582
    %v5655 = vpack.c.bf16 %v5591, %v5587
    %v5656 = vpack.c.bf16 %v5592, %v5588
    %v5657 = vpack.c.bf16 %v5593, %v5589
    %v5658 = vpack.c.bf16 %v5594, %v5590
    %v5659 = vpack.c.bf16 %v5599, %v5595
    %v5660 = vpack.c.bf16 %v5600, %v5596
    %v5661 = vpack.c.bf16 %v5601, %v5597
    %v5662 = vpack.c.bf16 %v5602, %v5598
    %v5663 = vpack.c.bf16 %v5607, %v5603
    %v5664 = vpack.c.bf16 %v5608, %v5604
    %v5665 = vpack.c.bf16 %v5609, %v5605
    %v5666 = vpack.c.bf16 %v5610, %v5606
    %v5667 = vpack.c.bf16 %v5615, %v5611
    %v5668 = vpack.c.bf16 %v5616, %v5612
    %v5669 = vpack.c.bf16 %v5617, %v5613
    %v5670 = vpack.c.bf16 %v5618, %v5614
    %v5671 = vpack.c.bf16 %v5623, %v5619
    %v5672 = vpack.c.bf16 %v5624, %v5620
    %v5673 = vpack.c.bf16 %v5625, %v5621
    %v5674 = vpack.c.bf16 %v5626, %v5622
    %v5675 = vpack.c.bf16 %v5631, %v5627
    %v5676 = vpack.c.bf16 %v5632, %v5628
    %v5677 = vpack.c.bf16 %v5633, %v5629
    %v5678 = vpack.c.bf16 %v5634, %v5630
    %v5679 = vpack.c.bf16 %v5639, %v5635
    %v5680 = vpack.c.bf16 %v5640, %v5636
    %v5681 = vpack.c.bf16 %v5641, %v5637
    %v5682 = vpack.c.bf16 %v5642, %v5638
    %5683 = vst [vmem:[#allocation4] sm:$0xff] %v5643
    %5684 = vst [vmem:[#allocation4 + $0x8] sm:$0xff] %v5644
    %5685 = vst [vmem:[#allocation4 + $0x10] sm:$0xff] %v5645
    %5686 = vst [vmem:[#allocation4 + $0x18] sm:$0xff] %v5646
    %5687 = vst [vmem:[#allocation4 + $0x20] sm:$0xff] %v5647
    %5688 = vst [vmem:[#allocation4 + $0x28] sm:$0xff] %v5648
    %5689 = vst [vmem:[#allocation4 + $0x30] sm:$0xff] %v5649
    %5690 = vst [vmem:[#allocation4 + $0x38] sm:$0xff] %v5650
    %5691 = vst [vmem:[#allocation4 + $0x40] sm:$0xff] %v5651
    %5692 = vst [vmem:[#allocation4 + $0x48] sm:$0xff] %v5652
    %5693 = vst [vmem:[#allocation4 + $0x50] sm:$0xff] %v5653
    %5694 = vst [vmem:[#allocation4 + $0x58] sm:$0xff] %v5654
    %5695 = vst [vmem:[#allocation4 + $0x60] sm:$0xff] %v5655
    %5696 = vst [vmem:[#allocation4 + $0x68] sm:$0xff] %v5656
    %5697 = vst [vmem:[#allocation4 + $0x70] sm:$0xff] %v5657
    %5698 = vst [vmem:[#allocation4 + $0x78] sm:$0xff] %v5658
    %5699 = vst [vmem:[#allocation4 + $0x80] sm:$0xff] %v5659
    %5700 = vst [vmem:[#allocation4 + $0x88] sm:$0xff] %v5660
    %5701 = vst [vmem:[#allocation4 + $0x90] sm:$0xff] %v5661
    %5702 = vst [vmem:[#allocation4 + $0x98] sm:$0xff] %v5662
    %5703 = vst [vmem:[#allocation4 + $0xa0] sm:$0xff] %v5663
    %5704 = vst [vmem:[#allocation4 + $0xa8] sm:$0xff] %v5664
    %5705 = vst [vmem:[#allocation4 + $0xb0] sm:$0xff] %v5665
    %5706 = vst [vmem:[#allocation4 + $0xb8] sm:$0xff] %v5666
    %5707 = vst [vmem:[#allocation4 + $0xc0] sm:$0xff] %v5667
    %5708 = vst [vmem:[#allocation4 + $0xc8] sm:$0xff] %v5668
    %5709 = vst [vmem:[#allocation4 + $0xd0] sm:$0xff] %v5669
    %5710 = vst [vmem:[#allocation4 + $0xd8] sm:$0xff] %v5670
    %5711 = vst [vmem:[#allocation4 + $0xe0] sm:$0xff] %v5671
    %5712 = vst [vmem:[#allocation4 + $0xe8] sm:$0xff] %v5672
    %5713 = vst [vmem:[#allocation4 + $0xf0] sm:$0xff] %v5673
    %5714 = vst [vmem:[#allocation4 + $0xf8] sm:$0xff] %v5674
    %5715 = vst [vmem:[#allocation4 + $0x100] sm:$0xff] %v5675
    %5716 = vst [vmem:[#allocation4 + $0x108] sm:$0xff] %v5676
    %5717 = vst [vmem:[#allocation4 + $0x110] sm:$0xff] %v5677
    %5718 = vst [vmem:[#allocation4 + $0x118] sm:$0xff] %v5678
    %5719 = vst [vmem:[#allocation4 + $0x120] sm:$0xff] %v5679
    %5720 = vst [vmem:[#allocation4 + $0x128] sm:$0xff] %v5680
    %5721 = vst [vmem:[#allocation4 + $0x130] sm:$0xff] %v5681
    %5722 = vst [vmem:[#allocation4 + $0x138] sm:$0xff] %v5682
    %v5723 = vld [vmem:[#allocation4] sm:$0xff]
    %v5724 = vld [vmem:[#allocation4 + $0x8] sm:$0xff]
    %v5725 = vld [vmem:[#allocation4 + $0x10] sm:$0xff]
    %v5726 = vld [vmem:[#allocation4 + $0x18] sm:$0xff]
    %v5727 = vld [vmem:[#allocation4 + $0x20] sm:$0xff]
    %v5728 = vld [vmem:[#allocation4 + $0x28] sm:$0xff]
    %v5729 = vld [vmem:[#allocation4 + $0x30] sm:$0xff]
    %v5730 = vld [vmem:[#allocation4 + $0x38] sm:$0xff]
    %v5731 = vmax.bf16 %v5723, %v5727
    %v5732 = vmax.bf16 %v5724, %v5728
    %v5733 = vmax.bf16 %v5725, %v5729
    %v5734 = vmax.bf16 %v5726, %v5730
    %v5735 = vmax.bf16 %v5731, %v5733
    %v5736 = vmax.bf16 %v5732, %v5734
    %5737 = vst [vmem:[#allocation5] sm:$0xff] %v5735
    %5738 = vst [vmem:[#allocation5 + $0x8] sm:$0xff] %v5736
    %v5739 = vld [vmem:[#allocation4 + $0x40] sm:$0xff]
    %v5740 = vld [vmem:[#allocation4 + $0x48] sm:$0xff]
    %v5741 = vld [vmem:[#allocation4 + $0x50] sm:$0xff]
    %v5742 = vld [vmem:[#allocation4 + $0x58] sm:$0xff]
    %v5743 = vld [vmem:[#allocation4 + $0x60] sm:$0xff]
    %v5744 = vld [vmem:[#allocation4 + $0x68] sm:$0xff]
    %v5745 = vld [vmem:[#allocation4 + $0x70] sm:$0xff]
    %v5746 = vld [vmem:[#allocation4 + $0x78] sm:$0xff]
    %v5747 = vmax.bf16 %v5739, %v5743
    %v5748 = vmax.bf16 %v5740, %v5744
    %v5749 = vmax.bf16 %v5741, %v5745
    %v5750 = vmax.bf16 %v5742, %v5746
    %v5751 = vmax.bf16 %v5747, %v5749
    %v5752 = vmax.bf16 %v5748, %v5750
    %5753 = vst [vmem:[#allocation5 + $0x10] sm:$0xff] %v5751
    %5754 = vst [vmem:[#allocation5 + $0x18] sm:$0xff] %v5752
    %v5755 = vld [vmem:[#allocation4 + $0x80] sm:$0xff]
    %v5756 = vld [vmem:[#allocation4 + $0x88] sm:$0xff]
    %v5757 = vld [vmem:[#allocation4 + $0x90] sm:$0xff]
    %v5758 = vld [vmem:[#allocation4 + $0x98] sm:$0xff]
    %v5759 = vld [vmem:[#allocation4 + $0xa0] sm:$0xff]
    %v5760 = vld [vmem:[#allocation4 + $0xa8] sm:$0xff]
    %v5761 = vld [vmem:[#allocation4 + $0xb0] sm:$0xff]
    %v5762 = vld [vmem:[#allocation4 + $0xb8] sm:$0xff]
    %v5763 = vmax.bf16 %v5755, %v5759
    %v5764 = vmax.bf16 %v5756, %v5760
    %v5765 = vmax.bf16 %v5757, %v5761
    %v5766 = vmax.bf16 %v5758, %v5762
    %v5767 = vmax.bf16 %v5763, %v5765
    %v5768 = vmax.bf16 %v5764, %v5766
    %5769 = vst [vmem:[#allocation5 + $0x20] sm:$0xff] %v5767
    %5770 = vst [vmem:[#allocation5 + $0x28] sm:$0xff] %v5768
    %v5771 = vld [vmem:[#allocation4 + $0xc0] sm:$0xff]
    %v5772 = vld [vmem:[#allocation4 + $0xc8] sm:$0xff]
    %v5773 = vld [vmem:[#allocation4 + $0xd0] sm:$0xff]
    %v5774 = vld [vmem:[#allocation4 + $0xd8] sm:$0xff]
    %v5775 = vld [vmem:[#allocation4 + $0xe0] sm:$0xff]
    %v5776 = vld [vmem:[#allocation4 + $0xe8] sm:$0xff]
    %v5777 = vld [vmem:[#allocation4 + $0xf0] sm:$0xff]
    %v5778 = vld [vmem:[#allocation4 + $0xf8] sm:$0xff]
    %v5779 = vmax.bf16 %v5771, %v5775
    %v5780 = vmax.bf16 %v5772, %v5776
    %v5781 = vmax.bf16 %v5773, %v5777
    %v5782 = vmax.bf16 %v5774, %v5778
    %v5783 = vmax.bf16 %v5779, %v5781
    %v5784 = vmax.bf16 %v5780, %v5782
    %5785 = vst [vmem:[#allocation5 + $0x30] sm:$0xff] %v5783
    %5786 = vst [vmem:[#allocation5 + $0x38] sm:$0xff] %v5784
    %v5787 = vld [vmem:[#allocation4 + $0x100] sm:$0xff]
    %v5788 = vld [vmem:[#allocation4 + $0x108] sm:$0xff]
    %v5789 = vld [vmem:[#allocation4 + $0x110] sm:$0xff]
    %v5790 = vld [vmem:[#allocation4 + $0x118] sm:$0xff]
    %v5791 = vld [vmem:[#allocation4 + $0x120] sm:$0xff]
    %v5792 = vld [vmem:[#allocation4 + $0x128] sm:$0xff]
    %v5793 = vld [vmem:[#allocation4 + $0x130] sm:$0xff]
    %v5794 = vld [vmem:[#allocation4 + $0x138] sm:$0xff]
    %v5795 = vmax.bf16 %v5787, %v5791
    %v5796 = vmax.bf16 %v5788, %v5792
    %v5797 = vmax.bf16 %v5789, %v5793
    %v5798 = vmax.bf16 %v5790, %v5794
    %v5799 = vmax.bf16 %v5795, %v5797
    %v5800 = vmax.bf16 %v5796, %v5798
    %5801 = vst [vmem:[#allocation5 + $0x40] sm:$0xff] %v5799
    %5802 = vst [vmem:[#allocation5 + $0x48] sm:$0xff] %v5800
    %v5803 = vld [vmem:[#allocation5] sm:$0xff]
    %v5804 = vld [vmem:[#allocation5 + $0x8] sm:$0xff]
    %v5805 = vld [vmem:[#allocation5 + $0x10] sm:$0xff]
    %v5806 = vld [vmem:[#allocation5 + $0x18] sm:$0xff]
    %v5807 = vld [vmem:[#allocation5 + $0x20] sm:$0xff]
    %v5808 = vld [vmem:[#allocation5 + $0x28] sm:$0xff]
    %v5809 = vld [vmem:[#allocation5 + $0x30] sm:$0xff]
    %v5810 = vld [vmem:[#allocation5 + $0x38] sm:$0xff]
    %v5811 = vld [vmem:[#allocation5 + $0x40] sm:$0xff]
    %v5812 = vld [vmem:[#allocation5 + $0x48] sm:$0xff]
    %v5813 = vld [vmem:[#allocation14] sm:$0xf]
    %v5814 = vld [vmem:[#allocation14 + $0x4] sm:$0xf]
    %v5815 = vld [vmem:[#allocation14 + $0x8] sm:$0xf]
    %v5816 = vld [vmem:[#allocation14 + $0xc] sm:$0xf]
    %v5817 = vld [vmem:[#allocation14 + $0x10] sm:$0xf]
    %v5818 = vld [vmem:[#allocation14 + $0x14] sm:$0xf]
    %v5819 = vld [vmem:[#allocation14 + $0x18] sm:$0xf]
    %v5820 = vld [vmem:[#allocation14 + $0x1c] sm:$0xf]
    %v5821 = vld [vmem:[#allocation14 + $0x20] sm:$0xf]
    %v5822 = vld [vmem:[#allocation14 + $0x24] sm:$0xf]
    %v5823 = vld [vmem:[#allocation14 + $0x28] sm:$0xf]
    %v5824 = vld [vmem:[#allocation14 + $0x2c] sm:$0xf]
    %v5825 = vld [vmem:[#allocation14 + $0x30] sm:$0xf]
    %v5826 = vld [vmem:[#allocation14 + $0x34] sm:$0xf]
    %v5827 = vld [vmem:[#allocation14 + $0x38] sm:$0xf]
    %v5828 = vld [vmem:[#allocation14 + $0x3c] sm:$0xf]
    %v5829 = vld [vmem:[#allocation14 + $0x40] sm:$0xf]
    %v5830 = vld [vmem:[#allocation14 + $0x44] sm:$0xf]
    %v5831 = vld [vmem:[#allocation14 + $0x48] sm:$0xf]
    %v5832 = vld [vmem:[#allocation14 + $0x4c] sm:$0xf]
    %v5833 = vld [vmem:[#allocation14 + $0x50] sm:$0xf]
    %v5834 = vld [vmem:[#allocation14 + $0x54] sm:$0xf]
    %v5835 = vld [vmem:[#allocation14 + $0x58] sm:$0xf]
    %v5836 = vld [vmem:[#allocation14 + $0x5c] sm:$0xf]
    %v5837 = vld [vmem:[#allocation14 + $0x60] sm:$0xf]
    %v5838 = vld [vmem:[#allocation14 + $0x64] sm:$0xf]
    %v5839 = vld [vmem:[#allocation14 + $0x68] sm:$0xf]
    %v5840 = vld [vmem:[#allocation14 + $0x6c] sm:$0xf]
    %v5841 = vld [vmem:[#allocation14 + $0x70] sm:$0xf]
    %v5842 = vld [vmem:[#allocation14 + $0x74] sm:$0xf]
    %v5843 = vld [vmem:[#allocation14 + $0x78] sm:$0xf]
    %v5844 = vld [vmem:[#allocation14 + $0x7c] sm:$0xf]
    %v5845 = vld [vmem:[#allocation14 + $0x80] sm:$0xf]
    %v5846 = vld [vmem:[#allocation14 + $0x84] sm:$0xf]
    %v5847 = vld [vmem:[#allocation14 + $0x88] sm:$0xf]
    %v5848 = vld [vmem:[#allocation14 + $0x8c] sm:$0xf]
    %v5849 = vld [vmem:[#allocation14 + $0x90] sm:$0xf]
    %v5850 = vld [vmem:[#allocation14 + $0x94] sm:$0xf]
    %v5851 = vld [vmem:[#allocation14 + $0x98] sm:$0xf]
    %v5852 = vld [vmem:[#allocation14 + $0x9c] sm:$0xf]
    %v5853 = vld [vmem:[#allocation14 + $0xa0] sm:$0xf]
    %v5854 = vld [vmem:[#allocation14 + $0xa4] sm:$0xf]
    %v5855 = vld [vmem:[#allocation14 + $0xa8] sm:$0xf]
    %v5856 = vld [vmem:[#allocation14 + $0xac] sm:$0xf]
    %v5857 = vld [vmem:[#allocation14 + $0xb0] sm:$0xf]
    %v5858 = vld [vmem:[#allocation14 + $0xb4] sm:$0xf]
    %v5859 = vld [vmem:[#allocation14 + $0xb8] sm:$0xf]
    %v5860 = vld [vmem:[#allocation14 + $0xbc] sm:$0xf]
    %v5861 = vld [vmem:[#allocation14 + $0xc0] sm:$0xf]
    %v5862 = vld [vmem:[#allocation14 + $0xc4] sm:$0xf]
    %v5863 = vld [vmem:[#allocation14 + $0xc8] sm:$0xf]
    %v5864 = vld [vmem:[#allocation14 + $0xcc] sm:$0xf]
    %v5865 = vld [vmem:[#allocation14 + $0xd0] sm:$0xf]
    %v5866 = vld [vmem:[#allocation14 + $0xd4] sm:$0xf]
    %v5867 = vld [vmem:[#allocation14 + $0xd8] sm:$0xf]
    %v5868 = vld [vmem:[#allocation14 + $0xdc] sm:$0xf]
    %v5869 = vld [vmem:[#allocation14 + $0xe0] sm:$0xf]
    %v5870 = vld [vmem:[#allocation14 + $0xe4] sm:$0xf]
    %v5871 = vld [vmem:[#allocation14 + $0xe8] sm:$0xf]
    %v5872 = vld [vmem:[#allocation14 + $0xec] sm:$0xf]
    %v5873 = vld [vmem:[#allocation14 + $0xf0] sm:$0xf]
    %v5874 = vld [vmem:[#allocation14 + $0xf4] sm:$0xf]
    %v5875 = vld [vmem:[#allocation14 + $0xf8] sm:$0xf]
    %v5876 = vld [vmem:[#allocation14 + $0xfc] sm:$0xf]
    %v5877 = vld [vmem:[#allocation14 + $0x100] sm:$0xf]
    %v5878 = vld [vmem:[#allocation14 + $0x104] sm:$0xf]
    %v5879 = vld [vmem:[#allocation14 + $0x108] sm:$0xf]
    %v5880 = vld [vmem:[#allocation14 + $0x10c] sm:$0xf]
    %v5881 = vld [vmem:[#allocation14 + $0x110] sm:$0xf]
    %v5882 = vld [vmem:[#allocation14 + $0x114] sm:$0xf]
    %v5883 = vld [vmem:[#allocation14 + $0x118] sm:$0xf]
    %v5884 = vld [vmem:[#allocation14 + $0x11c] sm:$0xf]
    %v5885 = vld [vmem:[#allocation14 + $0x120] sm:$0xf]
    %v5886 = vld [vmem:[#allocation14 + $0x124] sm:$0xf]
    %v5887 = vld [vmem:[#allocation14 + $0x128] sm:$0xf]
    %v5888 = vld [vmem:[#allocation14 + $0x12c] sm:$0xf]
    %v5889 = vld [vmem:[#allocation14 + $0x130] sm:$0xf]
    %v5890 = vld [vmem:[#allocation14 + $0x134] sm:$0xf]
    %v5891 = vld [vmem:[#allocation14 + $0x138] sm:$0xf]
    %v5892 = vld [vmem:[#allocation14 + $0x13c] sm:$0xf]
    %v5893 = vld [vmem:[#allocation14 + $0x140] sm:$0xf]
    %v5894 = vld [vmem:[#allocation14 + $0x144] sm:$0xf]
    %v5895 = vld [vmem:[#allocation14 + $0x148] sm:$0xf]
    %v5896 = vld [vmem:[#allocation14 + $0x14c] sm:$0xf]
    %v5897 = vld [vmem:[#allocation14 + $0x150] sm:$0xf]
    %v5898 = vld [vmem:[#allocation14 + $0x154] sm:$0xf]
    %v5899 = vld [vmem:[#allocation14 + $0x158] sm:$0xf]
    %v5900 = vld [vmem:[#allocation14 + $0x15c] sm:$0xf]
    %v5901 = vld [vmem:[#allocation14 + $0x160] sm:$0xf]
    %v5902 = vld [vmem:[#allocation14 + $0x164] sm:$0xf]
    %v5903 = vld [vmem:[#allocation14 + $0x168] sm:$0xf]
    %v5904 = vld [vmem:[#allocation14 + $0x16c] sm:$0xf]
    %v5905 = vld [vmem:[#allocation14 + $0x170] sm:$0xf]
    %v5906 = vld [vmem:[#allocation14 + $0x174] sm:$0xf]
    %v5907 = vld [vmem:[#allocation14 + $0x178] sm:$0xf]
    %v5908 = vld [vmem:[#allocation14 + $0x17c] sm:$0xf]
    %v5909 = vld [vmem:[#allocation14 + $0x180] sm:$0xf]
    %v5910 = vld [vmem:[#allocation14 + $0x184] sm:$0xf]
    %v5911 = vld [vmem:[#allocation14 + $0x188] sm:$0xf]
    %v5912 = vld [vmem:[#allocation14 + $0x18c] sm:$0xf]
    %v5913 = vld [vmem:[#allocation14 + $0x190] sm:$0xf]
    %v5914 = vld [vmem:[#allocation14 + $0x194] sm:$0xf]
    %v5915 = vld [vmem:[#allocation14 + $0x198] sm:$0xf]
    %v5916 = vld [vmem:[#allocation14 + $0x19c] sm:$0xf]
    %v5917 = vld [vmem:[#allocation14 + $0x1a0] sm:$0xf]
    %v5918 = vld [vmem:[#allocation14 + $0x1a4] sm:$0xf]
    %v5919 = vld [vmem:[#allocation14 + $0x1a8] sm:$0xf]
    %v5920 = vld [vmem:[#allocation14 + $0x1ac] sm:$0xf]
    %v5921 = vld [vmem:[#allocation14 + $0x1b0] sm:$0xf]
    %v5922 = vld [vmem:[#allocation14 + $0x1b4] sm:$0xf]
    %v5923 = vld [vmem:[#allocation14 + $0x1b8] sm:$0xf]
    %v5924 = vld [vmem:[#allocation14 + $0x1bc] sm:$0xf]
    %v5925 = vld [vmem:[#allocation14 + $0x1c0] sm:$0xf]
    %v5926 = vld [vmem:[#allocation14 + $0x1c4] sm:$0xf]
    %v5927 = vld [vmem:[#allocation14 + $0x1c8] sm:$0xf]
    %v5928 = vld [vmem:[#allocation14 + $0x1cc] sm:$0xf]
    %v5929 = vld [vmem:[#allocation14 + $0x1d0] sm:$0xf]
    %v5930 = vld [vmem:[#allocation14 + $0x1d4] sm:$0xf]
    %v5931 = vld [vmem:[#allocation14 + $0x1d8] sm:$0xf]
    %v5932 = vld [vmem:[#allocation14 + $0x1dc] sm:$0xf]
    %v5933 = vld [vmem:[#allocation14 + $0x1e0] sm:$0xf]
    %v5934 = vld [vmem:[#allocation14 + $0x1e4] sm:$0xf]
    %v5935 = vld [vmem:[#allocation14 + $0x1e8] sm:$0xf]
    %v5936 = vld [vmem:[#allocation14 + $0x1ec] sm:$0xf]
    %v5937 = vld [vmem:[#allocation14 + $0x1f0] sm:$0xf]
    %v5938 = vld [vmem:[#allocation14 + $0x1f4] sm:$0xf]
    %v5939 = vld [vmem:[#allocation14 + $0x1f8] sm:$0xf]
    %v5940 = vld [vmem:[#allocation14 + $0x1fc] sm:$0xf]
    %v5941 = vld [vmem:[#allocation14 + $0x200] sm:$0xf]
    %v5942 = vld [vmem:[#allocation14 + $0x204] sm:$0xf]
    %v5943 = vld [vmem:[#allocation14 + $0x208] sm:$0xf]
    %v5944 = vld [vmem:[#allocation14 + $0x20c] sm:$0xf]
    %v5945 = vld [vmem:[#allocation14 + $0x210] sm:$0xf]
    %v5946 = vld [vmem:[#allocation14 + $0x214] sm:$0xf]
    %v5947 = vld [vmem:[#allocation14 + $0x218] sm:$0xf]
    %v5948 = vld [vmem:[#allocation14 + $0x21c] sm:$0xf]
    %v5949 = vld [vmem:[#allocation14 + $0x220] sm:$0xf]
    %v5950 = vld [vmem:[#allocation14 + $0x224] sm:$0xf]
    %v5951 = vld [vmem:[#allocation14 + $0x228] sm:$0xf]
    %v5952 = vld [vmem:[#allocation14 + $0x22c] sm:$0xf]
    %v5953 = vld [vmem:[#allocation14 + $0x230] sm:$0xf]
    %v5954 = vld [vmem:[#allocation14 + $0x234] sm:$0xf]
    %v5955 = vld [vmem:[#allocation14 + $0x238] sm:$0xf]
    %v5956 = vld [vmem:[#allocation14 + $0x23c] sm:$0xf]
    %v5957 = vld [vmem:[#allocation14 + $0x240] sm:$0xf]
    %v5958 = vld [vmem:[#allocation14 + $0x244] sm:$0xf]
    %v5959 = vld [vmem:[#allocation14 + $0x248] sm:$0xf]
    %v5960 = vld [vmem:[#allocation14 + $0x24c] sm:$0xf]
    %v5961 = vld [vmem:[#allocation14 + $0x250] sm:$0xf]
    %v5962 = vld [vmem:[#allocation14 + $0x254] sm:$0xf]
    %v5963 = vld [vmem:[#allocation14 + $0x258] sm:$0xf]
    %v5964 = vld [vmem:[#allocation14 + $0x25c] sm:$0xf]
    %v5965 = vld [vmem:[#allocation14 + $0x260] sm:$0xf]
    %v5966 = vld [vmem:[#allocation14 + $0x264] sm:$0xf]
    %v5967 = vld [vmem:[#allocation14 + $0x268] sm:$0xf]
    %v5968 = vld [vmem:[#allocation14 + $0x26c] sm:$0xf]
    %v5969 = vld [vmem:[#allocation14 + $0x270] sm:$0xf]
    %v5970 = vld [vmem:[#allocation14 + $0x274] sm:$0xf]
    %v5971 = vld [vmem:[#allocation14 + $0x278] sm:$0xf]
    %v5972 = vld [vmem:[#allocation14 + $0x27c] sm:$0xf]
    %v5973 = vld [vmem:[#allocation15] sm:$0x1]
    %v5975 = vlaneseq
    %v5976 = vshrl.u32 %v5975, 7
    %v5977 = vsub.s32 0, %v5976
    %v5978 = vrot.slane %v5973, %v5977
    %v6140 = vunpack.c.l.b16 %v5813
    %v6141 = vunpack.c.l.b16 %v5814
    %v6142 = vunpack.c.l.b16 %v5815
    %v6143 = vunpack.c.l.b16 %v5816
    %v6144 = vunpack.c.l.b16 %v5817
    %v6145 = vunpack.c.l.b16 %v5818
    %v6146 = vunpack.c.l.b16 %v5819
    %v6147 = vunpack.c.l.b16 %v5820
    %v6148 = vunpack.c.l.b16 %v5821
    %v6149 = vunpack.c.l.b16 %v5822
    %v6150 = vunpack.c.l.b16 %v5823
    %v6151 = vunpack.c.l.b16 %v5824
    %v6152 = vunpack.c.l.b16 %v5825
    %v6153 = vunpack.c.l.b16 %v5826
    %v6154 = vunpack.c.l.b16 %v5827
    %v6155 = vunpack.c.l.b16 %v5828
    %v6156 = vunpack.c.l.b16 %v5829
    %v6157 = vunpack.c.l.b16 %v5830
    %v6158 = vunpack.c.l.b16 %v5831
    %v6159 = vunpack.c.l.b16 %v5832
    %v6160 = vunpack.c.l.b16 %v5833
    %v6161 = vunpack.c.l.b16 %v5834
    %v6162 = vunpack.c.l.b16 %v5835
    %v6163 = vunpack.c.l.b16 %v5836
    %v6164 = vunpack.c.l.b16 %v5837
    %v6165 = vunpack.c.l.b16 %v5838
    %v6166 = vunpack.c.l.b16 %v5839
    %v6167 = vunpack.c.l.b16 %v5840
    %v6168 = vunpack.c.l.b16 %v5841
    %v6169 = vunpack.c.l.b16 %v5842
    %v6170 = vunpack.c.l.b16 %v5843
    %v6171 = vunpack.c.l.b16 %v5844
    %v6172 = vunpack.c.l.b16 %v5845
    %v6173 = vunpack.c.l.b16 %v5846
    %v6174 = vunpack.c.l.b16 %v5847
    %v6175 = vunpack.c.l.b16 %v5848
    %v6176 = vunpack.c.l.b16 %v5849
    %v6177 = vunpack.c.l.b16 %v5850
    %v6178 = vunpack.c.l.b16 %v5851
    %v6179 = vunpack.c.l.b16 %v5852
    %v6180 = vunpack.c.l.b16 %v5853
    %v6181 = vunpack.c.l.b16 %v5854
    %v6182 = vunpack.c.l.b16 %v5855
    %v6183 = vunpack.c.l.b16 %v5856
    %v6184 = vunpack.c.l.b16 %v5857
    %v6185 = vunpack.c.l.b16 %v5858
    %v6186 = vunpack.c.l.b16 %v5859
    %v6187 = vunpack.c.l.b16 %v5860
    %v6188 = vunpack.c.l.b16 %v5861
    %v6189 = vunpack.c.l.b16 %v5862
    %v6190 = vunpack.c.l.b16 %v5863
    %v6191 = vunpack.c.l.b16 %v5864
    %v6192 = vunpack.c.l.b16 %v5865
    %v6193 = vunpack.c.l.b16 %v5866
    %v6194 = vunpack.c.l.b16 %v5867
    %v6195 = vunpack.c.l.b16 %v5868
    %v6196 = vunpack.c.l.b16 %v5869
    %v6197 = vunpack.c.l.b16 %v5870
    %v6198 = vunpack.c.l.b16 %v5871
    %v6199 = vunpack.c.l.b16 %v5872
    %v6200 = vunpack.c.l.b16 %v5873
    %v6201 = vunpack.c.l.b16 %v5874
    %v6202 = vunpack.c.l.b16 %v5875
    %v6203 = vunpack.c.l.b16 %v5876
    %v6204 = vunpack.c.l.b16 %v5877
    %v6205 = vunpack.c.l.b16 %v5878
    %v6206 = vunpack.c.l.b16 %v5879
    %v6207 = vunpack.c.l.b16 %v5880
    %v6208 = vunpack.c.l.b16 %v5881
    %v6209 = vunpack.c.l.b16 %v5882
    %v6210 = vunpack.c.l.b16 %v5883
    %v6211 = vunpack.c.l.b16 %v5884
    %v6212 = vunpack.c.l.b16 %v5885
    %v6213 = vunpack.c.l.b16 %v5886
    %v6214 = vunpack.c.l.b16 %v5887
    %v6215 = vunpack.c.l.b16 %v5888
    %v6216 = vunpack.c.l.b16 %v5889
    %v6217 = vunpack.c.l.b16 %v5890
    %v6218 = vunpack.c.l.b16 %v5891
    %v6219 = vunpack.c.l.b16 %v5892
    %v6220 = vunpack.c.l.b16 %v5893
    %v6221 = vunpack.c.l.b16 %v5894
    %v6222 = vunpack.c.l.b16 %v5895
    %v6223 = vunpack.c.l.b16 %v5896
    %v6224 = vunpack.c.l.b16 %v5897
    %v6225 = vunpack.c.l.b16 %v5898
    %v6226 = vunpack.c.l.b16 %v5899
    %v6227 = vunpack.c.l.b16 %v5900
    %v6228 = vunpack.c.l.b16 %v5901
    %v6229 = vunpack.c.l.b16 %v5902
    %v6230 = vunpack.c.l.b16 %v5903
    %v6231 = vunpack.c.l.b16 %v5904
    %v6232 = vunpack.c.l.b16 %v5905
    %v6233 = vunpack.c.l.b16 %v5906
    %v6234 = vunpack.c.l.b16 %v5907
    %v6235 = vunpack.c.l.b16 %v5908
    %v6236 = vunpack.c.l.b16 %v5909
    %v6237 = vunpack.c.l.b16 %v5910
    %v6238 = vunpack.c.l.b16 %v5911
    %v6239 = vunpack.c.l.b16 %v5912
    %v6240 = vunpack.c.l.b16 %v5913
    %v6241 = vunpack.c.l.b16 %v5914
    %v6242 = vunpack.c.l.b16 %v5915
    %v6243 = vunpack.c.l.b16 %v5916
    %v6244 = vunpack.c.l.b16 %v5917
    %v6245 = vunpack.c.l.b16 %v5918
    %v6246 = vunpack.c.l.b16 %v5919
    %v6247 = vunpack.c.l.b16 %v5920
    %v6248 = vunpack.c.l.b16 %v5921
    %v6249 = vunpack.c.l.b16 %v5922
    %v6250 = vunpack.c.l.b16 %v5923
    %v6251 = vunpack.c.l.b16 %v5924
    %v6252 = vunpack.c.l.b16 %v5925
    %v6253 = vunpack.c.l.b16 %v5926
    %v6254 = vunpack.c.l.b16 %v5927
    %v6255 = vunpack.c.l.b16 %v5928
    %v6256 = vunpack.c.l.b16 %v5929
    %v6257 = vunpack.c.l.b16 %v5930
    %v6258 = vunpack.c.l.b16 %v5931
    %v6259 = vunpack.c.l.b16 %v5932
    %v6260 = vunpack.c.l.b16 %v5933
    %v6261 = vunpack.c.l.b16 %v5934
    %v6262 = vunpack.c.l.b16 %v5935
    %v6263 = vunpack.c.l.b16 %v5936
    %v6264 = vunpack.c.l.b16 %v5937
    %v6265 = vunpack.c.l.b16 %v5938
    %v6266 = vunpack.c.l.b16 %v5939
    %v6267 = vunpack.c.l.b16 %v5940
    %v6268 = vunpack.c.l.b16 %v5941
    %v6269 = vunpack.c.l.b16 %v5942
    %v6270 = vunpack.c.l.b16 %v5943
    %v6271 = vunpack.c.l.b16 %v5944
    %v6272 = vunpack.c.l.b16 %v5945
    %v6273 = vunpack.c.l.b16 %v5946
    %v6274 = vunpack.c.l.b16 %v5947
    %v6275 = vunpack.c.l.b16 %v5948
    %v6276 = vunpack.c.l.b16 %v5949
    %v6277 = vunpack.c.l.b16 %v5950
    %v6278 = vunpack.c.l.b16 %v5951
    %v6279 = vunpack.c.l.b16 %v5952
    %v6280 = vunpack.c.l.b16 %v5953
    %v6281 = vunpack.c.l.b16 %v5954
    %v6282 = vunpack.c.l.b16 %v5955
    %v6283 = vunpack.c.l.b16 %v5956
    %v6284 = vunpack.c.l.b16 %v5957
    %v6285 = vunpack.c.l.b16 %v5958
    %v6286 = vunpack.c.l.b16 %v5959
    %v6287 = vunpack.c.l.b16 %v5960
    %v6288 = vunpack.c.l.b16 %v5961
    %v6289 = vunpack.c.l.b16 %v5962
    %v6290 = vunpack.c.l.b16 %v5963
    %v6291 = vunpack.c.l.b16 %v5964
    %v6292 = vunpack.c.l.b16 %v5965
    %v6293 = vunpack.c.l.b16 %v5966
    %v6294 = vunpack.c.l.b16 %v5967
    %v6295 = vunpack.c.l.b16 %v5968
    %v6296 = vunpack.c.l.b16 %v5969
    %v6297 = vunpack.c.l.b16 %v5970
    %v6298 = vunpack.c.l.b16 %v5971
    %v6299 = vunpack.c.l.b16 %v5972
    %v6300 = vpack.c.b16 %v6141, %v6140
    %v6301 = vpack.c.b16 %v6143, %v6142
    %v6302 = vpack.c.b16 %v6145, %v6144
    %v6303 = vpack.c.b16 %v6147, %v6146
    %v6304 = vpack.c.b16 %v6149, %v6148
    %v6305 = vpack.c.b16 %v6151, %v6150
    %v6306 = vpack.c.b16 %v6153, %v6152
    %v6307 = vpack.c.b16 %v6155, %v6154
    %v6308 = vpack.c.b16 %v6157, %v6156
    %v6309 = vpack.c.b16 %v6159, %v6158
    %v6310 = vpack.c.b16 %v6161, %v6160
    %v6311 = vpack.c.b16 %v6163, %v6162
    %v6312 = vpack.c.b16 %v6165, %v6164
    %v6313 = vpack.c.b16 %v6167, %v6166
    %v6314 = vpack.c.b16 %v6169, %v6168
    %v6315 = vpack.c.b16 %v6171, %v6170
    %v6316 = vpack.c.b16 %v6173, %v6172
    %v6317 = vpack.c.b16 %v6175, %v6174
    %v6318 = vpack.c.b16 %v6177, %v6176
    %v6319 = vpack.c.b16 %v6179, %v6178
    %v6320 = vpack.c.b16 %v6181, %v6180
    %v6321 = vpack.c.b16 %v6183, %v6182
    %v6322 = vpack.c.b16 %v6185, %v6184
    %v6323 = vpack.c.b16 %v6187, %v6186
    %v6324 = vpack.c.b16 %v6189, %v6188
    %v6325 = vpack.c.b16 %v6191, %v6190
    %v6326 = vpack.c.b16 %v6193, %v6192
    %v6327 = vpack.c.b16 %v6195, %v6194
    %v6328 = vpack.c.b16 %v6197, %v6196
    %v6329 = vpack.c.b16 %v6199, %v6198
    %v6330 = vpack.c.b16 %v6201, %v6200
    %v6331 = vpack.c.b16 %v6203, %v6202
    %v6332 = vpack.c.b16 %v6205, %v6204
    %v6333 = vpack.c.b16 %v6207, %v6206
    %v6334 = vpack.c.b16 %v6209, %v6208
    %v6335 = vpack.c.b16 %v6211, %v6210
    %v6336 = vpack.c.b16 %v6213, %v6212
    %v6337 = vpack.c.b16 %v6215, %v6214
    %v6338 = vpack.c.b16 %v6217, %v6216
    %v6339 = vpack.c.b16 %v6219, %v6218
    %v6340 = vpack.c.b16 %v6221, %v6220
    %v6341 = vpack.c.b16 %v6223, %v6222
    %v6342 = vpack.c.b16 %v6225, %v6224
    %v6343 = vpack.c.b16 %v6227, %v6226
    %v6344 = vpack.c.b16 %v6229, %v6228
    %v6345 = vpack.c.b16 %v6231, %v6230
    %v6346 = vpack.c.b16 %v6233, %v6232
    %v6347 = vpack.c.b16 %v6235, %v6234
    %v6348 = vpack.c.b16 %v6237, %v6236
    %v6349 = vpack.c.b16 %v6239, %v6238
    %v6350 = vpack.c.b16 %v6241, %v6240
    %v6351 = vpack.c.b16 %v6243, %v6242
    %v6352 = vpack.c.b16 %v6245, %v6244
    %v6353 = vpack.c.b16 %v6247, %v6246
    %v6354 = vpack.c.b16 %v6249, %v6248
    %v6355 = vpack.c.b16 %v6251, %v6250
    %v6356 = vpack.c.b16 %v6253, %v6252
    %v6357 = vpack.c.b16 %v6255, %v6254
    %v6358 = vpack.c.b16 %v6257, %v6256
    %v6359 = vpack.c.b16 %v6259, %v6258
    %v6360 = vpack.c.b16 %v6261, %v6260
    %v6361 = vpack.c.b16 %v6263, %v6262
    %v6362 = vpack.c.b16 %v6265, %v6264
    %v6363 = vpack.c.b16 %v6267, %v6266
    %v6364 = vpack.c.b16 %v6269, %v6268
    %v6365 = vpack.c.b16 %v6271, %v6270
    %v6366 = vpack.c.b16 %v6273, %v6272
    %v6367 = vpack.c.b16 %v6275, %v6274
    %v6368 = vpack.c.b16 %v6277, %v6276
    %v6369 = vpack.c.b16 %v6279, %v6278
    %v6370 = vpack.c.b16 %v6281, %v6280
    %v6371 = vpack.c.b16 %v6283, %v6282
    %v6372 = vpack.c.b16 %v6285, %v6284
    %v6373 = vpack.c.b16 %v6287, %v6286
    %v6374 = vpack.c.b16 %v6289, %v6288
    %v6375 = vpack.c.b16 %v6291, %v6290
    %v6376 = vpack.c.b16 %v6293, %v6292
    %v6377 = vpack.c.b16 %v6295, %v6294
    %v6378 = vpack.c.b16 %v6297, %v6296
    %v6379 = vpack.c.b16 %v6299, %v6298
    %6460 = vmatprep.subr.bf16.mxu0 0
    %6461 = vmatpush1.bf16.msra.mxu0 %v6300
    %6462 = vmatprep.subr.bf16.mxu0 0
    %6463 = vmatpush1.bf16.msra.mxu0 %v6301
    %6464 = vmatprep.subr.bf16.mxu0 0
    %6465 = vmatpush1.bf16.msra.mxu0 %v6302
    %6466 = vmatprep.subr.bf16.mxu0 0
    %6467 = vmatpush1.bf16.msra.mxu0 %v6303
    %6468 = vmatprep.subr.bf16.mxu0 0
    %6469 = vmatpush1.bf16.msra.mxu0 %v6304
    %6470 = vmatprep.subr.bf16.mxu0 0
    %6471 = vmatpush1.bf16.msra.mxu0 %v6305
    %6472 = vmatprep.subr.bf16.mxu0 0
    %6473 = vmatpush1.bf16.msra.mxu0 %v6306
    %6474 = vmatprep.subr.bf16.mxu0 0
    %6475 = vmatpush1.bf16.msra.mxu0 %v6307
    %6476 = vmatprep.subr.bf16.mxu0 0
    %6477 = vmatpush1.bf16.msra.mxu0 %v6308
    %6478 = vmatprep.subr.bf16.mxu0 0
    %6479 = vmatpush1.bf16.msra.mxu0 %v6309
    %6480 = vmatprep.subr.bf16.mxu0 0
    %6481 = vmatpush1.bf16.msra.mxu0 %v6310
    %6482 = vmatprep.subr.bf16.mxu0 0
    %6483 = vmatpush1.bf16.msra.mxu0 %v6311
    %6484 = vmatprep.subr.bf16.mxu0 0
    %6485 = vmatpush1.bf16.msra.mxu0 %v6312
    %6486 = vmatprep.subr.bf16.mxu0 0
    %6487 = vmatpush1.bf16.msra.mxu0 %v6313
    %6488 = vmatprep.subr.bf16.mxu0 0
    %6489 = vmatpush1.bf16.msra.mxu0 %v6314
    %6490 = vmatprep.subr.bf16.mxu0 0
    %6491 = vmatpush1.bf16.msra.mxu0 %v6315
    %6492 = vmatprep.mubr.bf16.mxu0 %v5804
    %6493 = vmatmul.mubr.bf16.gmra.mrb[0].mxu0 %v5803
    %v6494 = vpop.f32.mrb[0].mxu0
    %v6495 = vadd.f32 %v5978, %v6494
    %v6496 = vpop.f32.mrb[0].mxu0
    %v6497 = vpop.f32.mrb[0].mxu0
    %v6498 = vadd.f32 %v5978, %v6497
    %v6499 = vpop.f32.mrb[0].mxu0
    %6500 = vdwg.mxu0
    %6501 = vmatprep.subr.bf16.mxu0 0
    %6502 = vmatpush1.bf16.msra.mxu0 %v6316
    %6503 = vmatprep.subr.bf16.mxu0 0
    %6504 = vmatpush1.bf16.msra.mxu0 %v6317
    %6505 = vmatprep.subr.bf16.mxu0 0
    %6506 = vmatpush1.bf16.msra.mxu0 %v6318
    %6507 = vmatprep.subr.bf16.mxu0 0
    %6508 = vmatpush1.bf16.msra.mxu0 %v6319
    %6509 = vmatprep.subr.bf16.mxu0 0
    %6510 = vmatpush1.bf16.msra.mxu0 %v6320
    %6511 = vmatprep.subr.bf16.mxu0 0
    %6512 = vmatpush1.bf16.msra.mxu0 %v6321
    %6513 = vmatprep.subr.bf16.mxu0 0
    %6514 = vmatpush1.bf16.msra.mxu0 %v6322
    %6515 = vmatprep.subr.bf16.mxu0 0
    %6516 = vmatpush1.bf16.msra.mxu0 %v6323
    %6517 = vmatprep.subr.bf16.mxu0 0
    %6518 = vmatpush1.bf16.msra.mxu0 %v6324
    %6519 = vmatprep.subr.bf16.mxu0 0
    %6520 = vmatpush1.bf16.msra.mxu0 %v6325
    %6521 = vmatprep.subr.bf16.mxu0 0
    %6522 = vmatpush1.bf16.msra.mxu0 %v6326
    %6523 = vmatprep.subr.bf16.mxu0 0
    %6524 = vmatpush1.bf16.msra.mxu0 %v6327
    %6525 = vmatprep.subr.bf16.mxu0 0
    %6526 = vmatpush1.bf16.msra.mxu0 %v6328
    %6527 = vmatprep.subr.bf16.mxu0 0
    %6528 = vmatpush1.bf16.msra.mxu0 %v6329
    %6529 = vmatprep.subr.bf16.mxu0 0
    %6530 = vmatpush1.bf16.msra.mxu0 %v6330
    %6531 = vmatprep.subr.bf16.mxu0 0
    %6532 = vmatpush1.bf16.msra.mxu0 %v6331
    %6533 = vmatprep.mubr.bf16.mxu0 %v5806
    %6534 = vmatmul.mubr.bf16.gmra.mrb[0].mxu0 %v5805
    %v6535 = vpop.f32.mrb[0].mxu0
    %v6536 = vadd.f32 %v6495, %v6535
    %v6537 = vpop.f32.mrb[0].mxu0
    %v6538 = vpop.f32.mrb[0].mxu0
    %v6539 = vadd.f32 %v6498, %v6538
    %v6540 = vpop.f32.mrb[0].mxu0
    %6541 = vdwg.mxu0
    %6542 = vmatprep.subr.bf16.mxu0 0
    %6543 = vmatpush1.bf16.msra.mxu0 %v6332
    %6544 = vmatprep.subr.bf16.mxu0 0
    %6545 = vmatpush1.bf16.msra.mxu0 %v6333
    %6546 = vmatprep.subr.bf16.mxu0 0
    %6547 = vmatpush1.bf16.msra.mxu0 %v6334
    %6548 = vmatprep.subr.bf16.mxu0 0
    %6549 = vmatpush1.bf16.msra.mxu0 %v6335
    %6550 = vmatprep.subr.bf16.mxu0 0
    %6551 = vmatpush1.bf16.msra.mxu0 %v6336
    %6552 = vmatprep.subr.bf16.mxu0 0
    %6553 = vmatpush1.bf16.msra.mxu0 %v6337
    %6554 = vmatprep.subr.bf16.mxu0 0
    %6555 = vmatpush1.bf16.msra.mxu0 %v6338
    %6556 = vmatprep.subr.bf16.mxu0 0
    %6557 = vmatpush1.bf16.msra.mxu0 %v6339
    %6558 = vmatprep.subr.bf16.mxu0 0
    %6559 = vmatpush1.bf16.msra.mxu0 %v6340
    %6560 = vmatprep.subr.bf16.mxu0 0
    %6561 = vmatpush1.bf16.msra.mxu0 %v6341
    %6562 = vmatprep.subr.bf16.mxu0 0
    %6563 = vmatpush1.bf16.msra.mxu0 %v6342
    %6564 = vmatprep.subr.bf16.mxu0 0
    %6565 = vmatpush1.bf16.msra.mxu0 %v6343
    %6566 = vmatprep.subr.bf16.mxu0 0
    %6567 = vmatpush1.bf16.msra.mxu0 %v6344
    %6568 = vmatprep.subr.bf16.mxu0 0
    %6569 = vmatpush1.bf16.msra.mxu0 %v6345
    %6570 = vmatprep.subr.bf16.mxu0 0
    %6571 = vmatpush1.bf16.msra.mxu0 %v6346
    %6572 = vmatprep.subr.bf16.mxu0 0
    %6573 = vmatpush1.bf16.msra.mxu0 %v6347
    %6574 = vmatprep.mubr.bf16.mxu0 %v5808
    %6575 = vmatmul.mubr.bf16.gmra.mrb[0].mxu0 %v5807
    %v6576 = vpop.f32.mrb[0].mxu0
    %v6577 = vadd.f32 %v6536, %v6576
    %v6578 = vpop.f32.mrb[0].mxu0
    %v6579 = vpop.f32.mrb[0].mxu0
    %v6580 = vadd.f32 %v6539, %v6579
    %v6581 = vpop.f32.mrb[0].mxu0
    %6582 = vdwg.mxu0
    %6583 = vmatprep.subr.bf16.mxu0 0
    %6584 = vmatpush1.bf16.msra.mxu0 %v6348
    %6585 = vmatprep.subr.bf16.mxu0 0
    %6586 = vmatpush1.bf16.msra.mxu0 %v6349
    %6587 = vmatprep.subr.bf16.mxu0 0
    %6588 = vmatpush1.bf16.msra.mxu0 %v6350
    %6589 = vmatprep.subr.bf16.mxu0 0
    %6590 = vmatpush1.bf16.msra.mxu0 %v6351
    %6591 = vmatprep.subr.bf16.mxu0 0
    %6592 = vmatpush1.bf16.msra.mxu0 %v6352
    %6593 = vmatprep.subr.bf16.mxu0 0
    %6594 = vmatpush1.bf16.msra.mxu0 %v6353
    %6595 = vmatprep.subr.bf16.mxu0 0
    %6596 = vmatpush1.bf16.msra.mxu0 %v6354
    %6597 = vmatprep.subr.bf16.mxu0 0
    %6598 = vmatpush1.bf16.msra.mxu0 %v6355
    %6599 = vmatprep.subr.bf16.mxu0 0
    %6600 = vmatpush1.bf16.msra.mxu0 %v6356
    %6601 = vmatprep.subr.bf16.mxu0 0
    %6602 = vmatpush1.bf16.msra.mxu0 %v6357
    %6603 = vmatprep.subr.bf16.mxu0 0
    %6604 = vmatpush1.bf16.msra.mxu0 %v6358
    %6605 = vmatprep.subr.bf16.mxu0 0
    %6606 = vmatpush1.bf16.msra.mxu0 %v6359
    %6607 = vmatprep.subr.bf16.mxu0 0
    %6608 = vmatpush1.bf16.msra.mxu0 %v6360
    %6609 = vmatprep.subr.bf16.mxu0 0
    %6610 = vmatpush1.bf16.msra.mxu0 %v6361
    %6611 = vmatprep.subr.bf16.mxu0 0
    %6612 = vmatpush1.bf16.msra.mxu0 %v6362
    %6613 = vmatprep.subr.bf16.mxu0 0
    %6614 = vmatpush1.bf16.msra.mxu0 %v6363
    %6615 = vmatprep.mubr.bf16.mxu0 %v5810
    %6616 = vmatmul.mubr.bf16.gmra.mrb[0].mxu0 %v5809
    %v6617 = vpop.f32.mrb[0].mxu0
    %v6618 = vadd.f32 %v6577, %v6617
    %v6619 = vpop.f32.mrb[0].mxu0
    %v6620 = vpop.f32.mrb[0].mxu0
    %v6621 = vadd.f32 %v6580, %v6620
    %v6622 = vpop.f32.mrb[0].mxu0
    %6623 = vdwg.mxu0
    %6624 = vmatprep.subr.bf16.mxu0 0
    %6625 = vmatpush1.bf16.msra.mxu0 %v6364
    %6626 = vmatprep.subr.bf16.mxu0 0
    %6627 = vmatpush1.bf16.msra.mxu0 %v6365
    %6628 = vmatprep.subr.bf16.mxu0 0
    %6629 = vmatpush1.bf16.msra.mxu0 %v6366
    %6630 = vmatprep.subr.bf16.mxu0 0
    %6631 = vmatpush1.bf16.msra.mxu0 %v6367
    %6632 = vmatprep.subr.bf16.mxu0 0
    %6633 = vmatpush1.bf16.msra.mxu0 %v6368
    %6634 = vmatprep.subr.bf16.mxu0 0
    %6635 = vmatpush1.bf16.msra.mxu0 %v6369
    %6636 = vmatprep.subr.bf16.mxu0 0
    %6637 = vmatpush1.bf16.msra.mxu0 %v6370
    %6638 = vmatprep.subr.bf16.mxu0 0
    %6639 = vmatpush1.bf16.msra.mxu0 %v6371
    %6640 = vmatprep.subr.bf16.mxu0 0
    %6641 = vmatpush1.bf16.msra.mxu0 %v6372
    %6642 = vmatprep.subr.bf16.mxu0 0
    %6643 = vmatpush1.bf16.msra.mxu0 %v6373
    %6644 = vmatprep.subr.bf16.mxu0 0
    %6645 = vmatpush1.bf16.msra.mxu0 %v6374
    %6646 = vmatprep.subr.bf16.mxu0 0
    %6647 = vmatpush1.bf16.msra.mxu0 %v6375
    %6648 = vmatprep.subr.bf16.mxu0 0
    %6649 = vmatpush1.bf16.msra.mxu0 %v6376
    %6650 = vmatprep.subr.bf16.mxu0 0
    %6651 = vmatpush1.bf16.msra.mxu0 %v6377
    %6652 = vmatprep.subr.bf16.mxu0 0
    %6653 = vmatpush1.bf16.msra.mxu0 %v6378
    %6654 = vmatprep.subr.bf16.mxu0 0
    %6655 = vmatpush1.bf16.msra.mxu0 %v6379
    %6656 = vmatprep.mubr.bf16.mxu0 %v5812
    %6657 = vmatmul.mubr.bf16.gmra.mrb[0].mxu0 %v5811
    %v6658 = vpop.f32.mrb[0].mxu0
    %v6659 = vadd.f32 %v6618, %v6658
    %v6660 = vpop.f32.mrb[0].mxu0
    %v6661 = vpop.f32.mrb[0].mxu0
    %v6662 = vadd.f32 %v6621, %v6661
    %v6663 = vpop.f32.mrb[0].mxu0
    %6664 = vdwg.mxu0
    %v6665 = vmax.f32 %v6659, 0.0
    %v6666 = vmax.f32 %v6662, 0.0
    %v6667 = vpack.c.bf16 %v6666, %v6665
    %v6668 = vld [vmem:[#allocation17] sm:$0xf]
    %v6669 = vld [vmem:[#allocation17 + $0x4] sm:$0xf]
    %v6670 = vld [vmem:[#allocation17 + $0x8] sm:$0xf]
    %v6671 = vld [vmem:[#allocation17 + $0xc] sm:$0xf]
    %v6672 = vld [vmem:[#allocation17 + $0x10] sm:$0xf]
    %v6673 = vld [vmem:[#allocation17 + $0x14] sm:$0xf]
    %v6674 = vld [vmem:[#allocation17 + $0x18] sm:$0xf]
    %v6675 = vld [vmem:[#allocation17 + $0x1c] sm:$0xf]
    %v6676 = vld [vmem:[#allocation17 + $0x20] sm:$0xf]
    %v6677 = vld [vmem:[#allocation17 + $0x24] sm:$0xf]
    %v6678 = vld [vmem:[#allocation17 + $0x28] sm:$0xf]
    %v6679 = vld [vmem:[#allocation17 + $0x2c] sm:$0xf]
    %v6680 = vld [vmem:[#allocation17 + $0x30] sm:$0xf]
    %v6681 = vld [vmem:[#allocation17 + $0x34] sm:$0xf]
    %v6682 = vld [vmem:[#allocation17 + $0x38] sm:$0xf]
    %v6683 = vld [vmem:[#allocation17 + $0x3c] sm:$0xf]
    %v6684 = vld [vmem:[#allocation18] sm:$0x1]
    %v6686 = vlaneseq
    %v6687 = vshrl.u32 %v6686, 7
    %v6688 = vsub.s32 0, %v6687
    %v6689 = vrot.slane %v6684, %v6688
    %v6707 = vunpack.c.l.b16 %v6668
    %v6708 = vunpack.c.l.b16 %v6669
    %v6709 = vunpack.c.l.b16 %v6670
    %v6710 = vunpack.c.l.b16 %v6671
    %v6711 = vunpack.c.l.b16 %v6672
    %v6712 = vunpack.c.l.b16 %v6673
    %v6713 = vunpack.c.l.b16 %v6674
    %v6714 = vunpack.c.l.b16 %v6675
    %v6715 = vunpack.c.l.b16 %v6676
    %v6716 = vunpack.c.l.b16 %v6677
    %v6717 = vunpack.c.l.b16 %v6678
    %v6718 = vunpack.c.l.b16 %v6679
    %v6719 = vunpack.c.l.b16 %v6680
    %v6720 = vunpack.c.l.b16 %v6681
    %v6721 = vunpack.c.l.b16 %v6682
    %v6722 = vunpack.c.l.b16 %v6683
    %v6723 = vpack.c.b16 %v6708, %v6707
    %v6724 = vpack.c.b16 %v6710, %v6709
    %v6725 = vpack.c.b16 %v6712, %v6711
    %v6726 = vpack.c.b16 %v6714, %v6713
    %v6727 = vpack.c.b16 %v6716, %v6715
    %v6728 = vpack.c.b16 %v6718, %v6717
    %v6729 = vpack.c.b16 %v6720, %v6719
    %v6730 = vpack.c.b16 %v6722, %v6721
    %6739 = vmatprep.subr.bf16.mxu0 0
    %6740 = vmatpush1.bf16.msra.mxu0 %v6723
    %6741 = vmatprep.subr.bf16.mxu0 0
    %6742 = vmatpush1.bf16.msra.mxu0 %v6724
    %6743 = vmatprep.subr.bf16.mxu0 0
    %6744 = vmatpush1.bf16.msra.mxu0 %v6725
    %6745 = vmatprep.subr.bf16.mxu0 0
    %6746 = vmatpush1.bf16.msra.mxu0 %v6726
    %6747 = vmatprep.subr.bf16.mxu0 0
    %6748 = vmatpush1.bf16.msra.mxu0 %v6727
    %6749 = vmatprep.subr.bf16.mxu0 0
    %6750 = vmatpush1.bf16.msra.mxu0 %v6728
    %6751 = vmatprep.subr.bf16.mxu0 0
    %6752 = vmatpush1.bf16.msra.mxu0 %v6729
    %6753 = vmatprep.subr.bf16.mxu0 0
    %6754 = vmatpush1.bf16.msra.mxu0 %v6730
    %6755 = vmatprep.subr.bf16.mxu0 0
    %6756 = vmatpush1.bf16.msra.mxu0 0
    %6757 = vmatprep.subr.bf16.mxu0 0
    %6758 = vmatpush1.bf16.msra.mxu0 0
    %6759 = vmatprep.subr.bf16.mxu0 0
    %6760 = vmatpush1.bf16.msra.mxu0 0
    %6761 = vmatprep.subr.bf16.mxu0 0
    %6762 = vmatpush1.bf16.msra.mxu0 0
    %6763 = vmatprep.subr.bf16.mxu0 0
    %6764 = vmatpush1.bf16.msra.mxu0 0
    %6765 = vmatprep.subr.bf16.mxu0 0
    %6766 = vmatpush1.bf16.msra.mxu0 0
    %6767 = vmatprep.subr.bf16.mxu0 0
    %6768 = vmatpush1.bf16.msra.mxu0 0
    %6769 = vmatprep.subr.bf16.mxu0 0
    %6770 = vmatpush1.bf16.msra.mxu0 0
    %6771 = vmatprep.mubr.bf16.mxu0 0
    %6772 = vmatmul.mubr.bf16.gmra.mrb[0].mxu0 %v6667
    %v6773 = vpop.f32.mrb[0].mxu0
    %v6774 = vadd.f32 %v6689, %v6773
    %v6775 = vpop.f32.mrb[0].mxu0
    %v6776 = vpop.f32.mrb[0].mxu0
    %v6777 = vadd.f32 %v6689, %v6776
    %v6778 = vpop.f32.mrb[0].mxu0
    %6779 = vdwg.mxu0
    %v6780 = vmax.f32 %v6774, 0.0
    %v6781 = vmax.f32 %v6777, 0.0
    %v6782 = vpack.c.bf16 %v6781, %v6780
    %v6783 = vld [vmem:[#allocation20] sm:$0xf]
    %v6784 = vld [vmem:[#allocation20 + $0x4] sm:$0xf]
    %v6785 = vld [vmem:[#allocation20 + $0x8] sm:$0xf]
    %v6786 = vld [vmem:[#allocation20 + $0xc] sm:$0xf]
    %v6787 = vld [vmem:[#allocation20 + $0x10] sm:$0xf]
    %v6788 = vld [vmem:[#allocation20 + $0x14] sm:$0xf]
    %v6789 = vld [vmem:[#allocation20 + $0x18] sm:$0xf]
    %v6790 = vld [vmem:[#allocation20 + $0x1c] sm:$0xf]
    %v6791 = vld [vmem:[#allocation20 + $0x20] sm:$0xf]
    %v6792 = vld [vmem:[#allocation20 + $0x24] sm:$0xf]
    %v6793 = vld [vmem:[#allocation20 + $0x28] sm:$0xf]
    %v6794 = vld [vmem:[#allocation20 + $0x2c] sm:$0xf]
    %v6795 = vld [vmem:[#allocation20 + $0x30] sm:$0xf]
    %v6796 = vld [vmem:[#allocation20 + $0x34] sm:$0xf]
    %v6797 = vld [vmem:[#allocation20 + $0x38] sm:$0xf]
    %v6798 = vld [vmem:[#allocation20 + $0x3c] sm:$0xf]
    %v6799 = vld [vmem:[#allocation21] sm:$0x1]
    %v6801 = vlaneseq
    %v6802 = vshrl.u32 %v6801, 7
    %v6803 = vsub.s32 0, %v6802
    %v6804 = vrot.slane %v6799, %v6803
    %v6822 = vunpack.c.l.b16 %v6783
    %v6823 = vunpack.c.l.b16 %v6784
    %v6824 = vunpack.c.l.b16 %v6785
    %v6825 = vunpack.c.l.b16 %v6786
    %v6826 = vunpack.c.l.b16 %v6787
    %v6827 = vunpack.c.l.b16 %v6788
    %v6828 = vunpack.c.l.b16 %v6789
    %v6829 = vunpack.c.l.b16 %v6790
    %v6830 = vunpack.c.l.b16 %v6791
    %v6831 = vunpack.c.l.b16 %v6792
    %v6832 = vunpack.c.l.b16 %v6793
    %v6833 = vunpack.c.l.b16 %v6794
    %v6834 = vunpack.c.l.b16 %v6795
    %v6835 = vunpack.c.l.b16 %v6796
    %v6836 = vunpack.c.l.b16 %v6797
    %v6837 = vunpack.c.l.b16 %v6798
    %v6838 = vpack.c.b16 %v6823, %v6822
    %v6839 = vpack.c.b16 %v6825, %v6824
    %v6840 = vpack.c.b16 %v6827, %v6826
    %v6841 = vpack.c.b16 %v6829, %v6828
    %v6842 = vpack.c.b16 %v6831, %v6830
    %v6843 = vpack.c.b16 %v6833, %v6832
    %v6844 = vpack.c.b16 %v6835, %v6834
    %v6845 = vpack.c.b16 %v6837, %v6836
    %6854 = vmatprep.subr.bf16.mxu0 0
    %6855 = vmatpush1.bf16.msra.mxu0 %v6838
    %6856 = vmatprep.subr.bf16.mxu0 0
    %6857 = vmatpush1.bf16.msra.mxu0 %v6839
    %6858 = vmatprep.subr.bf16.mxu0 0
    %6859 = vmatpush1.bf16.msra.mxu0 %v6840
    %6860 = vmatprep.subr.bf16.mxu0 0
    %6861 = vmatpush1.bf16.msra.mxu0 %v6841
    %6862 = vmatprep.subr.bf16.mxu0 0
    %6863 = vmatpush1.bf16.msra.mxu0 %v6842
    %6864 = vmatprep.subr.bf16.mxu0 0
    %6865 = vmatpush1.bf16.msra.mxu0 %v6843
    %6866 = vmatprep.subr.bf16.mxu0 0
    %6867 = vmatpush1.bf16.msra.mxu0 %v6844
    %6868 = vmatprep.subr.bf16.mxu0 0
    %6869 = vmatpush1.bf16.msra.mxu0 %v6845
    %6870 = vmatprep.subr.bf16.mxu0 0
    %6871 = vmatpush1.bf16.msra.mxu0 0
    %6872 = vmatprep.subr.bf16.mxu0 0
    %6873 = vmatpush1.bf16.msra.mxu0 0
    %6874 = vmatprep.subr.bf16.mxu0 0
    %6875 = vmatpush1.bf16.msra.mxu0 0
    %6876 = vmatprep.subr.bf16.mxu0 0
    %6877 = vmatpush1.bf16.msra.mxu0 0
    %6878 = vmatprep.subr.bf16.mxu0 0
    %6879 = vmatpush1.bf16.msra.mxu0 0
    %6880 = vmatprep.subr.bf16.mxu0 0
    %6881 = vmatpush1.bf16.msra.mxu0 0
    %6882 = vmatprep.subr.bf16.mxu0 0
    %6883 = vmatpush1.bf16.msra.mxu0 0
    %6884 = vmatprep.subr.bf16.mxu0 0
    %6885 = vmatpush1.bf16.msra.mxu0 0
    %6886 = vmatprep.mubr.bf16.mxu0 0
    %6887 = vmatmul.mubr.bf16.gmra.mrb[0].mxu0 %v6782
    %v6888 = vpop.f32.mrb[0].mxu0
    %v6889 = vadd.f32 %v6804, %v6888
    %v6890 = vpop.f32.mrb[0].mxu0
    %v6891 = vpop.f32.mrb[0].mxu0
    %v6892 = vadd.f32 %v6804, %v6891
    %v6893 = vpop.f32.mrb[0].mxu0
    %6894 = vdwg.mxu0
    %6895 = vst [vmem:[#allocation23] sm:$0xff] %v6889
    %6896 = vst [vmem:[#allocation23 + $0x8] sm:$0xff] %v6892
    // Predicated region
    $region86: #{tpu_custom_call.1} parent=1 // pred_check
      _
    $region87: #{tpu_custom_call.1} parent=1 // pred_check_branch
      %6898 = sbr.rel (0) target = $region89
    $region88: #{tpu_custom_call.1} parent=1 // pred_region
      %s6900 = ssub.s32 256, 256
      %6901 = vsyncadd [#allocation8], %s6900
      %s6902 = sshll.u32 [#allocation23], 4
      %s6903 = int_to_ptr.vmem [resolvable:$true] %s6902
      %6908 = dma.vmem_to_hbm [thread:$0]  %s6903, 256, %s11, [#allocation8], 128, 128, 8
    $region89: #{tpu_custom_call.1} parent=1 // pred_fallthru
      _
    // Predicated region
    $region90: #{tpu_custom_call.1} parent=1 // pred_check
      _
    $region91: #{tpu_custom_call.1} parent=1 // pred_check_branch
      %6910 = sbr.rel (0) target = $region93
    $region92: #{tpu_custom_call.1} parent=1 // pred_region
      %6911 = dma.done [#allocation8], 256
    $region93: #{tpu_custom_call.1} parent=1 // pred_fallthru
      _
    %6912 = vsyncpa [#allocation7], 1
    %6913 = vsyncpa [#allocation10], 1
    %6914 = vsyncpa [#allocation13], 1
    %6915 = vsyncpa [#allocation16], 1
    %6916 = vsyncpa [#allocation19], 1
    %6917 = vsyncpa [#allocation22], 1
    %6918 = vsyncpa [#allocation8], 1

</llo_original>
